<compile_context>
chip_gen: v7x
topology: tpu7x:2x2x1
jax: 0.10.0
libtpu: 0.0.40
codegen_flags: <defaults>
</compile_context>

<pallas_src>
import functools

import numpy as np
import jax
import jax.numpy as jnp
from jax.experimental import pallas as pl
from jax.experimental.pallas import tpu as pltpu

HIDDEN1 = 200   # linear1 output size (nn.Linear(num_inputs, 200))
HIDDEN2 = 300   # LSTM hidden size   (nn.LSTM(200, 300, 1))
H2P = 384       # HIDDEN2 padded to a multiple of 128


def policy_kernel(x_ref, wf_ref, bf_ref, whh_ref, w2_ref, b2_ref,
                  out_ref, xproj_ref, *, T, BP):
    """Fused PolicyNetwork forward.

    x_ref    : [T*BP, D]      time-major, batch-padded input (f32)
    wf_ref   : [D, 4*H2P]     bf16  fused (linear1 @ W_ih), gate order (i, f, o, g)
    bf_ref   : [1, 4*H2P]     f32   fused bias (b1 @ W_ih + b_ih + b_hh)
    whh_ref  : [H2P, 4*H2P]   bf16  (gates i, f, o, g concatenated along last axis)
    w2_ref   : [H2P, AP]      bf16
    b2_ref   : [1, AP]        f32
    out_ref  : [BP, AP]       f32
    xproj_ref: [T*BP, 4*H2P]  f32 VMEM scratch (hoisted gate input projection)
    """
    h2 = whh_ref.shape[0]

    # ---- hoisted input-side projection: one MXU matmul for all T steps ----
    xproj_ref[...] = (
        jnp.dot(x_ref[...].astype(jnp.bfloat16), wf_ref[...],
                preferred_element_type=jnp.float32) + bf_ref[...])

    h = jnp.zeros((BP, h2), jnp.float32)
    c = jnp.zeros((BP, h2), jnp.float32)

    # ---- recurrence: only h @ Whh_cat left inside the (statically unrolled) loop ----
    for t in range(T):
        gates = xproj_ref[t * BP:(t + 1) * BP, :] + jnp.dot(
            h.astype(jnp.bfloat16), whh_ref[...],
            preferred_element_type=jnp.float32)            # [BP, 4*H2P], f32
        sig = jax.nn.sigmoid(gates[:, :3 * h2])            # i, f, o in one EUP slab
        i_g = sig[:, 0 * h2:1 * h2]
        f_g = sig[:, 1 * h2:2 * h2]
        o_g = sig[:, 2 * h2:3 * h2]
        g_g = jnp.tanh(gates[:, 3 * h2:4 * h2])
        c = f_g * c + i_g * g_g
        h = o_g * jnp.tanh(c)

    # h_n[-1] -> ReLU -> linear2 -> tanh
    relu_h = jnp.maximum(h, 0.0)
    out_ref[...] = jnp.tanh(
        jnp.dot(relu_h.astype(jnp.bfloat16), w2_ref[...],
                preferred_element_type=jnp.float32) + b2_ref[...])


def _pad_to(a, shape):
    return jnp.pad(a, [(0, s - d) for d, s in zip(a.shape, shape)])


def prepare_kernel_params(params):
    """Fuse, pad, concatenate and cast logical params into the kernel layout."""
    w1, b1, wih, whh, bih, bhh, w2, b2 = params
    D = w1.shape[0]
    A = w2.shape[1]
    AP = ((A + 127) // 128) * 128

    # Gate order in the concatenated lane axis: (i, f, o, g) so the sigmoid gates
    # form one contiguous slab and tanh the last slab.
    order = (0, 1, 3, 2)   # original PyTorch gate order is (i, f, g, o)

    wf_blocks, bf_blocks, whh_blocks = [], [], []
    for k in order:
        wk = w1 @ wih[k]                        # [D, H2]   f32 precompute (exact fold)
        bk = b1 @ wih[k] + bih[k] + bhh[k]      # [1, H2]
        wf_blocks.append(_pad_to(wk, (D, H2P)))
        bf_blocks.append(_pad_to(bk, (1, H2P)))
        whh_blocks.append(_pad_to(whh[k], (H2P, H2P)))

    wfused = jnp.concatenate(wf_blocks, axis=1).astype(jnp.bfloat16)   # [D, 4*H2P]
    bfused = jnp.concatenate(bf_blocks, axis=1).astype(jnp.float32)    # [1, 4*H2P]
    whh_p = jnp.concatenate(whh_blocks, axis=1).astype(jnp.bfloat16)   # [H2P, 4*H2P]
    w2p = _pad_to(w2, (H2P, AP)).astype(jnp.bfloat16)
    b2p = _pad_to(b2, (1, AP)).astype(jnp.float32)
    return (wfused, bfused, whh_p, w2p, b2p), AP


def policy_forward(state_btd, params):
    """state_btd: [B, T, num_inputs] -> actions [B, num_actions]."""
    B, T, D = state_btd.shape
    A = params[6].shape[1]
    (wfused, bfused, whh_p, w2p, b2p), AP = prepare_kernel_params(params)

    BP = max(8, ((B + 7) // 8) * 8)                        # pad batch to f32 sublane min
    x_tbd = jnp.transpose(state_btd, (1, 0, 2))            # time-major [T, B, D]
    x_tbd = jnp.pad(x_tbd, ((0, 0), (0, BP - B), (0, 0)))  # [T, BP, D]
    x_flat = x_tbd.reshape(T * BP, D).astype(jnp.float32)  # [T*BP, D]

    kernel = functools.partial(policy_kernel, T=T, BP=BP)

    def full_spec(a):
        nd = a.ndim
        return pl.BlockSpec(a.shape, lambda i, _nd=nd: (0,) * _nd)

    args = (x_flat, wfused, bfused, whh_p, w2p, b2p)
    out_padded = pl.pallas_call(
        kernel,
        out_shape=jax.ShapeDtypeStruct((BP, AP), jnp.float32),
        grid=(1,),
        in_specs=[full_spec(a) for a in args],
        out_specs=pl.BlockSpec((BP, AP), lambda i: (0, 0)),
        scratch_shapes=[pltpu.VMEM((T * BP, 4 * H2P), jnp.float32)],
        compiler_params=pltpu.CompilerParams(
            dimension_semantics=("arbitrary",)),
        # TODO(synk): if the effective batch grows large (B >~ 256), add a leading
        # "parallel" grid axis over batch so v7x's two TensorCores split the work.
    )(*args)
    return out_padded[:B, :A]


def init_params(key, num_inputs, num_actions, init_w=0.003):
    """Deterministic parameter init matching the PyTorch module's shapes."""
    ks = jax.random.split(key, 8)
    u = lambda k, shape, s: jax.random.uniform(k, shape, jnp.float32, -s, s)

    k1 = 1.0 / np.sqrt(num_inputs)       # nn.Linear default init scale
    kr = 1.0 / np.sqrt(HIDDEN2)          # nn.LSTM default init scale

    w1 = u(ks[0], (num_inputs, HIDDEN1), k1)          # linear1.weight (transposed)
    b1 = u(ks[1], (1, HIDDEN1), k1)                   # linear1.bias
    wih = u(ks[2], (4, HIDDEN1, HIDDEN2), kr)         # weight_ih_l0, gates (i,f,g,o)
    whh = u(ks[3], (4, HIDDEN2, HIDDEN2), kr)         # weight_hh_l0
    bih = u(ks[4], (4, 1, HIDDEN2), kr)               # bias_ih_l0
    bhh = u(ks[5], (4, 1, HIDDEN2), kr)               # bias_hh_l0
    w2 = u(ks[6], (HIDDEN2, num_actions), init_w)     # linear2.weight.uniform_(-init_w, init_w)
    b2 = u(ks[7], (1, num_actions), init_w)           # linear2.bias.uniform_(-init_w, init_w)
    return (w1, b1, wih, whh, bih, bhh, w2, b2)


def policy_reference(state_btd, params):
    """Pure-JAX f32 reference of the module math (for correctness check)."""
    w1, b1, wih, whh, bih, bhh, w2, b2 = params
    B, T, _ = state_btd.shape
    ob = state_btd @ w1 + b1[0]                       # (B, T, 200)
    h = jnp.zeros((B, HIDDEN2), jnp.float32)
    c = jnp.zeros((B, HIDDEN2), jnp.float32)
    for t in range(T):
        xt = ob[:, t, :]
        g = [xt @ wih[k] + h @ whh[k] + bih[k, 0] + bhh[k, 0] for k in range(4)]
        i_g = jax.nn.sigmoid(g[0])
        f_g = jax.nn.sigmoid(g[1])
        g_g = jnp.tanh(g[2])
        o_g = jax.nn.sigmoid(g[3])
        c = f_g * c + i_g * g_g
        h = o_g * jnp.tanh(c)
    return jnp.tanh(jnp.maximum(h, 0.0) @ w2 + b2[0])


if __name__ == "__main__":
    B, T, NUM_INPUTS, NUM_ACTIONS = 4, 8, 16, 4   # state_length = 8 timesteps

    key = jax.random.PRNGKey(0)
    k_x, k_p = jax.random.split(key)
    state = jax.random.normal(k_x, (B, T, NUM_INPUTS), jnp.float32)
    params = init_params(k_p, NUM_INPUTS, NUM_ACTIONS)

    out = jax.block_until_ready(policy_forward(state, params))
    ref = jax.block_until_ready(policy_reference(state, params))

    assert out.shape == (B, NUM_ACTIONS), out.shape
    # bf16 matmuls (f32 accumulation) in the kernel -> loosened tolerance vs f32 ref.
    np.testing.assert_allclose(np.asarray(out), np.asarray(ref), rtol=5e-2, atol=5e-3)
    print("KERNEL_OK")
</pallas_src>

<mosaic_0001>
module attributes {stable_mosaic.version = 11 : i64} {
  func.func @policy_kernel(%arg0: i32, %arg1: memref<64x16xf32, #tpu.memory_space<vmem>>, %arg2: memref<16x1536xbf16, #tpu.memory_space<vmem>>, %arg3: memref<1x1536xf32, #tpu.memory_space<vmem>>, %arg4: memref<384x1536xbf16, #tpu.memory_space<vmem>>, %arg5: memref<384x128xbf16, #tpu.memory_space<vmem>>, %arg6: memref<1x128xf32, #tpu.memory_space<vmem>>, %arg7: memref<8x128xf32, #tpu.memory_space<vmem>>, %arg8: memref<64x1536xf32, #tpu.memory_space<vmem>>) attributes {dimension_semantics = [#tpu.dimension_semantics<arbitrary>], iteration_bounds = array<i64: 1>, scalar_prefetch = 0 : i64, scratch_operands = 1 : i64, tpu.core_type = #tpu.core_type<tc>, window_params = [{pipeline_mode = #tpu.pipeline_mode<synchronous>, transform_indices = @transform_0, window_bounds = array<i64: 64, 16>}, {pipeline_mode = #tpu.pipeline_mode<synchronous>, transform_indices = @transform_1, window_bounds = array<i64: 16, 1536>}, {pipeline_mode = #tpu.pipeline_mode<synchronous>, transform_indices = @transform_2, window_bounds = array<i64: 1, 1536>}, {pipeline_mode = #tpu.pipeline_mode<synchronous>, transform_indices = @transform_3, window_bounds = array<i64: 384, 1536>}, {pipeline_mode = #tpu.pipeline_mode<synchronous>, transform_indices = @transform_4, window_bounds = array<i64: 384, 128>}, {pipeline_mode = #tpu.pipeline_mode<synchronous>, transform_indices = @transform_5, window_bounds = array<i64: 1, 128>}, {pipeline_mode = #tpu.pipeline_mode<synchronous>, transform_indices = @transform_6, window_bounds = array<i64: 8, 128>}]} {
    %c0 = arith.constant 0 : index
    %c0_0 = arith.constant 0 : index
    %0 = vector.load %arg1[%c0, %c0_0] : memref<64x16xf32, #tpu.memory_space<vmem>>, vector<64x16xf32>
    %1 = arith.truncf %0 : vector<64x16xf32> to vector<64x16xbf16>
    %c0_1 = arith.constant 0 : index
    %c0_2 = arith.constant 0 : index
    %2 = vector.load %arg2[%c0_1, %c0_2] : memref<16x1536xbf16, #tpu.memory_space<vmem>>, vector<16x1536xbf16>
    %cst = arith.constant dense<0.000000e+00> : vector<64x1536xf32>
    %3 = tpu.matmul %1, %2, %cst {dimension_numbers = #tpu.dot_dimension_numbers<[1], [0], [0], [1], [0, 0, 1, 1], [], []>} : vector<64x16xbf16>, vector<16x1536xbf16>, vector<64x1536xf32> -> vector<64x1536xf32>
    %c0_3 = arith.constant 0 : index
    %c0_4 = arith.constant 0 : index
    %4 = vector.load %arg3[%c0_3, %c0_4] : memref<1x1536xf32, #tpu.memory_space<vmem>>, vector<1x1536xf32>
    %5 = vector.broadcast %4 : vector<1x1536xf32> to vector<64x1536xf32>
    %6 = arith.addf %3, %5 : vector<64x1536xf32>
    %c0_5 = arith.constant 0 : index
    %c0_6 = arith.constant 0 : index
    %7 = vector.load %arg8[%c0_5, %c0_6] : memref<64x1536xf32, #tpu.memory_space<vmem>>, vector<64x1536xf32>
    tpu.vector_store %arg8[%c0_5, %c0_6], %6 {strides = array<i32>} : memref<64x1536xf32, #tpu.memory_space<vmem>>, vector<64x1536xf32>,
    %cst_7 = arith.constant 0.000000e+00 : f32
    %8 = vector.broadcast %cst_7 : f32 to vector<8x384xf32>
    %cst_8 = arith.constant 0.000000e+00 : f32
    %9 = vector.broadcast %cst_8 : f32 to vector<8x384xf32>
    %c0_9 = arith.constant 0 : index
    %c0_10 = arith.constant 0 : index
    %10 = vector.load %arg8[%c0_9, %c0_10] : memref<64x1536xf32, #tpu.memory_space<vmem>>, vector<8x1536xf32>
    %11 = arith.truncf %8 : vector<8x384xf32> to vector<8x384xbf16>
    %c0_11 = arith.constant 0 : index
    %c0_12 = arith.constant 0 : index
    %12 = vector.load %arg4[%c0_11, %c0_12] : memref<384x1536xbf16, #tpu.memory_space<vmem>>, vector<384x1536xbf16>
    %cst_13 = arith.constant dense<0.000000e+00> : vector<8x1536xf32>
    %13 = tpu.matmul %11, %12, %cst_13 {dimension_numbers = #tpu.dot_dimension_numbers<[1], [0], [0], [1], [0, 0, 1, 1], [], []>} : vector<8x384xbf16>, vector<384x1536xbf16>, vector<8x1536xf32> -> vector<8x1536xf32>
    %14 = arith.addf %10, %13 : vector<8x1536xf32>
    %15 = vector.extract_strided_slice %14 {offsets = [0, 0], sizes = [8, 1152], strides = [1, 1]} : vector<8x1536xf32> to vector<8x1152xf32>
    %16 = arith.negf %15 : vector<8x1152xf32>
    %17 = math.exp %16 : vector<8x1152xf32>
    %cst_14 = arith.constant 1.000000e+00 : f32
    %18 = vector.broadcast %cst_14 : f32 to vector<8x1152xf32>
    %19 = arith.addf %18, %17 : vector<8x1152xf32>
    %20 = arith.divf %18, %19 : vector<8x1152xf32>
    %21 = vector.extract_strided_slice %20 {offsets = [0, 0], sizes = [8, 384], strides = [1, 1]} : vector<8x1152xf32> to vector<8x384xf32>
    %22 = vector.extract_strided_slice %20 {offsets = [0, 384], sizes = [8, 384], strides = [1, 1]} : vector<8x1152xf32> to vector<8x384xf32>
    %23 = vector.extract_strided_slice %20 {offsets = [0, 768], sizes = [8, 384], strides = [1, 1]} : vector<8x1152xf32> to vector<8x384xf32>
    %24 = vector.extract_strided_slice %14 {offsets = [0, 1152], sizes = [8, 384], strides = [1, 1]} : vector<8x1536xf32> to vector<8x384xf32>
    %25 = math.tanh %24 : vector<8x384xf32>
    %26 = arith.mulf %22, %9 : vector<8x384xf32>
    %27 = arith.mulf %21, %25 : vector<8x384xf32>
    %28 = arith.addf %26, %27 : vector<8x384xf32>
    %29 = math.tanh %28 : vector<8x384xf32>
    %30 = arith.mulf %23, %29 : vector<8x384xf32>
    %c8 = arith.constant 8 : index
    %c0_15 = arith.constant 0 : index
    %31 = vector.load %arg8[%c8, %c0_15] : memref<64x1536xf32, #tpu.memory_space<vmem>>, vector<8x1536xf32>
    %32 = arith.truncf %30 : vector<8x384xf32> to vector<8x384xbf16>
    %c0_16 = arith.constant 0 : index
    %c0_17 = arith.constant 0 : index
    %33 = vector.load %arg4[%c0_16, %c0_17] : memref<384x1536xbf16, #tpu.memory_space<vmem>>, vector<384x1536xbf16>
    %cst_18 = arith.constant dense<0.000000e+00> : vector<8x1536xf32>
    %34 = tpu.matmul %32, %33, %cst_18 {dimension_numbers = #tpu.dot_dimension_numbers<[1], [0], [0], [1], [0, 0, 1, 1], [], []>} : vector<8x384xbf16>, vector<384x1536xbf16>, vector<8x1536xf32> -> vector<8x1536xf32>
    %35 = arith.addf %31, %34 : vector<8x1536xf32>
    %36 = vector.extract_strided_slice %35 {offsets = [0, 0], sizes = [8, 1152], strides = [1, 1]} : vector<8x1536xf32> to vector<8x1152xf32>
    %37 = arith.negf %36 : vector<8x1152xf32>
    %38 = math.exp %37 : vector<8x1152xf32>
    %cst_19 = arith.constant 1.000000e+00 : f32
    %39 = vector.broadcast %cst_19 : f32 to vector<8x1152xf32>
    %40 = arith.addf %39, %38 : vector<8x1152xf32>
    %41 = arith.divf %39, %40 : vector<8x1152xf32>
    %42 = vector.extract_strided_slice %41 {offsets = [0, 0], sizes = [8, 384], strides = [1, 1]} : vector<8x1152xf32> to vector<8x384xf32>
    %43 = vector.extract_strided_slice %41 {offsets = [0, 384], sizes = [8, 384], strides = [1, 1]} : vector<8x1152xf32> to vector<8x384xf32>
    %44 = vector.extract_strided_slice %41 {offsets = [0, 768], sizes = [8, 384], strides = [1, 1]} : vector<8x1152xf32> to vector<8x384xf32>
    %45 = vector.extract_strided_slice %35 {offsets = [0, 1152], sizes = [8, 384], strides = [1, 1]} : vector<8x1536xf32> to vector<8x384xf32>
    %46 = math.tanh %45 : vector<8x384xf32>
    %47 = arith.mulf %43, %28 : vector<8x384xf32>
    %48 = arith.mulf %42, %46 : vector<8x384xf32>
    %49 = arith.addf %47, %48 : vector<8x384xf32>
    %50 = math.tanh %49 : vector<8x384xf32>
    %51 = arith.mulf %44, %50 : vector<8x384xf32>
    %c16 = arith.constant 16 : index
    %c0_20 = arith.constant 0 : index
    %52 = vector.load %arg8[%c16, %c0_20] : memref<64x1536xf32, #tpu.memory_space<vmem>>, vector<8x1536xf32>
    %53 = arith.truncf %51 : vector<8x384xf32> to vector<8x384xbf16>
    %c0_21 = arith.constant 0 : index
    %c0_22 = arith.constant 0 : index
    %54 = vector.load %arg4[%c0_21, %c0_22] : memref<384x1536xbf16, #tpu.memory_space<vmem>>, vector<384x1536xbf16>
    %cst_23 = arith.constant dense<0.000000e+00> : vector<8x1536xf32>
    %55 = tpu.matmul %53, %54, %cst_23 {dimension_numbers = #tpu.dot_dimension_numbers<[1], [0], [0], [1], [0, 0, 1, 1], [], []>} : vector<8x384xbf16>, vector<384x1536xbf16>, vector<8x1536xf32> -> vector<8x1536xf32>
    %56 = arith.addf %52, %55 : vector<8x1536xf32>
    %57 = vector.extract_strided_slice %56 {offsets = [0, 0], sizes = [8, 1152], strides = [1, 1]} : vector<8x1536xf32> to vector<8x1152xf32>
    %58 = arith.negf %57 : vector<8x1152xf32>
    %59 = math.exp %58 : vector<8x1152xf32>
    %cst_24 = arith.constant 1.000000e+00 : f32
    %60 = vector.broadcast %cst_24 : f32 to vector<8x1152xf32>
    %61 = arith.addf %60, %59 : vector<8x1152xf32>
    %62 = arith.divf %60, %61 : vector<8x1152xf32>
    %63 = vector.extract_strided_slice %62 {offsets = [0, 0], sizes = [8, 384], strides = [1, 1]} : vector<8x1152xf32> to vector<8x384xf32>
    %64 = vector.extract_strided_slice %62 {offsets = [0, 384], sizes = [8, 384], strides = [1, 1]} : vector<8x1152xf32> to vector<8x384xf32>
    %65 = vector.extract_strided_slice %62 {offsets = [0, 768], sizes = [8, 384], strides = [1, 1]} : vector<8x1152xf32> to vector<8x384xf32>
    %66 = vector.extract_strided_slice %56 {offsets = [0, 1152], sizes = [8, 384], strides = [1, 1]} : vector<8x1536xf32> to vector<8x384xf32>
    %67 = math.tanh %66 : vector<8x384xf32>
    %68 = arith.mulf %64, %49 : vector<8x384xf32>
    %69 = arith.mulf %63, %67 : vector<8x384xf32>
    %70 = arith.addf %68, %69 : vector<8x384xf32>
    %71 = math.tanh %70 : vector<8x384xf32>
    %72 = arith.mulf %65, %71 : vector<8x384xf32>
    %c24 = arith.constant 24 : index
    %c0_25 = arith.constant 0 : index
    %73 = vector.load %arg8[%c24, %c0_25] : memref<64x1536xf32, #tpu.memory_space<vmem>>, vector<8x1536xf32>
    %74 = arith.truncf %72 : vector<8x384xf32> to vector<8x384xbf16>
    %c0_26 = arith.constant 0 : index
    %c0_27 = arith.constant 0 : index
    %75 = vector.load %arg4[%c0_26, %c0_27] : memref<384x1536xbf16, #tpu.memory_space<vmem>>, vector<384x1536xbf16>
    %cst_28 = arith.constant dense<0.000000e+00> : vector<8x1536xf32>
    %76 = tpu.matmul %74, %75, %cst_28 {dimension_numbers = #tpu.dot_dimension_numbers<[1], [0], [0], [1], [0, 0, 1, 1], [], []>} : vector<8x384xbf16>, vector<384x1536xbf16>, vector<8x1536xf32> -> vector<8x1536xf32>
    %77 = arith.addf %73, %76 : vector<8x1536xf32>
    %78 = vector.extract_strided_slice %77 {offsets = [0, 0], sizes = [8, 1152], strides = [1, 1]} : vector<8x1536xf32> to vector<8x1152xf32>
    %79 = arith.negf %78 : vector<8x1152xf32>
    %80 = math.exp %79 : vector<8x1152xf32>
    %cst_29 = arith.constant 1.000000e+00 : f32
    %81 = vector.broadcast %cst_29 : f32 to vector<8x1152xf32>
    %82 = arith.addf %81, %80 : vector<8x1152xf32>
    %83 = arith.divf %81, %82 : vector<8x1152xf32>
    %84 = vector.extract_strided_slice %83 {offsets = [0, 0], sizes = [8, 384], strides = [1, 1]} : vector<8x1152xf32> to vector<8x384xf32>
    %85 = vector.extract_strided_slice %83 {offsets = [0, 384], sizes = [8, 384], strides = [1, 1]} : vector<8x1152xf32> to vector<8x384xf32>
    %86 = vector.extract_strided_slice %83 {offsets = [0, 768], sizes = [8, 384], strides = [1, 1]} : vector<8x1152xf32> to vector<8x384xf32>
    %87 = vector.extract_strided_slice %77 {offsets = [0, 1152], sizes = [8, 384], strides = [1, 1]} : vector<8x1536xf32> to vector<8x384xf32>
    %88 = math.tanh %87 : vector<8x384xf32>
    %89 = arith.mulf %85, %70 : vector<8x384xf32>
    %90 = arith.mulf %84, %88 : vector<8x384xf32>
    %91 = arith.addf %89, %90 : vector<8x384xf32>
    %92 = math.tanh %91 : vector<8x384xf32>
    %93 = arith.mulf %86, %92 : vector<8x384xf32>
    %c32 = arith.constant 32 : index
    %c0_30 = arith.constant 0 : index
    %94 = vector.load %arg8[%c32, %c0_30] : memref<64x1536xf32, #tpu.memory_space<vmem>>, vector<8x1536xf32>
    %95 = arith.truncf %93 : vector<8x384xf32> to vector<8x384xbf16>
    %c0_31 = arith.constant 0 : index
    %c0_32 = arith.constant 0 : index
    %96 = vector.load %arg4[%c0_31, %c0_32] : memref<384x1536xbf16, #tpu.memory_space<vmem>>, vector<384x1536xbf16>
    %cst_33 = arith.constant dense<0.000000e+00> : vector<8x1536xf32>
    %97 = tpu.matmul %95, %96, %cst_33 {dimension_numbers = #tpu.dot_dimension_numbers<[1], [0], [0], [1], [0, 0, 1, 1], [], []>} : vector<8x384xbf16>, vector<384x1536xbf16>, vector<8x1536xf32> -> vector<8x1536xf32>
    %98 = arith.addf %94, %97 : vector<8x1536xf32>
    %99 = vector.extract_strided_slice %98 {offsets = [0, 0], sizes = [8, 1152], strides = [1, 1]} : vector<8x1536xf32> to vector<8x1152xf32>
    %100 = arith.negf %99 : vector<8x1152xf32>
    %101 = math.exp %100 : vector<8x1152xf32>
    %cst_34 = arith.constant 1.000000e+00 : f32
    %102 = vector.broadcast %cst_34 : f32 to vector<8x1152xf32>
    %103 = arith.addf %102, %101 : vector<8x1152xf32>
    %104 = arith.divf %102, %103 : vector<8x1152xf32>
    %105 = vector.extract_strided_slice %104 {offsets = [0, 0], sizes = [8, 384], strides = [1, 1]} : vector<8x1152xf32> to vector<8x384xf32>
    %106 = vector.extract_strided_slice %104 {offsets = [0, 384], sizes = [8, 384], strides = [1, 1]} : vector<8x1152xf32> to vector<8x384xf32>
    %107 = vector.extract_strided_slice %104 {offsets = [0, 768], sizes = [8, 384], strides = [1, 1]} : vector<8x1152xf32> to vector<8x384xf32>
    %108 = vector.extract_strided_slice %98 {offsets = [0, 1152], sizes = [8, 384], strides = [1, 1]} : vector<8x1536xf32> to vector<8x384xf32>
    %109 = math.tanh %108 : vector<8x384xf32>
    %110 = arith.mulf %106, %91 : vector<8x384xf32>
    %111 = arith.mulf %105, %109 : vector<8x384xf32>
    %112 = arith.addf %110, %111 : vector<8x384xf32>
    %113 = math.tanh %112 : vector<8x384xf32>
    %114 = arith.mulf %107, %113 : vector<8x384xf32>
    %c40 = arith.constant 40 : index
    %c0_35 = arith.constant 0 : index
    %115 = vector.load %arg8[%c40, %c0_35] : memref<64x1536xf32, #tpu.memory_space<vmem>>, vector<8x1536xf32>
    %116 = arith.truncf %114 : vector<8x384xf32> to vector<8x384xbf16>
    %c0_36 = arith.constant 0 : index
    %c0_37 = arith.constant 0 : index
    %117 = vector.load %arg4[%c0_36, %c0_37] : memref<384x1536xbf16, #tpu.memory_space<vmem>>, vector<384x1536xbf16>
    %cst_38 = arith.constant dense<0.000000e+00> : vector<8x1536xf32>
    %118 = tpu.matmul %116, %117, %cst_38 {dimension_numbers = #tpu.dot_dimension_numbers<[1], [0], [0], [1], [0, 0, 1, 1], [], []>} : vector<8x384xbf16>, vector<384x1536xbf16>, vector<8x1536xf32> -> vector<8x1536xf32>
    %119 = arith.addf %115, %118 : vector<8x1536xf32>
    %120 = vector.extract_strided_slice %119 {offsets = [0, 0], sizes = [8, 1152], strides = [1, 1]} : vector<8x1536xf32> to vector<8x1152xf32>
    %121 = arith.negf %120 : vector<8x1152xf32>
    %122 = math.exp %121 : vector<8x1152xf32>
    %cst_39 = arith.constant 1.000000e+00 : f32
    %123 = vector.broadcast %cst_39 : f32 to vector<8x1152xf32>
    %124 = arith.addf %123, %122 : vector<8x1152xf32>
    %125 = arith.divf %123, %124 : vector<8x1152xf32>
    %126 = vector.extract_strided_slice %125 {offsets = [0, 0], sizes = [8, 384], strides = [1, 1]} : vector<8x1152xf32> to vector<8x384xf32>
    %127 = vector.extract_strided_slice %125 {offsets = [0, 384], sizes = [8, 384], strides = [1, 1]} : vector<8x1152xf32> to vector<8x384xf32>
    %128 = vector.extract_strided_slice %125 {offsets = [0, 768], sizes = [8, 384], strides = [1, 1]} : vector<8x1152xf32> to vector<8x384xf32>
    %129 = vector.extract_strided_slice %119 {offsets = [0, 1152], sizes = [8, 384], strides = [1, 1]} : vector<8x1536xf32> to vector<8x384xf32>
    %130 = math.tanh %129 : vector<8x384xf32>
    %131 = arith.mulf %127, %112 : vector<8x384xf32>
    %132 = arith.mulf %126, %130 : vector<8x384xf32>
    %133 = arith.addf %131, %132 : vector<8x384xf32>
    %134 = math.tanh %133 : vector<8x384xf32>
    %135 = arith.mulf %128, %134 : vector<8x384xf32>
    %c48 = arith.constant 48 : index
    %c0_40 = arith.constant 0 : index
    %136 = vector.load %arg8[%c48, %c0_40] : memref<64x1536xf32, #tpu.memory_space<vmem>>, vector<8x1536xf32>
    %137 = arith.truncf %135 : vector<8x384xf32> to vector<8x384xbf16>
    %c0_41 = arith.constant 0 : index
    %c0_42 = arith.constant 0 : index
    %138 = vector.load %arg4[%c0_41, %c0_42] : memref<384x1536xbf16, #tpu.memory_space<vmem>>, vector<384x1536xbf16>
    %cst_43 = arith.constant dense<0.000000e+00> : vector<8x1536xf32>
    %139 = tpu.matmul %137, %138, %cst_43 {dimension_numbers = #tpu.dot_dimension_numbers<[1], [0], [0], [1], [0, 0, 1, 1], [], []>} : vector<8x384xbf16>, vector<384x1536xbf16>, vector<8x1536xf32> -> vector<8x1536xf32>
    %140 = arith.addf %136, %139 : vector<8x1536xf32>
    %141 = vector.extract_strided_slice %140 {offsets = [0, 0], sizes = [8, 1152], strides = [1, 1]} : vector<8x1536xf32> to vector<8x1152xf32>
    %142 = arith.negf %141 : vector<8x1152xf32>
    %143 = math.exp %142 : vector<8x1152xf32>
    %cst_44 = arith.constant 1.000000e+00 : f32
    %144 = vector.broadcast %cst_44 : f32 to vector<8x1152xf32>
    %145 = arith.addf %144, %143 : vector<8x1152xf32>
    %146 = arith.divf %144, %145 : vector<8x1152xf32>
    %147 = vector.extract_strided_slice %146 {offsets = [0, 0], sizes = [8, 384], strides = [1, 1]} : vector<8x1152xf32> to vector<8x384xf32>
    %148 = vector.extract_strided_slice %146 {offsets = [0, 384], sizes = [8, 384], strides = [1, 1]} : vector<8x1152xf32> to vector<8x384xf32>
    %149 = vector.extract_strided_slice %146 {offsets = [0, 768], sizes = [8, 384], strides = [1, 1]} : vector<8x1152xf32> to vector<8x384xf32>
    %150 = vector.extract_strided_slice %140 {offsets = [0, 1152], sizes = [8, 384], strides = [1, 1]} : vector<8x1536xf32> to vector<8x384xf32>
    %151 = math.tanh %150 : vector<8x384xf32>
    %152 = arith.mulf %148, %133 : vector<8x384xf32>
    %153 = arith.mulf %147, %151 : vector<8x384xf32>
    %154 = arith.addf %152, %153 : vector<8x384xf32>
    %155 = math.tanh %154 : vector<8x384xf32>
    %156 = arith.mulf %149, %155 : vector<8x384xf32>
    %c56 = arith.constant 56 : index
    %c0_45 = arith.constant 0 : index
    %157 = vector.load %arg8[%c56, %c0_45] : memref<64x1536xf32, #tpu.memory_space<vmem>>, vector<8x1536xf32>
    %158 = arith.truncf %156 : vector<8x384xf32> to vector<8x384xbf16>
    %c0_46 = arith.constant 0 : index
    %c0_47 = arith.constant 0 : index
    %159 = vector.load %arg4[%c0_46, %c0_47] : memref<384x1536xbf16, #tpu.memory_space<vmem>>, vector<384x1536xbf16>
    %cst_48 = arith.constant dense<0.000000e+00> : vector<8x1536xf32>
    %160 = tpu.matmul %158, %159, %cst_48 {dimension_numbers = #tpu.dot_dimension_numbers<[1], [0], [0], [1], [0, 0, 1, 1], [], []>} : vector<8x384xbf16>, vector<384x1536xbf16>, vector<8x1536xf32> -> vector<8x1536xf32>
    %161 = arith.addf %157, %160 : vector<8x1536xf32>
    %162 = vector.extract_strided_slice %161 {offsets = [0, 0], sizes = [8, 1152], strides = [1, 1]} : vector<8x1536xf32> to vector<8x1152xf32>
    %163 = arith.negf %162 : vector<8x1152xf32>
    %164 = math.exp %163 : vector<8x1152xf32>
    %cst_49 = arith.constant 1.000000e+00 : f32
    %165 = vector.broadcast %cst_49 : f32 to vector<8x1152xf32>
    %166 = arith.addf %165, %164 : vector<8x1152xf32>
    %167 = arith.divf %165, %166 : vector<8x1152xf32>
    %168 = vector.extract_strided_slice %167 {offsets = [0, 0], sizes = [8, 384], strides = [1, 1]} : vector<8x1152xf32> to vector<8x384xf32>
    %169 = vector.extract_strided_slice %167 {offsets = [0, 384], sizes = [8, 384], strides = [1, 1]} : vector<8x1152xf32> to vector<8x384xf32>
    %170 = vector.extract_strided_slice %167 {offsets = [0, 768], sizes = [8, 384], strides = [1, 1]} : vector<8x1152xf32> to vector<8x384xf32>
    %171 = vector.extract_strided_slice %161 {offsets = [0, 1152], sizes = [8, 384], strides = [1, 1]} : vector<8x1536xf32> to vector<8x384xf32>
    %172 = math.tanh %171 : vector<8x384xf32>
    %173 = arith.mulf %169, %154 : vector<8x384xf32>
    %174 = arith.mulf %168, %172 : vector<8x384xf32>
    %175 = arith.addf %173, %174 : vector<8x384xf32>
    %176 = math.tanh %175 : vector<8x384xf32>
    %177 = arith.mulf %170, %176 : vector<8x384xf32>
    %cst_50 = arith.constant 0.000000e+00 : f32
    %178 = vector.broadcast %cst_50 : f32 to vector<8x384xf32>
    %179 = arith.maximumf %177, %178 : vector<8x384xf32>
    %180 = arith.truncf %179 : vector<8x384xf32> to vector<8x384xbf16>
    %c0_51 = arith.constant 0 : index
    %c0_52 = arith.constant 0 : index
    %181 = vector.load %arg5[%c0_51, %c0_52] : memref<384x128xbf16, #tpu.memory_space<vmem>>, vector<384x128xbf16>
    %cst_53 = arith.constant dense<0.000000e+00> : vector<8x128xf32>
    %182 = tpu.matmul %180, %181, %cst_53 {dimension_numbers = #tpu.dot_dimension_numbers<[1], [0], [0], [1], [0, 0, 1, 1], [], []>} : vector<8x384xbf16>, vector<384x128xbf16>, vector<8x128xf32> -> vector<8x128xf32>
    %c0_54 = arith.constant 0 : index
    %c0_55 = arith.constant 0 : index
    %183 = vector.load %arg6[%c0_54, %c0_55] : memref<1x128xf32, #tpu.memory_space<vmem>>, vector<1x128xf32>
    %184 = vector.broadcast %183 : vector<1x128xf32> to vector<8x128xf32>
    %185 = arith.addf %182, %184 : vector<8x128xf32>
    %186 = math.tanh %185 : vector<8x128xf32>
    %c0_56 = arith.constant 0 : index
    %c0_57 = arith.constant 0 : index
    %187 = vector.load %arg7[%c0_56, %c0_57] : memref<8x128xf32, #tpu.memory_space<vmem>>, vector<8x128xf32>
    tpu.vector_store %arg7[%c0_56, %c0_57], %186 {strides = array<i32>} : memref<8x128xf32, #tpu.memory_space<vmem>>, vector<8x128xf32>,
    return
  }
  func.func @transform_0(%arg0: i32) -> (i32, i32) {
    %c0_i32 = arith.constant 0 : i32
    %c0_i32_0 = arith.constant 0 : i32
    %c0_i32_1 = arith.constant 0 : i32
    return %c0_i32, %c0_i32_0 : i32, i32
  }
  func.func @transform_1(%arg0: i32) -> (i32, i32) {
    %c0_i32 = arith.constant 0 : i32
    %c0_i32_0 = arith.constant 0 : i32
    %c0_i32_1 = arith.constant 0 : i32
    return %c0_i32, %c0_i32_0 : i32, i32
  }
  func.func @transform_2(%arg0: i32) -> (i32, i32) {
    %c0_i32 = arith.constant 0 : i32
    %c0_i32_0 = arith.constant 0 : i32
    %c0_i32_1 = arith.constant 0 : i32
    return %c0_i32, %c0_i32_0 : i32, i32
  }
  func.func @transform_3(%arg0: i32) -> (i32, i32) {
    %c0_i32 = arith.constant 0 : i32
    %c0_i32_0 = arith.constant 0 : i32
    %c0_i32_1 = arith.constant 0 : i32
    return %c0_i32, %c0_i32_0 : i32, i32
  }
  func.func @transform_4(%arg0: i32) -> (i32, i32) {
    %c0_i32 = arith.constant 0 : i32
    %c0_i32_0 = arith.constant 0 : i32
    %c0_i32_1 = arith.constant 0 : i32
    return %c0_i32, %c0_i32_0 : i32, i32
  }
  func.func @transform_5(%arg0: i32) -> (i32, i32) {
    %c0_i32 = arith.constant 0 : i32
    %c0_i32_0 = arith.constant 0 : i32
    %c0_i32_1 = arith.constant 0 : i32
    return %c0_i32, %c0_i32_0 : i32, i32
  }
  func.func @transform_6(%arg0: i32) -> (i32, i32) {
    %c0_i32 = arith.constant 0 : i32
    %c0_i32_0 = arith.constant 0 : i32
    %c0_i32_1 = arith.constant 0 : i32
    return %c0_i32, %c0_i32_0 : i32, i32
  }
}

</mosaic_0001>

<llo_original>
// kernel: tpu_custom_call.1
$region0: #{tpu_custom_call.1}
  #allocation0 [shape = 'u32[]', space=smem, size = 0x4, offset = 0x4, fixed_abs, tag = 'smem constant byte address 0x4 - core index']
  #allocation1 [shape = 'u32[144,128]{1,0:T(1,128)}', space=vmem, size = 0x12000, scoped, tag = 'internal scratch']
  #allocation2 [shape = 'f32[64,1536]{1,0:T(8,128)}', space=vmem, size = 0x60000, scoped, tag = 'scratch operand']
  %s0 = inlined_call_operand.vmem [shape: f32[64,16], index: 0, kind: input, shape index: {}]
  %s1 = inlined_call_operand.hbm [shape: bf16[16,1536], index: 1, kind: input, shape index: {}]
  %s2 = inlined_call_operand.hbm [shape: f32[1,1536], index: 2, kind: input, shape index: {}]
  %s3 = inlined_call_operand.hbm [shape: bf16[384,1536], index: 3, kind: input, shape index: {}]
  %s4 = inlined_call_operand.hbm [shape: bf16[384,128], index: 4, kind: input, shape index: {}]
  %s5 = inlined_call_operand.hbm [shape: f32[1,128], index: 5, kind: input, shape index: {}]
  %s6 = inlined_call_operand.hbm [shape: f32[8,128], index: 6, kind: output, shape index: {}]
  %s7 = sld [smem:[#allocation0]]
  $region54: #{tpu_custom_call.1} parent=0
    _
  %s9 = ssub.s32 1, %s7
  %s10 = scalar_select 0, %s9, %s7
  $region1: #{tpu_custom_call.1} parent=0
    #allocation3 [shape = 'u8[49152]{0}', space=vmem, size = 0xc000, scoped, tag = 'input window, operand 1, single buffered']
    #allocation4 [shape = 's32[1]{0}', space=sflag, size = 0x4, scoped, tag = 'scoped memory for tpu_custom_call.1']
    #allocation5 [shape = 's32[1]{0}', space=sflag, size = 0x4, scoped, tag = 'scoped memory for tpu_custom_call.1']
    #allocation6 [shape = 'u8[6144]{0}', space=vmem, size = 0x1800, scoped, tag = 'input window, operand 2, single buffered']
    #allocation7 [shape = 's32[1]{0}', space=sflag, size = 0x4, scoped, tag = 'scoped memory for tpu_custom_call.1']
    #allocation8 [shape = 'u8[1179648]{0}', space=vmem, size = 0x120000, scoped, tag = 'input window, operand 3, single buffered']
    #allocation9 [shape = 'u8[98304]{0}', space=vmem, size = 0x18000, scoped, tag = 'input window, operand 4, single buffered']
    #allocation10 [shape = 's32[1]{0}', space=sflag, size = 0x4, scoped, tag = 'scoped memory for tpu_custom_call.1']
    #allocation11 [shape = 'u8[512]{0}', space=vmem, size = 0x400, scoped, tag = 'input window, operand 5, single buffered']
    #allocation12 [shape = 'u8[4096]{0}', space=vmem, size = 0x1000, scoped, tag = 'output window, operand 0, single buffered']
    %11 = vsyncpa [#allocation4], 0
    %12 = vsyncpa [#allocation7], 0
    %13 = vsyncpa [#allocation10], 0
    %14 = vsyncpa [#allocation5], 0
    // Predicated region
    $region2: #{tpu_custom_call.1} parent=1 // pred_check
      _
    $region3: #{tpu_custom_call.1} parent=1 // pred_check_branch
      %16 = sbr.rel (0) target = $region5
    $region4: #{tpu_custom_call.1} parent=1 // pred_region
      _
    $region5: #{tpu_custom_call.1} parent=1 // pred_fallthru
      _
    // Predicated region
    $region6: #{tpu_custom_call.1} parent=1 // pred_check
      _
    $region7: #{tpu_custom_call.1} parent=1 // pred_check_branch
      %18 = sbr.rel (0) target = $region9
    $region8: #{tpu_custom_call.1} parent=1 // pred_region
      %s20 = ssub.s32 1536, 1536
      %21 = vsyncadd [#allocation4], %s20
      %s22 = sshll.u32 [#allocation3], 4
      %s23 = int_to_ptr.vmem [resolvable:$true] %s22
      %28 = dma.hbm_to_vmem [thread:$0]  %s1, 1536, %s23, [#allocation4], 768, 768, 48
    $region9: #{tpu_custom_call.1} parent=1 // pred_fallthru
      _
    // Predicated region
    $region10: #{tpu_custom_call.1} parent=1 // pred_check
      _
    $region11: #{tpu_custom_call.1} parent=1 // pred_check_branch
      %30 = sbr.rel (0) target = $region13
    $region12: #{tpu_custom_call.1} parent=1 // pred_region
      %s32 = ssub.s32 192, 192
      %33 = vsyncadd [#allocation7], %s32
      %s35 = sshll.u32 [#allocation6], 4
      %s36 = int_to_ptr.vmem [resolvable:$true] %s35
      %38 = dma.hbm_to_vmem [thread:$0]  %s2, 192, %s36, [#allocation7]
    $region13: #{tpu_custom_call.1} parent=1 // pred_fallthru
      _
    // Predicated region
    $region14: #{tpu_custom_call.1} parent=1 // pred_check
      _
    $region15: #{tpu_custom_call.1} parent=1 // pred_check_branch
      %40 = sbr.rel (0) target = $region17
    $region16: #{tpu_custom_call.1} parent=1 // pred_region
      %s42 = ssub.s32 36864, 36864
      %43 = vsyncadd [#allocation7], %s42
      %s44 = sshll.u32 [#allocation8], 4
      %s45 = int_to_ptr.vmem [resolvable:$true] %s44
      %50 = dma.hbm_to_vmem [thread:$0]  %s3, 36864, %s45, [#allocation7], 768, 768, 48
    $region17: #{tpu_custom_call.1} parent=1 // pred_fallthru
      _
    // Predicated region
    $region18: #{tpu_custom_call.1} parent=1 // pred_check
      _
    $region19: #{tpu_custom_call.1} parent=1 // pred_check_branch
      %52 = sbr.rel (0) target = $region21
    $region20: #{tpu_custom_call.1} parent=1 // pred_region
      %s54 = ssub.s32 3072, 3072
      %55 = vsyncadd [#allocation10], %s54
      %s56 = sshll.u32 [#allocation9], 4
      %s57 = int_to_ptr.vmem [resolvable:$true] %s56
      %62 = dma.hbm_to_vmem [thread:$0]  %s4, 3072, %s57, [#allocation10], 64, 64, 4
    $region21: #{tpu_custom_call.1} parent=1 // pred_fallthru
      _
    // Predicated region
    $region22: #{tpu_custom_call.1} parent=1 // pred_check
      _
    $region23: #{tpu_custom_call.1} parent=1 // pred_check_branch
      %64 = sbr.rel (0) target = $region25
    $region24: #{tpu_custom_call.1} parent=1 // pred_region
      %s66 = ssub.s32 16, 16
      %67 = vsyncadd [#allocation10], %s66
      %s69 = sshll.u32 [#allocation11], 4
      %s70 = int_to_ptr.vmem [resolvable:$true] %s69
      %72 = dma.hbm_to_vmem [thread:$0]  %s5, 16, %s70, [#allocation10]
    $region25: #{tpu_custom_call.1} parent=1 // pred_fallthru
      _
    // Predicated region
    $region26: #{tpu_custom_call.1} parent=1 // pred_check
      _
    $region27: #{tpu_custom_call.1} parent=1 // pred_check_branch
      %74 = sbr.rel (0) target = $region29
    $region28: #{tpu_custom_call.1} parent=1 // pred_region
      %75 = dma.done [#allocation4], 1536
    $region29: #{tpu_custom_call.1} parent=1 // pred_fallthru
      _
    // Predicated region
    $region30: #{tpu_custom_call.1} parent=1 // pred_check
      _
    $region31: #{tpu_custom_call.1} parent=1 // pred_check_branch
      %77 = sbr.rel (0) target = $region33
    $region32: #{tpu_custom_call.1} parent=1 // pred_region
      %78 = dma.done [#allocation7], 192
    $region33: #{tpu_custom_call.1} parent=1 // pred_fallthru
      _
    // Predicated region
    $region34: #{tpu_custom_call.1} parent=1 // pred_check
      _
    $region35: #{tpu_custom_call.1} parent=1 // pred_check_branch
      %80 = sbr.rel (0) target = $region37
    $region36: #{tpu_custom_call.1} parent=1 // pred_region
      %81 = dma.done [#allocation7], 36864
    $region37: #{tpu_custom_call.1} parent=1 // pred_fallthru
      _
    // Predicated region
    $region38: #{tpu_custom_call.1} parent=1 // pred_check
      _
    $region39: #{tpu_custom_call.1} parent=1 // pred_check_branch
      %83 = sbr.rel (0) target = $region41
    $region40: #{tpu_custom_call.1} parent=1 // pred_region
      %84 = dma.done [#allocation10], 3072
    $region41: #{tpu_custom_call.1} parent=1 // pred_fallthru
      _
    // Predicated region
    $region42: #{tpu_custom_call.1} parent=1 // pred_check
      _
    $region43: #{tpu_custom_call.1} parent=1 // pred_check_branch
      %86 = sbr.rel (0) target = $region45
    $region44: #{tpu_custom_call.1} parent=1 // pred_region
      %87 = dma.done [#allocation10], 16
    $region45: #{tpu_custom_call.1} parent=1 // pred_fallthru
      _
    %v89 = vld [vmem:[%s0] sm:$0xff]
    %v90 = vld [vmem:[%s0 + $0x8] sm:$0xff]
    %v91 = vld [vmem:[%s0 + $0x10] sm:$0xff]
    %v92 = vld [vmem:[%s0 + $0x18] sm:$0xff]
    %v93 = vld [vmem:[%s0 + $0x20] sm:$0xff]
    %v94 = vld [vmem:[%s0 + $0x28] sm:$0xff]
    %v95 = vld [vmem:[%s0 + $0x30] sm:$0xff]
    %v96 = vld [vmem:[%s0 + $0x38] sm:$0xff]
    %v97 = vpack.c.bf16 %v90, %v89
    %v98 = vpack.c.bf16 %v92, %v91
    %v99 = vpack.c.bf16 %v94, %v93
    %v100 = vpack.c.bf16 %v96, %v95
    %v101 = vld [vmem:[#allocation3] sm:$0xff]
    %v102 = vld [vmem:[#allocation3 + $0x8] sm:$0xff]
    %v103 = vld [vmem:[#allocation3 + $0x10] sm:$0xff]
    %v104 = vld [vmem:[#allocation3 + $0x18] sm:$0xff]
    %v105 = vld [vmem:[#allocation3 + $0x20] sm:$0xff]
    %v106 = vld [vmem:[#allocation3 + $0x28] sm:$0xff]
    %v107 = vld [vmem:[#allocation3 + $0x30] sm:$0xff]
    %v108 = vld [vmem:[#allocation3 + $0x38] sm:$0xff]
    %v109 = vld [vmem:[#allocation3 + $0x40] sm:$0xff]
    %v110 = vld [vmem:[#allocation3 + $0x48] sm:$0xff]
    %v111 = vld [vmem:[#allocation3 + $0x50] sm:$0xff]
    %v112 = vld [vmem:[#allocation3 + $0x58] sm:$0xff]
    %v113 = vld [vmem:[#allocation6] sm:$0xff]
    %v114 = vld [vmem:[#allocation6 + $0x8] sm:$0xf]
    %v117 = vlaneseq
    %v118 = vshrl.u32 %v117, 7
    %v119 = vsub.s32 0, %v118
    %v120 = vrot.slane %v113, %v119
    %v121 = vlaneseq
    %v122 = vshrl.u32 %v121, 7
    %v123 = vsub.s32 1, %v122
    %v124 = vrot.slane %v113, %v123
    %v125 = vlaneseq
    %v126 = vshrl.u32 %v125, 7
    %v127 = vsub.s32 2, %v126
    %v128 = vrot.slane %v113, %v127
    %v129 = vlaneseq
    %v130 = vshrl.u32 %v129, 7
    %v131 = vsub.s32 3, %v130
    %v132 = vrot.slane %v113, %v131
    %v133 = vlaneseq
    %v134 = vshrl.u32 %v133, 7
    %v135 = vsub.s32 4, %v134
    %v136 = vrot.slane %v113, %v135
    %v137 = vlaneseq
    %v138 = vshrl.u32 %v137, 7
    %v139 = vsub.s32 5, %v138
    %v140 = vrot.slane %v113, %v139
    %v141 = vlaneseq
    %v142 = vshrl.u32 %v141, 7
    %v143 = vsub.s32 6, %v142
    %v144 = vrot.slane %v113, %v143
    %v145 = vlaneseq
    %v146 = vshrl.u32 %v145, 7
    %v147 = vsub.s32 7, %v146
    %v148 = vrot.slane %v113, %v147
    %v149 = vlaneseq
    %v150 = vshrl.u32 %v149, 7
    %v151 = vsub.s32 0, %v150
    %v152 = vrot.slane %v114, %v151
    %v153 = vlaneseq
    %v154 = vshrl.u32 %v153, 7
    %v155 = vsub.s32 1, %v154
    %v156 = vrot.slane %v114, %v155
    %v157 = vlaneseq
    %v158 = vshrl.u32 %v157, 7
    %v159 = vsub.s32 2, %v158
    %v160 = vrot.slane %v114, %v159
    %v161 = vlaneseq
    %v162 = vshrl.u32 %v161, 7
    %v163 = vsub.s32 3, %v162
    %v164 = vrot.slane %v114, %v163
    %v189 = vunpack.c.l.b16 %v101
    %v190 = vunpack.c.h.b16 %v101
    %v191 = vunpack.c.l.b16 %v102
    %v192 = vunpack.c.h.b16 %v102
    %v193 = vunpack.c.l.b16 %v103
    %v194 = vunpack.c.h.b16 %v103
    %v195 = vunpack.c.l.b16 %v104
    %v196 = vunpack.c.h.b16 %v104
    %v197 = vunpack.c.l.b16 %v105
    %v198 = vunpack.c.h.b16 %v105
    %v199 = vunpack.c.l.b16 %v106
    %v200 = vunpack.c.h.b16 %v106
    %v201 = vunpack.c.l.b16 %v107
    %v202 = vunpack.c.h.b16 %v107
    %v203 = vunpack.c.l.b16 %v108
    %v204 = vunpack.c.h.b16 %v108
    %v205 = vunpack.c.l.b16 %v109
    %v206 = vunpack.c.h.b16 %v109
    %v207 = vunpack.c.l.b16 %v110
    %v208 = vunpack.c.h.b16 %v110
    %v209 = vunpack.c.l.b16 %v111
    %v210 = vunpack.c.h.b16 %v111
    %v211 = vunpack.c.l.b16 %v112
    %v212 = vunpack.c.h.b16 %v112
    %v213 = vpack.c.b16 %v201, %v189
    %v214 = vpack.c.b16 %v202, %v190
    %v215 = vpack.c.b16 %v203, %v191
    %v216 = vpack.c.b16 %v204, %v192
    %v217 = vpack.c.b16 %v205, %v193
    %v218 = vpack.c.b16 %v206, %v194
    %v219 = vpack.c.b16 %v207, %v195
    %v220 = vpack.c.b16 %v208, %v196
    %v221 = vpack.c.b16 %v209, %v197
    %v222 = vpack.c.b16 %v210, %v198
    %v223 = vpack.c.b16 %v211, %v199
    %v224 = vpack.c.b16 %v212, %v200
    %vm237 = vcmask 130048
    %v239 = vsel %vm237, %v97, 0
    %v242 = vsel %vm237, %v98, 0
    %v245 = vsel %vm237, %v99, 0
    %v248 = vsel %vm237, %v100, 0
    %250 = vmatprep.subr.bf16.mxu0 %v214
    %251 = vmatpush1.bf16.msra.mxu0 %v213
    %252 = vmatprep.subr.bf16.mxu0 0
    %253 = vmatpush1.bf16.msra.mxu0 0
    %254 = vmatprep.subr.bf16.mxu0 0
    %255 = vmatpush1.bf16.msra.mxu0 0
    %256 = vmatprep.subr.bf16.mxu0 0
    %257 = vmatpush1.bf16.msra.mxu0 0
    %258 = vmatprep.subr.bf16.mxu0 0
    %259 = vmatpush1.bf16.msra.mxu0 0
    %260 = vmatprep.subr.bf16.mxu0 0
    %261 = vmatpush1.bf16.msra.mxu0 0
    %262 = vmatprep.subr.bf16.mxu0 0
    %263 = vmatpush1.bf16.msra.mxu0 0
    %264 = vmatprep.subr.bf16.mxu0 0
    %265 = vmatpush1.bf16.msra.mxu0 0
    %266 = vmatprep.subr.bf16.mxu0 0
    %267 = vmatpush1.bf16.msra.mxu0 0
    %268 = vmatprep.subr.bf16.mxu0 0
    %269 = vmatpush1.bf16.msra.mxu0 0
    %270 = vmatprep.subr.bf16.mxu0 0
    %271 = vmatpush1.bf16.msra.mxu0 0
    %272 = vmatprep.subr.bf16.mxu0 0
    %273 = vmatpush1.bf16.msra.mxu0 0
    %274 = vmatprep.subr.bf16.mxu0 0
    %275 = vmatpush1.bf16.msra.mxu0 0
    %276 = vmatprep.subr.bf16.mxu0 0
    %277 = vmatpush1.bf16.msra.mxu0 0
    %278 = vmatprep.subr.bf16.mxu0 0
    %279 = vmatpush1.bf16.msra.mxu0 0
    %280 = vmatprep.subr.bf16.mxu0 0
    %281 = vmatpush1.bf16.msra.mxu0 0
    %282 = vmatprep.mubr.bf16.mxu0 0
    %283 = vmatmul.mubr.bf16.gmra.mrb[0].mxu0 %v239
    %v284 = vpop.f32.mrb[0].mxu0
    %v285 = vadd.f32 %v120, %v284
    %v286 = vpop.f32.mrb[0].mxu0
    %v287 = vadd.f32 %v124, %v286
    %v288 = vpop.f32.mrb[0].mxu0
    %v289 = vadd.f32 %v120, %v288
    %v290 = vpop.f32.mrb[0].mxu0
    %v291 = vadd.f32 %v124, %v290
    %292 = vmatprep.mubr.bf16.mxu0 0
    %293 = vmatmul.mubr.bf16.gmra.mrb[0].mxu0 %v242
    %v294 = vpop.f32.mrb[0].mxu0
    %v295 = vadd.f32 %v120, %v294
    %v296 = vpop.f32.mrb[0].mxu0
    %v297 = vadd.f32 %v124, %v296
    %v298 = vpop.f32.mrb[0].mxu0
    %v299 = vadd.f32 %v120, %v298
    %v300 = vpop.f32.mrb[0].mxu0
    %v301 = vadd.f32 %v124, %v300
    %302 = vmatprep.mubr.bf16.mxu0 0
    %303 = vmatmul.mubr.bf16.gmra.mrb[0].mxu0 %v245
    %v304 = vpop.f32.mrb[0].mxu0
    %v305 = vadd.f32 %v120, %v304
    %v306 = vpop.f32.mrb[0].mxu0
    %v307 = vadd.f32 %v124, %v306
    %v308 = vpop.f32.mrb[0].mxu0
    %v309 = vadd.f32 %v120, %v308
    %v310 = vpop.f32.mrb[0].mxu0
    %v311 = vadd.f32 %v124, %v310
    %312 = vmatprep.mubr.bf16.mxu0 0
    %313 = vmatmul.mubr.bf16.gmra.mrb[0].mxu0 %v248
    %v314 = vpop.f32.mrb[0].mxu0
    %v315 = vadd.f32 %v120, %v314
    %v316 = vpop.f32.mrb[0].mxu0
    %v317 = vadd.f32 %v124, %v316
    %v318 = vpop.f32.mrb[0].mxu0
    %v319 = vadd.f32 %v120, %v318
    %v320 = vpop.f32.mrb[0].mxu0
    %v321 = vadd.f32 %v124, %v320
    %322 = vdwg.mxu0
    %323 = vmatprep.subr.bf16.mxu0 %v216
    %324 = vmatpush1.bf16.msra.mxu0 %v215
    %325 = vmatprep.subr.bf16.mxu0 0
    %326 = vmatpush1.bf16.msra.mxu0 0
    %327 = vmatprep.subr.bf16.mxu0 0
    %328 = vmatpush1.bf16.msra.mxu0 0
    %329 = vmatprep.subr.bf16.mxu0 0
    %330 = vmatpush1.bf16.msra.mxu0 0
    %331 = vmatprep.subr.bf16.mxu0 0
    %332 = vmatpush1.bf16.msra.mxu0 0
    %333 = vmatprep.subr.bf16.mxu0 0
    %334 = vmatpush1.bf16.msra.mxu0 0
    %335 = vmatprep.subr.bf16.mxu0 0
    %336 = vmatpush1.bf16.msra.mxu0 0
    %337 = vmatprep.subr.bf16.mxu0 0
    %338 = vmatpush1.bf16.msra.mxu0 0
    %339 = vmatprep.subr.bf16.mxu0 0
    %340 = vmatpush1.bf16.msra.mxu0 0
    %341 = vmatprep.subr.bf16.mxu0 0
    %342 = vmatpush1.bf16.msra.mxu0 0
    %343 = vmatprep.subr.bf16.mxu0 0
    %344 = vmatpush1.bf16.msra.mxu0 0
    %345 = vmatprep.subr.bf16.mxu0 0
    %346 = vmatpush1.bf16.msra.mxu0 0
    %347 = vmatprep.subr.bf16.mxu0 0
    %348 = vmatpush1.bf16.msra.mxu0 0
    %349 = vmatprep.subr.bf16.mxu0 0
    %350 = vmatpush1.bf16.msra.mxu0 0
    %351 = vmatprep.subr.bf16.mxu0 0
    %352 = vmatpush1.bf16.msra.mxu0 0
    %353 = vmatprep.subr.bf16.mxu0 0
    %354 = vmatpush1.bf16.msra.mxu0 0
    %355 = vmatprep.mubr.bf16.mxu0 0
    %356 = vmatmul.mubr.bf16.gmra.mrb[0].mxu0 %v239
    %v357 = vpop.f32.mrb[0].mxu0
    %v358 = vadd.f32 %v128, %v357
    %v359 = vpop.f32.mrb[0].mxu0
    %v360 = vadd.f32 %v132, %v359
    %v361 = vpop.f32.mrb[0].mxu0
    %v362 = vadd.f32 %v128, %v361
    %v363 = vpop.f32.mrb[0].mxu0
    %v364 = vadd.f32 %v132, %v363
    %365 = vmatprep.mubr.bf16.mxu0 0
    %366 = vmatmul.mubr.bf16.gmra.mrb[0].mxu0 %v242
    %v367 = vpop.f32.mrb[0].mxu0
    %v368 = vadd.f32 %v128, %v367
    %v369 = vpop.f32.mrb[0].mxu0
    %v370 = vadd.f32 %v132, %v369
    %v371 = vpop.f32.mrb[0].mxu0
    %v372 = vadd.f32 %v128, %v371
    %v373 = vpop.f32.mrb[0].mxu0
    %v374 = vadd.f32 %v132, %v373
    %375 = vmatprep.mubr.bf16.mxu0 0
    %376 = vmatmul.mubr.bf16.gmra.mrb[0].mxu0 %v245
    %v377 = vpop.f32.mrb[0].mxu0
    %v378 = vadd.f32 %v128, %v377
    %v379 = vpop.f32.mrb[0].mxu0
    %v380 = vadd.f32 %v132, %v379
    %v381 = vpop.f32.mrb[0].mxu0
    %v382 = vadd.f32 %v128, %v381
    %v383 = vpop.f32.mrb[0].mxu0
    %v384 = vadd.f32 %v132, %v383
    %385 = vmatprep.mubr.bf16.mxu0 0
    %386 = vmatmul.mubr.bf16.gmra.mrb[0].mxu0 %v248
    %v387 = vpop.f32.mrb[0].mxu0
    %v388 = vadd.f32 %v128, %v387
    %v389 = vpop.f32.mrb[0].mxu0
    %v390 = vadd.f32 %v132, %v389
    %v391 = vpop.f32.mrb[0].mxu0
    %v392 = vadd.f32 %v128, %v391
    %v393 = vpop.f32.mrb[0].mxu0
    %v394 = vadd.f32 %v132, %v393
    %395 = vdwg.mxu0
    %396 = vmatprep.subr.bf16.mxu0 %v218
    %397 = vmatpush1.bf16.msra.mxu0 %v217
    %398 = vmatprep.subr.bf16.mxu0 0
    %399 = vmatpush1.bf16.msra.mxu0 0
    %400 = vmatprep.subr.bf16.mxu0 0
    %401 = vmatpush1.bf16.msra.mxu0 0
    %402 = vmatprep.subr.bf16.mxu0 0
    %403 = vmatpush1.bf16.msra.mxu0 0
    %404 = vmatprep.subr.bf16.mxu0 0
    %405 = vmatpush1.bf16.msra.mxu0 0
    %406 = vmatprep.subr.bf16.mxu0 0
    %407 = vmatpush1.bf16.msra.mxu0 0
    %408 = vmatprep.subr.bf16.mxu0 0
    %409 = vmatpush1.bf16.msra.mxu0 0
    %410 = vmatprep.subr.bf16.mxu0 0
    %411 = vmatpush1.bf16.msra.mxu0 0
    %412 = vmatprep.subr.bf16.mxu0 0
    %413 = vmatpush1.bf16.msra.mxu0 0
    %414 = vmatprep.subr.bf16.mxu0 0
    %415 = vmatpush1.bf16.msra.mxu0 0
    %416 = vmatprep.subr.bf16.mxu0 0
    %417 = vmatpush1.bf16.msra.mxu0 0
    %418 = vmatprep.subr.bf16.mxu0 0
    %419 = vmatpush1.bf16.msra.mxu0 0
    %420 = vmatprep.subr.bf16.mxu0 0
    %421 = vmatpush1.bf16.msra.mxu0 0
    %422 = vmatprep.subr.bf16.mxu0 0
    %423 = vmatpush1.bf16.msra.mxu0 0
    %424 = vmatprep.subr.bf16.mxu0 0
    %425 = vmatpush1.bf16.msra.mxu0 0
    %426 = vmatprep.subr.bf16.mxu0 0
    %427 = vmatpush1.bf16.msra.mxu0 0
    %428 = vmatprep.mubr.bf16.mxu0 0
    %429 = vmatmul.mubr.bf16.gmra.mrb[0].mxu0 %v239
    %v430 = vpop.f32.mrb[0].mxu0
    %v431 = vadd.f32 %v136, %v430
    %v432 = vpop.f32.mrb[0].mxu0
    %v433 = vadd.f32 %v140, %v432
    %v434 = vpop.f32.mrb[0].mxu0
    %v435 = vadd.f32 %v136, %v434
    %v436 = vpop.f32.mrb[0].mxu0
    %v437 = vadd.f32 %v140, %v436
    %438 = vmatprep.mubr.bf16.mxu0 0
    %439 = vmatmul.mubr.bf16.gmra.mrb[0].mxu0 %v242
    %v440 = vpop.f32.mrb[0].mxu0
    %v441 = vadd.f32 %v136, %v440
    %v442 = vpop.f32.mrb[0].mxu0
    %v443 = vadd.f32 %v140, %v442
    %v444 = vpop.f32.mrb[0].mxu0
    %v445 = vadd.f32 %v136, %v444
    %v446 = vpop.f32.mrb[0].mxu0
    %v447 = vadd.f32 %v140, %v446
    %448 = vmatprep.mubr.bf16.mxu0 0
    %449 = vmatmul.mubr.bf16.gmra.mrb[0].mxu0 %v245
    %v450 = vpop.f32.mrb[0].mxu0
    %v451 = vadd.f32 %v136, %v450
    %v452 = vpop.f32.mrb[0].mxu0
    %v453 = vadd.f32 %v140, %v452
    %v454 = vpop.f32.mrb[0].mxu0
    %v455 = vadd.f32 %v136, %v454
    %v456 = vpop.f32.mrb[0].mxu0
    %v457 = vadd.f32 %v140, %v456
    %458 = vmatprep.mubr.bf16.mxu0 0
    %459 = vmatmul.mubr.bf16.gmra.mrb[0].mxu0 %v248
    %v460 = vpop.f32.mrb[0].mxu0
    %v461 = vadd.f32 %v136, %v460
    %v462 = vpop.f32.mrb[0].mxu0
    %v463 = vadd.f32 %v140, %v462
    %v464 = vpop.f32.mrb[0].mxu0
    %v465 = vadd.f32 %v136, %v464
    %v466 = vpop.f32.mrb[0].mxu0
    %v467 = vadd.f32 %v140, %v466
    %468 = vdwg.mxu0
    %469 = vmatprep.subr.bf16.mxu0 %v220
    %470 = vmatpush1.bf16.msra.mxu0 %v219
    %471 = vmatprep.subr.bf16.mxu0 0
    %472 = vmatpush1.bf16.msra.mxu0 0
    %473 = vmatprep.subr.bf16.mxu0 0
    %474 = vmatpush1.bf16.msra.mxu0 0
    %475 = vmatprep.subr.bf16.mxu0 0
    %476 = vmatpush1.bf16.msra.mxu0 0
    %477 = vmatprep.subr.bf16.mxu0 0
    %478 = vmatpush1.bf16.msra.mxu0 0
    %479 = vmatprep.subr.bf16.mxu0 0
    %480 = vmatpush1.bf16.msra.mxu0 0
    %481 = vmatprep.subr.bf16.mxu0 0
    %482 = vmatpush1.bf16.msra.mxu0 0
    %483 = vmatprep.subr.bf16.mxu0 0
    %484 = vmatpush1.bf16.msra.mxu0 0
    %485 = vmatprep.subr.bf16.mxu0 0
    %486 = vmatpush1.bf16.msra.mxu0 0
    %487 = vmatprep.subr.bf16.mxu0 0
    %488 = vmatpush1.bf16.msra.mxu0 0
    %489 = vmatprep.subr.bf16.mxu0 0
    %490 = vmatpush1.bf16.msra.mxu0 0
    %491 = vmatprep.subr.bf16.mxu0 0
    %492 = vmatpush1.bf16.msra.mxu0 0
    %493 = vmatprep.subr.bf16.mxu0 0
    %494 = vmatpush1.bf16.msra.mxu0 0
    %495 = vmatprep.subr.bf16.mxu0 0
    %496 = vmatpush1.bf16.msra.mxu0 0
    %497 = vmatprep.subr.bf16.mxu0 0
    %498 = vmatpush1.bf16.msra.mxu0 0
    %499 = vmatprep.subr.bf16.mxu0 0
    %500 = vmatpush1.bf16.msra.mxu0 0
    %501 = vmatprep.mubr.bf16.mxu0 0
    %502 = vmatmul.mubr.bf16.gmra.mrb[0].mxu0 %v239
    %v503 = vpop.f32.mrb[0].mxu0
    %v504 = vadd.f32 %v144, %v503
    %v505 = vpop.f32.mrb[0].mxu0
    %v506 = vadd.f32 %v148, %v505
    %v507 = vpop.f32.mrb[0].mxu0
    %v508 = vadd.f32 %v144, %v507
    %v509 = vpop.f32.mrb[0].mxu0
    %v510 = vadd.f32 %v148, %v509
    %511 = vmatprep.mubr.bf16.mxu0 0
    %512 = vmatmul.mubr.bf16.gmra.mrb[0].mxu0 %v242
    %v513 = vpop.f32.mrb[0].mxu0
    %v514 = vadd.f32 %v144, %v513
    %v515 = vpop.f32.mrb[0].mxu0
    %v516 = vadd.f32 %v148, %v515
    %v517 = vpop.f32.mrb[0].mxu0
    %v518 = vadd.f32 %v144, %v517
    %v519 = vpop.f32.mrb[0].mxu0
    %v520 = vadd.f32 %v148, %v519
    %521 = vmatprep.mubr.bf16.mxu0 0
    %522 = vmatmul.mubr.bf16.gmra.mrb[0].mxu0 %v245
    %v523 = vpop.f32.mrb[0].mxu0
    %v524 = vadd.f32 %v144, %v523
    %v525 = vpop.f32.mrb[0].mxu0
    %v526 = vadd.f32 %v148, %v525
    %v527 = vpop.f32.mrb[0].mxu0
    %v528 = vadd.f32 %v144, %v527
    %v529 = vpop.f32.mrb[0].mxu0
    %v530 = vadd.f32 %v148, %v529
    %531 = vmatprep.mubr.bf16.mxu0 0
    %532 = vmatmul.mubr.bf16.gmra.mrb[0].mxu0 %v248
    %v533 = vpop.f32.mrb[0].mxu0
    %v534 = vadd.f32 %v144, %v533
    %v535 = vpop.f32.mrb[0].mxu0
    %v536 = vadd.f32 %v148, %v535
    %v537 = vpop.f32.mrb[0].mxu0
    %v538 = vadd.f32 %v144, %v537
    %v539 = vpop.f32.mrb[0].mxu0
    %v540 = vadd.f32 %v148, %v539
    %541 = vdwg.mxu0
    %542 = vmatprep.subr.bf16.mxu0 %v222
    %543 = vmatpush1.bf16.msra.mxu0 %v221
    %544 = vmatprep.subr.bf16.mxu0 0
    %545 = vmatpush1.bf16.msra.mxu0 0
    %546 = vmatprep.subr.bf16.mxu0 0
    %547 = vmatpush1.bf16.msra.mxu0 0
    %548 = vmatprep.subr.bf16.mxu0 0
    %549 = vmatpush1.bf16.msra.mxu0 0
    %550 = vmatprep.subr.bf16.mxu0 0
    %551 = vmatpush1.bf16.msra.mxu0 0
    %552 = vmatprep.subr.bf16.mxu0 0
    %553 = vmatpush1.bf16.msra.mxu0 0
    %554 = vmatprep.subr.bf16.mxu0 0
    %555 = vmatpush1.bf16.msra.mxu0 0
    %556 = vmatprep.subr.bf16.mxu0 0
    %557 = vmatpush1.bf16.msra.mxu0 0
    %558 = vmatprep.subr.bf16.mxu0 0
    %559 = vmatpush1.bf16.msra.mxu0 0
    %560 = vmatprep.subr.bf16.mxu0 0
    %561 = vmatpush1.bf16.msra.mxu0 0
    %562 = vmatprep.subr.bf16.mxu0 0
    %563 = vmatpush1.bf16.msra.mxu0 0
    %564 = vmatprep.subr.bf16.mxu0 0
    %565 = vmatpush1.bf16.msra.mxu0 0
    %566 = vmatprep.subr.bf16.mxu0 0
    %567 = vmatpush1.bf16.msra.mxu0 0
    %568 = vmatprep.subr.bf16.mxu0 0
    %569 = vmatpush1.bf16.msra.mxu0 0
    %570 = vmatprep.subr.bf16.mxu0 0
    %571 = vmatpush1.bf16.msra.mxu0 0
    %572 = vmatprep.subr.bf16.mxu0 0
    %573 = vmatpush1.bf16.msra.mxu0 0
    %574 = vmatprep.mubr.bf16.mxu0 0
    %575 = vmatmul.mubr.bf16.gmra.mrb[0].mxu0 %v239
    %v576 = vpop.f32.mrb[0].mxu0
    %v577 = vadd.f32 %v152, %v576
    %v578 = vpop.f32.mrb[0].mxu0
    %v579 = vadd.f32 %v156, %v578
    %v580 = vpop.f32.mrb[0].mxu0
    %v581 = vadd.f32 %v152, %v580
    %v582 = vpop.f32.mrb[0].mxu0
    %v583 = vadd.f32 %v156, %v582
    %584 = vmatprep.mubr.bf16.mxu0 0
    %585 = vmatmul.mubr.bf16.gmra.mrb[0].mxu0 %v242
    %v586 = vpop.f32.mrb[0].mxu0
    %v587 = vadd.f32 %v152, %v586
    %v588 = vpop.f32.mrb[0].mxu0
    %v589 = vadd.f32 %v156, %v588
    %v590 = vpop.f32.mrb[0].mxu0
    %v591 = vadd.f32 %v152, %v590
    %v592 = vpop.f32.mrb[0].mxu0
    %v593 = vadd.f32 %v156, %v592
    %594 = vmatprep.mubr.bf16.mxu0 0
    %595 = vmatmul.mubr.bf16.gmra.mrb[0].mxu0 %v245
    %v596 = vpop.f32.mrb[0].mxu0
    %v597 = vadd.f32 %v152, %v596
    %v598 = vpop.f32.mrb[0].mxu0
    %v599 = vadd.f32 %v156, %v598
    %v600 = vpop.f32.mrb[0].mxu0
    %v601 = vadd.f32 %v152, %v600
    %v602 = vpop.f32.mrb[0].mxu0
    %v603 = vadd.f32 %v156, %v602
    %604 = vmatprep.mubr.bf16.mxu0 0
    %605 = vmatmul.mubr.bf16.gmra.mrb[0].mxu0 %v248
    %v606 = vpop.f32.mrb[0].mxu0
    %v607 = vadd.f32 %v152, %v606
    %v608 = vpop.f32.mrb[0].mxu0
    %v609 = vadd.f32 %v156, %v608
    %v610 = vpop.f32.mrb[0].mxu0
    %v611 = vadd.f32 %v152, %v610
    %v612 = vpop.f32.mrb[0].mxu0
    %v613 = vadd.f32 %v156, %v612
    %614 = vdwg.mxu0
    %615 = vmatprep.subr.bf16.mxu0 %v224
    %616 = vmatpush1.bf16.msra.mxu0 %v223
    %617 = vmatprep.subr.bf16.mxu0 0
    %618 = vmatpush1.bf16.msra.mxu0 0
    %619 = vmatprep.subr.bf16.mxu0 0
    %620 = vmatpush1.bf16.msra.mxu0 0
    %621 = vmatprep.subr.bf16.mxu0 0
    %622 = vmatpush1.bf16.msra.mxu0 0
    %623 = vmatprep.subr.bf16.mxu0 0
    %624 = vmatpush1.bf16.msra.mxu0 0
    %625 = vmatprep.subr.bf16.mxu0 0
    %626 = vmatpush1.bf16.msra.mxu0 0
    %627 = vmatprep.subr.bf16.mxu0 0
    %628 = vmatpush1.bf16.msra.mxu0 0
    %629 = vmatprep.subr.bf16.mxu0 0
    %630 = vmatpush1.bf16.msra.mxu0 0
    %631 = vmatprep.subr.bf16.mxu0 0
    %632 = vmatpush1.bf16.msra.mxu0 0
    %633 = vmatprep.subr.bf16.mxu0 0
    %634 = vmatpush1.bf16.msra.mxu0 0
    %635 = vmatprep.subr.bf16.mxu0 0
    %636 = vmatpush1.bf16.msra.mxu0 0
    %637 = vmatprep.subr.bf16.mxu0 0
    %638 = vmatpush1.bf16.msra.mxu0 0
    %639 = vmatprep.subr.bf16.mxu0 0
    %640 = vmatpush1.bf16.msra.mxu0 0
    %641 = vmatprep.subr.bf16.mxu0 0
    %642 = vmatpush1.bf16.msra.mxu0 0
    %643 = vmatprep.subr.bf16.mxu0 0
    %644 = vmatpush1.bf16.msra.mxu0 0
    %645 = vmatprep.subr.bf16.mxu0 0
    %646 = vmatpush1.bf16.msra.mxu0 0
    %647 = vmatprep.mubr.bf16.mxu0 0
    %648 = vmatmul.mubr.bf16.gmra.mrb[0].mxu0 %v239
    %v649 = vpop.f32.mrb[0].mxu0
    %v650 = vadd.f32 %v160, %v649
    %v651 = vpop.f32.mrb[0].mxu0
    %v652 = vadd.f32 %v164, %v651
    %v653 = vpop.f32.mrb[0].mxu0
    %v654 = vadd.f32 %v160, %v653
    %v655 = vpop.f32.mrb[0].mxu0
    %v656 = vadd.f32 %v164, %v655
    %657 = vmatprep.mubr.bf16.mxu0 0
    %658 = vmatmul.mubr.bf16.gmra.mrb[0].mxu0 %v242
    %v659 = vpop.f32.mrb[0].mxu0
    %v660 = vadd.f32 %v160, %v659
    %v661 = vpop.f32.mrb[0].mxu0
    %v662 = vadd.f32 %v164, %v661
    %v663 = vpop.f32.mrb[0].mxu0
    %v664 = vadd.f32 %v160, %v663
    %v665 = vpop.f32.mrb[0].mxu0
    %v666 = vadd.f32 %v164, %v665
    %667 = vmatprep.mubr.bf16.mxu0 0
    %668 = vmatmul.mubr.bf16.gmra.mrb[0].mxu0 %v245
    %v669 = vpop.f32.mrb[0].mxu0
    %v670 = vadd.f32 %v160, %v669
    %v671 = vpop.f32.mrb[0].mxu0
    %v672 = vadd.f32 %v164, %v671
    %v673 = vpop.f32.mrb[0].mxu0
    %v674 = vadd.f32 %v160, %v673
    %v675 = vpop.f32.mrb[0].mxu0
    %v676 = vadd.f32 %v164, %v675
    %677 = vmatprep.mubr.bf16.mxu0 0
    %678 = vmatmul.mubr.bf16.gmra.mrb[0].mxu0 %v248
    %v679 = vpop.f32.mrb[0].mxu0
    %v680 = vadd.f32 %v160, %v679
    %v681 = vpop.f32.mrb[0].mxu0
    %v682 = vadd.f32 %v164, %v681
    %v683 = vpop.f32.mrb[0].mxu0
    %v684 = vadd.f32 %v160, %v683
    %v685 = vpop.f32.mrb[0].mxu0
    %v686 = vadd.f32 %v164, %v685
    %687 = vdwg.mxu0
    %688 = vst [vmem:[#allocation2] sm:$0xff] %v285
    %689 = vst [vmem:[#allocation2 + $0x8] sm:$0xff] %v287
    %690 = vst [vmem:[#allocation2 + $0x10] sm:$0xff] %v358
    %691 = vst [vmem:[#allocation2 + $0x18] sm:$0xff] %v360
    %692 = vst [vmem:[#allocation2 + $0x20] sm:$0xff] %v431
    %693 = vst [vmem:[#allocation2 + $0x28] sm:$0xff] %v433
    %694 = vst [vmem:[#allocation2 + $0x30] sm:$0xff] %v504
    %695 = vst [vmem:[#allocation2 + $0x38] sm:$0xff] %v506
    %696 = vst [vmem:[#allocation2 + $0x40] sm:$0xff] %v577
    %697 = vst [vmem:[#allocation2 + $0x48] sm:$0xff] %v579
    %698 = vst [vmem:[#allocation2 + $0x50] sm:$0xff] %v650
    %699 = vst [vmem:[#allocation2 + $0x58] sm:$0xff] %v652
    %700 = vst [vmem:[#allocation2 + $0x60] sm:$0xff] %v289
    %701 = vst [vmem:[#allocation2 + $0x68] sm:$0xff] %v291
    %702 = vst [vmem:[#allocation2 + $0x70] sm:$0xff] %v362
    %703 = vst [vmem:[#allocation2 + $0x78] sm:$0xff] %v364
    %704 = vst [vmem:[#allocation2 + $0x80] sm:$0xff] %v435
    %705 = vst [vmem:[#allocation2 + $0x88] sm:$0xff] %v437
    %706 = vst [vmem:[#allocation2 + $0x90] sm:$0xff] %v508
    %707 = vst [vmem:[#allocation2 + $0x98] sm:$0xff] %v510
    %708 = vst [vmem:[#allocation2 + $0xa0] sm:$0xff] %v581
    %709 = vst [vmem:[#allocation2 + $0xa8] sm:$0xff] %v583
    %710 = vst [vmem:[#allocation2 + $0xb0] sm:$0xff] %v654
    %711 = vst [vmem:[#allocation2 + $0xb8] sm:$0xff] %v656
    %712 = vst [vmem:[#allocation2 + $0xc0] sm:$0xff] %v295
    %713 = vst [vmem:[#allocation2 + $0xc8] sm:$0xff] %v297
    %714 = vst [vmem:[#allocation2 + $0xd0] sm:$0xff] %v368
    %715 = vst [vmem:[#allocation2 + $0xd8] sm:$0xff] %v370
    %716 = vst [vmem:[#allocation2 + $0xe0] sm:$0xff] %v441
    %717 = vst [vmem:[#allocation2 + $0xe8] sm:$0xff] %v443
    %718 = vst [vmem:[#allocation2 + $0xf0] sm:$0xff] %v514
    %719 = vst [vmem:[#allocation2 + $0xf8] sm:$0xff] %v516
    %720 = vst [vmem:[#allocation2 + $0x100] sm:$0xff] %v587
    %721 = vst [vmem:[#allocation2 + $0x108] sm:$0xff] %v589
    %722 = vst [vmem:[#allocation2 + $0x110] sm:$0xff] %v660
    %723 = vst [vmem:[#allocation2 + $0x118] sm:$0xff] %v662
    %724 = vst [vmem:[#allocation2 + $0x120] sm:$0xff] %v299
    %725 = vst [vmem:[#allocation2 + $0x128] sm:$0xff] %v301
    %726 = vst [vmem:[#allocation2 + $0x130] sm:$0xff] %v372
    %727 = vst [vmem:[#allocation2 + $0x138] sm:$0xff] %v374
    %728 = vst [vmem:[#allocation2 + $0x140] sm:$0xff] %v445
    %729 = vst [vmem:[#allocation2 + $0x148] sm:$0xff] %v447
    %730 = vst [vmem:[#allocation2 + $0x150] sm:$0xff] %v518
    %731 = vst [vmem:[#allocation2 + $0x158] sm:$0xff] %v520
    %732 = vst [vmem:[#allocation2 + $0x160] sm:$0xff] %v591
    %733 = vst [vmem:[#allocation2 + $0x168] sm:$0xff] %v593
    %734 = vst [vmem:[#allocation2 + $0x170] sm:$0xff] %v664
    %735 = vst [vmem:[#allocation2 + $0x178] sm:$0xff] %v666
    %736 = vst [vmem:[#allocation2 + $0x180] sm:$0xff] %v305
    %737 = vst [vmem:[#allocation2 + $0x188] sm:$0xff] %v307
    %738 = vst [vmem:[#allocation2 + $0x190] sm:$0xff] %v378
    %739 = vst [vmem:[#allocation2 + $0x198] sm:$0xff] %v380
    %740 = vst [vmem:[#allocation2 + $0x1a0] sm:$0xff] %v451
    %741 = vst [vmem:[#allocation2 + $0x1a8] sm:$0xff] %v453
    %742 = vst [vmem:[#allocation2 + $0x1b0] sm:$0xff] %v524
    %743 = vst [vmem:[#allocation2 + $0x1b8] sm:$0xff] %v526
    %744 = vst [vmem:[#allocation2 + $0x1c0] sm:$0xff] %v597
    %745 = vst [vmem:[#allocation2 + $0x1c8] sm:$0xff] %v599
    %746 = vst [vmem:[#allocation2 + $0x1d0] sm:$0xff] %v670
    %747 = vst [vmem:[#allocation2 + $0x1d8] sm:$0xff] %v672
    %748 = vst [vmem:[#allocation2 + $0x1e0] sm:$0xff] %v309
    %749 = vst [vmem:[#allocation2 + $0x1e8] sm:$0xff] %v311
    %750 = vst [vmem:[#allocation2 + $0x1f0] sm:$0xff] %v382
    %751 = vst [vmem:[#allocation2 + $0x1f8] sm:$0xff] %v384
    %752 = vst [vmem:[#allocation2 + $0x200] sm:$0xff] %v455
    %753 = vst [vmem:[#allocation2 + $0x208] sm:$0xff] %v457
    %754 = vst [vmem:[#allocation2 + $0x210] sm:$0xff] %v528
    %755 = vst [vmem:[#allocation2 + $0x218] sm:$0xff] %v530
    %756 = vst [vmem:[#allocation2 + $0x220] sm:$0xff] %v601
    %757 = vst [vmem:[#allocation2 + $0x228] sm:$0xff] %v603
    %758 = vst [vmem:[#allocation2 + $0x230] sm:$0xff] %v674
    %759 = vst [vmem:[#allocation2 + $0x238] sm:$0xff] %v676
    %760 = vst [vmem:[#allocation2 + $0x240] sm:$0xff] %v315
    %761 = vst [vmem:[#allocation2 + $0x248] sm:$0xff] %v317
    %762 = vst [vmem:[#allocation2 + $0x250] sm:$0xff] %v388
    %763 = vst [vmem:[#allocation2 + $0x258] sm:$0xff] %v390
    %764 = vst [vmem:[#allocation2 + $0x260] sm:$0xff] %v461
    %765 = vst [vmem:[#allocation2 + $0x268] sm:$0xff] %v463
    %766 = vst [vmem:[#allocation2 + $0x270] sm:$0xff] %v534
    %767 = vst [vmem:[#allocation2 + $0x278] sm:$0xff] %v536
    %768 = vst [vmem:[#allocation2 + $0x280] sm:$0xff] %v607
    %769 = vst [vmem:[#allocation2 + $0x288] sm:$0xff] %v609
    %770 = vst [vmem:[#allocation2 + $0x290] sm:$0xff] %v680
    %771 = vst [vmem:[#allocation2 + $0x298] sm:$0xff] %v682
    %772 = vst [vmem:[#allocation2 + $0x2a0] sm:$0xff] %v319
    %773 = vst [vmem:[#allocation2 + $0x2a8] sm:$0xff] %v321
    %774 = vst [vmem:[#allocation2 + $0x2b0] sm:$0xff] %v392
    %775 = vst [vmem:[#allocation2 + $0x2b8] sm:$0xff] %v394
    %776 = vst [vmem:[#allocation2 + $0x2c0] sm:$0xff] %v465
    %777 = vst [vmem:[#allocation2 + $0x2c8] sm:$0xff] %v467
    %778 = vst [vmem:[#allocation2 + $0x2d0] sm:$0xff] %v538
    %779 = vst [vmem:[#allocation2 + $0x2d8] sm:$0xff] %v540
    %780 = vst [vmem:[#allocation2 + $0x2e0] sm:$0xff] %v611
    %781 = vst [vmem:[#allocation2 + $0x2e8] sm:$0xff] %v613
    %782 = vst [vmem:[#allocation2 + $0x2f0] sm:$0xff] %v684
    %783 = vst [vmem:[#allocation2 + $0x2f8] sm:$0xff] %v686
    %v784 = vld [vmem:[#allocation2] sm:$0xff]
    %v785 = vld [vmem:[#allocation2 + $0x8] sm:$0xff]
    %v786 = vld [vmem:[#allocation2 + $0x10] sm:$0xff]
    %v787 = vld [vmem:[#allocation2 + $0x18] sm:$0xff]
    %v788 = vld [vmem:[#allocation2 + $0x20] sm:$0xff]
    %v789 = vld [vmem:[#allocation2 + $0x28] sm:$0xff]
    %v790 = vld [vmem:[#allocation2 + $0x30] sm:$0xff]
    %v791 = vld [vmem:[#allocation2 + $0x38] sm:$0xff]
    %v792 = vld [vmem:[#allocation2 + $0x40] sm:$0xff]
    %v793 = vld [vmem:[#allocation2 + $0x48] sm:$0xff]
    %v794 = vld [vmem:[#allocation2 + $0x50] sm:$0xff]
    %v795 = vld [vmem:[#allocation2 + $0x58] sm:$0xff]
    %v796 = vld [vmem:[#allocation8] sm:$0xff]
    %v797 = vld [vmem:[#allocation8 + $0x8] sm:$0xff]
    %v798 = vld [vmem:[#allocation8 + $0x10] sm:$0xff]
    %v799 = vld [vmem:[#allocation8 + $0x18] sm:$0xff]
    %v800 = vld [vmem:[#allocation8 + $0x20] sm:$0xff]
    %v801 = vld [vmem:[#allocation8 + $0x28] sm:$0xff]
    %v802 = vld [vmem:[#allocation8 + $0x30] sm:$0xff]
    %v803 = vld [vmem:[#allocation8 + $0x38] sm:$0xff]
    %v804 = vld [vmem:[#allocation8 + $0x40] sm:$0xff]
    %v805 = vld [vmem:[#allocation8 + $0x48] sm:$0xff]
    %v806 = vld [vmem:[#allocation8 + $0x50] sm:$0xff]
    %v807 = vld [vmem:[#allocation8 + $0x58] sm:$0xff]
    %v808 = vld [vmem:[#allocation8 + $0x60] sm:$0xff]
    %v809 = vld [vmem:[#allocation8 + $0x68] sm:$0xff]
    %v810 = vld [vmem:[#allocation8 + $0x70] sm:$0xff]
    %v811 = vld [vmem:[#allocation8 + $0x78] sm:$0xff]
    %v812 = vld [vmem:[#allocation8 + $0x80] sm:$0xff]
    %v813 = vld [vmem:[#allocation8 + $0x88] sm:$0xff]
    %v814 = vld [vmem:[#allocation8 + $0x90] sm:$0xff]
    %v815 = vld [vmem:[#allocation8 + $0x98] sm:$0xff]
    %v816 = vld [vmem:[#allocation8 + $0xa0] sm:$0xff]
    %v817 = vld [vmem:[#allocation8 + $0xa8] sm:$0xff]
    %v818 = vld [vmem:[#allocation8 + $0xb0] sm:$0xff]
    %v819 = vld [vmem:[#allocation8 + $0xb8] sm:$0xff]
    %v820 = vld [vmem:[#allocation8 + $0xc0] sm:$0xff]
    %v821 = vld [vmem:[#allocation8 + $0xc8] sm:$0xff]
    %v822 = vld [vmem:[#allocation8 + $0xd0] sm:$0xff]
    %v823 = vld [vmem:[#allocation8 + $0xd8] sm:$0xff]
    %v824 = vld [vmem:[#allocation8 + $0xe0] sm:$0xff]
    %v825 = vld [vmem:[#allocation8 + $0xe8] sm:$0xff]
    %v826 = vld [vmem:[#allocation8 + $0xf0] sm:$0xff]
    %v827 = vld [vmem:[#allocation8 + $0xf8] sm:$0xff]
    %v828 = vld [vmem:[#allocation8 + $0x100] sm:$0xff]
    %v829 = vld [vmem:[#allocation8 + $0x108] sm:$0xff]
    %v830 = vld [vmem:[#allocation8 + $0x110] sm:$0xff]
    %v831 = vld [vmem:[#allocation8 + $0x118] sm:$0xff]
    %v832 = vld [vmem:[#allocation8 + $0x120] sm:$0xff]
    %v833 = vld [vmem:[#allocation8 + $0x128] sm:$0xff]
    %v834 = vld [vmem:[#allocation8 + $0x130] sm:$0xff]
    %v835 = vld [vmem:[#allocation8 + $0x138] sm:$0xff]
    %v836 = vld [vmem:[#allocation8 + $0x140] sm:$0xff]
    %v837 = vld [vmem:[#allocation8 + $0x148] sm:$0xff]
    %v838 = vld [vmem:[#allocation8 + $0x150] sm:$0xff]
    %v839 = vld [vmem:[#allocation8 + $0x158] sm:$0xff]
    %v840 = vld [vmem:[#allocation8 + $0x160] sm:$0xff]
    %v841 = vld [vmem:[#allocation8 + $0x168] sm:$0xff]
    %v842 = vld [vmem:[#allocation8 + $0x170] sm:$0xff]
    %v843 = vld [vmem:[#allocation8 + $0x178] sm:$0xff]
    %v844 = vld [vmem:[#allocation8 + $0x180] sm:$0xff]
    %v845 = vld [vmem:[#allocation8 + $0x188] sm:$0xff]
    %v846 = vld [vmem:[#allocation8 + $0x190] sm:$0xff]
    %v847 = vld [vmem:[#allocation8 + $0x198] sm:$0xff]
    %v848 = vld [vmem:[#allocation8 + $0x1a0] sm:$0xff]
    %v849 = vld [vmem:[#allocation8 + $0x1a8] sm:$0xff]
    %v850 = vld [vmem:[#allocation8 + $0x1b0] sm:$0xff]
    %v851 = vld [vmem:[#allocation8 + $0x1b8] sm:$0xff]
    %v852 = vld [vmem:[#allocation8 + $0x1c0] sm:$0xff]
    %v853 = vld [vmem:[#allocation8 + $0x1c8] sm:$0xff]
    %v854 = vld [vmem:[#allocation8 + $0x1d0] sm:$0xff]
    %v855 = vld [vmem:[#allocation8 + $0x1d8] sm:$0xff]
    %v856 = vld [vmem:[#allocation8 + $0x1e0] sm:$0xff]
    %v857 = vld [vmem:[#allocation8 + $0x1e8] sm:$0xff]
    %v858 = vld [vmem:[#allocation8 + $0x1f0] sm:$0xff]
    %v859 = vld [vmem:[#allocation8 + $0x1f8] sm:$0xff]
    %v860 = vld [vmem:[#allocation8 + $0x200] sm:$0xff]
    %v861 = vld [vmem:[#allocation8 + $0x208] sm:$0xff]
    %v862 = vld [vmem:[#allocation8 + $0x210] sm:$0xff]
    %v863 = vld [vmem:[#allocation8 + $0x218] sm:$0xff]
    %v864 = vld [vmem:[#allocation8 + $0x220] sm:$0xff]
    %v865 = vld [vmem:[#allocation8 + $0x228] sm:$0xff]
    %v866 = vld [vmem:[#allocation8 + $0x230] sm:$0xff]
    %v867 = vld [vmem:[#allocation8 + $0x238] sm:$0xff]
    %v868 = vld [vmem:[#allocation8 + $0x240] sm:$0xff]
    %v869 = vld [vmem:[#allocation8 + $0x248] sm:$0xff]
    %v870 = vld [vmem:[#allocation8 + $0x250] sm:$0xff]
    %v871 = vld [vmem:[#allocation8 + $0x258] sm:$0xff]
    %v872 = vld [vmem:[#allocation8 + $0x260] sm:$0xff]
    %v873 = vld [vmem:[#allocation8 + $0x268] sm:$0xff]
    %v874 = vld [vmem:[#allocation8 + $0x270] sm:$0xff]
    %v875 = vld [vmem:[#allocation8 + $0x278] sm:$0xff]
    %v876 = vld [vmem:[#allocation8 + $0x280] sm:$0xff]
    %v877 = vld [vmem:[#allocation8 + $0x288] sm:$0xff]
    %v878 = vld [vmem:[#allocation8 + $0x290] sm:$0xff]
    %v879 = vld [vmem:[#allocation8 + $0x298] sm:$0xff]
    %v880 = vld [vmem:[#allocation8 + $0x2a0] sm:$0xff]
    %v881 = vld [vmem:[#allocation8 + $0x2a8] sm:$0xff]
    %v882 = vld [vmem:[#allocation8 + $0x2b0] sm:$0xff]
    %v883 = vld [vmem:[#allocation8 + $0x2b8] sm:$0xff]
    %v884 = vld [vmem:[#allocation8 + $0x2c0] sm:$0xff]
    %v885 = vld [vmem:[#allocation8 + $0x2c8] sm:$0xff]
    %v886 = vld [vmem:[#allocation8 + $0x2d0] sm:$0xff]
    %v887 = vld [vmem:[#allocation8 + $0x2d8] sm:$0xff]
    %v888 = vld [vmem:[#allocation8 + $0x2e0] sm:$0xff]
    %v889 = vld [vmem:[#allocation8 + $0x2e8] sm:$0xff]
    %v890 = vld [vmem:[#allocation8 + $0x2f0] sm:$0xff]
    %v891 = vld [vmem:[#allocation8 + $0x2f8] sm:$0xff]
    %v892 = vld [vmem:[#allocation8 + $0x300] sm:$0xff]
    %v893 = vld [vmem:[#allocation8 + $0x308] sm:$0xff]
    %v894 = vld [vmem:[#allocation8 + $0x310] sm:$0xff]
    %v895 = vld [vmem:[#allocation8 + $0x318] sm:$0xff]
    %v896 = vld [vmem:[#allocation8 + $0x320] sm:$0xff]
    %v897 = vld [vmem:[#allocation8 + $0x328] sm:$0xff]
    %v898 = vld [vmem:[#allocation8 + $0x330] sm:$0xff]
    %v899 = vld [vmem:[#allocation8 + $0x338] sm:$0xff]
    %v900 = vld [vmem:[#allocation8 + $0x340] sm:$0xff]
    %v901 = vld [vmem:[#allocation8 + $0x348] sm:$0xff]
    %v902 = vld [vmem:[#allocation8 + $0x350] sm:$0xff]
    %v903 = vld [vmem:[#allocation8 + $0x358] sm:$0xff]
    %v904 = vld [vmem:[#allocation8 + $0x360] sm:$0xff]
    %v905 = vld [vmem:[#allocation8 + $0x368] sm:$0xff]
    %v906 = vld [vmem:[#allocation8 + $0x370] sm:$0xff]
    %v907 = vld [vmem:[#allocation8 + $0x378] sm:$0xff]
    %v908 = vld [vmem:[#allocation8 + $0x380] sm:$0xff]
    %v909 = vld [vmem:[#allocation8 + $0x388] sm:$0xff]
    %v910 = vld [vmem:[#allocation8 + $0x390] sm:$0xff]
    %v911 = vld [vmem:[#allocation8 + $0x398] sm:$0xff]
    %v912 = vld [vmem:[#allocation8 + $0x3a0] sm:$0xff]
    %v913 = vld [vmem:[#allocation8 + $0x3a8] sm:$0xff]
    %v914 = vld [vmem:[#allocation8 + $0x3b0] sm:$0xff]
    %v915 = vld [vmem:[#allocation8 + $0x3b8] sm:$0xff]
    %v916 = vld [vmem:[#allocation8 + $0x3c0] sm:$0xff]
    %v917 = vld [vmem:[#allocation8 + $0x3c8] sm:$0xff]
    %v918 = vld [vmem:[#allocation8 + $0x3d0] sm:$0xff]
    %v919 = vld [vmem:[#allocation8 + $0x3d8] sm:$0xff]
    %v920 = vld [vmem:[#allocation8 + $0x3e0] sm:$0xff]
    %v921 = vld [vmem:[#allocation8 + $0x3e8] sm:$0xff]
    %v922 = vld [vmem:[#allocation8 + $0x3f0] sm:$0xff]
    %v923 = vld [vmem:[#allocation8 + $0x3f8] sm:$0xff]
    %v924 = vld [vmem:[#allocation8 + $0x400] sm:$0xff]
    %v925 = vld [vmem:[#allocation8 + $0x408] sm:$0xff]
    %v926 = vld [vmem:[#allocation8 + $0x410] sm:$0xff]
    %v927 = vld [vmem:[#allocation8 + $0x418] sm:$0xff]
    %v928 = vld [vmem:[#allocation8 + $0x420] sm:$0xff]
    %v929 = vld [vmem:[#allocation8 + $0x428] sm:$0xff]
    %v930 = vld [vmem:[#allocation8 + $0x430] sm:$0xff]
    %v931 = vld [vmem:[#allocation8 + $0x438] sm:$0xff]
    %v932 = vld [vmem:[#allocation8 + $0x440] sm:$0xff]
    %v933 = vld [vmem:[#allocation8 + $0x448] sm:$0xff]
    %v934 = vld [vmem:[#allocation8 + $0x450] sm:$0xff]
    %v935 = vld [vmem:[#allocation8 + $0x458] sm:$0xff]
    %v936 = vld [vmem:[#allocation8 + $0x460] sm:$0xff]
    %v937 = vld [vmem:[#allocation8 + $0x468] sm:$0xff]
    %v938 = vld [vmem:[#allocation8 + $0x470] sm:$0xff]
    %v939 = vld [vmem:[#allocation8 + $0x478] sm:$0xff]
    %v940 = vld [vmem:[#allocation8 + $0x480] sm:$0xff]
    %v941 = vld [vmem:[#allocation8 + $0x488] sm:$0xff]
    %v942 = vld [vmem:[#allocation8 + $0x490] sm:$0xff]
    %v943 = vld [vmem:[#allocation8 + $0x498] sm:$0xff]
    %v944 = vld [vmem:[#allocation8 + $0x4a0] sm:$0xff]
    %v945 = vld [vmem:[#allocation8 + $0x4a8] sm:$0xff]
    %v946 = vld [vmem:[#allocation8 + $0x4b0] sm:$0xff]
    %v947 = vld [vmem:[#allocation8 + $0x4b8] sm:$0xff]
    %v948 = vld [vmem:[#allocation8 + $0x4c0] sm:$0xff]
    %v949 = vld [vmem:[#allocation8 + $0x4c8] sm:$0xff]
    %v950 = vld [vmem:[#allocation8 + $0x4d0] sm:$0xff]
    %v951 = vld [vmem:[#allocation8 + $0x4d8] sm:$0xff]
    %v952 = vld [vmem:[#allocation8 + $0x4e0] sm:$0xff]
    %v953 = vld [vmem:[#allocation8 + $0x4e8] sm:$0xff]
    %v954 = vld [vmem:[#allocation8 + $0x4f0] sm:$0xff]
    %v955 = vld [vmem:[#allocation8 + $0x4f8] sm:$0xff]
    %v956 = vld [vmem:[#allocation8 + $0x500] sm:$0xff]
    %v957 = vld [vmem:[#allocation8 + $0x508] sm:$0xff]
    %v958 = vld [vmem:[#allocation8 + $0x510] sm:$0xff]
    %v959 = vld [vmem:[#allocation8 + $0x518] sm:$0xff]
    %v960 = vld [vmem:[#allocation8 + $0x520] sm:$0xff]
    %v961 = vld [vmem:[#allocation8 + $0x528] sm:$0xff]
    %v962 = vld [vmem:[#allocation8 + $0x530] sm:$0xff]
    %v963 = vld [vmem:[#allocation8 + $0x538] sm:$0xff]
    %v964 = vld [vmem:[#allocation8 + $0x540] sm:$0xff]
    %v965 = vld [vmem:[#allocation8 + $0x548] sm:$0xff]
    %v966 = vld [vmem:[#allocation8 + $0x550] sm:$0xff]
    %v967 = vld [vmem:[#allocation8 + $0x558] sm:$0xff]
    %v968 = vld [vmem:[#allocation8 + $0x560] sm:$0xff]
    %v969 = vld [vmem:[#allocation8 + $0x568] sm:$0xff]
    %v970 = vld [vmem:[#allocation8 + $0x570] sm:$0xff]
    %v971 = vld [vmem:[#allocation8 + $0x578] sm:$0xff]
    %v972 = vld [vmem:[#allocation8 + $0x580] sm:$0xff]
    %v973 = vld [vmem:[#allocation8 + $0x588] sm:$0xff]
    %v974 = vld [vmem:[#allocation8 + $0x590] sm:$0xff]
    %v975 = vld [vmem:[#allocation8 + $0x598] sm:$0xff]
    %v976 = vld [vmem:[#allocation8 + $0x5a0] sm:$0xff]
    %v977 = vld [vmem:[#allocation8 + $0x5a8] sm:$0xff]
    %v978 = vld [vmem:[#allocation8 + $0x5b0] sm:$0xff]
    %v979 = vld [vmem:[#allocation8 + $0x5b8] sm:$0xff]
    %v980 = vld [vmem:[#allocation8 + $0x5c0] sm:$0xff]
    %v981 = vld [vmem:[#allocation8 + $0x5c8] sm:$0xff]
    %v982 = vld [vmem:[#allocation8 + $0x5d0] sm:$0xff]
    %v983 = vld [vmem:[#allocation8 + $0x5d8] sm:$0xff]
    %v984 = vld [vmem:[#allocation8 + $0x5e0] sm:$0xff]
    %v985 = vld [vmem:[#allocation8 + $0x5e8] sm:$0xff]
    %v986 = vld [vmem:[#allocation8 + $0x5f0] sm:$0xff]
    %v987 = vld [vmem:[#allocation8 + $0x5f8] sm:$0xff]
    %v988 = vld [vmem:[#allocation8 + $0x600] sm:$0xff]
    %v989 = vld [vmem:[#allocation8 + $0x608] sm:$0xff]
    %v990 = vld [vmem:[#allocation8 + $0x610] sm:$0xff]
    %v991 = vld [vmem:[#allocation8 + $0x618] sm:$0xff]
    %v992 = vld [vmem:[#allocation8 + $0x620] sm:$0xff]
    %v993 = vld [vmem:[#allocation8 + $0x628] sm:$0xff]
    %v994 = vld [vmem:[#allocation8 + $0x630] sm:$0xff]
    %v995 = vld [vmem:[#allocation8 + $0x638] sm:$0xff]
    %v996 = vld [vmem:[#allocation8 + $0x640] sm:$0xff]
    %v997 = vld [vmem:[#allocation8 + $0x648] sm:$0xff]
    %v998 = vld [vmem:[#allocation8 + $0x650] sm:$0xff]
    %v999 = vld [vmem:[#allocation8 + $0x658] sm:$0xff]
    %v1000 = vld [vmem:[#allocation8 + $0x660] sm:$0xff]
    %v1001 = vld [vmem:[#allocation8 + $0x668] sm:$0xff]
    %v1002 = vld [vmem:[#allocation8 + $0x670] sm:$0xff]
    %v1003 = vld [vmem:[#allocation8 + $0x678] sm:$0xff]
    %v1004 = vld [vmem:[#allocation8 + $0x680] sm:$0xff]
    %v1005 = vld [vmem:[#allocation8 + $0x688] sm:$0xff]
    %v1006 = vld [vmem:[#allocation8 + $0x690] sm:$0xff]
    %v1007 = vld [vmem:[#allocation8 + $0x698] sm:$0xff]
    %v1008 = vld [vmem:[#allocation8 + $0x6a0] sm:$0xff]
    %v1009 = vld [vmem:[#allocation8 + $0x6a8] sm:$0xff]
    %v1010 = vld [vmem:[#allocation8 + $0x6b0] sm:$0xff]
    %v1011 = vld [vmem:[#allocation8 + $0x6b8] sm:$0xff]
    %v1012 = vld [vmem:[#allocation8 + $0x6c0] sm:$0xff]
    %v1013 = vld [vmem:[#allocation8 + $0x6c8] sm:$0xff]
    %v1014 = vld [vmem:[#allocation8 + $0x6d0] sm:$0xff]
    %v1015 = vld [vmem:[#allocation8 + $0x6d8] sm:$0xff]
    %v1016 = vld [vmem:[#allocation8 + $0x6e0] sm:$0xff]
    %v1017 = vld [vmem:[#allocation8 + $0x6e8] sm:$0xff]
    %v1018 = vld [vmem:[#allocation8 + $0x6f0] sm:$0xff]
    %v1019 = vld [vmem:[#allocation8 + $0x6f8] sm:$0xff]
    %v1020 = vld [vmem:[#allocation8 + $0x700] sm:$0xff]
    %v1021 = vld [vmem:[#allocation8 + $0x708] sm:$0xff]
    %v1022 = vld [vmem:[#allocation8 + $0x710] sm:$0xff]
    %v1023 = vld [vmem:[#allocation8 + $0x718] sm:$0xff]
    %v1024 = vld [vmem:[#allocation8 + $0x720] sm:$0xff]
    %v1025 = vld [vmem:[#allocation8 + $0x728] sm:$0xff]
    %v1026 = vld [vmem:[#allocation8 + $0x730] sm:$0xff]
    %v1027 = vld [vmem:[#allocation8 + $0x738] sm:$0xff]
    %v1028 = vld [vmem:[#allocation8 + $0x740] sm:$0xff]
    %v1029 = vld [vmem:[#allocation8 + $0x748] sm:$0xff]
    %v1030 = vld [vmem:[#allocation8 + $0x750] sm:$0xff]
    %v1031 = vld [vmem:[#allocation8 + $0x758] sm:$0xff]
    %v1032 = vld [vmem:[#allocation8 + $0x760] sm:$0xff]
    %v1033 = vld [vmem:[#allocation8 + $0x768] sm:$0xff]
    %v1034 = vld [vmem:[#allocation8 + $0x770] sm:$0xff]
    %v1035 = vld [vmem:[#allocation8 + $0x778] sm:$0xff]
    %v1036 = vld [vmem:[#allocation8 + $0x780] sm:$0xff]
    %v1037 = vld [vmem:[#allocation8 + $0x788] sm:$0xff]
    %v1038 = vld [vmem:[#allocation8 + $0x790] sm:$0xff]
    %v1039 = vld [vmem:[#allocation8 + $0x798] sm:$0xff]
    %v1040 = vld [vmem:[#allocation8 + $0x7a0] sm:$0xff]
    %v1041 = vld [vmem:[#allocation8 + $0x7a8] sm:$0xff]
    %v1042 = vld [vmem:[#allocation8 + $0x7b0] sm:$0xff]
    %v1043 = vld [vmem:[#allocation8 + $0x7b8] sm:$0xff]
    %v1044 = vld [vmem:[#allocation8 + $0x7c0] sm:$0xff]
    %v1045 = vld [vmem:[#allocation8 + $0x7c8] sm:$0xff]
    %v1046 = vld [vmem:[#allocation8 + $0x7d0] sm:$0xff]
    %v1047 = vld [vmem:[#allocation8 + $0x7d8] sm:$0xff]
    %v1048 = vld [vmem:[#allocation8 + $0x7e0] sm:$0xff]
    %v1049 = vld [vmem:[#allocation8 + $0x7e8] sm:$0xff]
    %v1050 = vld [vmem:[#allocation8 + $0x7f0] sm:$0xff]
    %v1051 = vld [vmem:[#allocation8 + $0x7f8] sm:$0xff]
    %v1052 = vld [vmem:[#allocation8 + $0x800] sm:$0xff]
    %v1053 = vld [vmem:[#allocation8 + $0x808] sm:$0xff]
    %v1054 = vld [vmem:[#allocation8 + $0x810] sm:$0xff]
    %v1055 = vld [vmem:[#allocation8 + $0x818] sm:$0xff]
    %v1056 = vld [vmem:[#allocation8 + $0x820] sm:$0xff]
    %v1057 = vld [vmem:[#allocation8 + $0x828] sm:$0xff]
    %v1058 = vld [vmem:[#allocation8 + $0x830] sm:$0xff]
    %v1059 = vld [vmem:[#allocation8 + $0x838] sm:$0xff]
    %v1060 = vld [vmem:[#allocation8 + $0x840] sm:$0xff]
    %v1061 = vld [vmem:[#allocation8 + $0x848] sm:$0xff]
    %v1062 = vld [vmem:[#allocation8 + $0x850] sm:$0xff]
    %v1063 = vld [vmem:[#allocation8 + $0x858] sm:$0xff]
    %v1064 = vld [vmem:[#allocation8 + $0x860] sm:$0xff]
    %v1065 = vld [vmem:[#allocation8 + $0x868] sm:$0xff]
    %v1066 = vld [vmem:[#allocation8 + $0x870] sm:$0xff]
    %v1067 = vld [vmem:[#allocation8 + $0x878] sm:$0xff]
    %v1068 = vld [vmem:[#allocation8 + $0x880] sm:$0xff]
    %v1069 = vld [vmem:[#allocation8 + $0x888] sm:$0xff]
    %v1070 = vld [vmem:[#allocation8 + $0x890] sm:$0xff]
    %v1071 = vld [vmem:[#allocation8 + $0x898] sm:$0xff]
    %v1072 = vld [vmem:[#allocation8 + $0x8a0] sm:$0xff]
    %v1073 = vld [vmem:[#allocation8 + $0x8a8] sm:$0xff]
    %v1074 = vld [vmem:[#allocation8 + $0x8b0] sm:$0xff]
    %v1075 = vld [vmem:[#allocation8 + $0x8b8] sm:$0xff]
    %v1076 = vld [vmem:[#allocation8 + $0x8c0] sm:$0xff]
    %v1077 = vld [vmem:[#allocation8 + $0x8c8] sm:$0xff]
    %v1078 = vld [vmem:[#allocation8 + $0x8d0] sm:$0xff]
    %v1079 = vld [vmem:[#allocation8 + $0x8d8] sm:$0xff]
    %v1080 = vld [vmem:[#allocation8 + $0x8e0] sm:$0xff]
    %v1081 = vld [vmem:[#allocation8 + $0x8e8] sm:$0xff]
    %v1082 = vld [vmem:[#allocation8 + $0x8f0] sm:$0xff]
    %v1083 = vld [vmem:[#allocation8 + $0x8f8] sm:$0xff]
    %v1372 = vunpack.c.l.b16 %v796
    %v1373 = vunpack.c.h.b16 %v796
    %v1374 = vunpack.c.l.b16 %v797
    %v1375 = vunpack.c.h.b16 %v797
    %v1376 = vunpack.c.l.b16 %v798
    %v1377 = vunpack.c.h.b16 %v798
    %v1378 = vunpack.c.l.b16 %v799
    %v1379 = vunpack.c.h.b16 %v799
    %v1380 = vunpack.c.l.b16 %v800
    %v1381 = vunpack.c.h.b16 %v800
    %v1382 = vunpack.c.l.b16 %v801
    %v1383 = vunpack.c.h.b16 %v801
    %v1384 = vunpack.c.l.b16 %v802
    %v1385 = vunpack.c.h.b16 %v802
    %v1386 = vunpack.c.l.b16 %v803
    %v1387 = vunpack.c.h.b16 %v803
    %v1388 = vunpack.c.l.b16 %v804
    %v1389 = vunpack.c.h.b16 %v804
    %v1390 = vunpack.c.l.b16 %v805
    %v1391 = vunpack.c.h.b16 %v805
    %v1392 = vunpack.c.l.b16 %v806
    %v1393 = vunpack.c.h.b16 %v806
    %v1394 = vunpack.c.l.b16 %v807
    %v1395 = vunpack.c.h.b16 %v807
    %v1396 = vunpack.c.l.b16 %v808
    %v1397 = vunpack.c.h.b16 %v808
    %v1398 = vunpack.c.l.b16 %v809
    %v1399 = vunpack.c.h.b16 %v809
    %v1400 = vunpack.c.l.b16 %v810
    %v1401 = vunpack.c.h.b16 %v810
    %v1402 = vunpack.c.l.b16 %v811
    %v1403 = vunpack.c.h.b16 %v811
    %v1404 = vunpack.c.l.b16 %v812
    %v1405 = vunpack.c.h.b16 %v812
    %v1406 = vunpack.c.l.b16 %v813
    %v1407 = vunpack.c.h.b16 %v813
    %v1408 = vunpack.c.l.b16 %v814
    %v1409 = vunpack.c.h.b16 %v814
    %v1410 = vunpack.c.l.b16 %v815
    %v1411 = vunpack.c.h.b16 %v815
    %v1412 = vunpack.c.l.b16 %v816
    %v1413 = vunpack.c.h.b16 %v816
    %v1414 = vunpack.c.l.b16 %v817
    %v1415 = vunpack.c.h.b16 %v817
    %v1416 = vunpack.c.l.b16 %v818
    %v1417 = vunpack.c.h.b16 %v818
    %v1418 = vunpack.c.l.b16 %v819
    %v1419 = vunpack.c.h.b16 %v819
    %v1420 = vunpack.c.l.b16 %v820
    %v1421 = vunpack.c.h.b16 %v820
    %v1422 = vunpack.c.l.b16 %v821
    %v1423 = vunpack.c.h.b16 %v821
    %v1424 = vunpack.c.l.b16 %v822
    %v1425 = vunpack.c.h.b16 %v822
    %v1426 = vunpack.c.l.b16 %v823
    %v1427 = vunpack.c.h.b16 %v823
    %v1428 = vunpack.c.l.b16 %v824
    %v1429 = vunpack.c.h.b16 %v824
    %v1430 = vunpack.c.l.b16 %v825
    %v1431 = vunpack.c.h.b16 %v825
    %v1432 = vunpack.c.l.b16 %v826
    %v1433 = vunpack.c.h.b16 %v826
    %v1434 = vunpack.c.l.b16 %v827
    %v1435 = vunpack.c.h.b16 %v827
    %v1436 = vunpack.c.l.b16 %v828
    %v1437 = vunpack.c.h.b16 %v828
    %v1438 = vunpack.c.l.b16 %v829
    %v1439 = vunpack.c.h.b16 %v829
    %v1440 = vunpack.c.l.b16 %v830
    %v1441 = vunpack.c.h.b16 %v830
    %v1442 = vunpack.c.l.b16 %v831
    %v1443 = vunpack.c.h.b16 %v831
    %v1444 = vunpack.c.l.b16 %v832
    %v1445 = vunpack.c.h.b16 %v832
    %v1446 = vunpack.c.l.b16 %v833
    %v1447 = vunpack.c.h.b16 %v833
    %v1448 = vunpack.c.l.b16 %v834
    %v1449 = vunpack.c.h.b16 %v834
    %v1450 = vunpack.c.l.b16 %v835
    %v1451 = vunpack.c.h.b16 %v835
    %v1452 = vunpack.c.l.b16 %v836
    %v1453 = vunpack.c.h.b16 %v836
    %v1454 = vunpack.c.l.b16 %v837
    %v1455 = vunpack.c.h.b16 %v837
    %v1456 = vunpack.c.l.b16 %v838
    %v1457 = vunpack.c.h.b16 %v838
    %v1458 = vunpack.c.l.b16 %v839
    %v1459 = vunpack.c.h.b16 %v839
    %v1460 = vunpack.c.l.b16 %v840
    %v1461 = vunpack.c.h.b16 %v840
    %v1462 = vunpack.c.l.b16 %v841
    %v1463 = vunpack.c.h.b16 %v841
    %v1464 = vunpack.c.l.b16 %v842
    %v1465 = vunpack.c.h.b16 %v842
    %v1466 = vunpack.c.l.b16 %v843
    %v1467 = vunpack.c.h.b16 %v843
    %v1468 = vunpack.c.l.b16 %v844
    %v1469 = vunpack.c.h.b16 %v844
    %v1470 = vunpack.c.l.b16 %v845
    %v1471 = vunpack.c.h.b16 %v845
    %v1472 = vunpack.c.l.b16 %v846
    %v1473 = vunpack.c.h.b16 %v846
    %v1474 = vunpack.c.l.b16 %v847
    %v1475 = vunpack.c.h.b16 %v847
    %v1476 = vunpack.c.l.b16 %v848
    %v1477 = vunpack.c.h.b16 %v848
    %v1478 = vunpack.c.l.b16 %v849
    %v1479 = vunpack.c.h.b16 %v849
    %v1480 = vunpack.c.l.b16 %v850
    %v1481 = vunpack.c.h.b16 %v850
    %v1482 = vunpack.c.l.b16 %v851
    %v1483 = vunpack.c.h.b16 %v851
    %v1484 = vunpack.c.l.b16 %v852
    %v1485 = vunpack.c.h.b16 %v852
    %v1486 = vunpack.c.l.b16 %v853
    %v1487 = vunpack.c.h.b16 %v853
    %v1488 = vunpack.c.l.b16 %v854
    %v1489 = vunpack.c.h.b16 %v854
    %v1490 = vunpack.c.l.b16 %v855
    %v1491 = vunpack.c.h.b16 %v855
    %v1492 = vunpack.c.l.b16 %v856
    %v1493 = vunpack.c.h.b16 %v856
    %v1494 = vunpack.c.l.b16 %v857
    %v1495 = vunpack.c.h.b16 %v857
    %v1496 = vunpack.c.l.b16 %v858
    %v1497 = vunpack.c.h.b16 %v858
    %v1498 = vunpack.c.l.b16 %v859
    %v1499 = vunpack.c.h.b16 %v859
    %v1500 = vunpack.c.l.b16 %v860
    %v1501 = vunpack.c.h.b16 %v860
    %v1502 = vunpack.c.l.b16 %v861
    %v1503 = vunpack.c.h.b16 %v861
    %v1504 = vunpack.c.l.b16 %v862
    %v1505 = vunpack.c.h.b16 %v862
    %v1506 = vunpack.c.l.b16 %v863
    %v1507 = vunpack.c.h.b16 %v863
    %v1508 = vunpack.c.l.b16 %v864
    %v1509 = vunpack.c.h.b16 %v864
    %v1510 = vunpack.c.l.b16 %v865
    %v1511 = vunpack.c.h.b16 %v865
    %v1512 = vunpack.c.l.b16 %v866
    %v1513 = vunpack.c.h.b16 %v866
    %v1514 = vunpack.c.l.b16 %v867
    %v1515 = vunpack.c.h.b16 %v867
    %v1516 = vunpack.c.l.b16 %v868
    %v1517 = vunpack.c.h.b16 %v868
    %v1518 = vunpack.c.l.b16 %v869
    %v1519 = vunpack.c.h.b16 %v869
    %v1520 = vunpack.c.l.b16 %v870
    %v1521 = vunpack.c.h.b16 %v870
    %v1522 = vunpack.c.l.b16 %v871
    %v1523 = vunpack.c.h.b16 %v871
    %v1524 = vunpack.c.l.b16 %v872
    %v1525 = vunpack.c.h.b16 %v872
    %v1526 = vunpack.c.l.b16 %v873
    %v1527 = vunpack.c.h.b16 %v873
    %v1528 = vunpack.c.l.b16 %v874
    %v1529 = vunpack.c.h.b16 %v874
    %v1530 = vunpack.c.l.b16 %v875
    %v1531 = vunpack.c.h.b16 %v875
    %v1532 = vunpack.c.l.b16 %v876
    %v1533 = vunpack.c.h.b16 %v876
    %v1534 = vunpack.c.l.b16 %v877
    %v1535 = vunpack.c.h.b16 %v877
    %v1536 = vunpack.c.l.b16 %v878
    %v1537 = vunpack.c.h.b16 %v878
    %v1538 = vunpack.c.l.b16 %v879
    %v1539 = vunpack.c.h.b16 %v879
    %v1540 = vunpack.c.l.b16 %v880
    %v1541 = vunpack.c.h.b16 %v880
    %v1542 = vunpack.c.l.b16 %v881
    %v1543 = vunpack.c.h.b16 %v881
    %v1544 = vunpack.c.l.b16 %v882
    %v1545 = vunpack.c.h.b16 %v882
    %v1546 = vunpack.c.l.b16 %v883
    %v1547 = vunpack.c.h.b16 %v883
    %v1548 = vunpack.c.l.b16 %v884
    %v1549 = vunpack.c.h.b16 %v884
    %v1550 = vunpack.c.l.b16 %v885
    %v1551 = vunpack.c.h.b16 %v885
    %v1552 = vunpack.c.l.b16 %v886
    %v1553 = vunpack.c.h.b16 %v886
    %v1554 = vunpack.c.l.b16 %v887
    %v1555 = vunpack.c.h.b16 %v887
    %v1556 = vunpack.c.l.b16 %v888
    %v1557 = vunpack.c.h.b16 %v888
    %v1558 = vunpack.c.l.b16 %v889
    %v1559 = vunpack.c.h.b16 %v889
    %v1560 = vunpack.c.l.b16 %v890
    %v1561 = vunpack.c.h.b16 %v890
    %v1562 = vunpack.c.l.b16 %v891
    %v1563 = vunpack.c.h.b16 %v891
    %v1564 = vunpack.c.l.b16 %v892
    %v1565 = vunpack.c.h.b16 %v892
    %v1566 = vunpack.c.l.b16 %v893
    %v1567 = vunpack.c.h.b16 %v893
    %v1568 = vunpack.c.l.b16 %v894
    %v1569 = vunpack.c.h.b16 %v894
    %v1570 = vunpack.c.l.b16 %v895
    %v1571 = vunpack.c.h.b16 %v895
    %v1572 = vunpack.c.l.b16 %v896
    %v1573 = vunpack.c.h.b16 %v896
    %v1574 = vunpack.c.l.b16 %v897
    %v1575 = vunpack.c.h.b16 %v897
    %v1576 = vunpack.c.l.b16 %v898
    %v1577 = vunpack.c.h.b16 %v898
    %v1578 = vunpack.c.l.b16 %v899
    %v1579 = vunpack.c.h.b16 %v899
    %v1580 = vunpack.c.l.b16 %v900
    %v1581 = vunpack.c.h.b16 %v900
    %v1582 = vunpack.c.l.b16 %v901
    %v1583 = vunpack.c.h.b16 %v901
    %v1584 = vunpack.c.l.b16 %v902
    %v1585 = vunpack.c.h.b16 %v902
    %v1586 = vunpack.c.l.b16 %v903
    %v1587 = vunpack.c.h.b16 %v903
    %v1588 = vunpack.c.l.b16 %v904
    %v1589 = vunpack.c.h.b16 %v904
    %v1590 = vunpack.c.l.b16 %v905
    %v1591 = vunpack.c.h.b16 %v905
    %v1592 = vunpack.c.l.b16 %v906
    %v1593 = vunpack.c.h.b16 %v906
    %v1594 = vunpack.c.l.b16 %v907
    %v1595 = vunpack.c.h.b16 %v907
    %v1596 = vunpack.c.l.b16 %v908
    %v1597 = vunpack.c.h.b16 %v908
    %v1598 = vunpack.c.l.b16 %v909
    %v1599 = vunpack.c.h.b16 %v909
    %v1600 = vunpack.c.l.b16 %v910
    %v1601 = vunpack.c.h.b16 %v910
    %v1602 = vunpack.c.l.b16 %v911
    %v1603 = vunpack.c.h.b16 %v911
    %v1604 = vunpack.c.l.b16 %v912
    %v1605 = vunpack.c.h.b16 %v912
    %v1606 = vunpack.c.l.b16 %v913
    %v1607 = vunpack.c.h.b16 %v913
    %v1608 = vunpack.c.l.b16 %v914
    %v1609 = vunpack.c.h.b16 %v914
    %v1610 = vunpack.c.l.b16 %v915
    %v1611 = vunpack.c.h.b16 %v915
    %v1612 = vunpack.c.l.b16 %v916
    %v1613 = vunpack.c.h.b16 %v916
    %v1614 = vunpack.c.l.b16 %v917
    %v1615 = vunpack.c.h.b16 %v917
    %v1616 = vunpack.c.l.b16 %v918
    %v1617 = vunpack.c.h.b16 %v918
    %v1618 = vunpack.c.l.b16 %v919
    %v1619 = vunpack.c.h.b16 %v919
    %v1620 = vunpack.c.l.b16 %v920
    %v1621 = vunpack.c.h.b16 %v920
    %v1622 = vunpack.c.l.b16 %v921
    %v1623 = vunpack.c.h.b16 %v921
    %v1624 = vunpack.c.l.b16 %v922
    %v1625 = vunpack.c.h.b16 %v922
    %v1626 = vunpack.c.l.b16 %v923
    %v1627 = vunpack.c.h.b16 %v923
    %v1628 = vunpack.c.l.b16 %v924
    %v1629 = vunpack.c.h.b16 %v924
    %v1630 = vunpack.c.l.b16 %v925
    %v1631 = vunpack.c.h.b16 %v925
    %v1632 = vunpack.c.l.b16 %v926
    %v1633 = vunpack.c.h.b16 %v926
    %v1634 = vunpack.c.l.b16 %v927
    %v1635 = vunpack.c.h.b16 %v927
    %v1636 = vunpack.c.l.b16 %v928
    %v1637 = vunpack.c.h.b16 %v928
    %v1638 = vunpack.c.l.b16 %v929
    %v1639 = vunpack.c.h.b16 %v929
    %v1640 = vunpack.c.l.b16 %v930
    %v1641 = vunpack.c.h.b16 %v930
    %v1642 = vunpack.c.l.b16 %v931
    %v1643 = vunpack.c.h.b16 %v931
    %v1644 = vunpack.c.l.b16 %v932
    %v1645 = vunpack.c.h.b16 %v932
    %v1646 = vunpack.c.l.b16 %v933
    %v1647 = vunpack.c.h.b16 %v933
    %v1648 = vunpack.c.l.b16 %v934
    %v1649 = vunpack.c.h.b16 %v934
    %v1650 = vunpack.c.l.b16 %v935
    %v1651 = vunpack.c.h.b16 %v935
    %v1652 = vunpack.c.l.b16 %v936
    %v1653 = vunpack.c.h.b16 %v936
    %v1654 = vunpack.c.l.b16 %v937
    %v1655 = vunpack.c.h.b16 %v937
    %v1656 = vunpack.c.l.b16 %v938
    %v1657 = vunpack.c.h.b16 %v938
    %v1658 = vunpack.c.l.b16 %v939
    %v1659 = vunpack.c.h.b16 %v939
    %v1660 = vunpack.c.l.b16 %v940
    %v1661 = vunpack.c.h.b16 %v940
    %v1662 = vunpack.c.l.b16 %v941
    %v1663 = vunpack.c.h.b16 %v941
    %v1664 = vunpack.c.l.b16 %v942
    %v1665 = vunpack.c.h.b16 %v942
    %v1666 = vunpack.c.l.b16 %v943
    %v1667 = vunpack.c.h.b16 %v943
    %v1668 = vunpack.c.l.b16 %v944
    %v1669 = vunpack.c.h.b16 %v944
    %v1670 = vunpack.c.l.b16 %v945
    %v1671 = vunpack.c.h.b16 %v945
    %v1672 = vunpack.c.l.b16 %v946
    %v1673 = vunpack.c.h.b16 %v946
    %v1674 = vunpack.c.l.b16 %v947
    %v1675 = vunpack.c.h.b16 %v947
    %v1676 = vunpack.c.l.b16 %v948
    %v1677 = vunpack.c.h.b16 %v948
    %v1678 = vunpack.c.l.b16 %v949
    %v1679 = vunpack.c.h.b16 %v949
    %v1680 = vunpack.c.l.b16 %v950
    %v1681 = vunpack.c.h.b16 %v950
    %v1682 = vunpack.c.l.b16 %v951
    %v1683 = vunpack.c.h.b16 %v951
    %v1684 = vunpack.c.l.b16 %v952
    %v1685 = vunpack.c.h.b16 %v952
    %v1686 = vunpack.c.l.b16 %v953
    %v1687 = vunpack.c.h.b16 %v953
    %v1688 = vunpack.c.l.b16 %v954
    %v1689 = vunpack.c.h.b16 %v954
    %v1690 = vunpack.c.l.b16 %v955
    %v1691 = vunpack.c.h.b16 %v955
    %v1692 = vunpack.c.l.b16 %v956
    %v1693 = vunpack.c.h.b16 %v956
    %v1694 = vunpack.c.l.b16 %v957
    %v1695 = vunpack.c.h.b16 %v957
    %v1696 = vunpack.c.l.b16 %v958
    %v1697 = vunpack.c.h.b16 %v958
    %v1698 = vunpack.c.l.b16 %v959
    %v1699 = vunpack.c.h.b16 %v959
    %v1700 = vunpack.c.l.b16 %v960
    %v1701 = vunpack.c.h.b16 %v960
    %v1702 = vunpack.c.l.b16 %v961
    %v1703 = vunpack.c.h.b16 %v961
    %v1704 = vunpack.c.l.b16 %v962
    %v1705 = vunpack.c.h.b16 %v962
    %v1706 = vunpack.c.l.b16 %v963
    %v1707 = vunpack.c.h.b16 %v963
    %v1708 = vunpack.c.l.b16 %v964
    %v1709 = vunpack.c.h.b16 %v964
    %v1710 = vunpack.c.l.b16 %v965
    %v1711 = vunpack.c.h.b16 %v965
    %v1712 = vunpack.c.l.b16 %v966
    %v1713 = vunpack.c.h.b16 %v966
    %v1714 = vunpack.c.l.b16 %v967
    %v1715 = vunpack.c.h.b16 %v967
    %v1716 = vunpack.c.l.b16 %v968
    %v1717 = vunpack.c.h.b16 %v968
    %v1718 = vunpack.c.l.b16 %v969
    %v1719 = vunpack.c.h.b16 %v969
    %v1720 = vunpack.c.l.b16 %v970
    %v1721 = vunpack.c.h.b16 %v970
    %v1722 = vunpack.c.l.b16 %v971
    %v1723 = vunpack.c.h.b16 %v971
    %v1724 = vunpack.c.l.b16 %v972
    %v1725 = vunpack.c.h.b16 %v972
    %v1726 = vunpack.c.l.b16 %v973
    %v1727 = vunpack.c.h.b16 %v973
    %v1728 = vunpack.c.l.b16 %v974
    %v1729 = vunpack.c.h.b16 %v974
    %v1730 = vunpack.c.l.b16 %v975
    %v1731 = vunpack.c.h.b16 %v975
    %v1732 = vunpack.c.l.b16 %v976
    %v1733 = vunpack.c.h.b16 %v976
    %v1734 = vunpack.c.l.b16 %v977
    %v1735 = vunpack.c.h.b16 %v977
    %v1736 = vunpack.c.l.b16 %v978
    %v1737 = vunpack.c.h.b16 %v978
    %v1738 = vunpack.c.l.b16 %v979
    %v1739 = vunpack.c.h.b16 %v979
    %v1740 = vunpack.c.l.b16 %v980
    %v1741 = vunpack.c.h.b16 %v980
    %v1742 = vunpack.c.l.b16 %v981
    %v1743 = vunpack.c.h.b16 %v981
    %v1744 = vunpack.c.l.b16 %v982
    %v1745 = vunpack.c.h.b16 %v982
    %v1746 = vunpack.c.l.b16 %v983
    %v1747 = vunpack.c.h.b16 %v983
    %v1748 = vunpack.c.l.b16 %v984
    %v1749 = vunpack.c.h.b16 %v984
    %v1750 = vunpack.c.l.b16 %v985
    %v1751 = vunpack.c.h.b16 %v985
    %v1752 = vunpack.c.l.b16 %v986
    %v1753 = vunpack.c.h.b16 %v986
    %v1754 = vunpack.c.l.b16 %v987
    %v1755 = vunpack.c.h.b16 %v987
    %v1756 = vunpack.c.l.b16 %v988
    %v1757 = vunpack.c.h.b16 %v988
    %v1758 = vunpack.c.l.b16 %v989
    %v1759 = vunpack.c.h.b16 %v989
    %v1760 = vunpack.c.l.b16 %v990
    %v1761 = vunpack.c.h.b16 %v990
    %v1762 = vunpack.c.l.b16 %v991
    %v1763 = vunpack.c.h.b16 %v991
    %v1764 = vunpack.c.l.b16 %v992
    %v1765 = vunpack.c.h.b16 %v992
    %v1766 = vunpack.c.l.b16 %v993
    %v1767 = vunpack.c.h.b16 %v993
    %v1768 = vunpack.c.l.b16 %v994
    %v1769 = vunpack.c.h.b16 %v994
    %v1770 = vunpack.c.l.b16 %v995
    %v1771 = vunpack.c.h.b16 %v995
    %v1772 = vunpack.c.l.b16 %v996
    %v1773 = vunpack.c.h.b16 %v996
    %v1774 = vunpack.c.l.b16 %v997
    %v1775 = vunpack.c.h.b16 %v997
    %v1776 = vunpack.c.l.b16 %v998
    %v1777 = vunpack.c.h.b16 %v998
    %v1778 = vunpack.c.l.b16 %v999
    %v1779 = vunpack.c.h.b16 %v999
    %v1780 = vunpack.c.l.b16 %v1000
    %v1781 = vunpack.c.h.b16 %v1000
    %v1782 = vunpack.c.l.b16 %v1001
    %v1783 = vunpack.c.h.b16 %v1001
    %v1784 = vunpack.c.l.b16 %v1002
    %v1785 = vunpack.c.h.b16 %v1002
    %v1786 = vunpack.c.l.b16 %v1003
    %v1787 = vunpack.c.h.b16 %v1003
    %v1788 = vunpack.c.l.b16 %v1004
    %v1789 = vunpack.c.h.b16 %v1004
    %v1790 = vunpack.c.l.b16 %v1005
    %v1791 = vunpack.c.h.b16 %v1005
    %v1792 = vunpack.c.l.b16 %v1006
    %v1793 = vunpack.c.h.b16 %v1006
    %v1794 = vunpack.c.l.b16 %v1007
    %v1795 = vunpack.c.h.b16 %v1007
    %v1796 = vunpack.c.l.b16 %v1008
    %v1797 = vunpack.c.h.b16 %v1008
    %v1798 = vunpack.c.l.b16 %v1009
    %v1799 = vunpack.c.h.b16 %v1009
    %v1800 = vunpack.c.l.b16 %v1010
    %v1801 = vunpack.c.h.b16 %v1010
    %v1802 = vunpack.c.l.b16 %v1011
    %v1803 = vunpack.c.h.b16 %v1011
    %v1804 = vunpack.c.l.b16 %v1012
    %v1805 = vunpack.c.h.b16 %v1012
    %v1806 = vunpack.c.l.b16 %v1013
    %v1807 = vunpack.c.h.b16 %v1013
    %v1808 = vunpack.c.l.b16 %v1014
    %v1809 = vunpack.c.h.b16 %v1014
    %v1810 = vunpack.c.l.b16 %v1015
    %v1811 = vunpack.c.h.b16 %v1015
    %v1812 = vunpack.c.l.b16 %v1016
    %v1813 = vunpack.c.h.b16 %v1016
    %v1814 = vunpack.c.l.b16 %v1017
    %v1815 = vunpack.c.h.b16 %v1017
    %v1816 = vunpack.c.l.b16 %v1018
    %v1817 = vunpack.c.h.b16 %v1018
    %v1818 = vunpack.c.l.b16 %v1019
    %v1819 = vunpack.c.h.b16 %v1019
    %v1820 = vunpack.c.l.b16 %v1020
    %v1821 = vunpack.c.h.b16 %v1020
    %v1822 = vunpack.c.l.b16 %v1021
    %v1823 = vunpack.c.h.b16 %v1021
    %v1824 = vunpack.c.l.b16 %v1022
    %v1825 = vunpack.c.h.b16 %v1022
    %v1826 = vunpack.c.l.b16 %v1023
    %v1827 = vunpack.c.h.b16 %v1023
    %v1828 = vunpack.c.l.b16 %v1024
    %v1829 = vunpack.c.h.b16 %v1024
    %v1830 = vunpack.c.l.b16 %v1025
    %v1831 = vunpack.c.h.b16 %v1025
    %v1832 = vunpack.c.l.b16 %v1026
    %v1833 = vunpack.c.h.b16 %v1026
    %v1834 = vunpack.c.l.b16 %v1027
    %v1835 = vunpack.c.h.b16 %v1027
    %v1836 = vunpack.c.l.b16 %v1028
    %v1837 = vunpack.c.h.b16 %v1028
    %v1838 = vunpack.c.l.b16 %v1029
    %v1839 = vunpack.c.h.b16 %v1029
    %v1840 = vunpack.c.l.b16 %v1030
    %v1841 = vunpack.c.h.b16 %v1030
    %v1842 = vunpack.c.l.b16 %v1031
    %v1843 = vunpack.c.h.b16 %v1031
    %v1844 = vunpack.c.l.b16 %v1032
    %v1845 = vunpack.c.h.b16 %v1032
    %v1846 = vunpack.c.l.b16 %v1033
    %v1847 = vunpack.c.h.b16 %v1033
    %v1848 = vunpack.c.l.b16 %v1034
    %v1849 = vunpack.c.h.b16 %v1034
    %v1850 = vunpack.c.l.b16 %v1035
    %v1851 = vunpack.c.h.b16 %v1035
    %v1852 = vunpack.c.l.b16 %v1036
    %v1853 = vunpack.c.h.b16 %v1036
    %v1854 = vunpack.c.l.b16 %v1037
    %v1855 = vunpack.c.h.b16 %v1037
    %v1856 = vunpack.c.l.b16 %v1038
    %v1857 = vunpack.c.h.b16 %v1038
    %v1858 = vunpack.c.l.b16 %v1039
    %v1859 = vunpack.c.h.b16 %v1039
    %v1860 = vunpack.c.l.b16 %v1040
    %v1861 = vunpack.c.h.b16 %v1040
    %v1862 = vunpack.c.l.b16 %v1041
    %v1863 = vunpack.c.h.b16 %v1041
    %v1864 = vunpack.c.l.b16 %v1042
    %v1865 = vunpack.c.h.b16 %v1042
    %v1866 = vunpack.c.l.b16 %v1043
    %v1867 = vunpack.c.h.b16 %v1043
    %v1868 = vunpack.c.l.b16 %v1044
    %v1869 = vunpack.c.h.b16 %v1044
    %v1870 = vunpack.c.l.b16 %v1045
    %v1871 = vunpack.c.h.b16 %v1045
    %v1872 = vunpack.c.l.b16 %v1046
    %v1873 = vunpack.c.h.b16 %v1046
    %v1874 = vunpack.c.l.b16 %v1047
    %v1875 = vunpack.c.h.b16 %v1047
    %v1876 = vunpack.c.l.b16 %v1048
    %v1877 = vunpack.c.h.b16 %v1048
    %v1878 = vunpack.c.l.b16 %v1049
    %v1879 = vunpack.c.h.b16 %v1049
    %v1880 = vunpack.c.l.b16 %v1050
    %v1881 = vunpack.c.h.b16 %v1050
    %v1882 = vunpack.c.l.b16 %v1051
    %v1883 = vunpack.c.h.b16 %v1051
    %v1884 = vunpack.c.l.b16 %v1052
    %v1885 = vunpack.c.h.b16 %v1052
    %v1886 = vunpack.c.l.b16 %v1053
    %v1887 = vunpack.c.h.b16 %v1053
    %v1888 = vunpack.c.l.b16 %v1054
    %v1889 = vunpack.c.h.b16 %v1054
    %v1890 = vunpack.c.l.b16 %v1055
    %v1891 = vunpack.c.h.b16 %v1055
    %v1892 = vunpack.c.l.b16 %v1056
    %v1893 = vunpack.c.h.b16 %v1056
    %v1894 = vunpack.c.l.b16 %v1057
    %v1895 = vunpack.c.h.b16 %v1057
    %v1896 = vunpack.c.l.b16 %v1058
    %v1897 = vunpack.c.h.b16 %v1058
    %v1898 = vunpack.c.l.b16 %v1059
    %v1899 = vunpack.c.h.b16 %v1059
    %v1900 = vunpack.c.l.b16 %v1060
    %v1901 = vunpack.c.h.b16 %v1060
    %v1902 = vunpack.c.l.b16 %v1061
    %v1903 = vunpack.c.h.b16 %v1061
    %v1904 = vunpack.c.l.b16 %v1062
    %v1905 = vunpack.c.h.b16 %v1062
    %v1906 = vunpack.c.l.b16 %v1063
    %v1907 = vunpack.c.h.b16 %v1063
    %v1908 = vunpack.c.l.b16 %v1064
    %v1909 = vunpack.c.h.b16 %v1064
    %v1910 = vunpack.c.l.b16 %v1065
    %v1911 = vunpack.c.h.b16 %v1065
    %v1912 = vunpack.c.l.b16 %v1066
    %v1913 = vunpack.c.h.b16 %v1066
    %v1914 = vunpack.c.l.b16 %v1067
    %v1915 = vunpack.c.h.b16 %v1067
    %v1916 = vunpack.c.l.b16 %v1068
    %v1917 = vunpack.c.h.b16 %v1068
    %v1918 = vunpack.c.l.b16 %v1069
    %v1919 = vunpack.c.h.b16 %v1069
    %v1920 = vunpack.c.l.b16 %v1070
    %v1921 = vunpack.c.h.b16 %v1070
    %v1922 = vunpack.c.l.b16 %v1071
    %v1923 = vunpack.c.h.b16 %v1071
    %v1924 = vunpack.c.l.b16 %v1072
    %v1925 = vunpack.c.h.b16 %v1072
    %v1926 = vunpack.c.l.b16 %v1073
    %v1927 = vunpack.c.h.b16 %v1073
    %v1928 = vunpack.c.l.b16 %v1074
    %v1929 = vunpack.c.h.b16 %v1074
    %v1930 = vunpack.c.l.b16 %v1075
    %v1931 = vunpack.c.h.b16 %v1075
    %v1932 = vunpack.c.l.b16 %v1076
    %v1933 = vunpack.c.h.b16 %v1076
    %v1934 = vunpack.c.l.b16 %v1077
    %v1935 = vunpack.c.h.b16 %v1077
    %v1936 = vunpack.c.l.b16 %v1078
    %v1937 = vunpack.c.h.b16 %v1078
    %v1938 = vunpack.c.l.b16 %v1079
    %v1939 = vunpack.c.h.b16 %v1079
    %v1940 = vunpack.c.l.b16 %v1080
    %v1941 = vunpack.c.h.b16 %v1080
    %v1942 = vunpack.c.l.b16 %v1081
    %v1943 = vunpack.c.h.b16 %v1081
    %v1944 = vunpack.c.l.b16 %v1082
    %v1945 = vunpack.c.h.b16 %v1082
    %v1946 = vunpack.c.l.b16 %v1083
    %v1947 = vunpack.c.h.b16 %v1083
    %v1948 = vpack.c.b16 %v1384, %v1372
    %v1949 = vpack.c.b16 %v1385, %v1373
    %v1950 = vpack.c.b16 %v1386, %v1374
    %v1951 = vpack.c.b16 %v1387, %v1375
    %v1952 = vpack.c.b16 %v1388, %v1376
    %v1953 = vpack.c.b16 %v1389, %v1377
    %v1954 = vpack.c.b16 %v1390, %v1378
    %v1955 = vpack.c.b16 %v1391, %v1379
    %v1956 = vpack.c.b16 %v1392, %v1380
    %v1957 = vpack.c.b16 %v1393, %v1381
    %v1958 = vpack.c.b16 %v1394, %v1382
    %v1959 = vpack.c.b16 %v1395, %v1383
    %v1960 = vpack.c.b16 %v1408, %v1396
    %v1961 = vpack.c.b16 %v1409, %v1397
    %v1962 = vpack.c.b16 %v1410, %v1398
    %v1963 = vpack.c.b16 %v1411, %v1399
    %v1964 = vpack.c.b16 %v1412, %v1400
    %v1965 = vpack.c.b16 %v1413, %v1401
    %v1966 = vpack.c.b16 %v1414, %v1402
    %v1967 = vpack.c.b16 %v1415, %v1403
    %v1968 = vpack.c.b16 %v1416, %v1404
    %v1969 = vpack.c.b16 %v1417, %v1405
    %v1970 = vpack.c.b16 %v1418, %v1406
    %v1971 = vpack.c.b16 %v1419, %v1407
    %v1972 = vpack.c.b16 %v1432, %v1420
    %v1973 = vpack.c.b16 %v1433, %v1421
    %v1974 = vpack.c.b16 %v1434, %v1422
    %v1975 = vpack.c.b16 %v1435, %v1423
    %v1976 = vpack.c.b16 %v1436, %v1424
    %v1977 = vpack.c.b16 %v1437, %v1425
    %v1978 = vpack.c.b16 %v1438, %v1426
    %v1979 = vpack.c.b16 %v1439, %v1427
    %v1980 = vpack.c.b16 %v1440, %v1428
    %v1981 = vpack.c.b16 %v1441, %v1429
    %v1982 = vpack.c.b16 %v1442, %v1430
    %v1983 = vpack.c.b16 %v1443, %v1431
    %v1984 = vpack.c.b16 %v1456, %v1444
    %v1985 = vpack.c.b16 %v1457, %v1445
    %v1986 = vpack.c.b16 %v1458, %v1446
    %v1987 = vpack.c.b16 %v1459, %v1447
    %v1988 = vpack.c.b16 %v1460, %v1448
    %v1989 = vpack.c.b16 %v1461, %v1449
    %v1990 = vpack.c.b16 %v1462, %v1450
    %v1991 = vpack.c.b16 %v1463, %v1451
    %v1992 = vpack.c.b16 %v1464, %v1452
    %v1993 = vpack.c.b16 %v1465, %v1453
    %v1994 = vpack.c.b16 %v1466, %v1454
    %v1995 = vpack.c.b16 %v1467, %v1455
    %v1996 = vpack.c.b16 %v1480, %v1468
    %v1997 = vpack.c.b16 %v1481, %v1469
    %v1998 = vpack.c.b16 %v1482, %v1470
    %v1999 = vpack.c.b16 %v1483, %v1471
    %v2000 = vpack.c.b16 %v1484, %v1472
    %v2001 = vpack.c.b16 %v1485, %v1473
    %v2002 = vpack.c.b16 %v1486, %v1474
    %v2003 = vpack.c.b16 %v1487, %v1475
    %v2004 = vpack.c.b16 %v1488, %v1476
    %v2005 = vpack.c.b16 %v1489, %v1477
    %v2006 = vpack.c.b16 %v1490, %v1478
    %v2007 = vpack.c.b16 %v1491, %v1479
    %v2008 = vpack.c.b16 %v1504, %v1492
    %v2009 = vpack.c.b16 %v1505, %v1493
    %v2010 = vpack.c.b16 %v1506, %v1494
    %v2011 = vpack.c.b16 %v1507, %v1495
    %v2012 = vpack.c.b16 %v1508, %v1496
    %v2013 = vpack.c.b16 %v1509, %v1497
    %v2014 = vpack.c.b16 %v1510, %v1498
    %v2015 = vpack.c.b16 %v1511, %v1499
    %v2016 = vpack.c.b16 %v1512, %v1500
    %v2017 = vpack.c.b16 %v1513, %v1501
    %v2018 = vpack.c.b16 %v1514, %v1502
    %v2019 = vpack.c.b16 %v1515, %v1503
    %v2020 = vpack.c.b16 %v1528, %v1516
    %v2021 = vpack.c.b16 %v1529, %v1517
    %v2022 = vpack.c.b16 %v1530, %v1518
    %v2023 = vpack.c.b16 %v1531, %v1519
    %v2024 = vpack.c.b16 %v1532, %v1520
    %v2025 = vpack.c.b16 %v1533, %v1521
    %v2026 = vpack.c.b16 %v1534, %v1522
    %v2027 = vpack.c.b16 %v1535, %v1523
    %v2028 = vpack.c.b16 %v1536, %v1524
    %v2029 = vpack.c.b16 %v1537, %v1525
    %v2030 = vpack.c.b16 %v1538, %v1526
    %v2031 = vpack.c.b16 %v1539, %v1527
    %v2032 = vpack.c.b16 %v1552, %v1540
    %v2033 = vpack.c.b16 %v1553, %v1541
    %v2034 = vpack.c.b16 %v1554, %v1542
    %v2035 = vpack.c.b16 %v1555, %v1543
    %v2036 = vpack.c.b16 %v1556, %v1544
    %v2037 = vpack.c.b16 %v1557, %v1545
    %v2038 = vpack.c.b16 %v1558, %v1546
    %v2039 = vpack.c.b16 %v1559, %v1547
    %v2040 = vpack.c.b16 %v1560, %v1548
    %v2041 = vpack.c.b16 %v1561, %v1549
    %v2042 = vpack.c.b16 %v1562, %v1550
    %v2043 = vpack.c.b16 %v1563, %v1551
    %v2044 = vpack.c.b16 %v1576, %v1564
    %v2045 = vpack.c.b16 %v1577, %v1565
    %v2046 = vpack.c.b16 %v1578, %v1566
    %v2047 = vpack.c.b16 %v1579, %v1567
    %v2048 = vpack.c.b16 %v1580, %v1568
    %v2049 = vpack.c.b16 %v1581, %v1569
    %v2050 = vpack.c.b16 %v1582, %v1570
    %v2051 = vpack.c.b16 %v1583, %v1571
    %v2052 = vpack.c.b16 %v1584, %v1572
    %v2053 = vpack.c.b16 %v1585, %v1573
    %v2054 = vpack.c.b16 %v1586, %v1574
    %v2055 = vpack.c.b16 %v1587, %v1575
    %v2056 = vpack.c.b16 %v1600, %v1588
    %v2057 = vpack.c.b16 %v1601, %v1589
    %v2058 = vpack.c.b16 %v1602, %v1590
    %v2059 = vpack.c.b16 %v1603, %v1591
    %v2060 = vpack.c.b16 %v1604, %v1592
    %v2061 = vpack.c.b16 %v1605, %v1593
    %v2062 = vpack.c.b16 %v1606, %v1594
    %v2063 = vpack.c.b16 %v1607, %v1595
    %v2064 = vpack.c.b16 %v1608, %v1596
    %v2065 = vpack.c.b16 %v1609, %v1597
    %v2066 = vpack.c.b16 %v1610, %v1598
    %v2067 = vpack.c.b16 %v1611, %v1599
    %v2068 = vpack.c.b16 %v1624, %v1612
    %v2069 = vpack.c.b16 %v1625, %v1613
    %v2070 = vpack.c.b16 %v1626, %v1614
    %v2071 = vpack.c.b16 %v1627, %v1615
    %v2072 = vpack.c.b16 %v1628, %v1616
    %v2073 = vpack.c.b16 %v1629, %v1617
    %v2074 = vpack.c.b16 %v1630, %v1618
    %v2075 = vpack.c.b16 %v1631, %v1619
    %v2076 = vpack.c.b16 %v1632, %v1620
    %v2077 = vpack.c.b16 %v1633, %v1621
    %v2078 = vpack.c.b16 %v1634, %v1622
    %v2079 = vpack.c.b16 %v1635, %v1623
    %v2080 = vpack.c.b16 %v1648, %v1636
    %v2081 = vpack.c.b16 %v1649, %v1637
    %v2082 = vpack.c.b16 %v1650, %v1638
    %v2083 = vpack.c.b16 %v1651, %v1639
    %v2084 = vpack.c.b16 %v1652, %v1640
    %v2085 = vpack.c.b16 %v1653, %v1641
    %v2086 = vpack.c.b16 %v1654, %v1642
    %v2087 = vpack.c.b16 %v1655, %v1643
    %v2088 = vpack.c.b16 %v1656, %v1644
    %v2089 = vpack.c.b16 %v1657, %v1645
    %v2090 = vpack.c.b16 %v1658, %v1646
    %v2091 = vpack.c.b16 %v1659, %v1647
    %v2092 = vpack.c.b16 %v1672, %v1660
    %v2093 = vpack.c.b16 %v1673, %v1661
    %v2094 = vpack.c.b16 %v1674, %v1662
    %v2095 = vpack.c.b16 %v1675, %v1663
    %v2096 = vpack.c.b16 %v1676, %v1664
    %v2097 = vpack.c.b16 %v1677, %v1665
    %v2098 = vpack.c.b16 %v1678, %v1666
    %v2099 = vpack.c.b16 %v1679, %v1667
    %v2100 = vpack.c.b16 %v1680, %v1668
    %v2101 = vpack.c.b16 %v1681, %v1669
    %v2102 = vpack.c.b16 %v1682, %v1670
    %v2103 = vpack.c.b16 %v1683, %v1671
    %v2104 = vpack.c.b16 %v1696, %v1684
    %v2105 = vpack.c.b16 %v1697, %v1685
    %v2106 = vpack.c.b16 %v1698, %v1686
    %v2107 = vpack.c.b16 %v1699, %v1687
    %v2108 = vpack.c.b16 %v1700, %v1688
    %v2109 = vpack.c.b16 %v1701, %v1689
    %v2110 = vpack.c.b16 %v1702, %v1690
    %v2111 = vpack.c.b16 %v1703, %v1691
    %v2112 = vpack.c.b16 %v1704, %v1692
    %v2113 = vpack.c.b16 %v1705, %v1693
    %v2114 = vpack.c.b16 %v1706, %v1694
    %v2115 = vpack.c.b16 %v1707, %v1695
    %v2116 = vpack.c.b16 %v1720, %v1708
    %v2117 = vpack.c.b16 %v1721, %v1709
    %v2118 = vpack.c.b16 %v1722, %v1710
    %v2119 = vpack.c.b16 %v1723, %v1711
    %v2120 = vpack.c.b16 %v1724, %v1712
    %v2121 = vpack.c.b16 %v1725, %v1713
    %v2122 = vpack.c.b16 %v1726, %v1714
    %v2123 = vpack.c.b16 %v1727, %v1715
    %v2124 = vpack.c.b16 %v1728, %v1716
    %v2125 = vpack.c.b16 %v1729, %v1717
    %v2126 = vpack.c.b16 %v1730, %v1718
    %v2127 = vpack.c.b16 %v1731, %v1719
    %v2128 = vpack.c.b16 %v1744, %v1732
    %v2129 = vpack.c.b16 %v1745, %v1733
    %v2130 = vpack.c.b16 %v1746, %v1734
    %v2131 = vpack.c.b16 %v1747, %v1735
    %v2132 = vpack.c.b16 %v1748, %v1736
    %v2133 = vpack.c.b16 %v1749, %v1737
    %v2134 = vpack.c.b16 %v1750, %v1738
    %v2135 = vpack.c.b16 %v1751, %v1739
    %v2136 = vpack.c.b16 %v1752, %v1740
    %v2137 = vpack.c.b16 %v1753, %v1741
    %v2138 = vpack.c.b16 %v1754, %v1742
    %v2139 = vpack.c.b16 %v1755, %v1743
    %v2140 = vpack.c.b16 %v1768, %v1756
    %v2141 = vpack.c.b16 %v1769, %v1757
    %v2142 = vpack.c.b16 %v1770, %v1758
    %v2143 = vpack.c.b16 %v1771, %v1759
    %v2144 = vpack.c.b16 %v1772, %v1760
    %v2145 = vpack.c.b16 %v1773, %v1761
    %v2146 = vpack.c.b16 %v1774, %v1762
    %v2147 = vpack.c.b16 %v1775, %v1763
    %v2148 = vpack.c.b16 %v1776, %v1764
    %v2149 = vpack.c.b16 %v1777, %v1765
    %v2150 = vpack.c.b16 %v1778, %v1766
    %v2151 = vpack.c.b16 %v1779, %v1767
    %v2152 = vpack.c.b16 %v1792, %v1780
    %v2153 = vpack.c.b16 %v1793, %v1781
    %v2154 = vpack.c.b16 %v1794, %v1782
    %v2155 = vpack.c.b16 %v1795, %v1783
    %v2156 = vpack.c.b16 %v1796, %v1784
    %v2157 = vpack.c.b16 %v1797, %v1785
    %v2158 = vpack.c.b16 %v1798, %v1786
    %v2159 = vpack.c.b16 %v1799, %v1787
    %v2160 = vpack.c.b16 %v1800, %v1788
    %v2161 = vpack.c.b16 %v1801, %v1789
    %v2162 = vpack.c.b16 %v1802, %v1790
    %v2163 = vpack.c.b16 %v1803, %v1791
    %v2164 = vpack.c.b16 %v1816, %v1804
    %v2165 = vpack.c.b16 %v1817, %v1805
    %v2166 = vpack.c.b16 %v1818, %v1806
    %v2167 = vpack.c.b16 %v1819, %v1807
    %v2168 = vpack.c.b16 %v1820, %v1808
    %v2169 = vpack.c.b16 %v1821, %v1809
    %v2170 = vpack.c.b16 %v1822, %v1810
    %v2171 = vpack.c.b16 %v1823, %v1811
    %v2172 = vpack.c.b16 %v1824, %v1812
    %v2173 = vpack.c.b16 %v1825, %v1813
    %v2174 = vpack.c.b16 %v1826, %v1814
    %v2175 = vpack.c.b16 %v1827, %v1815
    %v2176 = vpack.c.b16 %v1840, %v1828
    %v2177 = vpack.c.b16 %v1841, %v1829
    %v2178 = vpack.c.b16 %v1842, %v1830
    %v2179 = vpack.c.b16 %v1843, %v1831
    %v2180 = vpack.c.b16 %v1844, %v1832
    %v2181 = vpack.c.b16 %v1845, %v1833
    %v2182 = vpack.c.b16 %v1846, %v1834
    %v2183 = vpack.c.b16 %v1847, %v1835
    %v2184 = vpack.c.b16 %v1848, %v1836
    %v2185 = vpack.c.b16 %v1849, %v1837
    %v2186 = vpack.c.b16 %v1850, %v1838
    %v2187 = vpack.c.b16 %v1851, %v1839
    %v2188 = vpack.c.b16 %v1864, %v1852
    %v2189 = vpack.c.b16 %v1865, %v1853
    %v2190 = vpack.c.b16 %v1866, %v1854
    %v2191 = vpack.c.b16 %v1867, %v1855
    %v2192 = vpack.c.b16 %v1868, %v1856
    %v2193 = vpack.c.b16 %v1869, %v1857
    %v2194 = vpack.c.b16 %v1870, %v1858
    %v2195 = vpack.c.b16 %v1871, %v1859
    %v2196 = vpack.c.b16 %v1872, %v1860
    %v2197 = vpack.c.b16 %v1873, %v1861
    %v2198 = vpack.c.b16 %v1874, %v1862
    %v2199 = vpack.c.b16 %v1875, %v1863
    %v2200 = vpack.c.b16 %v1888, %v1876
    %v2201 = vpack.c.b16 %v1889, %v1877
    %v2202 = vpack.c.b16 %v1890, %v1878
    %v2203 = vpack.c.b16 %v1891, %v1879
    %v2204 = vpack.c.b16 %v1892, %v1880
    %v2205 = vpack.c.b16 %v1893, %v1881
    %v2206 = vpack.c.b16 %v1894, %v1882
    %v2207 = vpack.c.b16 %v1895, %v1883
    %v2208 = vpack.c.b16 %v1896, %v1884
    %v2209 = vpack.c.b16 %v1897, %v1885
    %v2210 = vpack.c.b16 %v1898, %v1886
    %v2211 = vpack.c.b16 %v1899, %v1887
    %v2212 = vpack.c.b16 %v1912, %v1900
    %v2213 = vpack.c.b16 %v1913, %v1901
    %v2214 = vpack.c.b16 %v1914, %v1902
    %v2215 = vpack.c.b16 %v1915, %v1903
    %v2216 = vpack.c.b16 %v1916, %v1904
    %v2217 = vpack.c.b16 %v1917, %v1905
    %v2218 = vpack.c.b16 %v1918, %v1906
    %v2219 = vpack.c.b16 %v1919, %v1907
    %v2220 = vpack.c.b16 %v1920, %v1908
    %v2221 = vpack.c.b16 %v1921, %v1909
    %v2222 = vpack.c.b16 %v1922, %v1910
    %v2223 = vpack.c.b16 %v1923, %v1911
    %v2224 = vpack.c.b16 %v1936, %v1924
    %v2225 = vpack.c.b16 %v1937, %v1925
    %v2226 = vpack.c.b16 %v1938, %v1926
    %v2227 = vpack.c.b16 %v1939, %v1927
    %v2228 = vpack.c.b16 %v1940, %v1928
    %v2229 = vpack.c.b16 %v1941, %v1929
    %v2230 = vpack.c.b16 %v1942, %v1930
    %v2231 = vpack.c.b16 %v1943, %v1931
    %v2232 = vpack.c.b16 %v1944, %v1932
    %v2233 = vpack.c.b16 %v1945, %v1933
    %v2234 = vpack.c.b16 %v1946, %v1934
    %v2235 = vpack.c.b16 %v1947, %v1935
    %2524 = vmatprep.subr.bf16.mxu0 %v1949
    %2525 = vmatpush1.bf16.msra.mxu0 %v1948
    %2526 = vmatprep.subr.bf16.mxu0 %v1961
    %2527 = vmatpush1.bf16.msra.mxu0 %v1960
    %2528 = vmatprep.subr.bf16.mxu0 %v1973
    %2529 = vmatpush1.bf16.msra.mxu0 %v1972
    %2530 = vmatprep.subr.bf16.mxu0 %v1985
    %2531 = vmatpush1.bf16.msra.mxu0 %v1984
    %2532 = vmatprep.subr.bf16.mxu0 %v1997
    %2533 = vmatpush1.bf16.msra.mxu0 %v1996
    %2534 = vmatprep.subr.bf16.mxu0 %v2009
    %2535 = vmatpush1.bf16.msra.mxu0 %v2008
    %2536 = vmatprep.subr.bf16.mxu0 %v2021
    %2537 = vmatpush1.bf16.msra.mxu0 %v2020
    %2538 = vmatprep.subr.bf16.mxu0 %v2033
    %2539 = vmatpush1.bf16.msra.mxu0 %v2032
    %2540 = vmatprep.subr.bf16.mxu0 %v2045
    %2541 = vmatpush1.bf16.msra.mxu0 %v2044
    %2542 = vmatprep.subr.bf16.mxu0 %v2057
    %2543 = vmatpush1.bf16.msra.mxu0 %v2056
    %2544 = vmatprep.subr.bf16.mxu0 %v2069
    %2545 = vmatpush1.bf16.msra.mxu0 %v2068
    %2546 = vmatprep.subr.bf16.mxu0 %v2081
    %2547 = vmatpush1.bf16.msra.mxu0 %v2080
    %2548 = vmatprep.subr.bf16.mxu0 %v2093
    %2549 = vmatpush1.bf16.msra.mxu0 %v2092
    %2550 = vmatprep.subr.bf16.mxu0 %v2105
    %2551 = vmatpush1.bf16.msra.mxu0 %v2104
    %2552 = vmatprep.subr.bf16.mxu0 %v2117
    %2553 = vmatpush1.bf16.msra.mxu0 %v2116
    %2554 = vmatprep.subr.bf16.mxu0 %v2129
    %2555 = vmatpush1.bf16.msra.mxu0 %v2128
    %2556 = vmatprep.mubr.bf16.mxu0 0
    %2557 = vmatmul.mubr.bf16.gmra.mrb[0].mxu0 0
    %v2558 = vpop.f32.mrb[0].mxu0
    %v2559 = vadd.f32 0.0, %v2558
    %v2560 = vpop.f32.mrb[0].mxu0
    %v2561 = vadd.f32 0.0, %v2560
    %v2562 = vpop.f32.mrb[0].mxu0
    %v2563 = vpop.f32.mrb[0].mxu0
    %2564 = vdwg.mxu0
    %2565 = vmatprep.subr.bf16.mxu0 %v2141
    %2566 = vmatpush1.bf16.msra.mxu0 %v2140
    %2567 = vmatprep.subr.bf16.mxu0 %v2153
    %2568 = vmatpush1.bf16.msra.mxu0 %v2152
    %2569 = vmatprep.subr.bf16.mxu0 %v2165
    %2570 = vmatpush1.bf16.msra.mxu0 %v2164
    %2571 = vmatprep.subr.bf16.mxu0 %v2177
    %2572 = vmatpush1.bf16.msra.mxu0 %v2176
    %2573 = vmatprep.subr.bf16.mxu0 %v2189
    %2574 = vmatpush1.bf16.msra.mxu0 %v2188
    %2575 = vmatprep.subr.bf16.mxu0 %v2201
    %2576 = vmatpush1.bf16.msra.mxu0 %v2200
    %2577 = vmatprep.subr.bf16.mxu0 %v2213
    %2578 = vmatpush1.bf16.msra.mxu0 %v2212
    %2579 = vmatprep.subr.bf16.mxu0 %v2225
    %2580 = vmatpush1.bf16.msra.mxu0 %v2224
    %2581 = vmatprep.subr.bf16.mxu0 0
    %2582 = vmatpush1.bf16.msra.mxu0 0
    %2583 = vmatprep.subr.bf16.mxu0 0
    %2584 = vmatpush1.bf16.msra.mxu0 0
    %2585 = vmatprep.subr.bf16.mxu0 0
    %2586 = vmatpush1.bf16.msra.mxu0 0
    %2587 = vmatprep.subr.bf16.mxu0 0
    %2588 = vmatpush1.bf16.msra.mxu0 0
    %2589 = vmatprep.subr.bf16.mxu0 0
    %2590 = vmatpush1.bf16.msra.mxu0 0
    %2591 = vmatprep.subr.bf16.mxu0 0
    %2592 = vmatpush1.bf16.msra.mxu0 0
    %2593 = vmatprep.subr.bf16.mxu0 0
    %2594 = vmatpush1.bf16.msra.mxu0 0
    %2595 = vmatprep.subr.bf16.mxu0 0
    %2596 = vmatpush1.bf16.msra.mxu0 0
    %2597 = vmatprep.mubr.bf16.mxu0 0
    %2598 = vmatmul.mubr.bf16.gmra.mrb[0].mxu0 0
    %v2599 = vpop.f32.mrb[0].mxu0
    %v2600 = vadd.f32 %v2559, %v2599
    %v2601 = vpop.f32.mrb[0].mxu0
    %v2602 = vadd.f32 %v2561, %v2601
    %v2603 = vpop.f32.mrb[0].mxu0
    %v2604 = vpop.f32.mrb[0].mxu0
    %2605 = vdwg.mxu0
    %2606 = vmatprep.subr.bf16.mxu0 %v1951
    %2607 = vmatpush1.bf16.msra.mxu0 %v1950
    %2608 = vmatprep.subr.bf16.mxu0 %v1963
    %2609 = vmatpush1.bf16.msra.mxu0 %v1962
    %2610 = vmatprep.subr.bf16.mxu0 %v1975
    %2611 = vmatpush1.bf16.msra.mxu0 %v1974
    %2612 = vmatprep.subr.bf16.mxu0 %v1987
    %2613 = vmatpush1.bf16.msra.mxu0 %v1986
    %2614 = vmatprep.subr.bf16.mxu0 %v1999
    %2615 = vmatpush1.bf16.msra.mxu0 %v1998
    %2616 = vmatprep.subr.bf16.mxu0 %v2011
    %2617 = vmatpush1.bf16.msra.mxu0 %v2010
    %2618 = vmatprep.subr.bf16.mxu0 %v2023
    %2619 = vmatpush1.bf16.msra.mxu0 %v2022
    %2620 = vmatprep.subr.bf16.mxu0 %v2035
    %2621 = vmatpush1.bf16.msra.mxu0 %v2034
    %2622 = vmatprep.subr.bf16.mxu0 %v2047
    %2623 = vmatpush1.bf16.msra.mxu0 %v2046
    %2624 = vmatprep.subr.bf16.mxu0 %v2059
    %2625 = vmatpush1.bf16.msra.mxu0 %v2058
    %2626 = vmatprep.subr.bf16.mxu0 %v2071
    %2627 = vmatpush1.bf16.msra.mxu0 %v2070
    %2628 = vmatprep.subr.bf16.mxu0 %v2083
    %2629 = vmatpush1.bf16.msra.mxu0 %v2082
    %2630 = vmatprep.subr.bf16.mxu0 %v2095
    %2631 = vmatpush1.bf16.msra.mxu0 %v2094
    %2632 = vmatprep.subr.bf16.mxu0 %v2107
    %2633 = vmatpush1.bf16.msra.mxu0 %v2106
    %2634 = vmatprep.subr.bf16.mxu0 %v2119
    %2635 = vmatpush1.bf16.msra.mxu0 %v2118
    %2636 = vmatprep.subr.bf16.mxu0 %v2131
    %2637 = vmatpush1.bf16.msra.mxu0 %v2130
    %2638 = vmatprep.mubr.bf16.mxu0 0
    %2639 = vmatmul.mubr.bf16.gmra.mrb[0].mxu0 0
    %v2640 = vpop.f32.mrb[0].mxu0
    %v2641 = vadd.f32 0.0, %v2640
    %v2642 = vpop.f32.mrb[0].mxu0
    %v2643 = vadd.f32 0.0, %v2642
    %v2644 = vpop.f32.mrb[0].mxu0
    %v2645 = vpop.f32.mrb[0].mxu0
    %2646 = vdwg.mxu0
    %2647 = vmatprep.subr.bf16.mxu0 %v2143
    %2648 = vmatpush1.bf16.msra.mxu0 %v2142
    %2649 = vmatprep.subr.bf16.mxu0 %v2155
    %2650 = vmatpush1.bf16.msra.mxu0 %v2154
    %2651 = vmatprep.subr.bf16.mxu0 %v2167
    %2652 = vmatpush1.bf16.msra.mxu0 %v2166
    %2653 = vmatprep.subr.bf16.mxu0 %v2179
    %2654 = vmatpush1.bf16.msra.mxu0 %v2178
    %2655 = vmatprep.subr.bf16.mxu0 %v2191
    %2656 = vmatpush1.bf16.msra.mxu0 %v2190
    %2657 = vmatprep.subr.bf16.mxu0 %v2203
    %2658 = vmatpush1.bf16.msra.mxu0 %v2202
    %2659 = vmatprep.subr.bf16.mxu0 %v2215
    %2660 = vmatpush1.bf16.msra.mxu0 %v2214
    %2661 = vmatprep.subr.bf16.mxu0 %v2227
    %2662 = vmatpush1.bf16.msra.mxu0 %v2226
    %2663 = vmatprep.subr.bf16.mxu0 0
    %2664 = vmatpush1.bf16.msra.mxu0 0
    %2665 = vmatprep.subr.bf16.mxu0 0
    %2666 = vmatpush1.bf16.msra.mxu0 0
    %2667 = vmatprep.subr.bf16.mxu0 0
    %2668 = vmatpush1.bf16.msra.mxu0 0
    %2669 = vmatprep.subr.bf16.mxu0 0
    %2670 = vmatpush1.bf16.msra.mxu0 0
    %2671 = vmatprep.subr.bf16.mxu0 0
    %2672 = vmatpush1.bf16.msra.mxu0 0
    %2673 = vmatprep.subr.bf16.mxu0 0
    %2674 = vmatpush1.bf16.msra.mxu0 0
    %2675 = vmatprep.subr.bf16.mxu0 0
    %2676 = vmatpush1.bf16.msra.mxu0 0
    %2677 = vmatprep.subr.bf16.mxu0 0
    %2678 = vmatpush1.bf16.msra.mxu0 0
    %2679 = vmatprep.mubr.bf16.mxu0 0
    %2680 = vmatmul.mubr.bf16.gmra.mrb[0].mxu0 0
    %v2681 = vpop.f32.mrb[0].mxu0
    %v2682 = vadd.f32 %v2641, %v2681
    %v2683 = vpop.f32.mrb[0].mxu0
    %v2684 = vadd.f32 %v2643, %v2683
    %v2685 = vpop.f32.mrb[0].mxu0
    %v2686 = vpop.f32.mrb[0].mxu0
    %2687 = vdwg.mxu0
    %2688 = vmatprep.subr.bf16.mxu0 %v1953
    %2689 = vmatpush1.bf16.msra.mxu0 %v1952
    %2690 = vmatprep.subr.bf16.mxu0 %v1965
    %2691 = vmatpush1.bf16.msra.mxu0 %v1964
    %2692 = vmatprep.subr.bf16.mxu0 %v1977
    %2693 = vmatpush1.bf16.msra.mxu0 %v1976
    %2694 = vmatprep.subr.bf16.mxu0 %v1989
    %2695 = vmatpush1.bf16.msra.mxu0 %v1988
    %2696 = vmatprep.subr.bf16.mxu0 %v2001
    %2697 = vmatpush1.bf16.msra.mxu0 %v2000
    %2698 = vmatprep.subr.bf16.mxu0 %v2013
    %2699 = vmatpush1.bf16.msra.mxu0 %v2012
    %2700 = vmatprep.subr.bf16.mxu0 %v2025
    %2701 = vmatpush1.bf16.msra.mxu0 %v2024
    %2702 = vmatprep.subr.bf16.mxu0 %v2037
    %2703 = vmatpush1.bf16.msra.mxu0 %v2036
    %2704 = vmatprep.subr.bf16.mxu0 %v2049
    %2705 = vmatpush1.bf16.msra.mxu0 %v2048
    %2706 = vmatprep.subr.bf16.mxu0 %v2061
    %2707 = vmatpush1.bf16.msra.mxu0 %v2060
    %2708 = vmatprep.subr.bf16.mxu0 %v2073
    %2709 = vmatpush1.bf16.msra.mxu0 %v2072
    %2710 = vmatprep.subr.bf16.mxu0 %v2085
    %2711 = vmatpush1.bf16.msra.mxu0 %v2084
    %2712 = vmatprep.subr.bf16.mxu0 %v2097
    %2713 = vmatpush1.bf16.msra.mxu0 %v2096
    %2714 = vmatprep.subr.bf16.mxu0 %v2109
    %2715 = vmatpush1.bf16.msra.mxu0 %v2108
    %2716 = vmatprep.subr.bf16.mxu0 %v2121
    %2717 = vmatpush1.bf16.msra.mxu0 %v2120
    %2718 = vmatprep.subr.bf16.mxu0 %v2133
    %2719 = vmatpush1.bf16.msra.mxu0 %v2132
    %2720 = vmatprep.mubr.bf16.mxu0 0
    %2721 = vmatmul.mubr.bf16.gmra.mrb[0].mxu0 0
    %v2722 = vpop.f32.mrb[0].mxu0
    %v2723 = vadd.f32 0.0, %v2722
    %v2724 = vpop.f32.mrb[0].mxu0
    %v2725 = vadd.f32 0.0, %v2724
    %v2726 = vpop.f32.mrb[0].mxu0
    %v2727 = vpop.f32.mrb[0].mxu0
    %2728 = vdwg.mxu0
    %2729 = vmatprep.subr.bf16.mxu0 %v2145
    %2730 = vmatpush1.bf16.msra.mxu0 %v2144
    %2731 = vmatprep.subr.bf16.mxu0 %v2157
    %2732 = vmatpush1.bf16.msra.mxu0 %v2156
    %2733 = vmatprep.subr.bf16.mxu0 %v2169
    %2734 = vmatpush1.bf16.msra.mxu0 %v2168
    %2735 = vmatprep.subr.bf16.mxu0 %v2181
    %2736 = vmatpush1.bf16.msra.mxu0 %v2180
    %2737 = vmatprep.subr.bf16.mxu0 %v2193
    %2738 = vmatpush1.bf16.msra.mxu0 %v2192
    %2739 = vmatprep.subr.bf16.mxu0 %v2205
    %2740 = vmatpush1.bf16.msra.mxu0 %v2204
    %2741 = vmatprep.subr.bf16.mxu0 %v2217
    %2742 = vmatpush1.bf16.msra.mxu0 %v2216
    %2743 = vmatprep.subr.bf16.mxu0 %v2229
    %2744 = vmatpush1.bf16.msra.mxu0 %v2228
    %2745 = vmatprep.subr.bf16.mxu0 0
    %2746 = vmatpush1.bf16.msra.mxu0 0
    %2747 = vmatprep.subr.bf16.mxu0 0
    %2748 = vmatpush1.bf16.msra.mxu0 0
    %2749 = vmatprep.subr.bf16.mxu0 0
    %2750 = vmatpush1.bf16.msra.mxu0 0
    %2751 = vmatprep.subr.bf16.mxu0 0
    %2752 = vmatpush1.bf16.msra.mxu0 0
    %2753 = vmatprep.subr.bf16.mxu0 0
    %2754 = vmatpush1.bf16.msra.mxu0 0
    %2755 = vmatprep.subr.bf16.mxu0 0
    %2756 = vmatpush1.bf16.msra.mxu0 0
    %2757 = vmatprep.subr.bf16.mxu0 0
    %2758 = vmatpush1.bf16.msra.mxu0 0
    %2759 = vmatprep.subr.bf16.mxu0 0
    %2760 = vmatpush1.bf16.msra.mxu0 0
    %2761 = vmatprep.mubr.bf16.mxu0 0
    %2762 = vmatmul.mubr.bf16.gmra.mrb[0].mxu0 0
    %v2763 = vpop.f32.mrb[0].mxu0
    %v2764 = vadd.f32 %v2723, %v2763
    %v2765 = vpop.f32.mrb[0].mxu0
    %v2766 = vadd.f32 %v2725, %v2765
    %v2767 = vpop.f32.mrb[0].mxu0
    %v2768 = vpop.f32.mrb[0].mxu0
    %2769 = vdwg.mxu0
    %2770 = vmatprep.subr.bf16.mxu0 %v1955
    %2771 = vmatpush1.bf16.msra.mxu0 %v1954
    %2772 = vmatprep.subr.bf16.mxu0 %v1967
    %2773 = vmatpush1.bf16.msra.mxu0 %v1966
    %2774 = vmatprep.subr.bf16.mxu0 %v1979
    %2775 = vmatpush1.bf16.msra.mxu0 %v1978
    %2776 = vmatprep.subr.bf16.mxu0 %v1991
    %2777 = vmatpush1.bf16.msra.mxu0 %v1990
    %2778 = vmatprep.subr.bf16.mxu0 %v2003
    %2779 = vmatpush1.bf16.msra.mxu0 %v2002
    %2780 = vmatprep.subr.bf16.mxu0 %v2015
    %2781 = vmatpush1.bf16.msra.mxu0 %v2014
    %2782 = vmatprep.subr.bf16.mxu0 %v2027
    %2783 = vmatpush1.bf16.msra.mxu0 %v2026
    %2784 = vmatprep.subr.bf16.mxu0 %v2039
    %2785 = vmatpush1.bf16.msra.mxu0 %v2038
    %2786 = vmatprep.subr.bf16.mxu0 %v2051
    %2787 = vmatpush1.bf16.msra.mxu0 %v2050
    %2788 = vmatprep.subr.bf16.mxu0 %v2063
    %2789 = vmatpush1.bf16.msra.mxu0 %v2062
    %2790 = vmatprep.subr.bf16.mxu0 %v2075
    %2791 = vmatpush1.bf16.msra.mxu0 %v2074
    %2792 = vmatprep.subr.bf16.mxu0 %v2087
    %2793 = vmatpush1.bf16.msra.mxu0 %v2086
    %2794 = vmatprep.subr.bf16.mxu0 %v2099
    %2795 = vmatpush1.bf16.msra.mxu0 %v2098
    %2796 = vmatprep.subr.bf16.mxu0 %v2111
    %2797 = vmatpush1.bf16.msra.mxu0 %v2110
    %2798 = vmatprep.subr.bf16.mxu0 %v2123
    %2799 = vmatpush1.bf16.msra.mxu0 %v2122
    %2800 = vmatprep.subr.bf16.mxu0 %v2135
    %2801 = vmatpush1.bf16.msra.mxu0 %v2134
    %2802 = vmatprep.mubr.bf16.mxu0 0
    %2803 = vmatmul.mubr.bf16.gmra.mrb[0].mxu0 0
    %v2804 = vpop.f32.mrb[0].mxu0
    %v2805 = vadd.f32 0.0, %v2804
    %v2806 = vpop.f32.mrb[0].mxu0
    %v2807 = vadd.f32 0.0, %v2806
    %v2808 = vpop.f32.mrb[0].mxu0
    %v2809 = vpop.f32.mrb[0].mxu0
    %2810 = vdwg.mxu0
    %2811 = vmatprep.subr.bf16.mxu0 %v2147
    %2812 = vmatpush1.bf16.msra.mxu0 %v2146
    %2813 = vmatprep.subr.bf16.mxu0 %v2159
    %2814 = vmatpush1.bf16.msra.mxu0 %v2158
    %2815 = vmatprep.subr.bf16.mxu0 %v2171
    %2816 = vmatpush1.bf16.msra.mxu0 %v2170
    %2817 = vmatprep.subr.bf16.mxu0 %v2183
    %2818 = vmatpush1.bf16.msra.mxu0 %v2182
    %2819 = vmatprep.subr.bf16.mxu0 %v2195
    %2820 = vmatpush1.bf16.msra.mxu0 %v2194
    %2821 = vmatprep.subr.bf16.mxu0 %v2207
    %2822 = vmatpush1.bf16.msra.mxu0 %v2206
    %2823 = vmatprep.subr.bf16.mxu0 %v2219
    %2824 = vmatpush1.bf16.msra.mxu0 %v2218
    %2825 = vmatprep.subr.bf16.mxu0 %v2231
    %2826 = vmatpush1.bf16.msra.mxu0 %v2230
    %2827 = vmatprep.subr.bf16.mxu0 0
    %2828 = vmatpush1.bf16.msra.mxu0 0
    %2829 = vmatprep.subr.bf16.mxu0 0
    %2830 = vmatpush1.bf16.msra.mxu0 0
    %2831 = vmatprep.subr.bf16.mxu0 0
    %2832 = vmatpush1.bf16.msra.mxu0 0
    %2833 = vmatprep.subr.bf16.mxu0 0
    %2834 = vmatpush1.bf16.msra.mxu0 0
    %2835 = vmatprep.subr.bf16.mxu0 0
    %2836 = vmatpush1.bf16.msra.mxu0 0
    %2837 = vmatprep.subr.bf16.mxu0 0
    %2838 = vmatpush1.bf16.msra.mxu0 0
    %2839 = vmatprep.subr.bf16.mxu0 0
    %2840 = vmatpush1.bf16.msra.mxu0 0
    %2841 = vmatprep.subr.bf16.mxu0 0
    %2842 = vmatpush1.bf16.msra.mxu0 0
    %2843 = vmatprep.mubr.bf16.mxu0 0
    %2844 = vmatmul.mubr.bf16.gmra.mrb[0].mxu0 0
    %v2845 = vpop.f32.mrb[0].mxu0
    %v2846 = vadd.f32 %v2805, %v2845
    %v2847 = vpop.f32.mrb[0].mxu0
    %v2848 = vadd.f32 %v2807, %v2847
    %v2849 = vpop.f32.mrb[0].mxu0
    %v2850 = vpop.f32.mrb[0].mxu0
    %2851 = vdwg.mxu0
    %2852 = vmatprep.subr.bf16.mxu0 %v1957
    %2853 = vmatpush1.bf16.msra.mxu0 %v1956
    %2854 = vmatprep.subr.bf16.mxu0 %v1969
    %2855 = vmatpush1.bf16.msra.mxu0 %v1968
    %2856 = vmatprep.subr.bf16.mxu0 %v1981
    %2857 = vmatpush1.bf16.msra.mxu0 %v1980
    %2858 = vmatprep.subr.bf16.mxu0 %v1993
    %2859 = vmatpush1.bf16.msra.mxu0 %v1992
    %2860 = vmatprep.subr.bf16.mxu0 %v2005
    %2861 = vmatpush1.bf16.msra.mxu0 %v2004
    %2862 = vmatprep.subr.bf16.mxu0 %v2017
    %2863 = vmatpush1.bf16.msra.mxu0 %v2016
    %2864 = vmatprep.subr.bf16.mxu0 %v2029
    %2865 = vmatpush1.bf16.msra.mxu0 %v2028
    %2866 = vmatprep.subr.bf16.mxu0 %v2041
    %2867 = vmatpush1.bf16.msra.mxu0 %v2040
    %2868 = vmatprep.subr.bf16.mxu0 %v2053
    %2869 = vmatpush1.bf16.msra.mxu0 %v2052
    %2870 = vmatprep.subr.bf16.mxu0 %v2065
    %2871 = vmatpush1.bf16.msra.mxu0 %v2064
    %2872 = vmatprep.subr.bf16.mxu0 %v2077
    %2873 = vmatpush1.bf16.msra.mxu0 %v2076
    %2874 = vmatprep.subr.bf16.mxu0 %v2089
    %2875 = vmatpush1.bf16.msra.mxu0 %v2088
    %2876 = vmatprep.subr.bf16.mxu0 %v2101
    %2877 = vmatpush1.bf16.msra.mxu0 %v2100
    %2878 = vmatprep.subr.bf16.mxu0 %v2113
    %2879 = vmatpush1.bf16.msra.mxu0 %v2112
    %2880 = vmatprep.subr.bf16.mxu0 %v2125
    %2881 = vmatpush1.bf16.msra.mxu0 %v2124
    %2882 = vmatprep.subr.bf16.mxu0 %v2137
    %2883 = vmatpush1.bf16.msra.mxu0 %v2136
    %2884 = vmatprep.mubr.bf16.mxu0 0
    %2885 = vmatmul.mubr.bf16.gmra.mrb[0].mxu0 0
    %v2886 = vpop.f32.mrb[0].mxu0
    %v2887 = vadd.f32 0.0, %v2886
    %v2888 = vpop.f32.mrb[0].mxu0
    %v2889 = vadd.f32 0.0, %v2888
    %v2890 = vpop.f32.mrb[0].mxu0
    %v2891 = vpop.f32.mrb[0].mxu0
    %2892 = vdwg.mxu0
    %2893 = vmatprep.subr.bf16.mxu0 %v2149
    %2894 = vmatpush1.bf16.msra.mxu0 %v2148
    %2895 = vmatprep.subr.bf16.mxu0 %v2161
    %2896 = vmatpush1.bf16.msra.mxu0 %v2160
    %2897 = vmatprep.subr.bf16.mxu0 %v2173
    %2898 = vmatpush1.bf16.msra.mxu0 %v2172
    %2899 = vmatprep.subr.bf16.mxu0 %v2185
    %2900 = vmatpush1.bf16.msra.mxu0 %v2184
    %2901 = vmatprep.subr.bf16.mxu0 %v2197
    %2902 = vmatpush1.bf16.msra.mxu0 %v2196
    %2903 = vmatprep.subr.bf16.mxu0 %v2209
    %2904 = vmatpush1.bf16.msra.mxu0 %v2208
    %2905 = vmatprep.subr.bf16.mxu0 %v2221
    %2906 = vmatpush1.bf16.msra.mxu0 %v2220
    %2907 = vmatprep.subr.bf16.mxu0 %v2233
    %2908 = vmatpush1.bf16.msra.mxu0 %v2232
    %2909 = vmatprep.subr.bf16.mxu0 0
    %2910 = vmatpush1.bf16.msra.mxu0 0
    %2911 = vmatprep.subr.bf16.mxu0 0
    %2912 = vmatpush1.bf16.msra.mxu0 0
    %2913 = vmatprep.subr.bf16.mxu0 0
    %2914 = vmatpush1.bf16.msra.mxu0 0
    %2915 = vmatprep.subr.bf16.mxu0 0
    %2916 = vmatpush1.bf16.msra.mxu0 0
    %2917 = vmatprep.subr.bf16.mxu0 0
    %2918 = vmatpush1.bf16.msra.mxu0 0
    %2919 = vmatprep.subr.bf16.mxu0 0
    %2920 = vmatpush1.bf16.msra.mxu0 0
    %2921 = vmatprep.subr.bf16.mxu0 0
    %2922 = vmatpush1.bf16.msra.mxu0 0
    %2923 = vmatprep.subr.bf16.mxu0 0
    %2924 = vmatpush1.bf16.msra.mxu0 0
    %2925 = vmatprep.mubr.bf16.mxu0 0
    %2926 = vmatmul.mubr.bf16.gmra.mrb[0].mxu0 0
    %v2927 = vpop.f32.mrb[0].mxu0
    %v2928 = vadd.f32 %v2887, %v2927
    %v2929 = vpop.f32.mrb[0].mxu0
    %v2930 = vadd.f32 %v2889, %v2929
    %v2931 = vpop.f32.mrb[0].mxu0
    %v2932 = vpop.f32.mrb[0].mxu0
    %2933 = vdwg.mxu0
    %2934 = vmatprep.subr.bf16.mxu0 %v1959
    %2935 = vmatpush1.bf16.msra.mxu0 %v1958
    %2936 = vmatprep.subr.bf16.mxu0 %v1971
    %2937 = vmatpush1.bf16.msra.mxu0 %v1970
    %2938 = vmatprep.subr.bf16.mxu0 %v1983
    %2939 = vmatpush1.bf16.msra.mxu0 %v1982
    %2940 = vmatprep.subr.bf16.mxu0 %v1995
    %2941 = vmatpush1.bf16.msra.mxu0 %v1994
    %2942 = vmatprep.subr.bf16.mxu0 %v2007
    %2943 = vmatpush1.bf16.msra.mxu0 %v2006
    %2944 = vmatprep.subr.bf16.mxu0 %v2019
    %2945 = vmatpush1.bf16.msra.mxu0 %v2018
    %2946 = vmatprep.subr.bf16.mxu0 %v2031
    %2947 = vmatpush1.bf16.msra.mxu0 %v2030
    %2948 = vmatprep.subr.bf16.mxu0 %v2043
    %2949 = vmatpush1.bf16.msra.mxu0 %v2042
    %2950 = vmatprep.subr.bf16.mxu0 %v2055
    %2951 = vmatpush1.bf16.msra.mxu0 %v2054
    %2952 = vmatprep.subr.bf16.mxu0 %v2067
    %2953 = vmatpush1.bf16.msra.mxu0 %v2066
    %2954 = vmatprep.subr.bf16.mxu0 %v2079
    %2955 = vmatpush1.bf16.msra.mxu0 %v2078
    %2956 = vmatprep.subr.bf16.mxu0 %v2091
    %2957 = vmatpush1.bf16.msra.mxu0 %v2090
    %2958 = vmatprep.subr.bf16.mxu0 %v2103
    %2959 = vmatpush1.bf16.msra.mxu0 %v2102
    %2960 = vmatprep.subr.bf16.mxu0 %v2115
    %2961 = vmatpush1.bf16.msra.mxu0 %v2114
    %2962 = vmatprep.subr.bf16.mxu0 %v2127
    %2963 = vmatpush1.bf16.msra.mxu0 %v2126
    %2964 = vmatprep.subr.bf16.mxu0 %v2139
    %2965 = vmatpush1.bf16.msra.mxu0 %v2138
    %2966 = vmatprep.mubr.bf16.mxu0 0
    %2967 = vmatmul.mubr.bf16.gmra.mrb[0].mxu0 0
    %v2968 = vpop.f32.mrb[0].mxu0
    %v2969 = vadd.f32 0.0, %v2968
    %v2970 = vpop.f32.mrb[0].mxu0
    %v2971 = vadd.f32 0.0, %v2970
    %v2972 = vpop.f32.mrb[0].mxu0
    %v2973 = vpop.f32.mrb[0].mxu0
    %2974 = vdwg.mxu0
    %2975 = vmatprep.subr.bf16.mxu0 %v2151
    %2976 = vmatpush1.bf16.msra.mxu0 %v2150
    %2977 = vmatprep.subr.bf16.mxu0 %v2163
    %2978 = vmatpush1.bf16.msra.mxu0 %v2162
    %2979 = vmatprep.subr.bf16.mxu0 %v2175
    %2980 = vmatpush1.bf16.msra.mxu0 %v2174
    %2981 = vmatprep.subr.bf16.mxu0 %v2187
    %2982 = vmatpush1.bf16.msra.mxu0 %v2186
    %2983 = vmatprep.subr.bf16.mxu0 %v2199
    %2984 = vmatpush1.bf16.msra.mxu0 %v2198
    %2985 = vmatprep.subr.bf16.mxu0 %v2211
    %2986 = vmatpush1.bf16.msra.mxu0 %v2210
    %2987 = vmatprep.subr.bf16.mxu0 %v2223
    %2988 = vmatpush1.bf16.msra.mxu0 %v2222
    %2989 = vmatprep.subr.bf16.mxu0 %v2235
    %2990 = vmatpush1.bf16.msra.mxu0 %v2234
    %2991 = vmatprep.subr.bf16.mxu0 0
    %2992 = vmatpush1.bf16.msra.mxu0 0
    %2993 = vmatprep.subr.bf16.mxu0 0
    %2994 = vmatpush1.bf16.msra.mxu0 0
    %2995 = vmatprep.subr.bf16.mxu0 0
    %2996 = vmatpush1.bf16.msra.mxu0 0
    %2997 = vmatprep.subr.bf16.mxu0 0
    %2998 = vmatpush1.bf16.msra.mxu0 0
    %2999 = vmatprep.subr.bf16.mxu0 0
    %3000 = vmatpush1.bf16.msra.mxu0 0
    %3001 = vmatprep.subr.bf16.mxu0 0
    %3002 = vmatpush1.bf16.msra.mxu0 0
    %3003 = vmatprep.subr.bf16.mxu0 0
    %3004 = vmatpush1.bf16.msra.mxu0 0
    %3005 = vmatprep.subr.bf16.mxu0 0
    %3006 = vmatpush1.bf16.msra.mxu0 0
    %3007 = vmatprep.mubr.bf16.mxu0 0
    %3008 = vmatmul.mubr.bf16.gmra.mrb[0].mxu0 0
    %v3009 = vpop.f32.mrb[0].mxu0
    %v3010 = vadd.f32 %v2969, %v3009
    %v3011 = vpop.f32.mrb[0].mxu0
    %v3012 = vadd.f32 %v2971, %v3011
    %v3013 = vpop.f32.mrb[0].mxu0
    %v3014 = vpop.f32.mrb[0].mxu0
    %3015 = vdwg.mxu0
    %v3016 = vadd.f32 %v784, %v2600
    %v3017 = vadd.f32 %v785, %v2602
    %v3018 = vadd.f32 %v786, %v2682
    %v3019 = vadd.f32 %v787, %v2684
    %v3020 = vadd.f32 %v788, %v2764
    %v3021 = vadd.f32 %v789, %v2766
    %v3022 = vadd.f32 %v790, %v2846
    %v3023 = vadd.f32 %v791, %v2848
    %v3024 = vadd.f32 %v792, %v2928
    %v3025 = vadd.f32 %v793, %v2930
    %v3026 = vadd.f32 %v794, %v3010
    %v3027 = vadd.f32 %v795, %v3012
    %v3028 = vxor.u32 %v3016, 2147483648
    %v3029 = vxor.u32 %v3017, 2147483648
    %v3030 = vxor.u32 %v3018, 2147483648
    %v3031 = vxor.u32 %v3019, 2147483648
    %v3032 = vxor.u32 %v3020, 2147483648
    %v3033 = vxor.u32 %v3021, 2147483648
    %v3034 = vxor.u32 %v3022, 2147483648
    %v3035 = vxor.u32 %v3023, 2147483648
    %v3036 = vxor.u32 %v3024, 2147483648
    %v3037 = vmul.f32 %v3028, 1.442695
    %v3038 = vpow.pop %v3037
    %v3039 = vmul.f32 %v3029, 1.442695
    %v3040 = vpow.pop %v3039
    %v3041 = vmul.f32 %v3030, 1.442695
    %v3042 = vpow.pop %v3041
    %v3043 = vmul.f32 %v3031, 1.442695
    %v3044 = vpow.pop %v3043
    %v3045 = vmul.f32 %v3032, 1.442695
    %v3046 = vpow.pop %v3045
    %v3047 = vmul.f32 %v3033, 1.442695
    %v3048 = vpow.pop %v3047
    %v3049 = vmul.f32 %v3034, 1.442695
    %v3050 = vpow.pop %v3049
    %v3051 = vmul.f32 %v3035, 1.442695
    %v3052 = vpow.pop %v3051
    %v3053 = vmul.f32 %v3036, 1.442695
    %v3054 = vpow.pop %v3053
    %v3055 = vadd.f32 %v3038, 1.0
    %v3056 = vadd.f32 %v3040, 1.0
    %v3057 = vadd.f32 %v3042, 1.0
    %v3058 = vadd.f32 %v3044, 1.0
    %v3059 = vadd.f32 %v3046, 1.0
    %v3060 = vadd.f32 %v3048, 1.0
    %v3061 = vadd.f32 %v3050, 1.0
    %v3062 = vadd.f32 %v3052, 1.0
    %v3063 = vadd.f32 %v3054, 1.0
    %v3064 = vrcp.pop %v3055
    %v3065 = vmul.f32 1.0, %v3064
    %v3066 = vrcp.pop %v3056
    %v3067 = vmul.f32 1.0, %v3066
    %v3068 = vrcp.pop %v3057
    %v3069 = vmul.f32 1.0, %v3068
    %v3070 = vrcp.pop %v3058
    %v3071 = vmul.f32 1.0, %v3070
    %v3072 = vrcp.pop %v3059
    %v3073 = vmul.f32 1.0, %v3072
    %v3074 = vrcp.pop %v3060
    %v3075 = vmul.f32 1.0, %v3074
    %v3076 = vrcp.pop %v3061
    %v3077 = vmul.f32 1.0, %v3076
    %v3078 = vrcp.pop %v3062
    %v3079 = vmul.f32 1.0, %v3078
    %v3080 = vrcp.pop %v3063
    %v3081 = vmul.f32 1.0, %v3080
    %v3082 = vtanh.pop %v3025
    %v3083 = vtanh.pop %v3026
    %v3084 = vtanh.pop %v3027
    %v3085 = vmul.f32 %v3071, 0.0
    %v3086 = vmul.f32 %v3073, 0.0
    %v3087 = vmul.f32 %v3075, 0.0
    %v3088 = vmul.f32 %v3065, %v3082
    %v3089 = vmul.f32 %v3067, %v3083
    %v3090 = vmul.f32 %v3069, %v3084
    %v3091 = vadd.f32 %v3085, %v3088
    %v3092 = vadd.f32 %v3086, %v3089
    %v3093 = vadd.f32 %v3087, %v3090
    %v3094 = vtanh.pop %v3091
    %v3095 = vtanh.pop %v3092
    %v3096 = vtanh.pop %v3093
    %v3097 = vmul.f32 %v3077, %v3094
    %v3098 = vmul.f32 %v3079, %v3095
    %v3099 = vmul.f32 %v3081, %v3096
    %v3100 = vld [vmem:[#allocation2 + $0x60] sm:$0xff]
    %v3101 = vld [vmem:[#allocation2 + $0x68] sm:$0xff]
    %v3102 = vld [vmem:[#allocation2 + $0x70] sm:$0xff]
    %v3103 = vld [vmem:[#allocation2 + $0x78] sm:$0xff]
    %v3104 = vld [vmem:[#allocation2 + $0x80] sm:$0xff]
    %v3105 = vld [vmem:[#allocation2 + $0x88] sm:$0xff]
    %v3106 = vld [vmem:[#allocation2 + $0x90] sm:$0xff]
    %v3107 = vld [vmem:[#allocation2 + $0x98] sm:$0xff]
    %v3108 = vld [vmem:[#allocation2 + $0xa0] sm:$0xff]
    %v3109 = vld [vmem:[#allocation2 + $0xa8] sm:$0xff]
    %v3110 = vld [vmem:[#allocation2 + $0xb0] sm:$0xff]
    %v3111 = vld [vmem:[#allocation2 + $0xb8] sm:$0xff]
    %v3112 = vpack.c.bf16 %v3097, %v3097
    %v3113 = vpack.c.bf16 %v3098, %v3098
    %v3114 = vpack.c.bf16 %v3099, %v3099
    %3115 = vmatprep.subr.bf16.mxu0 %v1949
    %3116 = vmatpush1.bf16.msra.mxu0 %v1948
    %3117 = vmatprep.subr.bf16.mxu0 %v1961
    %3118 = vmatpush1.bf16.msra.mxu0 %v1960
    %3119 = vmatprep.subr.bf16.mxu0 %v1973
    %3120 = vmatpush1.bf16.msra.mxu0 %v1972
    %3121 = vmatprep.subr.bf16.mxu0 %v1985
    %3122 = vmatpush1.bf16.msra.mxu0 %v1984
    %3123 = vmatprep.subr.bf16.mxu0 %v1997
    %3124 = vmatpush1.bf16.msra.mxu0 %v1996
    %3125 = vmatprep.subr.bf16.mxu0 %v2009
    %3126 = vmatpush1.bf16.msra.mxu0 %v2008
    %3127 = vmatprep.subr.bf16.mxu0 %v2021
    %3128 = vmatpush1.bf16.msra.mxu0 %v2020
    %3129 = vmatprep.subr.bf16.mxu0 %v2033
    %3130 = vmatpush1.bf16.msra.mxu0 %v2032
    %3131 = vmatprep.subr.bf16.mxu0 %v2045
    %3132 = vmatpush1.bf16.msra.mxu0 %v2044
    %3133 = vmatprep.subr.bf16.mxu0 %v2057
    %3134 = vmatpush1.bf16.msra.mxu0 %v2056
    %3135 = vmatprep.subr.bf16.mxu0 %v2069
    %3136 = vmatpush1.bf16.msra.mxu0 %v2068
    %3137 = vmatprep.subr.bf16.mxu0 %v2081
    %3138 = vmatpush1.bf16.msra.mxu0 %v2080
    %3139 = vmatprep.subr.bf16.mxu0 %v2093
    %3140 = vmatpush1.bf16.msra.mxu0 %v2092
    %3141 = vmatprep.subr.bf16.mxu0 %v2105
    %3142 = vmatpush1.bf16.msra.mxu0 %v2104
    %3143 = vmatprep.subr.bf16.mxu0 %v2117
    %3144 = vmatpush1.bf16.msra.mxu0 %v2116
    %3145 = vmatprep.subr.bf16.mxu0 %v2129
    %3146 = vmatpush1.bf16.msra.mxu0 %v2128
    %3147 = vmatprep.mubr.bf16.mxu0 %v3113
    %3148 = vmatmul.mubr.bf16.gmra.mrb[0].mxu0 %v3112
    %v3149 = vpop.f32.mrb[0].mxu0
    %v3150 = vadd.f32 0.0, %v3149
    %v3151 = vpop.f32.mrb[0].mxu0
    %v3152 = vadd.f32 0.0, %v3151
    %v3153 = vpop.f32.mrb[0].mxu0
    %v3154 = vpop.f32.mrb[0].mxu0
    %3155 = vdwg.mxu0
    %3156 = vmatprep.subr.bf16.mxu0 %v2141
    %3157 = vmatpush1.bf16.msra.mxu0 %v2140
    %3158 = vmatprep.subr.bf16.mxu0 %v2153
    %3159 = vmatpush1.bf16.msra.mxu0 %v2152
    %3160 = vmatprep.subr.bf16.mxu0 %v2165
    %3161 = vmatpush1.bf16.msra.mxu0 %v2164
    %3162 = vmatprep.subr.bf16.mxu0 %v2177
    %3163 = vmatpush1.bf16.msra.mxu0 %v2176
    %3164 = vmatprep.subr.bf16.mxu0 %v2189
    %3165 = vmatpush1.bf16.msra.mxu0 %v2188
    %3166 = vmatprep.subr.bf16.mxu0 %v2201
    %3167 = vmatpush1.bf16.msra.mxu0 %v2200
    %3168 = vmatprep.subr.bf16.mxu0 %v2213
    %3169 = vmatpush1.bf16.msra.mxu0 %v2212
    %3170 = vmatprep.subr.bf16.mxu0 %v2225
    %3171 = vmatpush1.bf16.msra.mxu0 %v2224
    %3172 = vmatprep.subr.bf16.mxu0 0
    %3173 = vmatpush1.bf16.msra.mxu0 0
    %3174 = vmatprep.subr.bf16.mxu0 0
    %3175 = vmatpush1.bf16.msra.mxu0 0
    %3176 = vmatprep.subr.bf16.mxu0 0
    %3177 = vmatpush1.bf16.msra.mxu0 0
    %3178 = vmatprep.subr.bf16.mxu0 0
    %3179 = vmatpush1.bf16.msra.mxu0 0
    %3180 = vmatprep.subr.bf16.mxu0 0
    %3181 = vmatpush1.bf16.msra.mxu0 0
    %3182 = vmatprep.subr.bf16.mxu0 0
    %3183 = vmatpush1.bf16.msra.mxu0 0
    %3184 = vmatprep.subr.bf16.mxu0 0
    %3185 = vmatpush1.bf16.msra.mxu0 0
    %3186 = vmatprep.subr.bf16.mxu0 0
    %3187 = vmatpush1.bf16.msra.mxu0 0
    %3188 = vmatprep.mubr.bf16.mxu0 0
    %3189 = vmatmul.mubr.bf16.gmra.mrb[0].mxu0 %v3114
    %v3190 = vpop.f32.mrb[0].mxu0
    %v3191 = vadd.f32 %v3150, %v3190
    %v3192 = vpop.f32.mrb[0].mxu0
    %v3193 = vadd.f32 %v3152, %v3192
    %v3194 = vpop.f32.mrb[0].mxu0
    %v3195 = vpop.f32.mrb[0].mxu0
    %3196 = vdwg.mxu0
    %3197 = vmatprep.subr.bf16.mxu0 %v1951
    %3198 = vmatpush1.bf16.msra.mxu0 %v1950
    %3199 = vmatprep.subr.bf16.mxu0 %v1963
    %3200 = vmatpush1.bf16.msra.mxu0 %v1962
    %3201 = vmatprep.subr.bf16.mxu0 %v1975
    %3202 = vmatpush1.bf16.msra.mxu0 %v1974
    %3203 = vmatprep.subr.bf16.mxu0 %v1987
    %3204 = vmatpush1.bf16.msra.mxu0 %v1986
    %3205 = vmatprep.subr.bf16.mxu0 %v1999
    %3206 = vmatpush1.bf16.msra.mxu0 %v1998
    %3207 = vmatprep.subr.bf16.mxu0 %v2011
    %3208 = vmatpush1.bf16.msra.mxu0 %v2010
    %3209 = vmatprep.subr.bf16.mxu0 %v2023
    %3210 = vmatpush1.bf16.msra.mxu0 %v2022
    %3211 = vmatprep.subr.bf16.mxu0 %v2035
    %3212 = vmatpush1.bf16.msra.mxu0 %v2034
    %3213 = vmatprep.subr.bf16.mxu0 %v2047
    %3214 = vmatpush1.bf16.msra.mxu0 %v2046
    %3215 = vmatprep.subr.bf16.mxu0 %v2059
    %3216 = vmatpush1.bf16.msra.mxu0 %v2058
    %3217 = vmatprep.subr.bf16.mxu0 %v2071
    %3218 = vmatpush1.bf16.msra.mxu0 %v2070
    %3219 = vmatprep.subr.bf16.mxu0 %v2083
    %3220 = vmatpush1.bf16.msra.mxu0 %v2082
    %3221 = vmatprep.subr.bf16.mxu0 %v2095
    %3222 = vmatpush1.bf16.msra.mxu0 %v2094
    %3223 = vmatprep.subr.bf16.mxu0 %v2107
    %3224 = vmatpush1.bf16.msra.mxu0 %v2106
    %3225 = vmatprep.subr.bf16.mxu0 %v2119
    %3226 = vmatpush1.bf16.msra.mxu0 %v2118
    %3227 = vmatprep.subr.bf16.mxu0 %v2131
    %3228 = vmatpush1.bf16.msra.mxu0 %v2130
    %3229 = vmatprep.mubr.bf16.mxu0 %v3113
    %3230 = vmatmul.mubr.bf16.gmra.mrb[0].mxu0 %v3112
    %v3231 = vpop.f32.mrb[0].mxu0
    %v3232 = vadd.f32 0.0, %v3231
    %v3233 = vpop.f32.mrb[0].mxu0
    %v3234 = vadd.f32 0.0, %v3233
    %v3235 = vpop.f32.mrb[0].mxu0
    %v3236 = vpop.f32.mrb[0].mxu0
    %3237 = vdwg.mxu0
    %3238 = vmatprep.subr.bf16.mxu0 %v2143
    %3239 = vmatpush1.bf16.msra.mxu0 %v2142
    %3240 = vmatprep.subr.bf16.mxu0 %v2155
    %3241 = vmatpush1.bf16.msra.mxu0 %v2154
    %3242 = vmatprep.subr.bf16.mxu0 %v2167
    %3243 = vmatpush1.bf16.msra.mxu0 %v2166
    %3244 = vmatprep.subr.bf16.mxu0 %v2179
    %3245 = vmatpush1.bf16.msra.mxu0 %v2178
    %3246 = vmatprep.subr.bf16.mxu0 %v2191
    %3247 = vmatpush1.bf16.msra.mxu0 %v2190
    %3248 = vmatprep.subr.bf16.mxu0 %v2203
    %3249 = vmatpush1.bf16.msra.mxu0 %v2202
    %3250 = vmatprep.subr.bf16.mxu0 %v2215
    %3251 = vmatpush1.bf16.msra.mxu0 %v2214
    %3252 = vmatprep.subr.bf16.mxu0 %v2227
    %3253 = vmatpush1.bf16.msra.mxu0 %v2226
    %3254 = vmatprep.subr.bf16.mxu0 0
    %3255 = vmatpush1.bf16.msra.mxu0 0
    %3256 = vmatprep.subr.bf16.mxu0 0
    %3257 = vmatpush1.bf16.msra.mxu0 0
    %3258 = vmatprep.subr.bf16.mxu0 0
    %3259 = vmatpush1.bf16.msra.mxu0 0
    %3260 = vmatprep.subr.bf16.mxu0 0
    %3261 = vmatpush1.bf16.msra.mxu0 0
    %3262 = vmatprep.subr.bf16.mxu0 0
    %3263 = vmatpush1.bf16.msra.mxu0 0
    %3264 = vmatprep.subr.bf16.mxu0 0
    %3265 = vmatpush1.bf16.msra.mxu0 0
    %3266 = vmatprep.subr.bf16.mxu0 0
    %3267 = vmatpush1.bf16.msra.mxu0 0
    %3268 = vmatprep.subr.bf16.mxu0 0
    %3269 = vmatpush1.bf16.msra.mxu0 0
    %3270 = vmatprep.mubr.bf16.mxu0 0
    %3271 = vmatmul.mubr.bf16.gmra.mrb[0].mxu0 %v3114
    %v3272 = vpop.f32.mrb[0].mxu0
    %v3273 = vadd.f32 %v3232, %v3272
    %v3274 = vpop.f32.mrb[0].mxu0
    %v3275 = vadd.f32 %v3234, %v3274
    %v3276 = vpop.f32.mrb[0].mxu0
    %v3277 = vpop.f32.mrb[0].mxu0
    %3278 = vdwg.mxu0
    %3279 = vmatprep.subr.bf16.mxu0 %v1953
    %3280 = vmatpush1.bf16.msra.mxu0 %v1952
    %3281 = vmatprep.subr.bf16.mxu0 %v1965
    %3282 = vmatpush1.bf16.msra.mxu0 %v1964
    %3283 = vmatprep.subr.bf16.mxu0 %v1977
    %3284 = vmatpush1.bf16.msra.mxu0 %v1976
    %3285 = vmatprep.subr.bf16.mxu0 %v1989
    %3286 = vmatpush1.bf16.msra.mxu0 %v1988
    %3287 = vmatprep.subr.bf16.mxu0 %v2001
    %3288 = vmatpush1.bf16.msra.mxu0 %v2000
    %3289 = vmatprep.subr.bf16.mxu0 %v2013
    %3290 = vmatpush1.bf16.msra.mxu0 %v2012
    %3291 = vmatprep.subr.bf16.mxu0 %v2025
    %3292 = vmatpush1.bf16.msra.mxu0 %v2024
    %3293 = vmatprep.subr.bf16.mxu0 %v2037
    %3294 = vmatpush1.bf16.msra.mxu0 %v2036
    %3295 = vmatprep.subr.bf16.mxu0 %v2049
    %3296 = vmatpush1.bf16.msra.mxu0 %v2048
    %3297 = vmatprep.subr.bf16.mxu0 %v2061
    %3298 = vmatpush1.bf16.msra.mxu0 %v2060
    %3299 = vmatprep.subr.bf16.mxu0 %v2073
    %3300 = vmatpush1.bf16.msra.mxu0 %v2072
    %3301 = vmatprep.subr.bf16.mxu0 %v2085
    %3302 = vmatpush1.bf16.msra.mxu0 %v2084
    %3303 = vmatprep.subr.bf16.mxu0 %v2097
    %3304 = vmatpush1.bf16.msra.mxu0 %v2096
    %3305 = vmatprep.subr.bf16.mxu0 %v2109
    %3306 = vmatpush1.bf16.msra.mxu0 %v2108
    %3307 = vmatprep.subr.bf16.mxu0 %v2121
    %3308 = vmatpush1.bf16.msra.mxu0 %v2120
    %3309 = vmatprep.subr.bf16.mxu0 %v2133
    %3310 = vmatpush1.bf16.msra.mxu0 %v2132
    %3311 = vmatprep.mubr.bf16.mxu0 %v3113
    %3312 = vmatmul.mubr.bf16.gmra.mrb[0].mxu0 %v3112
    %v3313 = vpop.f32.mrb[0].mxu0
    %v3314 = vadd.f32 0.0, %v3313
    %v3315 = vpop.f32.mrb[0].mxu0
    %v3316 = vadd.f32 0.0, %v3315
    %v3317 = vpop.f32.mrb[0].mxu0
    %v3318 = vpop.f32.mrb[0].mxu0
    %3319 = vdwg.mxu0
    %3320 = vmatprep.subr.bf16.mxu0 %v2145
    %3321 = vmatpush1.bf16.msra.mxu0 %v2144
    %3322 = vmatprep.subr.bf16.mxu0 %v2157
    %3323 = vmatpush1.bf16.msra.mxu0 %v2156
    %3324 = vmatprep.subr.bf16.mxu0 %v2169
    %3325 = vmatpush1.bf16.msra.mxu0 %v2168
    %3326 = vmatprep.subr.bf16.mxu0 %v2181
    %3327 = vmatpush1.bf16.msra.mxu0 %v2180
    %3328 = vmatprep.subr.bf16.mxu0 %v2193
    %3329 = vmatpush1.bf16.msra.mxu0 %v2192
    %3330 = vmatprep.subr.bf16.mxu0 %v2205
    %3331 = vmatpush1.bf16.msra.mxu0 %v2204
    %3332 = vmatprep.subr.bf16.mxu0 %v2217
    %3333 = vmatpush1.bf16.msra.mxu0 %v2216
    %3334 = vmatprep.subr.bf16.mxu0 %v2229
    %3335 = vmatpush1.bf16.msra.mxu0 %v2228
    %3336 = vmatprep.subr.bf16.mxu0 0
    %3337 = vmatpush1.bf16.msra.mxu0 0
    %3338 = vmatprep.subr.bf16.mxu0 0
    %3339 = vmatpush1.bf16.msra.mxu0 0
    %3340 = vmatprep.subr.bf16.mxu0 0
    %3341 = vmatpush1.bf16.msra.mxu0 0
    %3342 = vmatprep.subr.bf16.mxu0 0
    %3343 = vmatpush1.bf16.msra.mxu0 0
    %3344 = vmatprep.subr.bf16.mxu0 0
    %3345 = vmatpush1.bf16.msra.mxu0 0
    %3346 = vmatprep.subr.bf16.mxu0 0
    %3347 = vmatpush1.bf16.msra.mxu0 0
    %3348 = vmatprep.subr.bf16.mxu0 0
    %3349 = vmatpush1.bf16.msra.mxu0 0
    %3350 = vmatprep.subr.bf16.mxu0 0
    %3351 = vmatpush1.bf16.msra.mxu0 0
    %3352 = vmatprep.mubr.bf16.mxu0 0
    %3353 = vmatmul.mubr.bf16.gmra.mrb[0].mxu0 %v3114
    %v3354 = vpop.f32.mrb[0].mxu0
    %v3355 = vadd.f32 %v3314, %v3354
    %v3356 = vpop.f32.mrb[0].mxu0
    %v3357 = vadd.f32 %v3316, %v3356
    %v3358 = vpop.f32.mrb[0].mxu0
    %v3359 = vpop.f32.mrb[0].mxu0
    %3360 = vdwg.mxu0
    %3361 = vmatprep.subr.bf16.mxu0 %v1955
    %3362 = vmatpush1.bf16.msra.mxu0 %v1954
    %3363 = vmatprep.subr.bf16.mxu0 %v1967
    %3364 = vmatpush1.bf16.msra.mxu0 %v1966
    %3365 = vmatprep.subr.bf16.mxu0 %v1979
    %3366 = vmatpush1.bf16.msra.mxu0 %v1978
    %3367 = vmatprep.subr.bf16.mxu0 %v1991
    %3368 = vmatpush1.bf16.msra.mxu0 %v1990
    %3369 = vmatprep.subr.bf16.mxu0 %v2003
    %3370 = vmatpush1.bf16.msra.mxu0 %v2002
    %3371 = vmatprep.subr.bf16.mxu0 %v2015
    %3372 = vmatpush1.bf16.msra.mxu0 %v2014
    %3373 = vmatprep.subr.bf16.mxu0 %v2027
    %3374 = vmatpush1.bf16.msra.mxu0 %v2026
    %3375 = vmatprep.subr.bf16.mxu0 %v2039
    %3376 = vmatpush1.bf16.msra.mxu0 %v2038
    %3377 = vmatprep.subr.bf16.mxu0 %v2051
    %3378 = vmatpush1.bf16.msra.mxu0 %v2050
    %3379 = vmatprep.subr.bf16.mxu0 %v2063
    %3380 = vmatpush1.bf16.msra.mxu0 %v2062
    %3381 = vmatprep.subr.bf16.mxu0 %v2075
    %3382 = vmatpush1.bf16.msra.mxu0 %v2074
    %3383 = vmatprep.subr.bf16.mxu0 %v2087
    %3384 = vmatpush1.bf16.msra.mxu0 %v2086
    %3385 = vmatprep.subr.bf16.mxu0 %v2099
    %3386 = vmatpush1.bf16.msra.mxu0 %v2098
    %3387 = vmatprep.subr.bf16.mxu0 %v2111
    %3388 = vmatpush1.bf16.msra.mxu0 %v2110
    %3389 = vmatprep.subr.bf16.mxu0 %v2123
    %3390 = vmatpush1.bf16.msra.mxu0 %v2122
    %3391 = vmatprep.subr.bf16.mxu0 %v2135
    %3392 = vmatpush1.bf16.msra.mxu0 %v2134
    %3393 = vmatprep.mubr.bf16.mxu0 %v3113
    %3394 = vmatmul.mubr.bf16.gmra.mrb[0].mxu0 %v3112
    %v3395 = vpop.f32.mrb[0].mxu0
    %v3396 = vadd.f32 0.0, %v3395
    %v3397 = vpop.f32.mrb[0].mxu0
    %v3398 = vadd.f32 0.0, %v3397
    %v3399 = vpop.f32.mrb[0].mxu0
    %v3400 = vpop.f32.mrb[0].mxu0
    %3401 = vdwg.mxu0
    %3402 = vmatprep.subr.bf16.mxu0 %v2147
    %3403 = vmatpush1.bf16.msra.mxu0 %v2146
    %3404 = vmatprep.subr.bf16.mxu0 %v2159
    %3405 = vmatpush1.bf16.msra.mxu0 %v2158
    %3406 = vmatprep.subr.bf16.mxu0 %v2171
    %3407 = vmatpush1.bf16.msra.mxu0 %v2170
    %3408 = vmatprep.subr.bf16.mxu0 %v2183
    %3409 = vmatpush1.bf16.msra.mxu0 %v2182
    %3410 = vmatprep.subr.bf16.mxu0 %v2195
    %3411 = vmatpush1.bf16.msra.mxu0 %v2194
    %3412 = vmatprep.subr.bf16.mxu0 %v2207
    %3413 = vmatpush1.bf16.msra.mxu0 %v2206
    %3414 = vmatprep.subr.bf16.mxu0 %v2219
    %3415 = vmatpush1.bf16.msra.mxu0 %v2218
    %3416 = vmatprep.subr.bf16.mxu0 %v2231
    %3417 = vmatpush1.bf16.msra.mxu0 %v2230
    %3418 = vmatprep.subr.bf16.mxu0 0
    %3419 = vmatpush1.bf16.msra.mxu0 0
    %3420 = vmatprep.subr.bf16.mxu0 0
    %3421 = vmatpush1.bf16.msra.mxu0 0
    %3422 = vmatprep.subr.bf16.mxu0 0
    %3423 = vmatpush1.bf16.msra.mxu0 0
    %3424 = vmatprep.subr.bf16.mxu0 0
    %3425 = vmatpush1.bf16.msra.mxu0 0
    %3426 = vmatprep.subr.bf16.mxu0 0
    %3427 = vmatpush1.bf16.msra.mxu0 0
    %3428 = vmatprep.subr.bf16.mxu0 0
    %3429 = vmatpush1.bf16.msra.mxu0 0
    %3430 = vmatprep.subr.bf16.mxu0 0
    %3431 = vmatpush1.bf16.msra.mxu0 0
    %3432 = vmatprep.subr.bf16.mxu0 0
    %3433 = vmatpush1.bf16.msra.mxu0 0
    %3434 = vmatprep.mubr.bf16.mxu0 0
    %3435 = vmatmul.mubr.bf16.gmra.mrb[0].mxu0 %v3114
    %v3436 = vpop.f32.mrb[0].mxu0
    %v3437 = vadd.f32 %v3396, %v3436
    %v3438 = vpop.f32.mrb[0].mxu0
    %v3439 = vadd.f32 %v3398, %v3438
    %v3440 = vpop.f32.mrb[0].mxu0
    %v3441 = vpop.f32.mrb[0].mxu0
    %3442 = vdwg.mxu0
    %3443 = vmatprep.subr.bf16.mxu0 %v1957
    %3444 = vmatpush1.bf16.msra.mxu0 %v1956
    %3445 = vmatprep.subr.bf16.mxu0 %v1969
    %3446 = vmatpush1.bf16.msra.mxu0 %v1968
    %3447 = vmatprep.subr.bf16.mxu0 %v1981
    %3448 = vmatpush1.bf16.msra.mxu0 %v1980
    %3449 = vmatprep.subr.bf16.mxu0 %v1993
    %3450 = vmatpush1.bf16.msra.mxu0 %v1992
    %3451 = vmatprep.subr.bf16.mxu0 %v2005
    %3452 = vmatpush1.bf16.msra.mxu0 %v2004
    %3453 = vmatprep.subr.bf16.mxu0 %v2017
    %3454 = vmatpush1.bf16.msra.mxu0 %v2016
    %3455 = vmatprep.subr.bf16.mxu0 %v2029
    %3456 = vmatpush1.bf16.msra.mxu0 %v2028
    %3457 = vmatprep.subr.bf16.mxu0 %v2041
    %3458 = vmatpush1.bf16.msra.mxu0 %v2040
    %3459 = vmatprep.subr.bf16.mxu0 %v2053
    %3460 = vmatpush1.bf16.msra.mxu0 %v2052
    %3461 = vmatprep.subr.bf16.mxu0 %v2065
    %3462 = vmatpush1.bf16.msra.mxu0 %v2064
    %3463 = vmatprep.subr.bf16.mxu0 %v2077
    %3464 = vmatpush1.bf16.msra.mxu0 %v2076
    %3465 = vmatprep.subr.bf16.mxu0 %v2089
    %3466 = vmatpush1.bf16.msra.mxu0 %v2088
    %3467 = vmatprep.subr.bf16.mxu0 %v2101
    %3468 = vmatpush1.bf16.msra.mxu0 %v2100
    %3469 = vmatprep.subr.bf16.mxu0 %v2113
    %3470 = vmatpush1.bf16.msra.mxu0 %v2112
    %3471 = vmatprep.subr.bf16.mxu0 %v2125
    %3472 = vmatpush1.bf16.msra.mxu0 %v2124
    %3473 = vmatprep.subr.bf16.mxu0 %v2137
    %3474 = vmatpush1.bf16.msra.mxu0 %v2136
    %3475 = vmatprep.mubr.bf16.mxu0 %v3113
    %3476 = vmatmul.mubr.bf16.gmra.mrb[0].mxu0 %v3112
    %v3477 = vpop.f32.mrb[0].mxu0
    %v3478 = vadd.f32 0.0, %v3477
    %v3479 = vpop.f32.mrb[0].mxu0
    %v3480 = vadd.f32 0.0, %v3479
    %v3481 = vpop.f32.mrb[0].mxu0
    %v3482 = vpop.f32.mrb[0].mxu0
    %3483 = vdwg.mxu0
    %3484 = vmatprep.subr.bf16.mxu0 %v2149
    %3485 = vmatpush1.bf16.msra.mxu0 %v2148
    %3486 = vmatprep.subr.bf16.mxu0 %v2161
    %3487 = vmatpush1.bf16.msra.mxu0 %v2160
    %3488 = vmatprep.subr.bf16.mxu0 %v2173
    %3489 = vmatpush1.bf16.msra.mxu0 %v2172
    %3490 = vmatprep.subr.bf16.mxu0 %v2185
    %3491 = vmatpush1.bf16.msra.mxu0 %v2184
    %3492 = vmatprep.subr.bf16.mxu0 %v2197
    %3493 = vmatpush1.bf16.msra.mxu0 %v2196
    %3494 = vmatprep.subr.bf16.mxu0 %v2209
    %3495 = vmatpush1.bf16.msra.mxu0 %v2208
    %3496 = vmatprep.subr.bf16.mxu0 %v2221
    %3497 = vmatpush1.bf16.msra.mxu0 %v2220
    %3498 = vmatprep.subr.bf16.mxu0 %v2233
    %3499 = vmatpush1.bf16.msra.mxu0 %v2232
    %3500 = vmatprep.subr.bf16.mxu0 0
    %3501 = vmatpush1.bf16.msra.mxu0 0
    %3502 = vmatprep.subr.bf16.mxu0 0
    %3503 = vmatpush1.bf16.msra.mxu0 0
    %3504 = vmatprep.subr.bf16.mxu0 0
    %3505 = vmatpush1.bf16.msra.mxu0 0
    %3506 = vmatprep.subr.bf16.mxu0 0
    %3507 = vmatpush1.bf16.msra.mxu0 0
    %3508 = vmatprep.subr.bf16.mxu0 0
    %3509 = vmatpush1.bf16.msra.mxu0 0
    %3510 = vmatprep.subr.bf16.mxu0 0
    %3511 = vmatpush1.bf16.msra.mxu0 0
    %3512 = vmatprep.subr.bf16.mxu0 0
    %3513 = vmatpush1.bf16.msra.mxu0 0
    %3514 = vmatprep.subr.bf16.mxu0 0
    %3515 = vmatpush1.bf16.msra.mxu0 0
    %3516 = vmatprep.mubr.bf16.mxu0 0
    %3517 = vmatmul.mubr.bf16.gmra.mrb[0].mxu0 %v3114
    %v3518 = vpop.f32.mrb[0].mxu0
    %v3519 = vadd.f32 %v3478, %v3518
    %v3520 = vpop.f32.mrb[0].mxu0
    %v3521 = vadd.f32 %v3480, %v3520
    %v3522 = vpop.f32.mrb[0].mxu0
    %v3523 = vpop.f32.mrb[0].mxu0
    %3524 = vdwg.mxu0
    %3525 = vmatprep.subr.bf16.mxu0 %v1959
    %3526 = vmatpush1.bf16.msra.mxu0 %v1958
    %3527 = vmatprep.subr.bf16.mxu0 %v1971
    %3528 = vmatpush1.bf16.msra.mxu0 %v1970
    %3529 = vmatprep.subr.bf16.mxu0 %v1983
    %3530 = vmatpush1.bf16.msra.mxu0 %v1982
    %3531 = vmatprep.subr.bf16.mxu0 %v1995
    %3532 = vmatpush1.bf16.msra.mxu0 %v1994
    %3533 = vmatprep.subr.bf16.mxu0 %v2007
    %3534 = vmatpush1.bf16.msra.mxu0 %v2006
    %3535 = vmatprep.subr.bf16.mxu0 %v2019
    %3536 = vmatpush1.bf16.msra.mxu0 %v2018
    %3537 = vmatprep.subr.bf16.mxu0 %v2031
    %3538 = vmatpush1.bf16.msra.mxu0 %v2030
    %3539 = vmatprep.subr.bf16.mxu0 %v2043
    %3540 = vmatpush1.bf16.msra.mxu0 %v2042
    %3541 = vmatprep.subr.bf16.mxu0 %v2055
    %3542 = vmatpush1.bf16.msra.mxu0 %v2054
    %3543 = vmatprep.subr.bf16.mxu0 %v2067
    %3544 = vmatpush1.bf16.msra.mxu0 %v2066
    %3545 = vmatprep.subr.bf16.mxu0 %v2079
    %3546 = vmatpush1.bf16.msra.mxu0 %v2078
    %3547 = vmatprep.subr.bf16.mxu0 %v2091
    %3548 = vmatpush1.bf16.msra.mxu0 %v2090
    %3549 = vmatprep.subr.bf16.mxu0 %v2103
    %3550 = vmatpush1.bf16.msra.mxu0 %v2102
    %3551 = vmatprep.subr.bf16.mxu0 %v2115
    %3552 = vmatpush1.bf16.msra.mxu0 %v2114
    %3553 = vmatprep.subr.bf16.mxu0 %v2127
    %3554 = vmatpush1.bf16.msra.mxu0 %v2126
    %3555 = vmatprep.subr.bf16.mxu0 %v2139
    %3556 = vmatpush1.bf16.msra.mxu0 %v2138
    %3557 = vmatprep.mubr.bf16.mxu0 %v3113
    %3558 = vmatmul.mubr.bf16.gmra.mrb[0].mxu0 %v3112
    %v3559 = vpop.f32.mrb[0].mxu0
    %v3560 = vadd.f32 0.0, %v3559
    %v3561 = vpop.f32.mrb[0].mxu0
    %v3562 = vadd.f32 0.0, %v3561
    %v3563 = vpop.f32.mrb[0].mxu0
    %v3564 = vpop.f32.mrb[0].mxu0
    %3565 = vdwg.mxu0
    %3566 = vmatprep.subr.bf16.mxu0 %v2151
    %3567 = vmatpush1.bf16.msra.mxu0 %v2150
    %3568 = vmatprep.subr.bf16.mxu0 %v2163
    %3569 = vmatpush1.bf16.msra.mxu0 %v2162
    %3570 = vmatprep.subr.bf16.mxu0 %v2175
    %3571 = vmatpush1.bf16.msra.mxu0 %v2174
    %3572 = vmatprep.subr.bf16.mxu0 %v2187
    %3573 = vmatpush1.bf16.msra.mxu0 %v2186
    %3574 = vmatprep.subr.bf16.mxu0 %v2199
    %3575 = vmatpush1.bf16.msra.mxu0 %v2198
    %3576 = vmatprep.subr.bf16.mxu0 %v2211
    %3577 = vmatpush1.bf16.msra.mxu0 %v2210
    %3578 = vmatprep.subr.bf16.mxu0 %v2223
    %3579 = vmatpush1.bf16.msra.mxu0 %v2222
    %3580 = vmatprep.subr.bf16.mxu0 %v2235
    %3581 = vmatpush1.bf16.msra.mxu0 %v2234
    %3582 = vmatprep.subr.bf16.mxu0 0
    %3583 = vmatpush1.bf16.msra.mxu0 0
    %3584 = vmatprep.subr.bf16.mxu0 0
    %3585 = vmatpush1.bf16.msra.mxu0 0
    %3586 = vmatprep.subr.bf16.mxu0 0
    %3587 = vmatpush1.bf16.msra.mxu0 0
    %3588 = vmatprep.subr.bf16.mxu0 0
    %3589 = vmatpush1.bf16.msra.mxu0 0
    %3590 = vmatprep.subr.bf16.mxu0 0
    %3591 = vmatpush1.bf16.msra.mxu0 0
    %3592 = vmatprep.subr.bf16.mxu0 0
    %3593 = vmatpush1.bf16.msra.mxu0 0
    %3594 = vmatprep.subr.bf16.mxu0 0
    %3595 = vmatpush1.bf16.msra.mxu0 0
    %3596 = vmatprep.subr.bf16.mxu0 0
    %3597 = vmatpush1.bf16.msra.mxu0 0
    %3598 = vmatprep.mubr.bf16.mxu0 0
    %3599 = vmatmul.mubr.bf16.gmra.mrb[0].mxu0 %v3114
    %v3600 = vpop.f32.mrb[0].mxu0
    %v3601 = vadd.f32 %v3560, %v3600
    %v3602 = vpop.f32.mrb[0].mxu0
    %v3603 = vadd.f32 %v3562, %v3602
    %v3604 = vpop.f32.mrb[0].mxu0
    %v3605 = vpop.f32.mrb[0].mxu0
    %3606 = vdwg.mxu0
    %v3607 = vadd.f32 %v3100, %v3191
    %v3608 = vadd.f32 %v3101, %v3193
    %v3609 = vadd.f32 %v3102, %v3273
    %v3610 = vadd.f32 %v3103, %v3275
    %v3611 = vadd.f32 %v3104, %v3355
    %v3612 = vadd.f32 %v3105, %v3357
    %v3613 = vadd.f32 %v3106, %v3437
    %v3614 = vadd.f32 %v3107, %v3439
    %v3615 = vadd.f32 %v3108, %v3519
    %v3616 = vadd.f32 %v3109, %v3521
    %v3617 = vadd.f32 %v3110, %v3601
    %v3618 = vadd.f32 %v3111, %v3603
    %v3619 = vxor.u32 %v3607, 2147483648
    %v3620 = vxor.u32 %v3608, 2147483648
    %v3621 = vxor.u32 %v3609, 2147483648
    %v3622 = vxor.u32 %v3610, 2147483648
    %v3623 = vxor.u32 %v3611, 2147483648
    %v3624 = vxor.u32 %v3612, 2147483648
    %v3625 = vxor.u32 %v3613, 2147483648
    %v3626 = vxor.u32 %v3614, 2147483648
    %v3627 = vxor.u32 %v3615, 2147483648
    %v3628 = vmul.f32 %v3619, 1.442695
    %v3629 = vpow.pop %v3628
    %v3630 = vmul.f32 %v3620, 1.442695
    %v3631 = vpow.pop %v3630
    %v3632 = vmul.f32 %v3621, 1.442695
    %v3633 = vpow.pop %v3632
    %v3634 = vmul.f32 %v3622, 1.442695
    %v3635 = vpow.pop %v3634
    %v3636 = vmul.f32 %v3623, 1.442695
    %v3637 = vpow.pop %v3636
    %v3638 = vmul.f32 %v3624, 1.442695
    %v3639 = vpow.pop %v3638
    %v3640 = vmul.f32 %v3625, 1.442695
    %v3641 = vpow.pop %v3640
    %v3642 = vmul.f32 %v3626, 1.442695
    %v3643 = vpow.pop %v3642
    %v3644 = vmul.f32 %v3627, 1.442695
    %v3645 = vpow.pop %v3644
    %v3646 = vadd.f32 %v3629, 1.0
    %v3647 = vadd.f32 %v3631, 1.0
    %v3648 = vadd.f32 %v3633, 1.0
    %v3649 = vadd.f32 %v3635, 1.0
    %v3650 = vadd.f32 %v3637, 1.0
    %v3651 = vadd.f32 %v3639, 1.0
    %v3652 = vadd.f32 %v3641, 1.0
    %v3653 = vadd.f32 %v3643, 1.0
    %v3654 = vadd.f32 %v3645, 1.0
    %v3655 = vrcp.pop %v3646
    %v3656 = vmul.f32 1.0, %v3655
    %v3657 = vrcp.pop %v3647
    %v3658 = vmul.f32 1.0, %v3657
    %v3659 = vrcp.pop %v3648
    %v3660 = vmul.f32 1.0, %v3659
    %v3661 = vrcp.pop %v3649
    %v3662 = vmul.f32 1.0, %v3661
    %v3663 = vrcp.pop %v3650
    %v3664 = vmul.f32 1.0, %v3663
    %v3665 = vrcp.pop %v3651
    %v3666 = vmul.f32 1.0, %v3665
    %v3667 = vrcp.pop %v3652
    %v3668 = vmul.f32 1.0, %v3667
    %v3669 = vrcp.pop %v3653
    %v3670 = vmul.f32 1.0, %v3669
    %v3671 = vrcp.pop %v3654
    %v3672 = vmul.f32 1.0, %v3671
    %v3673 = vtanh.pop %v3616
    %v3674 = vtanh.pop %v3617
    %v3675 = vtanh.pop %v3618
    %v3676 = vmul.f32 %v3662, %v3091
    %v3677 = vmul.f32 %v3664, %v3092
    %v3678 = vmul.f32 %v3666, %v3093
    %v3679 = vmul.f32 %v3656, %v3673
    %v3680 = vmul.f32 %v3658, %v3674
    %v3681 = vmul.f32 %v3660, %v3675
    %v3682 = vadd.f32 %v3676, %v3679
    %v3683 = vadd.f32 %v3677, %v3680
    %v3684 = vadd.f32 %v3678, %v3681
    %v3685 = vtanh.pop %v3682
    %v3686 = vtanh.pop %v3683
    %v3687 = vtanh.pop %v3684
    %v3688 = vmul.f32 %v3668, %v3685
    %v3689 = vmul.f32 %v3670, %v3686
    %v3690 = vmul.f32 %v3672, %v3687
    %v3691 = vld [vmem:[#allocation2 + $0xc0] sm:$0xff]
    %v3692 = vld [vmem:[#allocation2 + $0xc8] sm:$0xff]
    %v3693 = vld [vmem:[#allocation2 + $0xd0] sm:$0xff]
    %v3694 = vld [vmem:[#allocation2 + $0xd8] sm:$0xff]
    %v3695 = vld [vmem:[#allocation2 + $0xe0] sm:$0xff]
    %v3696 = vld [vmem:[#allocation2 + $0xe8] sm:$0xff]
    %v3697 = vld [vmem:[#allocation2 + $0xf0] sm:$0xff]
    %v3698 = vld [vmem:[#allocation2 + $0xf8] sm:$0xff]
    %v3699 = vld [vmem:[#allocation2 + $0x100] sm:$0xff]
    %v3700 = vld [vmem:[#allocation2 + $0x108] sm:$0xff]
    %v3701 = vld [vmem:[#allocation2 + $0x110] sm:$0xff]
    %v3702 = vld [vmem:[#allocation2 + $0x118] sm:$0xff]
    %v3703 = vpack.c.bf16 %v3688, %v3688
    %v3704 = vpack.c.bf16 %v3689, %v3689
    %v3705 = vpack.c.bf16 %v3690, %v3690
    %3706 = vmatprep.subr.bf16.mxu0 %v1949
    %3707 = vmatpush1.bf16.msra.mxu0 %v1948
    %3708 = vmatprep.subr.bf16.mxu0 %v1961
    %3709 = vmatpush1.bf16.msra.mxu0 %v1960
    %3710 = vmatprep.subr.bf16.mxu0 %v1973
    %3711 = vmatpush1.bf16.msra.mxu0 %v1972
    %3712 = vmatprep.subr.bf16.mxu0 %v1985
    %3713 = vmatpush1.bf16.msra.mxu0 %v1984
    %3714 = vmatprep.subr.bf16.mxu0 %v1997
    %3715 = vmatpush1.bf16.msra.mxu0 %v1996
    %3716 = vmatprep.subr.bf16.mxu0 %v2009
    %3717 = vmatpush1.bf16.msra.mxu0 %v2008
    %3718 = vmatprep.subr.bf16.mxu0 %v2021
    %3719 = vmatpush1.bf16.msra.mxu0 %v2020
    %3720 = vmatprep.subr.bf16.mxu0 %v2033
    %3721 = vmatpush1.bf16.msra.mxu0 %v2032
    %3722 = vmatprep.subr.bf16.mxu0 %v2045
    %3723 = vmatpush1.bf16.msra.mxu0 %v2044
    %3724 = vmatprep.subr.bf16.mxu0 %v2057
    %3725 = vmatpush1.bf16.msra.mxu0 %v2056
    %3726 = vmatprep.subr.bf16.mxu0 %v2069
    %3727 = vmatpush1.bf16.msra.mxu0 %v2068
    %3728 = vmatprep.subr.bf16.mxu0 %v2081
    %3729 = vmatpush1.bf16.msra.mxu0 %v2080
    %3730 = vmatprep.subr.bf16.mxu0 %v2093
    %3731 = vmatpush1.bf16.msra.mxu0 %v2092
    %3732 = vmatprep.subr.bf16.mxu0 %v2105
    %3733 = vmatpush1.bf16.msra.mxu0 %v2104
    %3734 = vmatprep.subr.bf16.mxu0 %v2117
    %3735 = vmatpush1.bf16.msra.mxu0 %v2116
    %3736 = vmatprep.subr.bf16.mxu0 %v2129
    %3737 = vmatpush1.bf16.msra.mxu0 %v2128
    %3738 = vmatprep.mubr.bf16.mxu0 %v3704
    %3739 = vmatmul.mubr.bf16.gmra.mrb[0].mxu0 %v3703
    %v3740 = vpop.f32.mrb[0].mxu0
    %v3741 = vadd.f32 0.0, %v3740
    %v3742 = vpop.f32.mrb[0].mxu0
    %v3743 = vadd.f32 0.0, %v3742
    %v3744 = vpop.f32.mrb[0].mxu0
    %v3745 = vpop.f32.mrb[0].mxu0
    %3746 = vdwg.mxu0
    %3747 = vmatprep.subr.bf16.mxu0 %v2141
    %3748 = vmatpush1.bf16.msra.mxu0 %v2140
    %3749 = vmatprep.subr.bf16.mxu0 %v2153
    %3750 = vmatpush1.bf16.msra.mxu0 %v2152
    %3751 = vmatprep.subr.bf16.mxu0 %v2165
    %3752 = vmatpush1.bf16.msra.mxu0 %v2164
    %3753 = vmatprep.subr.bf16.mxu0 %v2177
    %3754 = vmatpush1.bf16.msra.mxu0 %v2176
    %3755 = vmatprep.subr.bf16.mxu0 %v2189
    %3756 = vmatpush1.bf16.msra.mxu0 %v2188
    %3757 = vmatprep.subr.bf16.mxu0 %v2201
    %3758 = vmatpush1.bf16.msra.mxu0 %v2200
    %3759 = vmatprep.subr.bf16.mxu0 %v2213
    %3760 = vmatpush1.bf16.msra.mxu0 %v2212
    %3761 = vmatprep.subr.bf16.mxu0 %v2225
    %3762 = vmatpush1.bf16.msra.mxu0 %v2224
    %3763 = vmatprep.subr.bf16.mxu0 0
    %3764 = vmatpush1.bf16.msra.mxu0 0
    %3765 = vmatprep.subr.bf16.mxu0 0
    %3766 = vmatpush1.bf16.msra.mxu0 0
    %3767 = vmatprep.subr.bf16.mxu0 0
    %3768 = vmatpush1.bf16.msra.mxu0 0
    %3769 = vmatprep.subr.bf16.mxu0 0
    %3770 = vmatpush1.bf16.msra.mxu0 0
    %3771 = vmatprep.subr.bf16.mxu0 0
    %3772 = vmatpush1.bf16.msra.mxu0 0
    %3773 = vmatprep.subr.bf16.mxu0 0
    %3774 = vmatpush1.bf16.msra.mxu0 0
    %3775 = vmatprep.subr.bf16.mxu0 0
    %3776 = vmatpush1.bf16.msra.mxu0 0
    %3777 = vmatprep.subr.bf16.mxu0 0
    %3778 = vmatpush1.bf16.msra.mxu0 0
    %3779 = vmatprep.mubr.bf16.mxu0 0
    %3780 = vmatmul.mubr.bf16.gmra.mrb[0].mxu0 %v3705
    %v3781 = vpop.f32.mrb[0].mxu0
    %v3782 = vadd.f32 %v3741, %v3781
    %v3783 = vpop.f32.mrb[0].mxu0
    %v3784 = vadd.f32 %v3743, %v3783
    %v3785 = vpop.f32.mrb[0].mxu0
    %v3786 = vpop.f32.mrb[0].mxu0
    %3787 = vdwg.mxu0
    %3788 = vmatprep.subr.bf16.mxu0 %v1951
    %3789 = vmatpush1.bf16.msra.mxu0 %v1950
    %3790 = vmatprep.subr.bf16.mxu0 %v1963
    %3791 = vmatpush1.bf16.msra.mxu0 %v1962
    %3792 = vmatprep.subr.bf16.mxu0 %v1975
    %3793 = vmatpush1.bf16.msra.mxu0 %v1974
    %3794 = vmatprep.subr.bf16.mxu0 %v1987
    %3795 = vmatpush1.bf16.msra.mxu0 %v1986
    %3796 = vmatprep.subr.bf16.mxu0 %v1999
    %3797 = vmatpush1.bf16.msra.mxu0 %v1998
    %3798 = vmatprep.subr.bf16.mxu0 %v2011
    %3799 = vmatpush1.bf16.msra.mxu0 %v2010
    %3800 = vmatprep.subr.bf16.mxu0 %v2023
    %3801 = vmatpush1.bf16.msra.mxu0 %v2022
    %3802 = vmatprep.subr.bf16.mxu0 %v2035
    %3803 = vmatpush1.bf16.msra.mxu0 %v2034
    %3804 = vmatprep.subr.bf16.mxu0 %v2047
    %3805 = vmatpush1.bf16.msra.mxu0 %v2046
    %3806 = vmatprep.subr.bf16.mxu0 %v2059
    %3807 = vmatpush1.bf16.msra.mxu0 %v2058
    %3808 = vmatprep.subr.bf16.mxu0 %v2071
    %3809 = vmatpush1.bf16.msra.mxu0 %v2070
    %3810 = vmatprep.subr.bf16.mxu0 %v2083
    %3811 = vmatpush1.bf16.msra.mxu0 %v2082
    %3812 = vmatprep.subr.bf16.mxu0 %v2095
    %3813 = vmatpush1.bf16.msra.mxu0 %v2094
    %3814 = vmatprep.subr.bf16.mxu0 %v2107
    %3815 = vmatpush1.bf16.msra.mxu0 %v2106
    %3816 = vmatprep.subr.bf16.mxu0 %v2119
    %3817 = vmatpush1.bf16.msra.mxu0 %v2118
    %3818 = vmatprep.subr.bf16.mxu0 %v2131
    %3819 = vmatpush1.bf16.msra.mxu0 %v2130
    %3820 = vmatprep.mubr.bf16.mxu0 %v3704
    %3821 = vmatmul.mubr.bf16.gmra.mrb[0].mxu0 %v3703
    %v3822 = vpop.f32.mrb[0].mxu0
    %v3823 = vadd.f32 0.0, %v3822
    %v3824 = vpop.f32.mrb[0].mxu0
    %v3825 = vadd.f32 0.0, %v3824
    %v3826 = vpop.f32.mrb[0].mxu0
    %v3827 = vpop.f32.mrb[0].mxu0
    %3828 = vdwg.mxu0
    %3829 = vmatprep.subr.bf16.mxu0 %v2143
    %3830 = vmatpush1.bf16.msra.mxu0 %v2142
    %3831 = vmatprep.subr.bf16.mxu0 %v2155
    %3832 = vmatpush1.bf16.msra.mxu0 %v2154
    %3833 = vmatprep.subr.bf16.mxu0 %v2167
    %3834 = vmatpush1.bf16.msra.mxu0 %v2166
    %3835 = vmatprep.subr.bf16.mxu0 %v2179
    %3836 = vmatpush1.bf16.msra.mxu0 %v2178
    %3837 = vmatprep.subr.bf16.mxu0 %v2191
    %3838 = vmatpush1.bf16.msra.mxu0 %v2190
    %3839 = vmatprep.subr.bf16.mxu0 %v2203
    %3840 = vmatpush1.bf16.msra.mxu0 %v2202
    %3841 = vmatprep.subr.bf16.mxu0 %v2215
    %3842 = vmatpush1.bf16.msra.mxu0 %v2214
    %3843 = vmatprep.subr.bf16.mxu0 %v2227
    %3844 = vmatpush1.bf16.msra.mxu0 %v2226
    %3845 = vmatprep.subr.bf16.mxu0 0
    %3846 = vmatpush1.bf16.msra.mxu0 0
    %3847 = vmatprep.subr.bf16.mxu0 0
    %3848 = vmatpush1.bf16.msra.mxu0 0
    %3849 = vmatprep.subr.bf16.mxu0 0
    %3850 = vmatpush1.bf16.msra.mxu0 0
    %3851 = vmatprep.subr.bf16.mxu0 0
    %3852 = vmatpush1.bf16.msra.mxu0 0
    %3853 = vmatprep.subr.bf16.mxu0 0
    %3854 = vmatpush1.bf16.msra.mxu0 0
    %3855 = vmatprep.subr.bf16.mxu0 0
    %3856 = vmatpush1.bf16.msra.mxu0 0
    %3857 = vmatprep.subr.bf16.mxu0 0
    %3858 = vmatpush1.bf16.msra.mxu0 0
    %3859 = vmatprep.subr.bf16.mxu0 0
    %3860 = vmatpush1.bf16.msra.mxu0 0
    %3861 = vmatprep.mubr.bf16.mxu0 0
    %3862 = vmatmul.mubr.bf16.gmra.mrb[0].mxu0 %v3705
    %v3863 = vpop.f32.mrb[0].mxu0
    %v3864 = vadd.f32 %v3823, %v3863
    %v3865 = vpop.f32.mrb[0].mxu0
    %v3866 = vadd.f32 %v3825, %v3865
    %v3867 = vpop.f32.mrb[0].mxu0
    %v3868 = vpop.f32.mrb[0].mxu0
    %3869 = vdwg.mxu0
    %3870 = vmatprep.subr.bf16.mxu0 %v1953
    %3871 = vmatpush1.bf16.msra.mxu0 %v1952
    %3872 = vmatprep.subr.bf16.mxu0 %v1965
    %3873 = vmatpush1.bf16.msra.mxu0 %v1964
    %3874 = vmatprep.subr.bf16.mxu0 %v1977
    %3875 = vmatpush1.bf16.msra.mxu0 %v1976
    %3876 = vmatprep.subr.bf16.mxu0 %v1989
    %3877 = vmatpush1.bf16.msra.mxu0 %v1988
    %3878 = vmatprep.subr.bf16.mxu0 %v2001
    %3879 = vmatpush1.bf16.msra.mxu0 %v2000
    %3880 = vmatprep.subr.bf16.mxu0 %v2013
    %3881 = vmatpush1.bf16.msra.mxu0 %v2012
    %3882 = vmatprep.subr.bf16.mxu0 %v2025
    %3883 = vmatpush1.bf16.msra.mxu0 %v2024
    %3884 = vmatprep.subr.bf16.mxu0 %v2037
    %3885 = vmatpush1.bf16.msra.mxu0 %v2036
    %3886 = vmatprep.subr.bf16.mxu0 %v2049
    %3887 = vmatpush1.bf16.msra.mxu0 %v2048
    %3888 = vmatprep.subr.bf16.mxu0 %v2061
    %3889 = vmatpush1.bf16.msra.mxu0 %v2060
    %3890 = vmatprep.subr.bf16.mxu0 %v2073
    %3891 = vmatpush1.bf16.msra.mxu0 %v2072
    %3892 = vmatprep.subr.bf16.mxu0 %v2085
    %3893 = vmatpush1.bf16.msra.mxu0 %v2084
    %3894 = vmatprep.subr.bf16.mxu0 %v2097
    %3895 = vmatpush1.bf16.msra.mxu0 %v2096
    %3896 = vmatprep.subr.bf16.mxu0 %v2109
    %3897 = vmatpush1.bf16.msra.mxu0 %v2108
    %3898 = vmatprep.subr.bf16.mxu0 %v2121
    %3899 = vmatpush1.bf16.msra.mxu0 %v2120
    %3900 = vmatprep.subr.bf16.mxu0 %v2133
    %3901 = vmatpush1.bf16.msra.mxu0 %v2132
    %3902 = vmatprep.mubr.bf16.mxu0 %v3704
    %3903 = vmatmul.mubr.bf16.gmra.mrb[0].mxu0 %v3703
    %v3904 = vpop.f32.mrb[0].mxu0
    %v3905 = vadd.f32 0.0, %v3904
    %v3906 = vpop.f32.mrb[0].mxu0
    %v3907 = vadd.f32 0.0, %v3906
    %v3908 = vpop.f32.mrb[0].mxu0
    %v3909 = vpop.f32.mrb[0].mxu0
    %3910 = vdwg.mxu0
    %3911 = vmatprep.subr.bf16.mxu0 %v2145
    %3912 = vmatpush1.bf16.msra.mxu0 %v2144
    %3913 = vmatprep.subr.bf16.mxu0 %v2157
    %3914 = vmatpush1.bf16.msra.mxu0 %v2156
    %3915 = vmatprep.subr.bf16.mxu0 %v2169
    %3916 = vmatpush1.bf16.msra.mxu0 %v2168
    %3917 = vmatprep.subr.bf16.mxu0 %v2181
    %3918 = vmatpush1.bf16.msra.mxu0 %v2180
    %3919 = vmatprep.subr.bf16.mxu0 %v2193
    %3920 = vmatpush1.bf16.msra.mxu0 %v2192
    %3921 = vmatprep.subr.bf16.mxu0 %v2205
    %3922 = vmatpush1.bf16.msra.mxu0 %v2204
    %3923 = vmatprep.subr.bf16.mxu0 %v2217
    %3924 = vmatpush1.bf16.msra.mxu0 %v2216
    %3925 = vmatprep.subr.bf16.mxu0 %v2229
    %3926 = vmatpush1.bf16.msra.mxu0 %v2228
    %3927 = vmatprep.subr.bf16.mxu0 0
    %3928 = vmatpush1.bf16.msra.mxu0 0
    %3929 = vmatprep.subr.bf16.mxu0 0
    %3930 = vmatpush1.bf16.msra.mxu0 0
    %3931 = vmatprep.subr.bf16.mxu0 0
    %3932 = vmatpush1.bf16.msra.mxu0 0
    %3933 = vmatprep.subr.bf16.mxu0 0
    %3934 = vmatpush1.bf16.msra.mxu0 0
    %3935 = vmatprep.subr.bf16.mxu0 0
    %3936 = vmatpush1.bf16.msra.mxu0 0
    %3937 = vmatprep.subr.bf16.mxu0 0
    %3938 = vmatpush1.bf16.msra.mxu0 0
    %3939 = vmatprep.subr.bf16.mxu0 0
    %3940 = vmatpush1.bf16.msra.mxu0 0
    %3941 = vmatprep.subr.bf16.mxu0 0
    %3942 = vmatpush1.bf16.msra.mxu0 0
    %3943 = vmatprep.mubr.bf16.mxu0 0
    %3944 = vmatmul.mubr.bf16.gmra.mrb[0].mxu0 %v3705
    %v3945 = vpop.f32.mrb[0].mxu0
    %v3946 = vadd.f32 %v3905, %v3945
    %v3947 = vpop.f32.mrb[0].mxu0
    %v3948 = vadd.f32 %v3907, %v3947
    %v3949 = vpop.f32.mrb[0].mxu0
    %v3950 = vpop.f32.mrb[0].mxu0
    %3951 = vdwg.mxu0
    %3952 = vmatprep.subr.bf16.mxu0 %v1955
    %3953 = vmatpush1.bf16.msra.mxu0 %v1954
    %3954 = vmatprep.subr.bf16.mxu0 %v1967
    %3955 = vmatpush1.bf16.msra.mxu0 %v1966
    %3956 = vmatprep.subr.bf16.mxu0 %v1979
    %3957 = vmatpush1.bf16.msra.mxu0 %v1978
    %3958 = vmatprep.subr.bf16.mxu0 %v1991
    %3959 = vmatpush1.bf16.msra.mxu0 %v1990
    %3960 = vmatprep.subr.bf16.mxu0 %v2003
    %3961 = vmatpush1.bf16.msra.mxu0 %v2002
    %3962 = vmatprep.subr.bf16.mxu0 %v2015
    %3963 = vmatpush1.bf16.msra.mxu0 %v2014
    %3964 = vmatprep.subr.bf16.mxu0 %v2027
    %3965 = vmatpush1.bf16.msra.mxu0 %v2026
    %3966 = vmatprep.subr.bf16.mxu0 %v2039
    %3967 = vmatpush1.bf16.msra.mxu0 %v2038
    %3968 = vmatprep.subr.bf16.mxu0 %v2051
    %3969 = vmatpush1.bf16.msra.mxu0 %v2050
    %3970 = vmatprep.subr.bf16.mxu0 %v2063
    %3971 = vmatpush1.bf16.msra.mxu0 %v2062
    %3972 = vmatprep.subr.bf16.mxu0 %v2075
    %3973 = vmatpush1.bf16.msra.mxu0 %v2074
    %3974 = vmatprep.subr.bf16.mxu0 %v2087
    %3975 = vmatpush1.bf16.msra.mxu0 %v2086
    %3976 = vmatprep.subr.bf16.mxu0 %v2099
    %3977 = vmatpush1.bf16.msra.mxu0 %v2098
    %3978 = vmatprep.subr.bf16.mxu0 %v2111
    %3979 = vmatpush1.bf16.msra.mxu0 %v2110
    %3980 = vmatprep.subr.bf16.mxu0 %v2123
    %3981 = vmatpush1.bf16.msra.mxu0 %v2122
    %3982 = vmatprep.subr.bf16.mxu0 %v2135
    %3983 = vmatpush1.bf16.msra.mxu0 %v2134
    %3984 = vmatprep.mubr.bf16.mxu0 %v3704
    %3985 = vmatmul.mubr.bf16.gmra.mrb[0].mxu0 %v3703
    %v3986 = vpop.f32.mrb[0].mxu0
    %v3987 = vadd.f32 0.0, %v3986
    %v3988 = vpop.f32.mrb[0].mxu0
    %v3989 = vadd.f32 0.0, %v3988
    %v3990 = vpop.f32.mrb[0].mxu0
    %v3991 = vpop.f32.mrb[0].mxu0
    %3992 = vdwg.mxu0
    %3993 = vmatprep.subr.bf16.mxu0 %v2147
    %3994 = vmatpush1.bf16.msra.mxu0 %v2146
    %3995 = vmatprep.subr.bf16.mxu0 %v2159
    %3996 = vmatpush1.bf16.msra.mxu0 %v2158
    %3997 = vmatprep.subr.bf16.mxu0 %v2171
    %3998 = vmatpush1.bf16.msra.mxu0 %v2170
    %3999 = vmatprep.subr.bf16.mxu0 %v2183
    %4000 = vmatpush1.bf16.msra.mxu0 %v2182
    %4001 = vmatprep.subr.bf16.mxu0 %v2195
    %4002 = vmatpush1.bf16.msra.mxu0 %v2194
    %4003 = vmatprep.subr.bf16.mxu0 %v2207
    %4004 = vmatpush1.bf16.msra.mxu0 %v2206
    %4005 = vmatprep.subr.bf16.mxu0 %v2219
    %4006 = vmatpush1.bf16.msra.mxu0 %v2218
    %4007 = vmatprep.subr.bf16.mxu0 %v2231
    %4008 = vmatpush1.bf16.msra.mxu0 %v2230
    %4009 = vmatprep.subr.bf16.mxu0 0
    %4010 = vmatpush1.bf16.msra.mxu0 0
    %4011 = vmatprep.subr.bf16.mxu0 0
    %4012 = vmatpush1.bf16.msra.mxu0 0
    %4013 = vmatprep.subr.bf16.mxu0 0
    %4014 = vmatpush1.bf16.msra.mxu0 0
    %4015 = vmatprep.subr.bf16.mxu0 0
    %4016 = vmatpush1.bf16.msra.mxu0 0
    %4017 = vmatprep.subr.bf16.mxu0 0
    %4018 = vmatpush1.bf16.msra.mxu0 0
    %4019 = vmatprep.subr.bf16.mxu0 0
    %4020 = vmatpush1.bf16.msra.mxu0 0
    %4021 = vmatprep.subr.bf16.mxu0 0
    %4022 = vmatpush1.bf16.msra.mxu0 0
    %4023 = vmatprep.subr.bf16.mxu0 0
    %4024 = vmatpush1.bf16.msra.mxu0 0
    %4025 = vmatprep.mubr.bf16.mxu0 0
    %4026 = vmatmul.mubr.bf16.gmra.mrb[0].mxu0 %v3705
    %v4027 = vpop.f32.mrb[0].mxu0
    %v4028 = vadd.f32 %v3987, %v4027
    %v4029 = vpop.f32.mrb[0].mxu0
    %v4030 = vadd.f32 %v3989, %v4029
    %v4031 = vpop.f32.mrb[0].mxu0
    %v4032 = vpop.f32.mrb[0].mxu0
    %4033 = vdwg.mxu0
    %4034 = vmatprep.subr.bf16.mxu0 %v1957
    %4035 = vmatpush1.bf16.msra.mxu0 %v1956
    %4036 = vmatprep.subr.bf16.mxu0 %v1969
    %4037 = vmatpush1.bf16.msra.mxu0 %v1968
    %4038 = vmatprep.subr.bf16.mxu0 %v1981
    %4039 = vmatpush1.bf16.msra.mxu0 %v1980
    %4040 = vmatprep.subr.bf16.mxu0 %v1993
    %4041 = vmatpush1.bf16.msra.mxu0 %v1992
    %4042 = vmatprep.subr.bf16.mxu0 %v2005
    %4043 = vmatpush1.bf16.msra.mxu0 %v2004
    %4044 = vmatprep.subr.bf16.mxu0 %v2017
    %4045 = vmatpush1.bf16.msra.mxu0 %v2016
    %4046 = vmatprep.subr.bf16.mxu0 %v2029
    %4047 = vmatpush1.bf16.msra.mxu0 %v2028
    %4048 = vmatprep.subr.bf16.mxu0 %v2041
    %4049 = vmatpush1.bf16.msra.mxu0 %v2040
    %4050 = vmatprep.subr.bf16.mxu0 %v2053
    %4051 = vmatpush1.bf16.msra.mxu0 %v2052
    %4052 = vmatprep.subr.bf16.mxu0 %v2065
    %4053 = vmatpush1.bf16.msra.mxu0 %v2064
    %4054 = vmatprep.subr.bf16.mxu0 %v2077
    %4055 = vmatpush1.bf16.msra.mxu0 %v2076
    %4056 = vmatprep.subr.bf16.mxu0 %v2089
    %4057 = vmatpush1.bf16.msra.mxu0 %v2088
    %4058 = vmatprep.subr.bf16.mxu0 %v2101
    %4059 = vmatpush1.bf16.msra.mxu0 %v2100
    %4060 = vmatprep.subr.bf16.mxu0 %v2113
    %4061 = vmatpush1.bf16.msra.mxu0 %v2112
    %4062 = vmatprep.subr.bf16.mxu0 %v2125
    %4063 = vmatpush1.bf16.msra.mxu0 %v2124
    %4064 = vmatprep.subr.bf16.mxu0 %v2137
    %4065 = vmatpush1.bf16.msra.mxu0 %v2136
    %4066 = vmatprep.mubr.bf16.mxu0 %v3704
    %4067 = vmatmul.mubr.bf16.gmra.mrb[0].mxu0 %v3703
    %v4068 = vpop.f32.mrb[0].mxu0
    %v4069 = vadd.f32 0.0, %v4068
    %v4070 = vpop.f32.mrb[0].mxu0
    %v4071 = vadd.f32 0.0, %v4070
    %v4072 = vpop.f32.mrb[0].mxu0
    %v4073 = vpop.f32.mrb[0].mxu0
    %4074 = vdwg.mxu0
    %4075 = vmatprep.subr.bf16.mxu0 %v2149
    %4076 = vmatpush1.bf16.msra.mxu0 %v2148
    %4077 = vmatprep.subr.bf16.mxu0 %v2161
    %4078 = vmatpush1.bf16.msra.mxu0 %v2160
    %4079 = vmatprep.subr.bf16.mxu0 %v2173
    %4080 = vmatpush1.bf16.msra.mxu0 %v2172
    %4081 = vmatprep.subr.bf16.mxu0 %v2185
    %4082 = vmatpush1.bf16.msra.mxu0 %v2184
    %4083 = vmatprep.subr.bf16.mxu0 %v2197
    %4084 = vmatpush1.bf16.msra.mxu0 %v2196
    %4085 = vmatprep.subr.bf16.mxu0 %v2209
    %4086 = vmatpush1.bf16.msra.mxu0 %v2208
    %4087 = vmatprep.subr.bf16.mxu0 %v2221
    %4088 = vmatpush1.bf16.msra.mxu0 %v2220
    %4089 = vmatprep.subr.bf16.mxu0 %v2233
    %4090 = vmatpush1.bf16.msra.mxu0 %v2232
    %4091 = vmatprep.subr.bf16.mxu0 0
    %4092 = vmatpush1.bf16.msra.mxu0 0
    %4093 = vmatprep.subr.bf16.mxu0 0
    %4094 = vmatpush1.bf16.msra.mxu0 0
    %4095 = vmatprep.subr.bf16.mxu0 0
    %4096 = vmatpush1.bf16.msra.mxu0 0
    %4097 = vmatprep.subr.bf16.mxu0 0
    %4098 = vmatpush1.bf16.msra.mxu0 0
    %4099 = vmatprep.subr.bf16.mxu0 0
    %4100 = vmatpush1.bf16.msra.mxu0 0
    %4101 = vmatprep.subr.bf16.mxu0 0
    %4102 = vmatpush1.bf16.msra.mxu0 0
    %4103 = vmatprep.subr.bf16.mxu0 0
    %4104 = vmatpush1.bf16.msra.mxu0 0
    %4105 = vmatprep.subr.bf16.mxu0 0
    %4106 = vmatpush1.bf16.msra.mxu0 0
    %4107 = vmatprep.mubr.bf16.mxu0 0
    %4108 = vmatmul.mubr.bf16.gmra.mrb[0].mxu0 %v3705
    %v4109 = vpop.f32.mrb[0].mxu0
    %v4110 = vadd.f32 %v4069, %v4109
    %v4111 = vpop.f32.mrb[0].mxu0
    %v4112 = vadd.f32 %v4071, %v4111
    %v4113 = vpop.f32.mrb[0].mxu0
    %v4114 = vpop.f32.mrb[0].mxu0
    %4115 = vdwg.mxu0
    %4116 = vmatprep.subr.bf16.mxu0 %v1959
    %4117 = vmatpush1.bf16.msra.mxu0 %v1958
    %4118 = vmatprep.subr.bf16.mxu0 %v1971
    %4119 = vmatpush1.bf16.msra.mxu0 %v1970
    %4120 = vmatprep.subr.bf16.mxu0 %v1983
    %4121 = vmatpush1.bf16.msra.mxu0 %v1982
    %4122 = vmatprep.subr.bf16.mxu0 %v1995
    %4123 = vmatpush1.bf16.msra.mxu0 %v1994
    %4124 = vmatprep.subr.bf16.mxu0 %v2007
    %4125 = vmatpush1.bf16.msra.mxu0 %v2006
    %4126 = vmatprep.subr.bf16.mxu0 %v2019
    %4127 = vmatpush1.bf16.msra.mxu0 %v2018
    %4128 = vmatprep.subr.bf16.mxu0 %v2031
    %4129 = vmatpush1.bf16.msra.mxu0 %v2030
    %4130 = vmatprep.subr.bf16.mxu0 %v2043
    %4131 = vmatpush1.bf16.msra.mxu0 %v2042
    %4132 = vmatprep.subr.bf16.mxu0 %v2055
    %4133 = vmatpush1.bf16.msra.mxu0 %v2054
    %4134 = vmatprep.subr.bf16.mxu0 %v2067
    %4135 = vmatpush1.bf16.msra.mxu0 %v2066
    %4136 = vmatprep.subr.bf16.mxu0 %v2079
    %4137 = vmatpush1.bf16.msra.mxu0 %v2078
    %4138 = vmatprep.subr.bf16.mxu0 %v2091
    %4139 = vmatpush1.bf16.msra.mxu0 %v2090
    %4140 = vmatprep.subr.bf16.mxu0 %v2103
    %4141 = vmatpush1.bf16.msra.mxu0 %v2102
    %4142 = vmatprep.subr.bf16.mxu0 %v2115
    %4143 = vmatpush1.bf16.msra.mxu0 %v2114
    %4144 = vmatprep.subr.bf16.mxu0 %v2127
    %4145 = vmatpush1.bf16.msra.mxu0 %v2126
    %4146 = vmatprep.subr.bf16.mxu0 %v2139
    %4147 = vmatpush1.bf16.msra.mxu0 %v2138
    %4148 = vmatprep.mubr.bf16.mxu0 %v3704
    %4149 = vmatmul.mubr.bf16.gmra.mrb[0].mxu0 %v3703
    %v4150 = vpop.f32.mrb[0].mxu0
    %v4151 = vadd.f32 0.0, %v4150
    %v4152 = vpop.f32.mrb[0].mxu0
    %v4153 = vadd.f32 0.0, %v4152
    %v4154 = vpop.f32.mrb[0].mxu0
    %v4155 = vpop.f32.mrb[0].mxu0
    %4156 = vdwg.mxu0
    %4157 = vmatprep.subr.bf16.mxu0 %v2151
    %4158 = vmatpush1.bf16.msra.mxu0 %v2150
    %4159 = vmatprep.subr.bf16.mxu0 %v2163
    %4160 = vmatpush1.bf16.msra.mxu0 %v2162
    %4161 = vmatprep.subr.bf16.mxu0 %v2175
    %4162 = vmatpush1.bf16.msra.mxu0 %v2174
    %4163 = vmatprep.subr.bf16.mxu0 %v2187
    %4164 = vmatpush1.bf16.msra.mxu0 %v2186
    %4165 = vmatprep.subr.bf16.mxu0 %v2199
    %4166 = vmatpush1.bf16.msra.mxu0 %v2198
    %4167 = vmatprep.subr.bf16.mxu0 %v2211
    %4168 = vmatpush1.bf16.msra.mxu0 %v2210
    %4169 = vmatprep.subr.bf16.mxu0 %v2223
    %4170 = vmatpush1.bf16.msra.mxu0 %v2222
    %4171 = vmatprep.subr.bf16.mxu0 %v2235
    %4172 = vmatpush1.bf16.msra.mxu0 %v2234
    %4173 = vmatprep.subr.bf16.mxu0 0
    %4174 = vmatpush1.bf16.msra.mxu0 0
    %4175 = vmatprep.subr.bf16.mxu0 0
    %4176 = vmatpush1.bf16.msra.mxu0 0
    %4177 = vmatprep.subr.bf16.mxu0 0
    %4178 = vmatpush1.bf16.msra.mxu0 0
    %4179 = vmatprep.subr.bf16.mxu0 0
    %4180 = vmatpush1.bf16.msra.mxu0 0
    %4181 = vmatprep.subr.bf16.mxu0 0
    %4182 = vmatpush1.bf16.msra.mxu0 0
    %4183 = vmatprep.subr.bf16.mxu0 0
    %4184 = vmatpush1.bf16.msra.mxu0 0
    %4185 = vmatprep.subr.bf16.mxu0 0
    %4186 = vmatpush1.bf16.msra.mxu0 0
    %4187 = vmatprep.subr.bf16.mxu0 0
    %4188 = vmatpush1.bf16.msra.mxu0 0
    %4189 = vmatprep.mubr.bf16.mxu0 0
    %4190 = vmatmul.mubr.bf16.gmra.mrb[0].mxu0 %v3705
    %v4191 = vpop.f32.mrb[0].mxu0
    %v4192 = vadd.f32 %v4151, %v4191
    %v4193 = vpop.f32.mrb[0].mxu0
    %v4194 = vadd.f32 %v4153, %v4193
    %v4195 = vpop.f32.mrb[0].mxu0
    %v4196 = vpop.f32.mrb[0].mxu0
    %4197 = vdwg.mxu0
    %v4198 = vadd.f32 %v3691, %v3782
    %v4199 = vadd.f32 %v3692, %v3784
    %v4200 = vadd.f32 %v3693, %v3864
    %v4201 = vadd.f32 %v3694, %v3866
    %v4202 = vadd.f32 %v3695, %v3946
    %v4203 = vadd.f32 %v3696, %v3948
    %v4204 = vadd.f32 %v3697, %v4028
    %v4205 = vadd.f32 %v3698, %v4030
    %v4206 = vadd.f32 %v3699, %v4110
    %v4207 = vadd.f32 %v3700, %v4112
    %v4208 = vadd.f32 %v3701, %v4192
    %v4209 = vadd.f32 %v3702, %v4194
    %v4210 = vxor.u32 %v4198, 2147483648
    %v4211 = vxor.u32 %v4199, 2147483648
    %v4212 = vxor.u32 %v4200, 2147483648
    %v4213 = vxor.u32 %v4201, 2147483648
    %v4214 = vxor.u32 %v4202, 2147483648
    %v4215 = vxor.u32 %v4203, 2147483648
    %v4216 = vxor.u32 %v4204, 2147483648
    %v4217 = vxor.u32 %v4205, 2147483648
    %v4218 = vxor.u32 %v4206, 2147483648
    %v4219 = vmul.f32 %v4210, 1.442695
    %v4220 = vpow.pop %v4219
    %v4221 = vmul.f32 %v4211, 1.442695
    %v4222 = vpow.pop %v4221
    %v4223 = vmul.f32 %v4212, 1.442695
    %v4224 = vpow.pop %v4223
    %v4225 = vmul.f32 %v4213, 1.442695
    %v4226 = vpow.pop %v4225
    %v4227 = vmul.f32 %v4214, 1.442695
    %v4228 = vpow.pop %v4227
    %v4229 = vmul.f32 %v4215, 1.442695
    %v4230 = vpow.pop %v4229
    %v4231 = vmul.f32 %v4216, 1.442695
    %v4232 = vpow.pop %v4231
    %v4233 = vmul.f32 %v4217, 1.442695
    %v4234 = vpow.pop %v4233
    %v4235 = vmul.f32 %v4218, 1.442695
    %v4236 = vpow.pop %v4235
    %v4237 = vadd.f32 %v4220, 1.0
    %v4238 = vadd.f32 %v4222, 1.0
    %v4239 = vadd.f32 %v4224, 1.0
    %v4240 = vadd.f32 %v4226, 1.0
    %v4241 = vadd.f32 %v4228, 1.0
    %v4242 = vadd.f32 %v4230, 1.0
    %v4243 = vadd.f32 %v4232, 1.0
    %v4244 = vadd.f32 %v4234, 1.0
    %v4245 = vadd.f32 %v4236, 1.0
    %v4246 = vrcp.pop %v4237
    %v4247 = vmul.f32 1.0, %v4246
    %v4248 = vrcp.pop %v4238
    %v4249 = vmul.f32 1.0, %v4248
    %v4250 = vrcp.pop %v4239
    %v4251 = vmul.f32 1.0, %v4250
    %v4252 = vrcp.pop %v4240
    %v4253 = vmul.f32 1.0, %v4252
    %v4254 = vrcp.pop %v4241
    %v4255 = vmul.f32 1.0, %v4254
    %v4256 = vrcp.pop %v4242
    %v4257 = vmul.f32 1.0, %v4256
    %v4258 = vrcp.pop %v4243
    %v4259 = vmul.f32 1.0, %v4258
    %v4260 = vrcp.pop %v4244
    %v4261 = vmul.f32 1.0, %v4260
    %v4262 = vrcp.pop %v4245
    %v4263 = vmul.f32 1.0, %v4262
    %v4264 = vtanh.pop %v4207
    %v4265 = vtanh.pop %v4208
    %v4266 = vtanh.pop %v4209
    %v4267 = vmul.f32 %v4253, %v3682
    %v4268 = vmul.f32 %v4255, %v3683
    %v4269 = vmul.f32 %v4257, %v3684
    %v4270 = vmul.f32 %v4247, %v4264
    %v4271 = vmul.f32 %v4249, %v4265
    %v4272 = vmul.f32 %v4251, %v4266
    %v4273 = vadd.f32 %v4267, %v4270
    %v4274 = vadd.f32 %v4268, %v4271
    %v4275 = vadd.f32 %v4269, %v4272
    %v4276 = vtanh.pop %v4273
    %v4277 = vtanh.pop %v4274
    %v4278 = vtanh.pop %v4275
    %v4279 = vmul.f32 %v4259, %v4276
    %v4280 = vmul.f32 %v4261, %v4277
    %v4281 = vmul.f32 %v4263, %v4278
    %v4282 = vld [vmem:[#allocation2 + $0x120] sm:$0xff]
    %v4283 = vld [vmem:[#allocation2 + $0x128] sm:$0xff]
    %v4284 = vld [vmem:[#allocation2 + $0x130] sm:$0xff]
    %v4285 = vld [vmem:[#allocation2 + $0x138] sm:$0xff]
    %v4286 = vld [vmem:[#allocation2 + $0x140] sm:$0xff]
    %v4287 = vld [vmem:[#allocation2 + $0x148] sm:$0xff]
    %v4288 = vld [vmem:[#allocation2 + $0x150] sm:$0xff]
    %v4289 = vld [vmem:[#allocation2 + $0x158] sm:$0xff]
    %v4290 = vld [vmem:[#allocation2 + $0x160] sm:$0xff]
    %v4291 = vld [vmem:[#allocation2 + $0x168] sm:$0xff]
    %v4292 = vld [vmem:[#allocation2 + $0x170] sm:$0xff]
    %v4293 = vld [vmem:[#allocation2 + $0x178] sm:$0xff]
    %v4294 = vpack.c.bf16 %v4279, %v4279
    %v4295 = vpack.c.bf16 %v4280, %v4280
    %v4296 = vpack.c.bf16 %v4281, %v4281
    %4297 = vmatprep.subr.bf16.mxu0 %v1949
    %4298 = vmatpush1.bf16.msra.mxu0 %v1948
    %4299 = vmatprep.subr.bf16.mxu0 %v1961
    %4300 = vmatpush1.bf16.msra.mxu0 %v1960
    %4301 = vmatprep.subr.bf16.mxu0 %v1973
    %4302 = vmatpush1.bf16.msra.mxu0 %v1972
    %4303 = vmatprep.subr.bf16.mxu0 %v1985
    %4304 = vmatpush1.bf16.msra.mxu0 %v1984
    %4305 = vmatprep.subr.bf16.mxu0 %v1997
    %4306 = vmatpush1.bf16.msra.mxu0 %v1996
    %4307 = vmatprep.subr.bf16.mxu0 %v2009
    %4308 = vmatpush1.bf16.msra.mxu0 %v2008
    %4309 = vmatprep.subr.bf16.mxu0 %v2021
    %4310 = vmatpush1.bf16.msra.mxu0 %v2020
    %4311 = vmatprep.subr.bf16.mxu0 %v2033
    %4312 = vmatpush1.bf16.msra.mxu0 %v2032
    %4313 = vmatprep.subr.bf16.mxu0 %v2045
    %4314 = vmatpush1.bf16.msra.mxu0 %v2044
    %4315 = vmatprep.subr.bf16.mxu0 %v2057
    %4316 = vmatpush1.bf16.msra.mxu0 %v2056
    %4317 = vmatprep.subr.bf16.mxu0 %v2069
    %4318 = vmatpush1.bf16.msra.mxu0 %v2068
    %4319 = vmatprep.subr.bf16.mxu0 %v2081
    %4320 = vmatpush1.bf16.msra.mxu0 %v2080
    %4321 = vmatprep.subr.bf16.mxu0 %v2093
    %4322 = vmatpush1.bf16.msra.mxu0 %v2092
    %4323 = vmatprep.subr.bf16.mxu0 %v2105
    %4324 = vmatpush1.bf16.msra.mxu0 %v2104
    %4325 = vmatprep.subr.bf16.mxu0 %v2117
    %4326 = vmatpush1.bf16.msra.mxu0 %v2116
    %4327 = vmatprep.subr.bf16.mxu0 %v2129
    %4328 = vmatpush1.bf16.msra.mxu0 %v2128
    %4329 = vmatprep.mubr.bf16.mxu0 %v4295
    %4330 = vmatmul.mubr.bf16.gmra.mrb[0].mxu0 %v4294
    %v4331 = vpop.f32.mrb[0].mxu0
    %v4332 = vadd.f32 0.0, %v4331
    %v4333 = vpop.f32.mrb[0].mxu0
    %v4334 = vadd.f32 0.0, %v4333
    %v4335 = vpop.f32.mrb[0].mxu0
    %v4336 = vpop.f32.mrb[0].mxu0
    %4337 = vdwg.mxu0
    %4338 = vmatprep.subr.bf16.mxu0 %v2141
    %4339 = vmatpush1.bf16.msra.mxu0 %v2140
    %4340 = vmatprep.subr.bf16.mxu0 %v2153
    %4341 = vmatpush1.bf16.msra.mxu0 %v2152
    %4342 = vmatprep.subr.bf16.mxu0 %v2165
    %4343 = vmatpush1.bf16.msra.mxu0 %v2164
    %4344 = vmatprep.subr.bf16.mxu0 %v2177
    %4345 = vmatpush1.bf16.msra.mxu0 %v2176
    %4346 = vmatprep.subr.bf16.mxu0 %v2189
    %4347 = vmatpush1.bf16.msra.mxu0 %v2188
    %4348 = vmatprep.subr.bf16.mxu0 %v2201
    %4349 = vmatpush1.bf16.msra.mxu0 %v2200
    %4350 = vmatprep.subr.bf16.mxu0 %v2213
    %4351 = vmatpush1.bf16.msra.mxu0 %v2212
    %4352 = vmatprep.subr.bf16.mxu0 %v2225
    %4353 = vmatpush1.bf16.msra.mxu0 %v2224
    %4354 = vmatprep.subr.bf16.mxu0 0
    %4355 = vmatpush1.bf16.msra.mxu0 0
    %4356 = vmatprep.subr.bf16.mxu0 0
    %4357 = vmatpush1.bf16.msra.mxu0 0
    %4358 = vmatprep.subr.bf16.mxu0 0
    %4359 = vmatpush1.bf16.msra.mxu0 0
    %4360 = vmatprep.subr.bf16.mxu0 0
    %4361 = vmatpush1.bf16.msra.mxu0 0
    %4362 = vmatprep.subr.bf16.mxu0 0
    %4363 = vmatpush1.bf16.msra.mxu0 0
    %4364 = vmatprep.subr.bf16.mxu0 0
    %4365 = vmatpush1.bf16.msra.mxu0 0
    %4366 = vmatprep.subr.bf16.mxu0 0
    %4367 = vmatpush1.bf16.msra.mxu0 0
    %4368 = vmatprep.subr.bf16.mxu0 0
    %4369 = vmatpush1.bf16.msra.mxu0 0
    %4370 = vmatprep.mubr.bf16.mxu0 0
    %4371 = vmatmul.mubr.bf16.gmra.mrb[0].mxu0 %v4296
    %v4372 = vpop.f32.mrb[0].mxu0
    %v4373 = vadd.f32 %v4332, %v4372
    %v4374 = vpop.f32.mrb[0].mxu0
    %v4375 = vadd.f32 %v4334, %v4374
    %v4376 = vpop.f32.mrb[0].mxu0
    %v4377 = vpop.f32.mrb[0].mxu0
    %4378 = vdwg.mxu0
    %4379 = vmatprep.subr.bf16.mxu0 %v1951
    %4380 = vmatpush1.bf16.msra.mxu0 %v1950
    %4381 = vmatprep.subr.bf16.mxu0 %v1963
    %4382 = vmatpush1.bf16.msra.mxu0 %v1962
    %4383 = vmatprep.subr.bf16.mxu0 %v1975
    %4384 = vmatpush1.bf16.msra.mxu0 %v1974
    %4385 = vmatprep.subr.bf16.mxu0 %v1987
    %4386 = vmatpush1.bf16.msra.mxu0 %v1986
    %4387 = vmatprep.subr.bf16.mxu0 %v1999
    %4388 = vmatpush1.bf16.msra.mxu0 %v1998
    %4389 = vmatprep.subr.bf16.mxu0 %v2011
    %4390 = vmatpush1.bf16.msra.mxu0 %v2010
    %4391 = vmatprep.subr.bf16.mxu0 %v2023
    %4392 = vmatpush1.bf16.msra.mxu0 %v2022
    %4393 = vmatprep.subr.bf16.mxu0 %v2035
    %4394 = vmatpush1.bf16.msra.mxu0 %v2034
    %4395 = vmatprep.subr.bf16.mxu0 %v2047
    %4396 = vmatpush1.bf16.msra.mxu0 %v2046
    %4397 = vmatprep.subr.bf16.mxu0 %v2059
    %4398 = vmatpush1.bf16.msra.mxu0 %v2058
    %4399 = vmatprep.subr.bf16.mxu0 %v2071
    %4400 = vmatpush1.bf16.msra.mxu0 %v2070
    %4401 = vmatprep.subr.bf16.mxu0 %v2083
    %4402 = vmatpush1.bf16.msra.mxu0 %v2082
    %4403 = vmatprep.subr.bf16.mxu0 %v2095
    %4404 = vmatpush1.bf16.msra.mxu0 %v2094
    %4405 = vmatprep.subr.bf16.mxu0 %v2107
    %4406 = vmatpush1.bf16.msra.mxu0 %v2106
    %4407 = vmatprep.subr.bf16.mxu0 %v2119
    %4408 = vmatpush1.bf16.msra.mxu0 %v2118
    %4409 = vmatprep.subr.bf16.mxu0 %v2131
    %4410 = vmatpush1.bf16.msra.mxu0 %v2130
    %4411 = vmatprep.mubr.bf16.mxu0 %v4295
    %4412 = vmatmul.mubr.bf16.gmra.mrb[0].mxu0 %v4294
    %v4413 = vpop.f32.mrb[0].mxu0
    %v4414 = vadd.f32 0.0, %v4413
    %v4415 = vpop.f32.mrb[0].mxu0
    %v4416 = vadd.f32 0.0, %v4415
    %v4417 = vpop.f32.mrb[0].mxu0
    %v4418 = vpop.f32.mrb[0].mxu0
    %4419 = vdwg.mxu0
    %4420 = vmatprep.subr.bf16.mxu0 %v2143
    %4421 = vmatpush1.bf16.msra.mxu0 %v2142
    %4422 = vmatprep.subr.bf16.mxu0 %v2155
    %4423 = vmatpush1.bf16.msra.mxu0 %v2154
    %4424 = vmatprep.subr.bf16.mxu0 %v2167
    %4425 = vmatpush1.bf16.msra.mxu0 %v2166
    %4426 = vmatprep.subr.bf16.mxu0 %v2179
    %4427 = vmatpush1.bf16.msra.mxu0 %v2178
    %4428 = vmatprep.subr.bf16.mxu0 %v2191
    %4429 = vmatpush1.bf16.msra.mxu0 %v2190
    %4430 = vmatprep.subr.bf16.mxu0 %v2203
    %4431 = vmatpush1.bf16.msra.mxu0 %v2202
    %4432 = vmatprep.subr.bf16.mxu0 %v2215
    %4433 = vmatpush1.bf16.msra.mxu0 %v2214
    %4434 = vmatprep.subr.bf16.mxu0 %v2227
    %4435 = vmatpush1.bf16.msra.mxu0 %v2226
    %4436 = vmatprep.subr.bf16.mxu0 0
    %4437 = vmatpush1.bf16.msra.mxu0 0
    %4438 = vmatprep.subr.bf16.mxu0 0
    %4439 = vmatpush1.bf16.msra.mxu0 0
    %4440 = vmatprep.subr.bf16.mxu0 0
    %4441 = vmatpush1.bf16.msra.mxu0 0
    %4442 = vmatprep.subr.bf16.mxu0 0
    %4443 = vmatpush1.bf16.msra.mxu0 0
    %4444 = vmatprep.subr.bf16.mxu0 0
    %4445 = vmatpush1.bf16.msra.mxu0 0
    %4446 = vmatprep.subr.bf16.mxu0 0
    %4447 = vmatpush1.bf16.msra.mxu0 0
    %4448 = vmatprep.subr.bf16.mxu0 0
    %4449 = vmatpush1.bf16.msra.mxu0 0
    %4450 = vmatprep.subr.bf16.mxu0 0
    %4451 = vmatpush1.bf16.msra.mxu0 0
    %4452 = vmatprep.mubr.bf16.mxu0 0
    %4453 = vmatmul.mubr.bf16.gmra.mrb[0].mxu0 %v4296
    %v4454 = vpop.f32.mrb[0].mxu0
    %v4455 = vadd.f32 %v4414, %v4454
    %v4456 = vpop.f32.mrb[0].mxu0
    %v4457 = vadd.f32 %v4416, %v4456
    %v4458 = vpop.f32.mrb[0].mxu0
    %v4459 = vpop.f32.mrb[0].mxu0
    %4460 = vdwg.mxu0
    %4461 = vmatprep.subr.bf16.mxu0 %v1953
    %4462 = vmatpush1.bf16.msra.mxu0 %v1952
    %4463 = vmatprep.subr.bf16.mxu0 %v1965
    %4464 = vmatpush1.bf16.msra.mxu0 %v1964
    %4465 = vmatprep.subr.bf16.mxu0 %v1977
    %4466 = vmatpush1.bf16.msra.mxu0 %v1976
    %4467 = vmatprep.subr.bf16.mxu0 %v1989
    %4468 = vmatpush1.bf16.msra.mxu0 %v1988
    %4469 = vmatprep.subr.bf16.mxu0 %v2001
    %4470 = vmatpush1.bf16.msra.mxu0 %v2000
    %4471 = vmatprep.subr.bf16.mxu0 %v2013
    %4472 = vmatpush1.bf16.msra.mxu0 %v2012
    %4473 = vmatprep.subr.bf16.mxu0 %v2025
    %4474 = vmatpush1.bf16.msra.mxu0 %v2024
    %4475 = vmatprep.subr.bf16.mxu0 %v2037
    %4476 = vmatpush1.bf16.msra.mxu0 %v2036
    %4477 = vmatprep.subr.bf16.mxu0 %v2049
    %4478 = vmatpush1.bf16.msra.mxu0 %v2048
    %4479 = vmatprep.subr.bf16.mxu0 %v2061
    %4480 = vmatpush1.bf16.msra.mxu0 %v2060
    %4481 = vmatprep.subr.bf16.mxu0 %v2073
    %4482 = vmatpush1.bf16.msra.mxu0 %v2072
    %4483 = vmatprep.subr.bf16.mxu0 %v2085
    %4484 = vmatpush1.bf16.msra.mxu0 %v2084
    %4485 = vmatprep.subr.bf16.mxu0 %v2097
    %4486 = vmatpush1.bf16.msra.mxu0 %v2096
    %4487 = vmatprep.subr.bf16.mxu0 %v2109
    %4488 = vmatpush1.bf16.msra.mxu0 %v2108
    %4489 = vmatprep.subr.bf16.mxu0 %v2121
    %4490 = vmatpush1.bf16.msra.mxu0 %v2120
    %4491 = vmatprep.subr.bf16.mxu0 %v2133
    %4492 = vmatpush1.bf16.msra.mxu0 %v2132
    %4493 = vmatprep.mubr.bf16.mxu0 %v4295
    %4494 = vmatmul.mubr.bf16.gmra.mrb[0].mxu0 %v4294
    %v4495 = vpop.f32.mrb[0].mxu0
    %v4496 = vadd.f32 0.0, %v4495
    %v4497 = vpop.f32.mrb[0].mxu0
    %v4498 = vadd.f32 0.0, %v4497
    %v4499 = vpop.f32.mrb[0].mxu0
    %v4500 = vpop.f32.mrb[0].mxu0
    %4501 = vdwg.mxu0
    %4502 = vmatprep.subr.bf16.mxu0 %v2145
    %4503 = vmatpush1.bf16.msra.mxu0 %v2144
    %4504 = vmatprep.subr.bf16.mxu0 %v2157
    %4505 = vmatpush1.bf16.msra.mxu0 %v2156
    %4506 = vmatprep.subr.bf16.mxu0 %v2169
    %4507 = vmatpush1.bf16.msra.mxu0 %v2168
    %4508 = vmatprep.subr.bf16.mxu0 %v2181
    %4509 = vmatpush1.bf16.msra.mxu0 %v2180
    %4510 = vmatprep.subr.bf16.mxu0 %v2193
    %4511 = vmatpush1.bf16.msra.mxu0 %v2192
    %4512 = vmatprep.subr.bf16.mxu0 %v2205
    %4513 = vmatpush1.bf16.msra.mxu0 %v2204
    %4514 = vmatprep.subr.bf16.mxu0 %v2217
    %4515 = vmatpush1.bf16.msra.mxu0 %v2216
    %4516 = vmatprep.subr.bf16.mxu0 %v2229
    %4517 = vmatpush1.bf16.msra.mxu0 %v2228
    %4518 = vmatprep.subr.bf16.mxu0 0
    %4519 = vmatpush1.bf16.msra.mxu0 0
    %4520 = vmatprep.subr.bf16.mxu0 0
    %4521 = vmatpush1.bf16.msra.mxu0 0
    %4522 = vmatprep.subr.bf16.mxu0 0
    %4523 = vmatpush1.bf16.msra.mxu0 0
    %4524 = vmatprep.subr.bf16.mxu0 0
    %4525 = vmatpush1.bf16.msra.mxu0 0
    %4526 = vmatprep.subr.bf16.mxu0 0
    %4527 = vmatpush1.bf16.msra.mxu0 0
    %4528 = vmatprep.subr.bf16.mxu0 0
    %4529 = vmatpush1.bf16.msra.mxu0 0
    %4530 = vmatprep.subr.bf16.mxu0 0
    %4531 = vmatpush1.bf16.msra.mxu0 0
    %4532 = vmatprep.subr.bf16.mxu0 0
    %4533 = vmatpush1.bf16.msra.mxu0 0
    %4534 = vmatprep.mubr.bf16.mxu0 0
    %4535 = vmatmul.mubr.bf16.gmra.mrb[0].mxu0 %v4296
    %v4536 = vpop.f32.mrb[0].mxu0
    %v4537 = vadd.f32 %v4496, %v4536
    %v4538 = vpop.f32.mrb[0].mxu0
    %v4539 = vadd.f32 %v4498, %v4538
    %v4540 = vpop.f32.mrb[0].mxu0
    %v4541 = vpop.f32.mrb[0].mxu0
    %4542 = vdwg.mxu0
    %4543 = vmatprep.subr.bf16.mxu0 %v1955
    %4544 = vmatpush1.bf16.msra.mxu0 %v1954
    %4545 = vmatprep.subr.bf16.mxu0 %v1967
    %4546 = vmatpush1.bf16.msra.mxu0 %v1966
    %4547 = vmatprep.subr.bf16.mxu0 %v1979
    %4548 = vmatpush1.bf16.msra.mxu0 %v1978
    %4549 = vmatprep.subr.bf16.mxu0 %v1991
    %4550 = vmatpush1.bf16.msra.mxu0 %v1990
    %4551 = vmatprep.subr.bf16.mxu0 %v2003
    %4552 = vmatpush1.bf16.msra.mxu0 %v2002
    %4553 = vmatprep.subr.bf16.mxu0 %v2015
    %4554 = vmatpush1.bf16.msra.mxu0 %v2014
    %4555 = vmatprep.subr.bf16.mxu0 %v2027
    %4556 = vmatpush1.bf16.msra.mxu0 %v2026
    %4557 = vmatprep.subr.bf16.mxu0 %v2039
    %4558 = vmatpush1.bf16.msra.mxu0 %v2038
    %4559 = vmatprep.subr.bf16.mxu0 %v2051
    %4560 = vmatpush1.bf16.msra.mxu0 %v2050
    %4561 = vmatprep.subr.bf16.mxu0 %v2063
    %4562 = vmatpush1.bf16.msra.mxu0 %v2062
    %4563 = vmatprep.subr.bf16.mxu0 %v2075
    %4564 = vmatpush1.bf16.msra.mxu0 %v2074
    %4565 = vmatprep.subr.bf16.mxu0 %v2087
    %4566 = vmatpush1.bf16.msra.mxu0 %v2086
    %4567 = vmatprep.subr.bf16.mxu0 %v2099
    %4568 = vmatpush1.bf16.msra.mxu0 %v2098
    %4569 = vmatprep.subr.bf16.mxu0 %v2111
    %4570 = vmatpush1.bf16.msra.mxu0 %v2110
    %4571 = vmatprep.subr.bf16.mxu0 %v2123
    %4572 = vmatpush1.bf16.msra.mxu0 %v2122
    %4573 = vmatprep.subr.bf16.mxu0 %v2135
    %4574 = vmatpush1.bf16.msra.mxu0 %v2134
    %4575 = vmatprep.mubr.bf16.mxu0 %v4295
    %4576 = vmatmul.mubr.bf16.gmra.mrb[0].mxu0 %v4294
    %v4577 = vpop.f32.mrb[0].mxu0
    %v4578 = vadd.f32 0.0, %v4577
    %v4579 = vpop.f32.mrb[0].mxu0
    %v4580 = vadd.f32 0.0, %v4579
    %v4581 = vpop.f32.mrb[0].mxu0
    %v4582 = vpop.f32.mrb[0].mxu0
    %4583 = vdwg.mxu0
    %4584 = vmatprep.subr.bf16.mxu0 %v2147
    %4585 = vmatpush1.bf16.msra.mxu0 %v2146
    %4586 = vmatprep.subr.bf16.mxu0 %v2159
    %4587 = vmatpush1.bf16.msra.mxu0 %v2158
    %4588 = vmatprep.subr.bf16.mxu0 %v2171
    %4589 = vmatpush1.bf16.msra.mxu0 %v2170
    %4590 = vmatprep.subr.bf16.mxu0 %v2183
    %4591 = vmatpush1.bf16.msra.mxu0 %v2182
    %4592 = vmatprep.subr.bf16.mxu0 %v2195
    %4593 = vmatpush1.bf16.msra.mxu0 %v2194
    %4594 = vmatprep.subr.bf16.mxu0 %v2207
    %4595 = vmatpush1.bf16.msra.mxu0 %v2206
    %4596 = vmatprep.subr.bf16.mxu0 %v2219
    %4597 = vmatpush1.bf16.msra.mxu0 %v2218
    %4598 = vmatprep.subr.bf16.mxu0 %v2231
    %4599 = vmatpush1.bf16.msra.mxu0 %v2230
    %4600 = vmatprep.subr.bf16.mxu0 0
    %4601 = vmatpush1.bf16.msra.mxu0 0
    %4602 = vmatprep.subr.bf16.mxu0 0
    %4603 = vmatpush1.bf16.msra.mxu0 0
    %4604 = vmatprep.subr.bf16.mxu0 0
    %4605 = vmatpush1.bf16.msra.mxu0 0
    %4606 = vmatprep.subr.bf16.mxu0 0
    %4607 = vmatpush1.bf16.msra.mxu0 0
    %4608 = vmatprep.subr.bf16.mxu0 0
    %4609 = vmatpush1.bf16.msra.mxu0 0
    %4610 = vmatprep.subr.bf16.mxu0 0
    %4611 = vmatpush1.bf16.msra.mxu0 0
    %4612 = vmatprep.subr.bf16.mxu0 0
    %4613 = vmatpush1.bf16.msra.mxu0 0
    %4614 = vmatprep.subr.bf16.mxu0 0
    %4615 = vmatpush1.bf16.msra.mxu0 0
    %4616 = vmatprep.mubr.bf16.mxu0 0
    %4617 = vmatmul.mubr.bf16.gmra.mrb[0].mxu0 %v4296
    %v4618 = vpop.f32.mrb[0].mxu0
    %v4619 = vadd.f32 %v4578, %v4618
    %v4620 = vpop.f32.mrb[0].mxu0
    %v4621 = vadd.f32 %v4580, %v4620
    %v4622 = vpop.f32.mrb[0].mxu0
    %v4623 = vpop.f32.mrb[0].mxu0
    %4624 = vdwg.mxu0
    %4625 = vmatprep.subr.bf16.mxu0 %v1957
    %4626 = vmatpush1.bf16.msra.mxu0 %v1956
    %4627 = vmatprep.subr.bf16.mxu0 %v1969
    %4628 = vmatpush1.bf16.msra.mxu0 %v1968
    %4629 = vmatprep.subr.bf16.mxu0 %v1981
    %4630 = vmatpush1.bf16.msra.mxu0 %v1980
    %4631 = vmatprep.subr.bf16.mxu0 %v1993
    %4632 = vmatpush1.bf16.msra.mxu0 %v1992
    %4633 = vmatprep.subr.bf16.mxu0 %v2005
    %4634 = vmatpush1.bf16.msra.mxu0 %v2004
    %4635 = vmatprep.subr.bf16.mxu0 %v2017
    %4636 = vmatpush1.bf16.msra.mxu0 %v2016
    %4637 = vmatprep.subr.bf16.mxu0 %v2029
    %4638 = vmatpush1.bf16.msra.mxu0 %v2028
    %4639 = vmatprep.subr.bf16.mxu0 %v2041
    %4640 = vmatpush1.bf16.msra.mxu0 %v2040
    %4641 = vmatprep.subr.bf16.mxu0 %v2053
    %4642 = vmatpush1.bf16.msra.mxu0 %v2052
    %4643 = vmatprep.subr.bf16.mxu0 %v2065
    %4644 = vmatpush1.bf16.msra.mxu0 %v2064
    %4645 = vmatprep.subr.bf16.mxu0 %v2077
    %4646 = vmatpush1.bf16.msra.mxu0 %v2076
    %4647 = vmatprep.subr.bf16.mxu0 %v2089
    %4648 = vmatpush1.bf16.msra.mxu0 %v2088
    %4649 = vmatprep.subr.bf16.mxu0 %v2101
    %4650 = vmatpush1.bf16.msra.mxu0 %v2100
    %4651 = vmatprep.subr.bf16.mxu0 %v2113
    %4652 = vmatpush1.bf16.msra.mxu0 %v2112
    %4653 = vmatprep.subr.bf16.mxu0 %v2125
    %4654 = vmatpush1.bf16.msra.mxu0 %v2124
    %4655 = vmatprep.subr.bf16.mxu0 %v2137
    %4656 = vmatpush1.bf16.msra.mxu0 %v2136
    %4657 = vmatprep.mubr.bf16.mxu0 %v4295
    %4658 = vmatmul.mubr.bf16.gmra.mrb[0].mxu0 %v4294
    %v4659 = vpop.f32.mrb[0].mxu0
    %v4660 = vadd.f32 0.0, %v4659
    %v4661 = vpop.f32.mrb[0].mxu0
    %v4662 = vadd.f32 0.0, %v4661
    %v4663 = vpop.f32.mrb[0].mxu0
    %v4664 = vpop.f32.mrb[0].mxu0
    %4665 = vdwg.mxu0
    %4666 = vmatprep.subr.bf16.mxu0 %v2149
    %4667 = vmatpush1.bf16.msra.mxu0 %v2148
    %4668 = vmatprep.subr.bf16.mxu0 %v2161
    %4669 = vmatpush1.bf16.msra.mxu0 %v2160
    %4670 = vmatprep.subr.bf16.mxu0 %v2173
    %4671 = vmatpush1.bf16.msra.mxu0 %v2172
    %4672 = vmatprep.subr.bf16.mxu0 %v2185
    %4673 = vmatpush1.bf16.msra.mxu0 %v2184
    %4674 = vmatprep.subr.bf16.mxu0 %v2197
    %4675 = vmatpush1.bf16.msra.mxu0 %v2196
    %4676 = vmatprep.subr.bf16.mxu0 %v2209
    %4677 = vmatpush1.bf16.msra.mxu0 %v2208
    %4678 = vmatprep.subr.bf16.mxu0 %v2221
    %4679 = vmatpush1.bf16.msra.mxu0 %v2220
    %4680 = vmatprep.subr.bf16.mxu0 %v2233
    %4681 = vmatpush1.bf16.msra.mxu0 %v2232
    %4682 = vmatprep.subr.bf16.mxu0 0
    %4683 = vmatpush1.bf16.msra.mxu0 0
    %4684 = vmatprep.subr.bf16.mxu0 0
    %4685 = vmatpush1.bf16.msra.mxu0 0
    %4686 = vmatprep.subr.bf16.mxu0 0
    %4687 = vmatpush1.bf16.msra.mxu0 0
    %4688 = vmatprep.subr.bf16.mxu0 0
    %4689 = vmatpush1.bf16.msra.mxu0 0
    %4690 = vmatprep.subr.bf16.mxu0 0
    %4691 = vmatpush1.bf16.msra.mxu0 0
    %4692 = vmatprep.subr.bf16.mxu0 0
    %4693 = vmatpush1.bf16.msra.mxu0 0
    %4694 = vmatprep.subr.bf16.mxu0 0
    %4695 = vmatpush1.bf16.msra.mxu0 0
    %4696 = vmatprep.subr.bf16.mxu0 0
    %4697 = vmatpush1.bf16.msra.mxu0 0
    %4698 = vmatprep.mubr.bf16.mxu0 0
    %4699 = vmatmul.mubr.bf16.gmra.mrb[0].mxu0 %v4296
    %v4700 = vpop.f32.mrb[0].mxu0
    %v4701 = vadd.f32 %v4660, %v4700
    %v4702 = vpop.f32.mrb[0].mxu0
    %v4703 = vadd.f32 %v4662, %v4702
    %v4704 = vpop.f32.mrb[0].mxu0
    %v4705 = vpop.f32.mrb[0].mxu0
    %4706 = vdwg.mxu0
    %4707 = vmatprep.subr.bf16.mxu0 %v1959
    %4708 = vmatpush1.bf16.msra.mxu0 %v1958
    %4709 = vmatprep.subr.bf16.mxu0 %v1971
    %4710 = vmatpush1.bf16.msra.mxu0 %v1970
    %4711 = vmatprep.subr.bf16.mxu0 %v1983
    %4712 = vmatpush1.bf16.msra.mxu0 %v1982
    %4713 = vmatprep.subr.bf16.mxu0 %v1995
    %4714 = vmatpush1.bf16.msra.mxu0 %v1994
    %4715 = vmatprep.subr.bf16.mxu0 %v2007
    %4716 = vmatpush1.bf16.msra.mxu0 %v2006
    %4717 = vmatprep.subr.bf16.mxu0 %v2019
    %4718 = vmatpush1.bf16.msra.mxu0 %v2018
    %4719 = vmatprep.subr.bf16.mxu0 %v2031
    %4720 = vmatpush1.bf16.msra.mxu0 %v2030
    %4721 = vmatprep.subr.bf16.mxu0 %v2043
    %4722 = vmatpush1.bf16.msra.mxu0 %v2042
    %4723 = vmatprep.subr.bf16.mxu0 %v2055
    %4724 = vmatpush1.bf16.msra.mxu0 %v2054
    %4725 = vmatprep.subr.bf16.mxu0 %v2067
    %4726 = vmatpush1.bf16.msra.mxu0 %v2066
    %4727 = vmatprep.subr.bf16.mxu0 %v2079
    %4728 = vmatpush1.bf16.msra.mxu0 %v2078
    %4729 = vmatprep.subr.bf16.mxu0 %v2091
    %4730 = vmatpush1.bf16.msra.mxu0 %v2090
    %4731 = vmatprep.subr.bf16.mxu0 %v2103
    %4732 = vmatpush1.bf16.msra.mxu0 %v2102
    %4733 = vmatprep.subr.bf16.mxu0 %v2115
    %4734 = vmatpush1.bf16.msra.mxu0 %v2114
    %4735 = vmatprep.subr.bf16.mxu0 %v2127
    %4736 = vmatpush1.bf16.msra.mxu0 %v2126
    %4737 = vmatprep.subr.bf16.mxu0 %v2139
    %4738 = vmatpush1.bf16.msra.mxu0 %v2138
    %4739 = vmatprep.mubr.bf16.mxu0 %v4295
    %4740 = vmatmul.mubr.bf16.gmra.mrb[0].mxu0 %v4294
    %v4741 = vpop.f32.mrb[0].mxu0
    %v4742 = vadd.f32 0.0, %v4741
    %v4743 = vpop.f32.mrb[0].mxu0
    %v4744 = vadd.f32 0.0, %v4743
    %v4745 = vpop.f32.mrb[0].mxu0
    %v4746 = vpop.f32.mrb[0].mxu0
    %4747 = vdwg.mxu0
    %4748 = vmatprep.subr.bf16.mxu0 %v2151
    %4749 = vmatpush1.bf16.msra.mxu0 %v2150
    %4750 = vmatprep.subr.bf16.mxu0 %v2163
    %4751 = vmatpush1.bf16.msra.mxu0 %v2162
    %4752 = vmatprep.subr.bf16.mxu0 %v2175
    %4753 = vmatpush1.bf16.msra.mxu0 %v2174
    %4754 = vmatprep.subr.bf16.mxu0 %v2187
    %4755 = vmatpush1.bf16.msra.mxu0 %v2186
    %4756 = vmatprep.subr.bf16.mxu0 %v2199
    %4757 = vmatpush1.bf16.msra.mxu0 %v2198
    %4758 = vmatprep.subr.bf16.mxu0 %v2211
    %4759 = vmatpush1.bf16.msra.mxu0 %v2210
    %4760 = vmatprep.subr.bf16.mxu0 %v2223
    %4761 = vmatpush1.bf16.msra.mxu0 %v2222
    %4762 = vmatprep.subr.bf16.mxu0 %v2235
    %4763 = vmatpush1.bf16.msra.mxu0 %v2234
    %4764 = vmatprep.subr.bf16.mxu0 0
    %4765 = vmatpush1.bf16.msra.mxu0 0
    %4766 = vmatprep.subr.bf16.mxu0 0
    %4767 = vmatpush1.bf16.msra.mxu0 0
    %4768 = vmatprep.subr.bf16.mxu0 0
    %4769 = vmatpush1.bf16.msra.mxu0 0
    %4770 = vmatprep.subr.bf16.mxu0 0
    %4771 = vmatpush1.bf16.msra.mxu0 0
    %4772 = vmatprep.subr.bf16.mxu0 0
    %4773 = vmatpush1.bf16.msra.mxu0 0
    %4774 = vmatprep.subr.bf16.mxu0 0
    %4775 = vmatpush1.bf16.msra.mxu0 0
    %4776 = vmatprep.subr.bf16.mxu0 0
    %4777 = vmatpush1.bf16.msra.mxu0 0
    %4778 = vmatprep.subr.bf16.mxu0 0
    %4779 = vmatpush1.bf16.msra.mxu0 0
    %4780 = vmatprep.mubr.bf16.mxu0 0
    %4781 = vmatmul.mubr.bf16.gmra.mrb[0].mxu0 %v4296
    %v4782 = vpop.f32.mrb[0].mxu0
    %v4783 = vadd.f32 %v4742, %v4782
    %v4784 = vpop.f32.mrb[0].mxu0
    %v4785 = vadd.f32 %v4744, %v4784
    %v4786 = vpop.f32.mrb[0].mxu0
    %v4787 = vpop.f32.mrb[0].mxu0
    %4788 = vdwg.mxu0
    %v4789 = vadd.f32 %v4282, %v4373
    %v4790 = vadd.f32 %v4283, %v4375
    %v4791 = vadd.f32 %v4284, %v4455
    %v4792 = vadd.f32 %v4285, %v4457
    %v4793 = vadd.f32 %v4286, %v4537
    %v4794 = vadd.f32 %v4287, %v4539
    %v4795 = vadd.f32 %v4288, %v4619
    %v4796 = vadd.f32 %v4289, %v4621
    %v4797 = vadd.f32 %v4290, %v4701
    %v4798 = vadd.f32 %v4291, %v4703
    %v4799 = vadd.f32 %v4292, %v4783
    %v4800 = vadd.f32 %v4293, %v4785
    %v4801 = vxor.u32 %v4789, 2147483648
    %v4802 = vxor.u32 %v4790, 2147483648
    %v4803 = vxor.u32 %v4791, 2147483648
    %v4804 = vxor.u32 %v4792, 2147483648
    %v4805 = vxor.u32 %v4793, 2147483648
    %v4806 = vxor.u32 %v4794, 2147483648
    %v4807 = vxor.u32 %v4795, 2147483648
    %v4808 = vxor.u32 %v4796, 2147483648
    %v4809 = vxor.u32 %v4797, 2147483648
    %v4810 = vmul.f32 %v4801, 1.442695
    %v4811 = vpow.pop %v4810
    %v4812 = vmul.f32 %v4802, 1.442695
    %v4813 = vpow.pop %v4812
    %v4814 = vmul.f32 %v4803, 1.442695
    %v4815 = vpow.pop %v4814
    %v4816 = vmul.f32 %v4804, 1.442695
    %v4817 = vpow.pop %v4816
    %v4818 = vmul.f32 %v4805, 1.442695
    %v4819 = vpow.pop %v4818
    %v4820 = vmul.f32 %v4806, 1.442695
    %v4821 = vpow.pop %v4820
    %v4822 = vmul.f32 %v4807, 1.442695
    %v4823 = vpow.pop %v4822
    %v4824 = vmul.f32 %v4808, 1.442695
    %v4825 = vpow.pop %v4824
    %v4826 = vmul.f32 %v4809, 1.442695
    %v4827 = vpow.pop %v4826
    %v4828 = vadd.f32 %v4811, 1.0
    %v4829 = vadd.f32 %v4813, 1.0
    %v4830 = vadd.f32 %v4815, 1.0
    %v4831 = vadd.f32 %v4817, 1.0
    %v4832 = vadd.f32 %v4819, 1.0
    %v4833 = vadd.f32 %v4821, 1.0
    %v4834 = vadd.f32 %v4823, 1.0
    %v4835 = vadd.f32 %v4825, 1.0
    %v4836 = vadd.f32 %v4827, 1.0
    %v4837 = vrcp.pop %v4828
    %v4838 = vmul.f32 1.0, %v4837
    %v4839 = vrcp.pop %v4829
    %v4840 = vmul.f32 1.0, %v4839
    %v4841 = vrcp.pop %v4830
    %v4842 = vmul.f32 1.0, %v4841
    %v4843 = vrcp.pop %v4831
    %v4844 = vmul.f32 1.0, %v4843
    %v4845 = vrcp.pop %v4832
    %v4846 = vmul.f32 1.0, %v4845
    %v4847 = vrcp.pop %v4833
    %v4848 = vmul.f32 1.0, %v4847
    %v4849 = vrcp.pop %v4834
    %v4850 = vmul.f32 1.0, %v4849
    %v4851 = vrcp.pop %v4835
    %v4852 = vmul.f32 1.0, %v4851
    %v4853 = vrcp.pop %v4836
    %v4854 = vmul.f32 1.0, %v4853
    %v4855 = vtanh.pop %v4798
    %v4856 = vtanh.pop %v4799
    %v4857 = vtanh.pop %v4800
    %v4858 = vmul.f32 %v4844, %v4273
    %v4859 = vmul.f32 %v4846, %v4274
    %v4860 = vmul.f32 %v4848, %v4275
    %v4861 = vmul.f32 %v4838, %v4855
    %v4862 = vmul.f32 %v4840, %v4856
    %v4863 = vmul.f32 %v4842, %v4857
    %v4864 = vadd.f32 %v4858, %v4861
    %v4865 = vadd.f32 %v4859, %v4862
    %v4866 = vadd.f32 %v4860, %v4863
    %v4867 = vtanh.pop %v4864
    %v4868 = vtanh.pop %v4865
    %v4869 = vtanh.pop %v4866
    %v4870 = vmul.f32 %v4850, %v4867
    %v4871 = vmul.f32 %v4852, %v4868
    %v4872 = vmul.f32 %v4854, %v4869
    %v4873 = vld [vmem:[#allocation2 + $0x180] sm:$0xff]
    %v4874 = vld [vmem:[#allocation2 + $0x188] sm:$0xff]
    %v4875 = vld [vmem:[#allocation2 + $0x190] sm:$0xff]
    %v4876 = vld [vmem:[#allocation2 + $0x198] sm:$0xff]
    %v4877 = vld [vmem:[#allocation2 + $0x1a0] sm:$0xff]
    %v4878 = vld [vmem:[#allocation2 + $0x1a8] sm:$0xff]
    %v4879 = vld [vmem:[#allocation2 + $0x1b0] sm:$0xff]
    %v4880 = vld [vmem:[#allocation2 + $0x1b8] sm:$0xff]
    %v4881 = vld [vmem:[#allocation2 + $0x1c0] sm:$0xff]
    %v4882 = vld [vmem:[#allocation2 + $0x1c8] sm:$0xff]
    %v4883 = vld [vmem:[#allocation2 + $0x1d0] sm:$0xff]
    %v4884 = vld [vmem:[#allocation2 + $0x1d8] sm:$0xff]
    %v4885 = vpack.c.bf16 %v4870, %v4870
    %v4886 = vpack.c.bf16 %v4871, %v4871
    %v4887 = vpack.c.bf16 %v4872, %v4872
    %4888 = vmatprep.subr.bf16.mxu0 %v1949
    %4889 = vmatpush1.bf16.msra.mxu0 %v1948
    %4890 = vmatprep.subr.bf16.mxu0 %v1961
    %4891 = vmatpush1.bf16.msra.mxu0 %v1960
    %4892 = vmatprep.subr.bf16.mxu0 %v1973
    %4893 = vmatpush1.bf16.msra.mxu0 %v1972
    %4894 = vmatprep.subr.bf16.mxu0 %v1985
    %4895 = vmatpush1.bf16.msra.mxu0 %v1984
    %4896 = vmatprep.subr.bf16.mxu0 %v1997
    %4897 = vmatpush1.bf16.msra.mxu0 %v1996
    %4898 = vmatprep.subr.bf16.mxu0 %v2009
    %4899 = vmatpush1.bf16.msra.mxu0 %v2008
    %4900 = vmatprep.subr.bf16.mxu0 %v2021
    %4901 = vmatpush1.bf16.msra.mxu0 %v2020
    %4902 = vmatprep.subr.bf16.mxu0 %v2033
    %4903 = vmatpush1.bf16.msra.mxu0 %v2032
    %4904 = vmatprep.subr.bf16.mxu0 %v2045
    %4905 = vmatpush1.bf16.msra.mxu0 %v2044
    %4906 = vmatprep.subr.bf16.mxu0 %v2057
    %4907 = vmatpush1.bf16.msra.mxu0 %v2056
    %4908 = vmatprep.subr.bf16.mxu0 %v2069
    %4909 = vmatpush1.bf16.msra.mxu0 %v2068
    %4910 = vmatprep.subr.bf16.mxu0 %v2081
    %4911 = vmatpush1.bf16.msra.mxu0 %v2080
    %4912 = vmatprep.subr.bf16.mxu0 %v2093
    %4913 = vmatpush1.bf16.msra.mxu0 %v2092
    %4914 = vmatprep.subr.bf16.mxu0 %v2105
    %4915 = vmatpush1.bf16.msra.mxu0 %v2104
    %4916 = vmatprep.subr.bf16.mxu0 %v2117
    %4917 = vmatpush1.bf16.msra.mxu0 %v2116
    %4918 = vmatprep.subr.bf16.mxu0 %v2129
    %4919 = vmatpush1.bf16.msra.mxu0 %v2128
    %4920 = vmatprep.mubr.bf16.mxu0 %v4886
    %4921 = vmatmul.mubr.bf16.gmra.mrb[0].mxu0 %v4885
    %v4922 = vpop.f32.mrb[0].mxu0
    %v4923 = vadd.f32 0.0, %v4922
    %v4924 = vpop.f32.mrb[0].mxu0
    %v4925 = vadd.f32 0.0, %v4924
    %v4926 = vpop.f32.mrb[0].mxu0
    %v4927 = vpop.f32.mrb[0].mxu0
    %4928 = vdwg.mxu0
    %4929 = vmatprep.subr.bf16.mxu0 %v2141
    %4930 = vmatpush1.bf16.msra.mxu0 %v2140
    %4931 = vmatprep.subr.bf16.mxu0 %v2153
    %4932 = vmatpush1.bf16.msra.mxu0 %v2152
    %4933 = vmatprep.subr.bf16.mxu0 %v2165
    %4934 = vmatpush1.bf16.msra.mxu0 %v2164
    %4935 = vmatprep.subr.bf16.mxu0 %v2177
    %4936 = vmatpush1.bf16.msra.mxu0 %v2176
    %4937 = vmatprep.subr.bf16.mxu0 %v2189
    %4938 = vmatpush1.bf16.msra.mxu0 %v2188
    %4939 = vmatprep.subr.bf16.mxu0 %v2201
    %4940 = vmatpush1.bf16.msra.mxu0 %v2200
    %4941 = vmatprep.subr.bf16.mxu0 %v2213
    %4942 = vmatpush1.bf16.msra.mxu0 %v2212
    %4943 = vmatprep.subr.bf16.mxu0 %v2225
    %4944 = vmatpush1.bf16.msra.mxu0 %v2224
    %4945 = vmatprep.subr.bf16.mxu0 0
    %4946 = vmatpush1.bf16.msra.mxu0 0
    %4947 = vmatprep.subr.bf16.mxu0 0
    %4948 = vmatpush1.bf16.msra.mxu0 0
    %4949 = vmatprep.subr.bf16.mxu0 0
    %4950 = vmatpush1.bf16.msra.mxu0 0
    %4951 = vmatprep.subr.bf16.mxu0 0
    %4952 = vmatpush1.bf16.msra.mxu0 0
    %4953 = vmatprep.subr.bf16.mxu0 0
    %4954 = vmatpush1.bf16.msra.mxu0 0
    %4955 = vmatprep.subr.bf16.mxu0 0
    %4956 = vmatpush1.bf16.msra.mxu0 0
    %4957 = vmatprep.subr.bf16.mxu0 0
    %4958 = vmatpush1.bf16.msra.mxu0 0
    %4959 = vmatprep.subr.bf16.mxu0 0
    %4960 = vmatpush1.bf16.msra.mxu0 0
    %4961 = vmatprep.mubr.bf16.mxu0 0
    %4962 = vmatmul.mubr.bf16.gmra.mrb[0].mxu0 %v4887
    %v4963 = vpop.f32.mrb[0].mxu0
    %v4964 = vadd.f32 %v4923, %v4963
    %v4965 = vpop.f32.mrb[0].mxu0
    %v4966 = vadd.f32 %v4925, %v4965
    %v4967 = vpop.f32.mrb[0].mxu0
    %v4968 = vpop.f32.mrb[0].mxu0
    %4969 = vdwg.mxu0
    %4970 = vmatprep.subr.bf16.mxu0 %v1951
    %4971 = vmatpush1.bf16.msra.mxu0 %v1950
    %4972 = vmatprep.subr.bf16.mxu0 %v1963
    %4973 = vmatpush1.bf16.msra.mxu0 %v1962
    %4974 = vmatprep.subr.bf16.mxu0 %v1975
    %4975 = vmatpush1.bf16.msra.mxu0 %v1974
    %4976 = vmatprep.subr.bf16.mxu0 %v1987
    %4977 = vmatpush1.bf16.msra.mxu0 %v1986
    %4978 = vmatprep.subr.bf16.mxu0 %v1999
    %4979 = vmatpush1.bf16.msra.mxu0 %v1998
    %4980 = vmatprep.subr.bf16.mxu0 %v2011
    %4981 = vmatpush1.bf16.msra.mxu0 %v2010
    %4982 = vmatprep.subr.bf16.mxu0 %v2023
    %4983 = vmatpush1.bf16.msra.mxu0 %v2022
    %4984 = vmatprep.subr.bf16.mxu0 %v2035
    %4985 = vmatpush1.bf16.msra.mxu0 %v2034
    %4986 = vmatprep.subr.bf16.mxu0 %v2047
    %4987 = vmatpush1.bf16.msra.mxu0 %v2046
    %4988 = vmatprep.subr.bf16.mxu0 %v2059
    %4989 = vmatpush1.bf16.msra.mxu0 %v2058
    %4990 = vmatprep.subr.bf16.mxu0 %v2071
    %4991 = vmatpush1.bf16.msra.mxu0 %v2070
    %4992 = vmatprep.subr.bf16.mxu0 %v2083
    %4993 = vmatpush1.bf16.msra.mxu0 %v2082
    %4994 = vmatprep.subr.bf16.mxu0 %v2095
    %4995 = vmatpush1.bf16.msra.mxu0 %v2094
    %4996 = vmatprep.subr.bf16.mxu0 %v2107
    %4997 = vmatpush1.bf16.msra.mxu0 %v2106
    %4998 = vmatprep.subr.bf16.mxu0 %v2119
    %4999 = vmatpush1.bf16.msra.mxu0 %v2118
    %5000 = vmatprep.subr.bf16.mxu0 %v2131
    %5001 = vmatpush1.bf16.msra.mxu0 %v2130
    %5002 = vmatprep.mubr.bf16.mxu0 %v4886
    %5003 = vmatmul.mubr.bf16.gmra.mrb[0].mxu0 %v4885
    %v5004 = vpop.f32.mrb[0].mxu0
    %v5005 = vadd.f32 0.0, %v5004
    %v5006 = vpop.f32.mrb[0].mxu0
    %v5007 = vadd.f32 0.0, %v5006
    %v5008 = vpop.f32.mrb[0].mxu0
    %v5009 = vpop.f32.mrb[0].mxu0
    %5010 = vdwg.mxu0
    %5011 = vmatprep.subr.bf16.mxu0 %v2143
    %5012 = vmatpush1.bf16.msra.mxu0 %v2142
    %5013 = vmatprep.subr.bf16.mxu0 %v2155
    %5014 = vmatpush1.bf16.msra.mxu0 %v2154
    %5015 = vmatprep.subr.bf16.mxu0 %v2167
    %5016 = vmatpush1.bf16.msra.mxu0 %v2166
    %5017 = vmatprep.subr.bf16.mxu0 %v2179
    %5018 = vmatpush1.bf16.msra.mxu0 %v2178
    %5019 = vmatprep.subr.bf16.mxu0 %v2191
    %5020 = vmatpush1.bf16.msra.mxu0 %v2190
    %5021 = vmatprep.subr.bf16.mxu0 %v2203
    %5022 = vmatpush1.bf16.msra.mxu0 %v2202
    %5023 = vmatprep.subr.bf16.mxu0 %v2215
    %5024 = vmatpush1.bf16.msra.mxu0 %v2214
    %5025 = vmatprep.subr.bf16.mxu0 %v2227
    %5026 = vmatpush1.bf16.msra.mxu0 %v2226
    %5027 = vmatprep.subr.bf16.mxu0 0
    %5028 = vmatpush1.bf16.msra.mxu0 0
    %5029 = vmatprep.subr.bf16.mxu0 0
    %5030 = vmatpush1.bf16.msra.mxu0 0
    %5031 = vmatprep.subr.bf16.mxu0 0
    %5032 = vmatpush1.bf16.msra.mxu0 0
    %5033 = vmatprep.subr.bf16.mxu0 0
    %5034 = vmatpush1.bf16.msra.mxu0 0
    %5035 = vmatprep.subr.bf16.mxu0 0
    %5036 = vmatpush1.bf16.msra.mxu0 0
    %5037 = vmatprep.subr.bf16.mxu0 0
    %5038 = vmatpush1.bf16.msra.mxu0 0
    %5039 = vmatprep.subr.bf16.mxu0 0
    %5040 = vmatpush1.bf16.msra.mxu0 0
    %5041 = vmatprep.subr.bf16.mxu0 0
    %5042 = vmatpush1.bf16.msra.mxu0 0
    %5043 = vmatprep.mubr.bf16.mxu0 0
    %5044 = vmatmul.mubr.bf16.gmra.mrb[0].mxu0 %v4887
    %v5045 = vpop.f32.mrb[0].mxu0
    %v5046 = vadd.f32 %v5005, %v5045
    %v5047 = vpop.f32.mrb[0].mxu0
    %v5048 = vadd.f32 %v5007, %v5047
    %v5049 = vpop.f32.mrb[0].mxu0
    %v5050 = vpop.f32.mrb[0].mxu0
    %5051 = vdwg.mxu0
    %5052 = vmatprep.subr.bf16.mxu0 %v1953
    %5053 = vmatpush1.bf16.msra.mxu0 %v1952
    %5054 = vmatprep.subr.bf16.mxu0 %v1965
    %5055 = vmatpush1.bf16.msra.mxu0 %v1964
    %5056 = vmatprep.subr.bf16.mxu0 %v1977
    %5057 = vmatpush1.bf16.msra.mxu0 %v1976
    %5058 = vmatprep.subr.bf16.mxu0 %v1989
    %5059 = vmatpush1.bf16.msra.mxu0 %v1988
    %5060 = vmatprep.subr.bf16.mxu0 %v2001
    %5061 = vmatpush1.bf16.msra.mxu0 %v2000
    %5062 = vmatprep.subr.bf16.mxu0 %v2013
    %5063 = vmatpush1.bf16.msra.mxu0 %v2012
    %5064 = vmatprep.subr.bf16.mxu0 %v2025
    %5065 = vmatpush1.bf16.msra.mxu0 %v2024
    %5066 = vmatprep.subr.bf16.mxu0 %v2037
    %5067 = vmatpush1.bf16.msra.mxu0 %v2036
    %5068 = vmatprep.subr.bf16.mxu0 %v2049
    %5069 = vmatpush1.bf16.msra.mxu0 %v2048
    %5070 = vmatprep.subr.bf16.mxu0 %v2061
    %5071 = vmatpush1.bf16.msra.mxu0 %v2060
    %5072 = vmatprep.subr.bf16.mxu0 %v2073
    %5073 = vmatpush1.bf16.msra.mxu0 %v2072
    %5074 = vmatprep.subr.bf16.mxu0 %v2085
    %5075 = vmatpush1.bf16.msra.mxu0 %v2084
    %5076 = vmatprep.subr.bf16.mxu0 %v2097
    %5077 = vmatpush1.bf16.msra.mxu0 %v2096
    %5078 = vmatprep.subr.bf16.mxu0 %v2109
    %5079 = vmatpush1.bf16.msra.mxu0 %v2108
    %5080 = vmatprep.subr.bf16.mxu0 %v2121
    %5081 = vmatpush1.bf16.msra.mxu0 %v2120
    %5082 = vmatprep.subr.bf16.mxu0 %v2133
    %5083 = vmatpush1.bf16.msra.mxu0 %v2132
    %5084 = vmatprep.mubr.bf16.mxu0 %v4886
    %5085 = vmatmul.mubr.bf16.gmra.mrb[0].mxu0 %v4885
    %v5086 = vpop.f32.mrb[0].mxu0
    %v5087 = vadd.f32 0.0, %v5086
    %v5088 = vpop.f32.mrb[0].mxu0
    %v5089 = vadd.f32 0.0, %v5088
    %v5090 = vpop.f32.mrb[0].mxu0
    %v5091 = vpop.f32.mrb[0].mxu0
    %5092 = vdwg.mxu0
    %5093 = vmatprep.subr.bf16.mxu0 %v2145
    %5094 = vmatpush1.bf16.msra.mxu0 %v2144
    %5095 = vmatprep.subr.bf16.mxu0 %v2157
    %5096 = vmatpush1.bf16.msra.mxu0 %v2156
    %5097 = vmatprep.subr.bf16.mxu0 %v2169
    %5098 = vmatpush1.bf16.msra.mxu0 %v2168
    %5099 = vmatprep.subr.bf16.mxu0 %v2181
    %5100 = vmatpush1.bf16.msra.mxu0 %v2180
    %5101 = vmatprep.subr.bf16.mxu0 %v2193
    %5102 = vmatpush1.bf16.msra.mxu0 %v2192
    %5103 = vmatprep.subr.bf16.mxu0 %v2205
    %5104 = vmatpush1.bf16.msra.mxu0 %v2204
    %5105 = vmatprep.subr.bf16.mxu0 %v2217
    %5106 = vmatpush1.bf16.msra.mxu0 %v2216
    %5107 = vmatprep.subr.bf16.mxu0 %v2229
    %5108 = vmatpush1.bf16.msra.mxu0 %v2228
    %5109 = vmatprep.subr.bf16.mxu0 0
    %5110 = vmatpush1.bf16.msra.mxu0 0
    %5111 = vmatprep.subr.bf16.mxu0 0
    %5112 = vmatpush1.bf16.msra.mxu0 0
    %5113 = vmatprep.subr.bf16.mxu0 0
    %5114 = vmatpush1.bf16.msra.mxu0 0
    %5115 = vmatprep.subr.bf16.mxu0 0
    %5116 = vmatpush1.bf16.msra.mxu0 0
    %5117 = vmatprep.subr.bf16.mxu0 0
    %5118 = vmatpush1.bf16.msra.mxu0 0
    %5119 = vmatprep.subr.bf16.mxu0 0
    %5120 = vmatpush1.bf16.msra.mxu0 0
    %5121 = vmatprep.subr.bf16.mxu0 0
    %5122 = vmatpush1.bf16.msra.mxu0 0
    %5123 = vmatprep.subr.bf16.mxu0 0
    %5124 = vmatpush1.bf16.msra.mxu0 0
    %5125 = vmatprep.mubr.bf16.mxu0 0
    %5126 = vmatmul.mubr.bf16.gmra.mrb[0].mxu0 %v4887
    %v5127 = vpop.f32.mrb[0].mxu0
    %v5128 = vadd.f32 %v5087, %v5127
    %v5129 = vpop.f32.mrb[0].mxu0
    %v5130 = vadd.f32 %v5089, %v5129
    %v5131 = vpop.f32.mrb[0].mxu0
    %v5132 = vpop.f32.mrb[0].mxu0
    %5133 = vdwg.mxu0
    %5134 = vmatprep.subr.bf16.mxu0 %v1955
    %5135 = vmatpush1.bf16.msra.mxu0 %v1954
    %5136 = vmatprep.subr.bf16.mxu0 %v1967
    %5137 = vmatpush1.bf16.msra.mxu0 %v1966
    %5138 = vmatprep.subr.bf16.mxu0 %v1979
    %5139 = vmatpush1.bf16.msra.mxu0 %v1978
    %5140 = vmatprep.subr.bf16.mxu0 %v1991
    %5141 = vmatpush1.bf16.msra.mxu0 %v1990
    %5142 = vmatprep.subr.bf16.mxu0 %v2003
    %5143 = vmatpush1.bf16.msra.mxu0 %v2002
    %5144 = vmatprep.subr.bf16.mxu0 %v2015
    %5145 = vmatpush1.bf16.msra.mxu0 %v2014
    %5146 = vmatprep.subr.bf16.mxu0 %v2027
    %5147 = vmatpush1.bf16.msra.mxu0 %v2026
    %5148 = vmatprep.subr.bf16.mxu0 %v2039
    %5149 = vmatpush1.bf16.msra.mxu0 %v2038
    %5150 = vmatprep.subr.bf16.mxu0 %v2051
    %5151 = vmatpush1.bf16.msra.mxu0 %v2050
    %5152 = vmatprep.subr.bf16.mxu0 %v2063
    %5153 = vmatpush1.bf16.msra.mxu0 %v2062
    %5154 = vmatprep.subr.bf16.mxu0 %v2075
    %5155 = vmatpush1.bf16.msra.mxu0 %v2074
    %5156 = vmatprep.subr.bf16.mxu0 %v2087
    %5157 = vmatpush1.bf16.msra.mxu0 %v2086
    %5158 = vmatprep.subr.bf16.mxu0 %v2099
    %5159 = vmatpush1.bf16.msra.mxu0 %v2098
    %5160 = vmatprep.subr.bf16.mxu0 %v2111
    %5161 = vmatpush1.bf16.msra.mxu0 %v2110
    %5162 = vmatprep.subr.bf16.mxu0 %v2123
    %5163 = vmatpush1.bf16.msra.mxu0 %v2122
    %5164 = vmatprep.subr.bf16.mxu0 %v2135
    %5165 = vmatpush1.bf16.msra.mxu0 %v2134
    %5166 = vmatprep.mubr.bf16.mxu0 %v4886
    %5167 = vmatmul.mubr.bf16.gmra.mrb[0].mxu0 %v4885
    %v5168 = vpop.f32.mrb[0].mxu0
    %v5169 = vadd.f32 0.0, %v5168
    %v5170 = vpop.f32.mrb[0].mxu0
    %v5171 = vadd.f32 0.0, %v5170
    %v5172 = vpop.f32.mrb[0].mxu0
    %v5173 = vpop.f32.mrb[0].mxu0
    %5174 = vdwg.mxu0
    %5175 = vmatprep.subr.bf16.mxu0 %v2147
    %5176 = vmatpush1.bf16.msra.mxu0 %v2146
    %5177 = vmatprep.subr.bf16.mxu0 %v2159
    %5178 = vmatpush1.bf16.msra.mxu0 %v2158
    %5179 = vmatprep.subr.bf16.mxu0 %v2171
    %5180 = vmatpush1.bf16.msra.mxu0 %v2170
    %5181 = vmatprep.subr.bf16.mxu0 %v2183
    %5182 = vmatpush1.bf16.msra.mxu0 %v2182
    %5183 = vmatprep.subr.bf16.mxu0 %v2195
    %5184 = vmatpush1.bf16.msra.mxu0 %v2194
    %5185 = vmatprep.subr.bf16.mxu0 %v2207
    %5186 = vmatpush1.bf16.msra.mxu0 %v2206
    %5187 = vmatprep.subr.bf16.mxu0 %v2219
    %5188 = vmatpush1.bf16.msra.mxu0 %v2218
    %5189 = vmatprep.subr.bf16.mxu0 %v2231
    %5190 = vmatpush1.bf16.msra.mxu0 %v2230
    %5191 = vmatprep.subr.bf16.mxu0 0
    %5192 = vmatpush1.bf16.msra.mxu0 0
    %5193 = vmatprep.subr.bf16.mxu0 0
    %5194 = vmatpush1.bf16.msra.mxu0 0
    %5195 = vmatprep.subr.bf16.mxu0 0
    %5196 = vmatpush1.bf16.msra.mxu0 0
    %5197 = vmatprep.subr.bf16.mxu0 0
    %5198 = vmatpush1.bf16.msra.mxu0 0
    %5199 = vmatprep.subr.bf16.mxu0 0
    %5200 = vmatpush1.bf16.msra.mxu0 0
    %5201 = vmatprep.subr.bf16.mxu0 0
    %5202 = vmatpush1.bf16.msra.mxu0 0
    %5203 = vmatprep.subr.bf16.mxu0 0
    %5204 = vmatpush1.bf16.msra.mxu0 0
    %5205 = vmatprep.subr.bf16.mxu0 0
    %5206 = vmatpush1.bf16.msra.mxu0 0
    %5207 = vmatprep.mubr.bf16.mxu0 0
    %5208 = vmatmul.mubr.bf16.gmra.mrb[0].mxu0 %v4887
    %v5209 = vpop.f32.mrb[0].mxu0
    %v5210 = vadd.f32 %v5169, %v5209
    %v5211 = vpop.f32.mrb[0].mxu0
    %v5212 = vadd.f32 %v5171, %v5211
    %v5213 = vpop.f32.mrb[0].mxu0
    %v5214 = vpop.f32.mrb[0].mxu0
    %5215 = vdwg.mxu0
    %5216 = vmatprep.subr.bf16.mxu0 %v1957
    %5217 = vmatpush1.bf16.msra.mxu0 %v1956
    %5218 = vmatprep.subr.bf16.mxu0 %v1969
    %5219 = vmatpush1.bf16.msra.mxu0 %v1968
    %5220 = vmatprep.subr.bf16.mxu0 %v1981
    %5221 = vmatpush1.bf16.msra.mxu0 %v1980
    %5222 = vmatprep.subr.bf16.mxu0 %v1993
    %5223 = vmatpush1.bf16.msra.mxu0 %v1992
    %5224 = vmatprep.subr.bf16.mxu0 %v2005
    %5225 = vmatpush1.bf16.msra.mxu0 %v2004
    %5226 = vmatprep.subr.bf16.mxu0 %v2017
    %5227 = vmatpush1.bf16.msra.mxu0 %v2016
    %5228 = vmatprep.subr.bf16.mxu0 %v2029
    %5229 = vmatpush1.bf16.msra.mxu0 %v2028
    %5230 = vmatprep.subr.bf16.mxu0 %v2041
    %5231 = vmatpush1.bf16.msra.mxu0 %v2040
    %5232 = vmatprep.subr.bf16.mxu0 %v2053
    %5233 = vmatpush1.bf16.msra.mxu0 %v2052
    %5234 = vmatprep.subr.bf16.mxu0 %v2065
    %5235 = vmatpush1.bf16.msra.mxu0 %v2064
    %5236 = vmatprep.subr.bf16.mxu0 %v2077
    %5237 = vmatpush1.bf16.msra.mxu0 %v2076
    %5238 = vmatprep.subr.bf16.mxu0 %v2089
    %5239 = vmatpush1.bf16.msra.mxu0 %v2088
    %5240 = vmatprep.subr.bf16.mxu0 %v2101
    %5241 = vmatpush1.bf16.msra.mxu0 %v2100
    %5242 = vmatprep.subr.bf16.mxu0 %v2113
    %5243 = vmatpush1.bf16.msra.mxu0 %v2112
    %5244 = vmatprep.subr.bf16.mxu0 %v2125
    %5245 = vmatpush1.bf16.msra.mxu0 %v2124
    %5246 = vmatprep.subr.bf16.mxu0 %v2137
    %5247 = vmatpush1.bf16.msra.mxu0 %v2136
    %5248 = vmatprep.mubr.bf16.mxu0 %v4886
    %5249 = vmatmul.mubr.bf16.gmra.mrb[0].mxu0 %v4885
    %v5250 = vpop.f32.mrb[0].mxu0
    %v5251 = vadd.f32 0.0, %v5250
    %v5252 = vpop.f32.mrb[0].mxu0
    %v5253 = vadd.f32 0.0, %v5252
    %v5254 = vpop.f32.mrb[0].mxu0
    %v5255 = vpop.f32.mrb[0].mxu0
    %5256 = vdwg.mxu0
    %5257 = vmatprep.subr.bf16.mxu0 %v2149
    %5258 = vmatpush1.bf16.msra.mxu0 %v2148
    %5259 = vmatprep.subr.bf16.mxu0 %v2161
    %5260 = vmatpush1.bf16.msra.mxu0 %v2160
    %5261 = vmatprep.subr.bf16.mxu0 %v2173
    %5262 = vmatpush1.bf16.msra.mxu0 %v2172
    %5263 = vmatprep.subr.bf16.mxu0 %v2185
    %5264 = vmatpush1.bf16.msra.mxu0 %v2184
    %5265 = vmatprep.subr.bf16.mxu0 %v2197
    %5266 = vmatpush1.bf16.msra.mxu0 %v2196
    %5267 = vmatprep.subr.bf16.mxu0 %v2209
    %5268 = vmatpush1.bf16.msra.mxu0 %v2208
    %5269 = vmatprep.subr.bf16.mxu0 %v2221
    %5270 = vmatpush1.bf16.msra.mxu0 %v2220
    %5271 = vmatprep.subr.bf16.mxu0 %v2233
    %5272 = vmatpush1.bf16.msra.mxu0 %v2232
    %5273 = vmatprep.subr.bf16.mxu0 0
    %5274 = vmatpush1.bf16.msra.mxu0 0
    %5275 = vmatprep.subr.bf16.mxu0 0
    %5276 = vmatpush1.bf16.msra.mxu0 0
    %5277 = vmatprep.subr.bf16.mxu0 0
    %5278 = vmatpush1.bf16.msra.mxu0 0
    %5279 = vmatprep.subr.bf16.mxu0 0
    %5280 = vmatpush1.bf16.msra.mxu0 0
    %5281 = vmatprep.subr.bf16.mxu0 0
    %5282 = vmatpush1.bf16.msra.mxu0 0
    %5283 = vmatprep.subr.bf16.mxu0 0
    %5284 = vmatpush1.bf16.msra.mxu0 0
    %5285 = vmatprep.subr.bf16.mxu0 0
    %5286 = vmatpush1.bf16.msra.mxu0 0
    %5287 = vmatprep.subr.bf16.mxu0 0
    %5288 = vmatpush1.bf16.msra.mxu0 0
    %5289 = vmatprep.mubr.bf16.mxu0 0
    %5290 = vmatmul.mubr.bf16.gmra.mrb[0].mxu0 %v4887
    %v5291 = vpop.f32.mrb[0].mxu0
    %v5292 = vadd.f32 %v5251, %v5291
    %v5293 = vpop.f32.mrb[0].mxu0
    %v5294 = vadd.f32 %v5253, %v5293
    %v5295 = vpop.f32.mrb[0].mxu0
    %v5296 = vpop.f32.mrb[0].mxu0
    %5297 = vdwg.mxu0
    %5298 = vmatprep.subr.bf16.mxu0 %v1959
    %5299 = vmatpush1.bf16.msra.mxu0 %v1958
    %5300 = vmatprep.subr.bf16.mxu0 %v1971
    %5301 = vmatpush1.bf16.msra.mxu0 %v1970
    %5302 = vmatprep.subr.bf16.mxu0 %v1983
    %5303 = vmatpush1.bf16.msra.mxu0 %v1982
    %5304 = vmatprep.subr.bf16.mxu0 %v1995
    %5305 = vmatpush1.bf16.msra.mxu0 %v1994
    %5306 = vmatprep.subr.bf16.mxu0 %v2007
    %5307 = vmatpush1.bf16.msra.mxu0 %v2006
    %5308 = vmatprep.subr.bf16.mxu0 %v2019
    %5309 = vmatpush1.bf16.msra.mxu0 %v2018
    %5310 = vmatprep.subr.bf16.mxu0 %v2031
    %5311 = vmatpush1.bf16.msra.mxu0 %v2030
    %5312 = vmatprep.subr.bf16.mxu0 %v2043
    %5313 = vmatpush1.bf16.msra.mxu0 %v2042
    %5314 = vmatprep.subr.bf16.mxu0 %v2055
    %5315 = vmatpush1.bf16.msra.mxu0 %v2054
    %5316 = vmatprep.subr.bf16.mxu0 %v2067
    %5317 = vmatpush1.bf16.msra.mxu0 %v2066
    %5318 = vmatprep.subr.bf16.mxu0 %v2079
    %5319 = vmatpush1.bf16.msra.mxu0 %v2078
    %5320 = vmatprep.subr.bf16.mxu0 %v2091
    %5321 = vmatpush1.bf16.msra.mxu0 %v2090
    %5322 = vmatprep.subr.bf16.mxu0 %v2103
    %5323 = vmatpush1.bf16.msra.mxu0 %v2102
    %5324 = vmatprep.subr.bf16.mxu0 %v2115
    %5325 = vmatpush1.bf16.msra.mxu0 %v2114
    %5326 = vmatprep.subr.bf16.mxu0 %v2127
    %5327 = vmatpush1.bf16.msra.mxu0 %v2126
    %5328 = vmatprep.subr.bf16.mxu0 %v2139
    %5329 = vmatpush1.bf16.msra.mxu0 %v2138
    %5330 = vmatprep.mubr.bf16.mxu0 %v4886
    %5331 = vmatmul.mubr.bf16.gmra.mrb[0].mxu0 %v4885
    %v5332 = vpop.f32.mrb[0].mxu0
    %v5333 = vadd.f32 0.0, %v5332
    %v5334 = vpop.f32.mrb[0].mxu0
    %v5335 = vadd.f32 0.0, %v5334
    %v5336 = vpop.f32.mrb[0].mxu0
    %v5337 = vpop.f32.mrb[0].mxu0
    %5338 = vdwg.mxu0
    %5339 = vmatprep.subr.bf16.mxu0 %v2151
    %5340 = vmatpush1.bf16.msra.mxu0 %v2150
    %5341 = vmatprep.subr.bf16.mxu0 %v2163
    %5342 = vmatpush1.bf16.msra.mxu0 %v2162
    %5343 = vmatprep.subr.bf16.mxu0 %v2175
    %5344 = vmatpush1.bf16.msra.mxu0 %v2174
    %5345 = vmatprep.subr.bf16.mxu0 %v2187
    %5346 = vmatpush1.bf16.msra.mxu0 %v2186
    %5347 = vmatprep.subr.bf16.mxu0 %v2199
    %5348 = vmatpush1.bf16.msra.mxu0 %v2198
    %5349 = vmatprep.subr.bf16.mxu0 %v2211
    %5350 = vmatpush1.bf16.msra.mxu0 %v2210
    %5351 = vmatprep.subr.bf16.mxu0 %v2223
    %5352 = vmatpush1.bf16.msra.mxu0 %v2222
    %5353 = vmatprep.subr.bf16.mxu0 %v2235
    %5354 = vmatpush1.bf16.msra.mxu0 %v2234
    %5355 = vmatprep.subr.bf16.mxu0 0
    %5356 = vmatpush1.bf16.msra.mxu0 0
    %5357 = vmatprep.subr.bf16.mxu0 0
    %5358 = vmatpush1.bf16.msra.mxu0 0
    %5359 = vmatprep.subr.bf16.mxu0 0
    %5360 = vmatpush1.bf16.msra.mxu0 0
    %5361 = vmatprep.subr.bf16.mxu0 0
    %5362 = vmatpush1.bf16.msra.mxu0 0
    %5363 = vmatprep.subr.bf16.mxu0 0
    %5364 = vmatpush1.bf16.msra.mxu0 0
    %5365 = vmatprep.subr.bf16.mxu0 0
    %5366 = vmatpush1.bf16.msra.mxu0 0
    %5367 = vmatprep.subr.bf16.mxu0 0
    %5368 = vmatpush1.bf16.msra.mxu0 0
    %5369 = vmatprep.subr.bf16.mxu0 0
    %5370 = vmatpush1.bf16.msra.mxu0 0
    %5371 = vmatprep.mubr.bf16.mxu0 0
    %5372 = vmatmul.mubr.bf16.gmra.mrb[0].mxu0 %v4887
    %v5373 = vpop.f32.mrb[0].mxu0
    %v5374 = vadd.f32 %v5333, %v5373
    %v5375 = vpop.f32.mrb[0].mxu0
    %v5376 = vadd.f32 %v5335, %v5375
    %v5377 = vpop.f32.mrb[0].mxu0
    %v5378 = vpop.f32.mrb[0].mxu0
    %5379 = vdwg.mxu0
    %v5380 = vadd.f32 %v4873, %v4964
    %v5381 = vadd.f32 %v4874, %v4966
    %v5382 = vadd.f32 %v4875, %v5046
    %v5383 = vadd.f32 %v4876, %v5048
    %v5384 = vadd.f32 %v4877, %v5128
    %v5385 = vadd.f32 %v4878, %v5130
    %v5386 = vadd.f32 %v4879, %v5210
    %v5387 = vadd.f32 %v4880, %v5212
    %v5388 = vadd.f32 %v4881, %v5292
    %v5389 = vadd.f32 %v4882, %v5294
    %v5390 = vadd.f32 %v4883, %v5374
    %v5391 = vadd.f32 %v4884, %v5376
    %v5392 = vxor.u32 %v5380, 2147483648
    %v5393 = vxor.u32 %v5381, 2147483648
    %v5394 = vxor.u32 %v5382, 2147483648
    %v5395 = vxor.u32 %v5383, 2147483648
    %v5396 = vxor.u32 %v5384, 2147483648
    %v5397 = vxor.u32 %v5385, 2147483648
    %v5398 = vxor.u32 %v5386, 2147483648
    %v5399 = vxor.u32 %v5387, 2147483648
    %v5400 = vxor.u32 %v5388, 2147483648
    %v5401 = vmul.f32 %v5392, 1.442695
    %v5402 = vpow.pop %v5401
    %v5403 = vmul.f32 %v5393, 1.442695
    %v5404 = vpow.pop %v5403
    %v5405 = vmul.f32 %v5394, 1.442695
    %v5406 = vpow.pop %v5405
    %v5407 = vmul.f32 %v5395, 1.442695
    %v5408 = vpow.pop %v5407
    %v5409 = vmul.f32 %v5396, 1.442695
    %v5410 = vpow.pop %v5409
    %v5411 = vmul.f32 %v5397, 1.442695
    %v5412 = vpow.pop %v5411
    %v5413 = vmul.f32 %v5398, 1.442695
    %v5414 = vpow.pop %v5413
    %v5415 = vmul.f32 %v5399, 1.442695
    %v5416 = vpow.pop %v5415
    %v5417 = vmul.f32 %v5400, 1.442695
    %v5418 = vpow.pop %v5417
    %v5419 = vadd.f32 %v5402, 1.0
    %v5420 = vadd.f32 %v5404, 1.0
    %v5421 = vadd.f32 %v5406, 1.0
    %v5422 = vadd.f32 %v5408, 1.0
    %v5423 = vadd.f32 %v5410, 1.0
    %v5424 = vadd.f32 %v5412, 1.0
    %v5425 = vadd.f32 %v5414, 1.0
    %v5426 = vadd.f32 %v5416, 1.0
    %v5427 = vadd.f32 %v5418, 1.0
    %v5428 = vrcp.pop %v5419
    %v5429 = vmul.f32 1.0, %v5428
    %v5430 = vrcp.pop %v5420
    %v5431 = vmul.f32 1.0, %v5430
    %v5432 = vrcp.pop %v5421
    %v5433 = vmul.f32 1.0, %v5432
    %v5434 = vrcp.pop %v5422
    %v5435 = vmul.f32 1.0, %v5434
    %v5436 = vrcp.pop %v5423
    %v5437 = vmul.f32 1.0, %v5436
    %v5438 = vrcp.pop %v5424
    %v5439 = vmul.f32 1.0, %v5438
    %v5440 = vrcp.pop %v5425
    %v5441 = vmul.f32 1.0, %v5440
    %v5442 = vrcp.pop %v5426
    %v5443 = vmul.f32 1.0, %v5442
    %v5444 = vrcp.pop %v5427
    %v5445 = vmul.f32 1.0, %v5444
    %v5446 = vtanh.pop %v5389
    %v5447 = vtanh.pop %v5390
    %v5448 = vtanh.pop %v5391
    %v5449 = vmul.f32 %v5435, %v4864
    %v5450 = vmul.f32 %v5437, %v4865
    %v5451 = vmul.f32 %v5439, %v4866
    %v5452 = vmul.f32 %v5429, %v5446
    %v5453 = vmul.f32 %v5431, %v5447
    %v5454 = vmul.f32 %v5433, %v5448
    %v5455 = vadd.f32 %v5449, %v5452
    %v5456 = vadd.f32 %v5450, %v5453
    %v5457 = vadd.f32 %v5451, %v5454
    %v5458 = vtanh.pop %v5455
    %v5459 = vtanh.pop %v5456
    %v5460 = vtanh.pop %v5457
    %v5461 = vmul.f32 %v5441, %v5458
    %v5462 = vmul.f32 %v5443, %v5459
    %v5463 = vmul.f32 %v5445, %v5460
    %v5464 = vld [vmem:[#allocation2 + $0x1e0] sm:$0xff]
    %v5465 = vld [vmem:[#allocation2 + $0x1e8] sm:$0xff]
    %v5466 = vld [vmem:[#allocation2 + $0x1f0] sm:$0xff]
    %v5467 = vld [vmem:[#allocation2 + $0x1f8] sm:$0xff]
    %v5468 = vld [vmem:[#allocation2 + $0x200] sm:$0xff]
    %v5469 = vld [vmem:[#allocation2 + $0x208] sm:$0xff]
    %v5470 = vld [vmem:[#allocation2 + $0x210] sm:$0xff]
    %v5471 = vld [vmem:[#allocation2 + $0x218] sm:$0xff]
    %v5472 = vld [vmem:[#allocation2 + $0x220] sm:$0xff]
    %v5473 = vld [vmem:[#allocation2 + $0x228] sm:$0xff]
    %v5474 = vld [vmem:[#allocation2 + $0x230] sm:$0xff]
    %v5475 = vld [vmem:[#allocation2 + $0x238] sm:$0xff]
    %v5476 = vpack.c.bf16 %v5461, %v5461
    %v5477 = vpack.c.bf16 %v5462, %v5462
    %v5478 = vpack.c.bf16 %v5463, %v5463
    %5479 = vmatprep.subr.bf16.mxu0 %v1949
    %5480 = vmatpush1.bf16.msra.mxu0 %v1948
    %5481 = vmatprep.subr.bf16.mxu0 %v1961
    %5482 = vmatpush1.bf16.msra.mxu0 %v1960
    %5483 = vmatprep.subr.bf16.mxu0 %v1973
    %5484 = vmatpush1.bf16.msra.mxu0 %v1972
    %5485 = vmatprep.subr.bf16.mxu0 %v1985
    %5486 = vmatpush1.bf16.msra.mxu0 %v1984
    %5487 = vmatprep.subr.bf16.mxu0 %v1997
    %5488 = vmatpush1.bf16.msra.mxu0 %v1996
    %5489 = vmatprep.subr.bf16.mxu0 %v2009
    %5490 = vmatpush1.bf16.msra.mxu0 %v2008
    %5491 = vmatprep.subr.bf16.mxu0 %v2021
    %5492 = vmatpush1.bf16.msra.mxu0 %v2020
    %5493 = vmatprep.subr.bf16.mxu0 %v2033
    %5494 = vmatpush1.bf16.msra.mxu0 %v2032
    %5495 = vmatprep.subr.bf16.mxu0 %v2045
    %5496 = vmatpush1.bf16.msra.mxu0 %v2044
    %5497 = vmatprep.subr.bf16.mxu0 %v2057
    %5498 = vmatpush1.bf16.msra.mxu0 %v2056
    %5499 = vmatprep.subr.bf16.mxu0 %v2069
    %5500 = vmatpush1.bf16.msra.mxu0 %v2068
    %5501 = vmatprep.subr.bf16.mxu0 %v2081
    %5502 = vmatpush1.bf16.msra.mxu0 %v2080
    %5503 = vmatprep.subr.bf16.mxu0 %v2093
    %5504 = vmatpush1.bf16.msra.mxu0 %v2092
    %5505 = vmatprep.subr.bf16.mxu0 %v2105
    %5506 = vmatpush1.bf16.msra.mxu0 %v2104
    %5507 = vmatprep.subr.bf16.mxu0 %v2117
    %5508 = vmatpush1.bf16.msra.mxu0 %v2116
    %5509 = vmatprep.subr.bf16.mxu0 %v2129
    %5510 = vmatpush1.bf16.msra.mxu0 %v2128
    %5511 = vmatprep.mubr.bf16.mxu0 %v5477
    %5512 = vmatmul.mubr.bf16.gmra.mrb[0].mxu0 %v5476
    %v5513 = vpop.f32.mrb[0].mxu0
    %v5514 = vadd.f32 0.0, %v5513
    %v5515 = vpop.f32.mrb[0].mxu0
    %v5516 = vadd.f32 0.0, %v5515
    %v5517 = vpop.f32.mrb[0].mxu0
    %v5518 = vpop.f32.mrb[0].mxu0
    %5519 = vdwg.mxu0
    %5520 = vmatprep.subr.bf16.mxu0 %v2141
    %5521 = vmatpush1.bf16.msra.mxu0 %v2140
    %5522 = vmatprep.subr.bf16.mxu0 %v2153
    %5523 = vmatpush1.bf16.msra.mxu0 %v2152
    %5524 = vmatprep.subr.bf16.mxu0 %v2165
    %5525 = vmatpush1.bf16.msra.mxu0 %v2164
    %5526 = vmatprep.subr.bf16.mxu0 %v2177
    %5527 = vmatpush1.bf16.msra.mxu0 %v2176
    %5528 = vmatprep.subr.bf16.mxu0 %v2189
    %5529 = vmatpush1.bf16.msra.mxu0 %v2188
    %5530 = vmatprep.subr.bf16.mxu0 %v2201
    %5531 = vmatpush1.bf16.msra.mxu0 %v2200
    %5532 = vmatprep.subr.bf16.mxu0 %v2213
    %5533 = vmatpush1.bf16.msra.mxu0 %v2212
    %5534 = vmatprep.subr.bf16.mxu0 %v2225
    %5535 = vmatpush1.bf16.msra.mxu0 %v2224
    %5536 = vmatprep.subr.bf16.mxu0 0
    %5537 = vmatpush1.bf16.msra.mxu0 0
    %5538 = vmatprep.subr.bf16.mxu0 0
    %5539 = vmatpush1.bf16.msra.mxu0 0
    %5540 = vmatprep.subr.bf16.mxu0 0
    %5541 = vmatpush1.bf16.msra.mxu0 0
    %5542 = vmatprep.subr.bf16.mxu0 0
    %5543 = vmatpush1.bf16.msra.mxu0 0
    %5544 = vmatprep.subr.bf16.mxu0 0
    %5545 = vmatpush1.bf16.msra.mxu0 0
    %5546 = vmatprep.subr.bf16.mxu0 0
    %5547 = vmatpush1.bf16.msra.mxu0 0
    %5548 = vmatprep.subr.bf16.mxu0 0
    %5549 = vmatpush1.bf16.msra.mxu0 0
    %5550 = vmatprep.subr.bf16.mxu0 0
    %5551 = vmatpush1.bf16.msra.mxu0 0
    %5552 = vmatprep.mubr.bf16.mxu0 0
    %5553 = vmatmul.mubr.bf16.gmra.mrb[0].mxu0 %v5478
    %v5554 = vpop.f32.mrb[0].mxu0
    %v5555 = vadd.f32 %v5514, %v5554
    %v5556 = vpop.f32.mrb[0].mxu0
    %v5557 = vadd.f32 %v5516, %v5556
    %v5558 = vpop.f32.mrb[0].mxu0
    %v5559 = vpop.f32.mrb[0].mxu0
    %5560 = vdwg.mxu0
    %5561 = vmatprep.subr.bf16.mxu0 %v1951
    %5562 = vmatpush1.bf16.msra.mxu0 %v1950
    %5563 = vmatprep.subr.bf16.mxu0 %v1963
    %5564 = vmatpush1.bf16.msra.mxu0 %v1962
    %5565 = vmatprep.subr.bf16.mxu0 %v1975
    %5566 = vmatpush1.bf16.msra.mxu0 %v1974
    %5567 = vmatprep.subr.bf16.mxu0 %v1987
    %5568 = vmatpush1.bf16.msra.mxu0 %v1986
    %5569 = vmatprep.subr.bf16.mxu0 %v1999
    %5570 = vmatpush1.bf16.msra.mxu0 %v1998
    %5571 = vmatprep.subr.bf16.mxu0 %v2011
    %5572 = vmatpush1.bf16.msra.mxu0 %v2010
    %5573 = vmatprep.subr.bf16.mxu0 %v2023
    %5574 = vmatpush1.bf16.msra.mxu0 %v2022
    %5575 = vmatprep.subr.bf16.mxu0 %v2035
    %5576 = vmatpush1.bf16.msra.mxu0 %v2034
    %5577 = vmatprep.subr.bf16.mxu0 %v2047
    %5578 = vmatpush1.bf16.msra.mxu0 %v2046
    %5579 = vmatprep.subr.bf16.mxu0 %v2059
    %5580 = vmatpush1.bf16.msra.mxu0 %v2058
    %5581 = vmatprep.subr.bf16.mxu0 %v2071
    %5582 = vmatpush1.bf16.msra.mxu0 %v2070
    %5583 = vmatprep.subr.bf16.mxu0 %v2083
    %5584 = vmatpush1.bf16.msra.mxu0 %v2082
    %5585 = vmatprep.subr.bf16.mxu0 %v2095
    %5586 = vmatpush1.bf16.msra.mxu0 %v2094
    %5587 = vmatprep.subr.bf16.mxu0 %v2107
    %5588 = vmatpush1.bf16.msra.mxu0 %v2106
    %5589 = vmatprep.subr.bf16.mxu0 %v2119
    %5590 = vmatpush1.bf16.msra.mxu0 %v2118
    %5591 = vmatprep.subr.bf16.mxu0 %v2131
    %5592 = vmatpush1.bf16.msra.mxu0 %v2130
    %5593 = vmatprep.mubr.bf16.mxu0 %v5477
    %5594 = vmatmul.mubr.bf16.gmra.mrb[0].mxu0 %v5476
    %v5595 = vpop.f32.mrb[0].mxu0
    %v5596 = vadd.f32 0.0, %v5595
    %v5597 = vpop.f32.mrb[0].mxu0
    %v5598 = vadd.f32 0.0, %v5597
    %v5599 = vpop.f32.mrb[0].mxu0
    %v5600 = vpop.f32.mrb[0].mxu0
    %5601 = vdwg.mxu0
    %5602 = vmatprep.subr.bf16.mxu0 %v2143
    %5603 = vmatpush1.bf16.msra.mxu0 %v2142
    %5604 = vmatprep.subr.bf16.mxu0 %v2155
    %5605 = vmatpush1.bf16.msra.mxu0 %v2154
    %5606 = vmatprep.subr.bf16.mxu0 %v2167
    %5607 = vmatpush1.bf16.msra.mxu0 %v2166
    %5608 = vmatprep.subr.bf16.mxu0 %v2179
    %5609 = vmatpush1.bf16.msra.mxu0 %v2178
    %5610 = vmatprep.subr.bf16.mxu0 %v2191
    %5611 = vmatpush1.bf16.msra.mxu0 %v2190
    %5612 = vmatprep.subr.bf16.mxu0 %v2203
    %5613 = vmatpush1.bf16.msra.mxu0 %v2202
    %5614 = vmatprep.subr.bf16.mxu0 %v2215
    %5615 = vmatpush1.bf16.msra.mxu0 %v2214
    %5616 = vmatprep.subr.bf16.mxu0 %v2227
    %5617 = vmatpush1.bf16.msra.mxu0 %v2226
    %5618 = vmatprep.subr.bf16.mxu0 0
    %5619 = vmatpush1.bf16.msra.mxu0 0
    %5620 = vmatprep.subr.bf16.mxu0 0
    %5621 = vmatpush1.bf16.msra.mxu0 0
    %5622 = vmatprep.subr.bf16.mxu0 0
    %5623 = vmatpush1.bf16.msra.mxu0 0
    %5624 = vmatprep.subr.bf16.mxu0 0
    %5625 = vmatpush1.bf16.msra.mxu0 0
    %5626 = vmatprep.subr.bf16.mxu0 0
    %5627 = vmatpush1.bf16.msra.mxu0 0
    %5628 = vmatprep.subr.bf16.mxu0 0
    %5629 = vmatpush1.bf16.msra.mxu0 0
    %5630 = vmatprep.subr.bf16.mxu0 0
    %5631 = vmatpush1.bf16.msra.mxu0 0
    %5632 = vmatprep.subr.bf16.mxu0 0
    %5633 = vmatpush1.bf16.msra.mxu0 0
    %5634 = vmatprep.mubr.bf16.mxu0 0
    %5635 = vmatmul.mubr.bf16.gmra.mrb[0].mxu0 %v5478
    %v5636 = vpop.f32.mrb[0].mxu0
    %v5637 = vadd.f32 %v5596, %v5636
    %v5638 = vpop.f32.mrb[0].mxu0
    %v5639 = vadd.f32 %v5598, %v5638
    %v5640 = vpop.f32.mrb[0].mxu0
    %v5641 = vpop.f32.mrb[0].mxu0
    %5642 = vdwg.mxu0
    %5643 = vmatprep.subr.bf16.mxu0 %v1953
    %5644 = vmatpush1.bf16.msra.mxu0 %v1952
    %5645 = vmatprep.subr.bf16.mxu0 %v1965
    %5646 = vmatpush1.bf16.msra.mxu0 %v1964
    %5647 = vmatprep.subr.bf16.mxu0 %v1977
    %5648 = vmatpush1.bf16.msra.mxu0 %v1976
    %5649 = vmatprep.subr.bf16.mxu0 %v1989
    %5650 = vmatpush1.bf16.msra.mxu0 %v1988
    %5651 = vmatprep.subr.bf16.mxu0 %v2001
    %5652 = vmatpush1.bf16.msra.mxu0 %v2000
    %5653 = vmatprep.subr.bf16.mxu0 %v2013
    %5654 = vmatpush1.bf16.msra.mxu0 %v2012
    %5655 = vmatprep.subr.bf16.mxu0 %v2025
    %5656 = vmatpush1.bf16.msra.mxu0 %v2024
    %5657 = vmatprep.subr.bf16.mxu0 %v2037
    %5658 = vmatpush1.bf16.msra.mxu0 %v2036
    %5659 = vmatprep.subr.bf16.mxu0 %v2049
    %5660 = vmatpush1.bf16.msra.mxu0 %v2048
    %5661 = vmatprep.subr.bf16.mxu0 %v2061
    %5662 = vmatpush1.bf16.msra.mxu0 %v2060
    %5663 = vmatprep.subr.bf16.mxu0 %v2073
    %5664 = vmatpush1.bf16.msra.mxu0 %v2072
    %5665 = vmatprep.subr.bf16.mxu0 %v2085
    %5666 = vmatpush1.bf16.msra.mxu0 %v2084
    %5667 = vmatprep.subr.bf16.mxu0 %v2097
    %5668 = vmatpush1.bf16.msra.mxu0 %v2096
    %5669 = vmatprep.subr.bf16.mxu0 %v2109
    %5670 = vmatpush1.bf16.msra.mxu0 %v2108
    %5671 = vmatprep.subr.bf16.mxu0 %v2121
    %5672 = vmatpush1.bf16.msra.mxu0 %v2120
    %5673 = vmatprep.subr.bf16.mxu0 %v2133
    %5674 = vmatpush1.bf16.msra.mxu0 %v2132
    %5675 = vmatprep.mubr.bf16.mxu0 %v5477
    %5676 = vmatmul.mubr.bf16.gmra.mrb[0].mxu0 %v5476
    %v5677 = vpop.f32.mrb[0].mxu0
    %v5678 = vadd.f32 0.0, %v5677
    %v5679 = vpop.f32.mrb[0].mxu0
    %v5680 = vadd.f32 0.0, %v5679
    %v5681 = vpop.f32.mrb[0].mxu0
    %v5682 = vpop.f32.mrb[0].mxu0
    %5683 = vdwg.mxu0
    %5684 = vmatprep.subr.bf16.mxu0 %v2145
    %5685 = vmatpush1.bf16.msra.mxu0 %v2144
    %5686 = vmatprep.subr.bf16.mxu0 %v2157
    %5687 = vmatpush1.bf16.msra.mxu0 %v2156
    %5688 = vmatprep.subr.bf16.mxu0 %v2169
    %5689 = vmatpush1.bf16.msra.mxu0 %v2168
    %5690 = vmatprep.subr.bf16.mxu0 %v2181
    %5691 = vmatpush1.bf16.msra.mxu0 %v2180
    %5692 = vmatprep.subr.bf16.mxu0 %v2193
    %5693 = vmatpush1.bf16.msra.mxu0 %v2192
    %5694 = vmatprep.subr.bf16.mxu0 %v2205
    %5695 = vmatpush1.bf16.msra.mxu0 %v2204
    %5696 = vmatprep.subr.bf16.mxu0 %v2217
    %5697 = vmatpush1.bf16.msra.mxu0 %v2216
    %5698 = vmatprep.subr.bf16.mxu0 %v2229
    %5699 = vmatpush1.bf16.msra.mxu0 %v2228
    %5700 = vmatprep.subr.bf16.mxu0 0
    %5701 = vmatpush1.bf16.msra.mxu0 0
    %5702 = vmatprep.subr.bf16.mxu0 0
    %5703 = vmatpush1.bf16.msra.mxu0 0
    %5704 = vmatprep.subr.bf16.mxu0 0
    %5705 = vmatpush1.bf16.msra.mxu0 0
    %5706 = vmatprep.subr.bf16.mxu0 0
    %5707 = vmatpush1.bf16.msra.mxu0 0
    %5708 = vmatprep.subr.bf16.mxu0 0
    %5709 = vmatpush1.bf16.msra.mxu0 0
    %5710 = vmatprep.subr.bf16.mxu0 0
    %5711 = vmatpush1.bf16.msra.mxu0 0
    %5712 = vmatprep.subr.bf16.mxu0 0
    %5713 = vmatpush1.bf16.msra.mxu0 0
    %5714 = vmatprep.subr.bf16.mxu0 0
    %5715 = vmatpush1.bf16.msra.mxu0 0
    %5716 = vmatprep.mubr.bf16.mxu0 0
    %5717 = vmatmul.mubr.bf16.gmra.mrb[0].mxu0 %v5478
    %v5718 = vpop.f32.mrb[0].mxu0
    %v5719 = vadd.f32 %v5678, %v5718
    %v5720 = vpop.f32.mrb[0].mxu0
    %v5721 = vadd.f32 %v5680, %v5720
    %v5722 = vpop.f32.mrb[0].mxu0
    %v5723 = vpop.f32.mrb[0].mxu0
    %5724 = vdwg.mxu0
    %5725 = vmatprep.subr.bf16.mxu0 %v1955
    %5726 = vmatpush1.bf16.msra.mxu0 %v1954
    %5727 = vmatprep.subr.bf16.mxu0 %v1967
    %5728 = vmatpush1.bf16.msra.mxu0 %v1966
    %5729 = vmatprep.subr.bf16.mxu0 %v1979
    %5730 = vmatpush1.bf16.msra.mxu0 %v1978
    %5731 = vmatprep.subr.bf16.mxu0 %v1991
    %5732 = vmatpush1.bf16.msra.mxu0 %v1990
    %5733 = vmatprep.subr.bf16.mxu0 %v2003
    %5734 = vmatpush1.bf16.msra.mxu0 %v2002
    %5735 = vmatprep.subr.bf16.mxu0 %v2015
    %5736 = vmatpush1.bf16.msra.mxu0 %v2014
    %5737 = vmatprep.subr.bf16.mxu0 %v2027
    %5738 = vmatpush1.bf16.msra.mxu0 %v2026
    %5739 = vmatprep.subr.bf16.mxu0 %v2039
    %5740 = vmatpush1.bf16.msra.mxu0 %v2038
    %5741 = vmatprep.subr.bf16.mxu0 %v2051
    %5742 = vmatpush1.bf16.msra.mxu0 %v2050
    %5743 = vmatprep.subr.bf16.mxu0 %v2063
    %5744 = vmatpush1.bf16.msra.mxu0 %v2062
    %5745 = vmatprep.subr.bf16.mxu0 %v2075
    %5746 = vmatpush1.bf16.msra.mxu0 %v2074
    %5747 = vmatprep.subr.bf16.mxu0 %v2087
    %5748 = vmatpush1.bf16.msra.mxu0 %v2086
    %5749 = vmatprep.subr.bf16.mxu0 %v2099
    %5750 = vmatpush1.bf16.msra.mxu0 %v2098
    %5751 = vmatprep.subr.bf16.mxu0 %v2111
    %5752 = vmatpush1.bf16.msra.mxu0 %v2110
    %5753 = vmatprep.subr.bf16.mxu0 %v2123
    %5754 = vmatpush1.bf16.msra.mxu0 %v2122
    %5755 = vmatprep.subr.bf16.mxu0 %v2135
    %5756 = vmatpush1.bf16.msra.mxu0 %v2134
    %5757 = vmatprep.mubr.bf16.mxu0 %v5477
    %5758 = vmatmul.mubr.bf16.gmra.mrb[0].mxu0 %v5476
    %v5759 = vpop.f32.mrb[0].mxu0
    %v5760 = vadd.f32 0.0, %v5759
    %v5761 = vpop.f32.mrb[0].mxu0
    %v5762 = vadd.f32 0.0, %v5761
    %v5763 = vpop.f32.mrb[0].mxu0
    %v5764 = vpop.f32.mrb[0].mxu0
    %5765 = vdwg.mxu0
    %5766 = vmatprep.subr.bf16.mxu0 %v2147
    %5767 = vmatpush1.bf16.msra.mxu0 %v2146
    %5768 = vmatprep.subr.bf16.mxu0 %v2159
    %5769 = vmatpush1.bf16.msra.mxu0 %v2158
    %5770 = vmatprep.subr.bf16.mxu0 %v2171
    %5771 = vmatpush1.bf16.msra.mxu0 %v2170
    %5772 = vmatprep.subr.bf16.mxu0 %v2183
    %5773 = vmatpush1.bf16.msra.mxu0 %v2182
    %5774 = vmatprep.subr.bf16.mxu0 %v2195
    %5775 = vmatpush1.bf16.msra.mxu0 %v2194
    %5776 = vmatprep.subr.bf16.mxu0 %v2207
    %5777 = vmatpush1.bf16.msra.mxu0 %v2206
    %5778 = vmatprep.subr.bf16.mxu0 %v2219
    %5779 = vmatpush1.bf16.msra.mxu0 %v2218
    %5780 = vmatprep.subr.bf16.mxu0 %v2231
    %5781 = vmatpush1.bf16.msra.mxu0 %v2230
    %5782 = vmatprep.subr.bf16.mxu0 0
    %5783 = vmatpush1.bf16.msra.mxu0 0
    %5784 = vmatprep.subr.bf16.mxu0 0
    %5785 = vmatpush1.bf16.msra.mxu0 0
    %5786 = vmatprep.subr.bf16.mxu0 0
    %5787 = vmatpush1.bf16.msra.mxu0 0
    %5788 = vmatprep.subr.bf16.mxu0 0
    %5789 = vmatpush1.bf16.msra.mxu0 0
    %5790 = vmatprep.subr.bf16.mxu0 0
    %5791 = vmatpush1.bf16.msra.mxu0 0
    %5792 = vmatprep.subr.bf16.mxu0 0
    %5793 = vmatpush1.bf16.msra.mxu0 0
    %5794 = vmatprep.subr.bf16.mxu0 0
    %5795 = vmatpush1.bf16.msra.mxu0 0
    %5796 = vmatprep.subr.bf16.mxu0 0
    %5797 = vmatpush1.bf16.msra.mxu0 0
    %5798 = vmatprep.mubr.bf16.mxu0 0
    %5799 = vmatmul.mubr.bf16.gmra.mrb[0].mxu0 %v5478
    %v5800 = vpop.f32.mrb[0].mxu0
    %v5801 = vadd.f32 %v5760, %v5800
    %v5802 = vpop.f32.mrb[0].mxu0
    %v5803 = vadd.f32 %v5762, %v5802
    %v5804 = vpop.f32.mrb[0].mxu0
    %v5805 = vpop.f32.mrb[0].mxu0
    %5806 = vdwg.mxu0
    %5807 = vmatprep.subr.bf16.mxu0 %v1957
    %5808 = vmatpush1.bf16.msra.mxu0 %v1956
    %5809 = vmatprep.subr.bf16.mxu0 %v1969
    %5810 = vmatpush1.bf16.msra.mxu0 %v1968
    %5811 = vmatprep.subr.bf16.mxu0 %v1981
    %5812 = vmatpush1.bf16.msra.mxu0 %v1980
    %5813 = vmatprep.subr.bf16.mxu0 %v1993
    %5814 = vmatpush1.bf16.msra.mxu0 %v1992
    %5815 = vmatprep.subr.bf16.mxu0 %v2005
    %5816 = vmatpush1.bf16.msra.mxu0 %v2004
    %5817 = vmatprep.subr.bf16.mxu0 %v2017
    %5818 = vmatpush1.bf16.msra.mxu0 %v2016
    %5819 = vmatprep.subr.bf16.mxu0 %v2029
    %5820 = vmatpush1.bf16.msra.mxu0 %v2028
    %5821 = vmatprep.subr.bf16.mxu0 %v2041
    %5822 = vmatpush1.bf16.msra.mxu0 %v2040
    %5823 = vmatprep.subr.bf16.mxu0 %v2053
    %5824 = vmatpush1.bf16.msra.mxu0 %v2052
    %5825 = vmatprep.subr.bf16.mxu0 %v2065
    %5826 = vmatpush1.bf16.msra.mxu0 %v2064
    %5827 = vmatprep.subr.bf16.mxu0 %v2077
    %5828 = vmatpush1.bf16.msra.mxu0 %v2076
    %5829 = vmatprep.subr.bf16.mxu0 %v2089
    %5830 = vmatpush1.bf16.msra.mxu0 %v2088
    %5831 = vmatprep.subr.bf16.mxu0 %v2101
    %5832 = vmatpush1.bf16.msra.mxu0 %v2100
    %5833 = vmatprep.subr.bf16.mxu0 %v2113
    %5834 = vmatpush1.bf16.msra.mxu0 %v2112
    %5835 = vmatprep.subr.bf16.mxu0 %v2125
    %5836 = vmatpush1.bf16.msra.mxu0 %v2124
    %5837 = vmatprep.subr.bf16.mxu0 %v2137
    %5838 = vmatpush1.bf16.msra.mxu0 %v2136
    %5839 = vmatprep.mubr.bf16.mxu0 %v5477
    %5840 = vmatmul.mubr.bf16.gmra.mrb[0].mxu0 %v5476
    %v5841 = vpop.f32.mrb[0].mxu0
    %v5842 = vadd.f32 0.0, %v5841
    %v5843 = vpop.f32.mrb[0].mxu0
    %v5844 = vadd.f32 0.0, %v5843
    %v5845 = vpop.f32.mrb[0].mxu0
    %v5846 = vpop.f32.mrb[0].mxu0
    %5847 = vdwg.mxu0
    %5848 = vmatprep.subr.bf16.mxu0 %v2149
    %5849 = vmatpush1.bf16.msra.mxu0 %v2148
    %5850 = vmatprep.subr.bf16.mxu0 %v2161
    %5851 = vmatpush1.bf16.msra.mxu0 %v2160
    %5852 = vmatprep.subr.bf16.mxu0 %v2173
    %5853 = vmatpush1.bf16.msra.mxu0 %v2172
    %5854 = vmatprep.subr.bf16.mxu0 %v2185
    %5855 = vmatpush1.bf16.msra.mxu0 %v2184
    %5856 = vmatprep.subr.bf16.mxu0 %v2197
    %5857 = vmatpush1.bf16.msra.mxu0 %v2196
    %5858 = vmatprep.subr.bf16.mxu0 %v2209
    %5859 = vmatpush1.bf16.msra.mxu0 %v2208
    %5860 = vmatprep.subr.bf16.mxu0 %v2221
    %5861 = vmatpush1.bf16.msra.mxu0 %v2220
    %5862 = vmatprep.subr.bf16.mxu0 %v2233
    %5863 = vmatpush1.bf16.msra.mxu0 %v2232
    %5864 = vmatprep.subr.bf16.mxu0 0
    %5865 = vmatpush1.bf16.msra.mxu0 0
    %5866 = vmatprep.subr.bf16.mxu0 0
    %5867 = vmatpush1.bf16.msra.mxu0 0
    %5868 = vmatprep.subr.bf16.mxu0 0
    %5869 = vmatpush1.bf16.msra.mxu0 0
    %5870 = vmatprep.subr.bf16.mxu0 0
    %5871 = vmatpush1.bf16.msra.mxu0 0
    %5872 = vmatprep.subr.bf16.mxu0 0
    %5873 = vmatpush1.bf16.msra.mxu0 0
    %5874 = vmatprep.subr.bf16.mxu0 0
    %5875 = vmatpush1.bf16.msra.mxu0 0
    %5876 = vmatprep.subr.bf16.mxu0 0
    %5877 = vmatpush1.bf16.msra.mxu0 0
    %5878 = vmatprep.subr.bf16.mxu0 0
    %5879 = vmatpush1.bf16.msra.mxu0 0
    %5880 = vmatprep.mubr.bf16.mxu0 0
    %5881 = vmatmul.mubr.bf16.gmra.mrb[0].mxu0 %v5478
    %v5882 = vpop.f32.mrb[0].mxu0
    %v5883 = vadd.f32 %v5842, %v5882
    %v5884 = vpop.f32.mrb[0].mxu0
    %v5885 = vadd.f32 %v5844, %v5884
    %v5886 = vpop.f32.mrb[0].mxu0
    %v5887 = vpop.f32.mrb[0].mxu0
    %5888 = vdwg.mxu0
    %5889 = vmatprep.subr.bf16.mxu0 %v1959
    %5890 = vmatpush1.bf16.msra.mxu0 %v1958
    %5891 = vmatprep.subr.bf16.mxu0 %v1971
    %5892 = vmatpush1.bf16.msra.mxu0 %v1970
    %5893 = vmatprep.subr.bf16.mxu0 %v1983
    %5894 = vmatpush1.bf16.msra.mxu0 %v1982
    %5895 = vmatprep.subr.bf16.mxu0 %v1995
    %5896 = vmatpush1.bf16.msra.mxu0 %v1994
    %5897 = vmatprep.subr.bf16.mxu0 %v2007
    %5898 = vmatpush1.bf16.msra.mxu0 %v2006
    %5899 = vmatprep.subr.bf16.mxu0 %v2019
    %5900 = vmatpush1.bf16.msra.mxu0 %v2018
    %5901 = vmatprep.subr.bf16.mxu0 %v2031
    %5902 = vmatpush1.bf16.msra.mxu0 %v2030
    %5903 = vmatprep.subr.bf16.mxu0 %v2043
    %5904 = vmatpush1.bf16.msra.mxu0 %v2042
    %5905 = vmatprep.subr.bf16.mxu0 %v2055
    %5906 = vmatpush1.bf16.msra.mxu0 %v2054
    %5907 = vmatprep.subr.bf16.mxu0 %v2067
    %5908 = vmatpush1.bf16.msra.mxu0 %v2066
    %5909 = vmatprep.subr.bf16.mxu0 %v2079
    %5910 = vmatpush1.bf16.msra.mxu0 %v2078
    %5911 = vmatprep.subr.bf16.mxu0 %v2091
    %5912 = vmatpush1.bf16.msra.mxu0 %v2090
    %5913 = vmatprep.subr.bf16.mxu0 %v2103
    %5914 = vmatpush1.bf16.msra.mxu0 %v2102
    %5915 = vmatprep.subr.bf16.mxu0 %v2115
    %5916 = vmatpush1.bf16.msra.mxu0 %v2114
    %5917 = vmatprep.subr.bf16.mxu0 %v2127
    %5918 = vmatpush1.bf16.msra.mxu0 %v2126
    %5919 = vmatprep.subr.bf16.mxu0 %v2139
    %5920 = vmatpush1.bf16.msra.mxu0 %v2138
    %5921 = vmatprep.mubr.bf16.mxu0 %v5477
    %5922 = vmatmul.mubr.bf16.gmra.mrb[0].mxu0 %v5476
    %v5923 = vpop.f32.mrb[0].mxu0
    %v5924 = vadd.f32 0.0, %v5923
    %v5925 = vpop.f32.mrb[0].mxu0
    %v5926 = vadd.f32 0.0, %v5925
    %v5927 = vpop.f32.mrb[0].mxu0
    %v5928 = vpop.f32.mrb[0].mxu0
    %5929 = vdwg.mxu0
    %5930 = vmatprep.subr.bf16.mxu0 %v2151
    %5931 = vmatpush1.bf16.msra.mxu0 %v2150
    %5932 = vmatprep.subr.bf16.mxu0 %v2163
    %5933 = vmatpush1.bf16.msra.mxu0 %v2162
    %5934 = vmatprep.subr.bf16.mxu0 %v2175
    %5935 = vmatpush1.bf16.msra.mxu0 %v2174
    %5936 = vmatprep.subr.bf16.mxu0 %v2187
    %5937 = vmatpush1.bf16.msra.mxu0 %v2186
    %5938 = vmatprep.subr.bf16.mxu0 %v2199
    %5939 = vmatpush1.bf16.msra.mxu0 %v2198
    %5940 = vmatprep.subr.bf16.mxu0 %v2211
    %5941 = vmatpush1.bf16.msra.mxu0 %v2210
    %5942 = vmatprep.subr.bf16.mxu0 %v2223
    %5943 = vmatpush1.bf16.msra.mxu0 %v2222
    %5944 = vmatprep.subr.bf16.mxu0 %v2235
    %5945 = vmatpush1.bf16.msra.mxu0 %v2234
    %5946 = vmatprep.subr.bf16.mxu0 0
    %5947 = vmatpush1.bf16.msra.mxu0 0
    %5948 = vmatprep.subr.bf16.mxu0 0
    %5949 = vmatpush1.bf16.msra.mxu0 0
    %5950 = vmatprep.subr.bf16.mxu0 0
    %5951 = vmatpush1.bf16.msra.mxu0 0
    %5952 = vmatprep.subr.bf16.mxu0 0
    %5953 = vmatpush1.bf16.msra.mxu0 0
    %5954 = vmatprep.subr.bf16.mxu0 0
    %5955 = vmatpush1.bf16.msra.mxu0 0
    %5956 = vmatprep.subr.bf16.mxu0 0
    %5957 = vmatpush1.bf16.msra.mxu0 0
    %5958 = vmatprep.subr.bf16.mxu0 0
    %5959 = vmatpush1.bf16.msra.mxu0 0
    %5960 = vmatprep.subr.bf16.mxu0 0
    %5961 = vmatpush1.bf16.msra.mxu0 0
    %5962 = vmatprep.mubr.bf16.mxu0 0
    %5963 = vmatmul.mubr.bf16.gmra.mrb[0].mxu0 %v5478
    %v5964 = vpop.f32.mrb[0].mxu0
    %v5965 = vadd.f32 %v5924, %v5964
    %v5966 = vpop.f32.mrb[0].mxu0
    %v5967 = vadd.f32 %v5926, %v5966
    %v5968 = vpop.f32.mrb[0].mxu0
    %v5969 = vpop.f32.mrb[0].mxu0
    %5970 = vdwg.mxu0
    %v5971 = vadd.f32 %v5464, %v5555
    %v5972 = vadd.f32 %v5465, %v5557
    %v5973 = vadd.f32 %v5466, %v5637
    %v5974 = vadd.f32 %v5467, %v5639
    %v5975 = vadd.f32 %v5468, %v5719
    %v5976 = vadd.f32 %v5469, %v5721
    %v5977 = vadd.f32 %v5470, %v5801
    %v5978 = vadd.f32 %v5471, %v5803
    %v5979 = vadd.f32 %v5472, %v5883
    %v5980 = vadd.f32 %v5473, %v5885
    %v5981 = vadd.f32 %v5474, %v5965
    %v5982 = vadd.f32 %v5475, %v5967
    %v5983 = vxor.u32 %v5971, 2147483648
    %v5984 = vxor.u32 %v5972, 2147483648
    %v5985 = vxor.u32 %v5973, 2147483648
    %v5986 = vxor.u32 %v5974, 2147483648
    %v5987 = vxor.u32 %v5975, 2147483648
    %v5988 = vxor.u32 %v5976, 2147483648
    %v5989 = vxor.u32 %v5977, 2147483648
    %v5990 = vxor.u32 %v5978, 2147483648
    %v5991 = vxor.u32 %v5979, 2147483648
    %v5992 = vmul.f32 %v5983, 1.442695
    %v5993 = vpow.pop %v5992
    %v5994 = vmul.f32 %v5984, 1.442695
    %v5995 = vpow.pop %v5994
    %v5996 = vmul.f32 %v5985, 1.442695
    %v5997 = vpow.pop %v5996
    %v5998 = vmul.f32 %v5986, 1.442695
    %v5999 = vpow.pop %v5998
    %v6000 = vmul.f32 %v5987, 1.442695
    %v6001 = vpow.pop %v6000
    %v6002 = vmul.f32 %v5988, 1.442695
    %v6003 = vpow.pop %v6002
    %v6004 = vmul.f32 %v5989, 1.442695
    %v6005 = vpow.pop %v6004
    %v6006 = vmul.f32 %v5990, 1.442695
    %v6007 = vpow.pop %v6006
    %v6008 = vmul.f32 %v5991, 1.442695
    %v6009 = vpow.pop %v6008
    %v6010 = vadd.f32 %v5993, 1.0
    %v6011 = vadd.f32 %v5995, 1.0
    %v6012 = vadd.f32 %v5997, 1.0
    %v6013 = vadd.f32 %v5999, 1.0
    %v6014 = vadd.f32 %v6001, 1.0
    %v6015 = vadd.f32 %v6003, 1.0
    %v6016 = vadd.f32 %v6005, 1.0
    %v6017 = vadd.f32 %v6007, 1.0
    %v6018 = vadd.f32 %v6009, 1.0
    %v6019 = vrcp.pop %v6010
    %v6020 = vmul.f32 1.0, %v6019
    %v6021 = vrcp.pop %v6011
    %v6022 = vmul.f32 1.0, %v6021
    %v6023 = vrcp.pop %v6012
    %v6024 = vmul.f32 1.0, %v6023
    %v6025 = vrcp.pop %v6013
    %v6026 = vmul.f32 1.0, %v6025
    %v6027 = vrcp.pop %v6014
    %v6028 = vmul.f32 1.0, %v6027
    %v6029 = vrcp.pop %v6015
    %v6030 = vmul.f32 1.0, %v6029
    %v6031 = vrcp.pop %v6016
    %v6032 = vmul.f32 1.0, %v6031
    %v6033 = vrcp.pop %v6017
    %v6034 = vmul.f32 1.0, %v6033
    %v6035 = vrcp.pop %v6018
    %v6036 = vmul.f32 1.0, %v6035
    %v6037 = vtanh.pop %v5980
    %v6038 = vtanh.pop %v5981
    %v6039 = vtanh.pop %v5982
    %v6040 = vmul.f32 %v6026, %v5455
    %v6041 = vmul.f32 %v6028, %v5456
    %v6042 = vmul.f32 %v6030, %v5457
    %v6043 = vmul.f32 %v6020, %v6037
    %v6044 = vmul.f32 %v6022, %v6038
    %v6045 = vmul.f32 %v6024, %v6039
    %v6046 = vadd.f32 %v6040, %v6043
    %v6047 = vadd.f32 %v6041, %v6044
    %v6048 = vadd.f32 %v6042, %v6045
    %v6049 = vtanh.pop %v6046
    %v6050 = vtanh.pop %v6047
    %v6051 = vtanh.pop %v6048
    %v6052 = vmul.f32 %v6032, %v6049
    %v6053 = vmul.f32 %v6034, %v6050
    %v6054 = vmul.f32 %v6036, %v6051
    %v6055 = vld [vmem:[#allocation2 + $0x240] sm:$0xff]
    %v6056 = vld [vmem:[#allocation2 + $0x248] sm:$0xff]
    %v6057 = vld [vmem:[#allocation2 + $0x250] sm:$0xff]
    %v6058 = vld [vmem:[#allocation2 + $0x258] sm:$0xff]
    %v6059 = vld [vmem:[#allocation2 + $0x260] sm:$0xff]
    %v6060 = vld [vmem:[#allocation2 + $0x268] sm:$0xff]
    %v6061 = vld [vmem:[#allocation2 + $0x270] sm:$0xff]
    %v6062 = vld [vmem:[#allocation2 + $0x278] sm:$0xff]
    %v6063 = vld [vmem:[#allocation2 + $0x280] sm:$0xff]
    %v6064 = vld [vmem:[#allocation2 + $0x288] sm:$0xff]
    %v6065 = vld [vmem:[#allocation2 + $0x290] sm:$0xff]
    %v6066 = vld [vmem:[#allocation2 + $0x298] sm:$0xff]
    %v6067 = vpack.c.bf16 %v6052, %v6052
    %v6068 = vpack.c.bf16 %v6053, %v6053
    %v6069 = vpack.c.bf16 %v6054, %v6054
    %6070 = vmatprep.subr.bf16.mxu0 %v1949
    %6071 = vmatpush1.bf16.msra.mxu0 %v1948
    %6072 = vmatprep.subr.bf16.mxu0 %v1961
    %6073 = vmatpush1.bf16.msra.mxu0 %v1960
    %6074 = vmatprep.subr.bf16.mxu0 %v1973
    %6075 = vmatpush1.bf16.msra.mxu0 %v1972
    %6076 = vmatprep.subr.bf16.mxu0 %v1985
    %6077 = vmatpush1.bf16.msra.mxu0 %v1984
    %6078 = vmatprep.subr.bf16.mxu0 %v1997
    %6079 = vmatpush1.bf16.msra.mxu0 %v1996
    %6080 = vmatprep.subr.bf16.mxu0 %v2009
    %6081 = vmatpush1.bf16.msra.mxu0 %v2008
    %6082 = vmatprep.subr.bf16.mxu0 %v2021
    %6083 = vmatpush1.bf16.msra.mxu0 %v2020
    %6084 = vmatprep.subr.bf16.mxu0 %v2033
    %6085 = vmatpush1.bf16.msra.mxu0 %v2032
    %6086 = vmatprep.subr.bf16.mxu0 %v2045
    %6087 = vmatpush1.bf16.msra.mxu0 %v2044
    %6088 = vmatprep.subr.bf16.mxu0 %v2057
    %6089 = vmatpush1.bf16.msra.mxu0 %v2056
    %6090 = vmatprep.subr.bf16.mxu0 %v2069
    %6091 = vmatpush1.bf16.msra.mxu0 %v2068
    %6092 = vmatprep.subr.bf16.mxu0 %v2081
    %6093 = vmatpush1.bf16.msra.mxu0 %v2080
    %6094 = vmatprep.subr.bf16.mxu0 %v2093
    %6095 = vmatpush1.bf16.msra.mxu0 %v2092
    %6096 = vmatprep.subr.bf16.mxu0 %v2105
    %6097 = vmatpush1.bf16.msra.mxu0 %v2104
    %6098 = vmatprep.subr.bf16.mxu0 %v2117
    %6099 = vmatpush1.bf16.msra.mxu0 %v2116
    %6100 = vmatprep.subr.bf16.mxu0 %v2129
    %6101 = vmatpush1.bf16.msra.mxu0 %v2128
    %6102 = vmatprep.mubr.bf16.mxu0 %v6068
    %6103 = vmatmul.mubr.bf16.gmra.mrb[0].mxu0 %v6067
    %v6104 = vpop.f32.mrb[0].mxu0
    %v6105 = vadd.f32 0.0, %v6104
    %v6106 = vpop.f32.mrb[0].mxu0
    %v6107 = vadd.f32 0.0, %v6106
    %v6108 = vpop.f32.mrb[0].mxu0
    %v6109 = vpop.f32.mrb[0].mxu0
    %6110 = vdwg.mxu0
    %6111 = vmatprep.subr.bf16.mxu0 %v2141
    %6112 = vmatpush1.bf16.msra.mxu0 %v2140
    %6113 = vmatprep.subr.bf16.mxu0 %v2153
    %6114 = vmatpush1.bf16.msra.mxu0 %v2152
    %6115 = vmatprep.subr.bf16.mxu0 %v2165
    %6116 = vmatpush1.bf16.msra.mxu0 %v2164
    %6117 = vmatprep.subr.bf16.mxu0 %v2177
    %6118 = vmatpush1.bf16.msra.mxu0 %v2176
    %6119 = vmatprep.subr.bf16.mxu0 %v2189
    %6120 = vmatpush1.bf16.msra.mxu0 %v2188
    %6121 = vmatprep.subr.bf16.mxu0 %v2201
    %6122 = vmatpush1.bf16.msra.mxu0 %v2200
    %6123 = vmatprep.subr.bf16.mxu0 %v2213
    %6124 = vmatpush1.bf16.msra.mxu0 %v2212
    %6125 = vmatprep.subr.bf16.mxu0 %v2225
    %6126 = vmatpush1.bf16.msra.mxu0 %v2224
    %6127 = vmatprep.subr.bf16.mxu0 0
    %6128 = vmatpush1.bf16.msra.mxu0 0
    %6129 = vmatprep.subr.bf16.mxu0 0
    %6130 = vmatpush1.bf16.msra.mxu0 0
    %6131 = vmatprep.subr.bf16.mxu0 0
    %6132 = vmatpush1.bf16.msra.mxu0 0
    %6133 = vmatprep.subr.bf16.mxu0 0
    %6134 = vmatpush1.bf16.msra.mxu0 0
    %6135 = vmatprep.subr.bf16.mxu0 0
    %6136 = vmatpush1.bf16.msra.mxu0 0
    %6137 = vmatprep.subr.bf16.mxu0 0
    %6138 = vmatpush1.bf16.msra.mxu0 0
    %6139 = vmatprep.subr.bf16.mxu0 0
    %6140 = vmatpush1.bf16.msra.mxu0 0
    %6141 = vmatprep.subr.bf16.mxu0 0
    %6142 = vmatpush1.bf16.msra.mxu0 0
    %6143 = vmatprep.mubr.bf16.mxu0 0
    %6144 = vmatmul.mubr.bf16.gmra.mrb[0].mxu0 %v6069
    %v6145 = vpop.f32.mrb[0].mxu0
    %v6146 = vadd.f32 %v6105, %v6145
    %v6147 = vpop.f32.mrb[0].mxu0
    %v6148 = vadd.f32 %v6107, %v6147
    %v6149 = vpop.f32.mrb[0].mxu0
    %v6150 = vpop.f32.mrb[0].mxu0
    %6151 = vdwg.mxu0
    %6152 = vmatprep.subr.bf16.mxu0 %v1951
    %6153 = vmatpush1.bf16.msra.mxu0 %v1950
    %6154 = vmatprep.subr.bf16.mxu0 %v1963
    %6155 = vmatpush1.bf16.msra.mxu0 %v1962
    %6156 = vmatprep.subr.bf16.mxu0 %v1975
    %6157 = vmatpush1.bf16.msra.mxu0 %v1974
    %6158 = vmatprep.subr.bf16.mxu0 %v1987
    %6159 = vmatpush1.bf16.msra.mxu0 %v1986
    %6160 = vmatprep.subr.bf16.mxu0 %v1999
    %6161 = vmatpush1.bf16.msra.mxu0 %v1998
    %6162 = vmatprep.subr.bf16.mxu0 %v2011
    %6163 = vmatpush1.bf16.msra.mxu0 %v2010
    %6164 = vmatprep.subr.bf16.mxu0 %v2023
    %6165 = vmatpush1.bf16.msra.mxu0 %v2022
    %6166 = vmatprep.subr.bf16.mxu0 %v2035
    %6167 = vmatpush1.bf16.msra.mxu0 %v2034
    %6168 = vmatprep.subr.bf16.mxu0 %v2047
    %6169 = vmatpush1.bf16.msra.mxu0 %v2046
    %6170 = vmatprep.subr.bf16.mxu0 %v2059
    %6171 = vmatpush1.bf16.msra.mxu0 %v2058
    %6172 = vmatprep.subr.bf16.mxu0 %v2071
    %6173 = vmatpush1.bf16.msra.mxu0 %v2070
    %6174 = vmatprep.subr.bf16.mxu0 %v2083
    %6175 = vmatpush1.bf16.msra.mxu0 %v2082
    %6176 = vmatprep.subr.bf16.mxu0 %v2095
    %6177 = vmatpush1.bf16.msra.mxu0 %v2094
    %6178 = vmatprep.subr.bf16.mxu0 %v2107
    %6179 = vmatpush1.bf16.msra.mxu0 %v2106
    %6180 = vmatprep.subr.bf16.mxu0 %v2119
    %6181 = vmatpush1.bf16.msra.mxu0 %v2118
    %6182 = vmatprep.subr.bf16.mxu0 %v2131
    %6183 = vmatpush1.bf16.msra.mxu0 %v2130
    %6184 = vmatprep.mubr.bf16.mxu0 %v6068
    %6185 = vmatmul.mubr.bf16.gmra.mrb[0].mxu0 %v6067
    %v6186 = vpop.f32.mrb[0].mxu0
    %v6187 = vadd.f32 0.0, %v6186
    %v6188 = vpop.f32.mrb[0].mxu0
    %v6189 = vadd.f32 0.0, %v6188
    %v6190 = vpop.f32.mrb[0].mxu0
    %v6191 = vpop.f32.mrb[0].mxu0
    %6192 = vdwg.mxu0
    %6193 = vmatprep.subr.bf16.mxu0 %v2143
    %6194 = vmatpush1.bf16.msra.mxu0 %v2142
    %6195 = vmatprep.subr.bf16.mxu0 %v2155
    %6196 = vmatpush1.bf16.msra.mxu0 %v2154
    %6197 = vmatprep.subr.bf16.mxu0 %v2167
    %6198 = vmatpush1.bf16.msra.mxu0 %v2166
    %6199 = vmatprep.subr.bf16.mxu0 %v2179
    %6200 = vmatpush1.bf16.msra.mxu0 %v2178
    %6201 = vmatprep.subr.bf16.mxu0 %v2191
    %6202 = vmatpush1.bf16.msra.mxu0 %v2190
    %6203 = vmatprep.subr.bf16.mxu0 %v2203
    %6204 = vmatpush1.bf16.msra.mxu0 %v2202
    %6205 = vmatprep.subr.bf16.mxu0 %v2215
    %6206 = vmatpush1.bf16.msra.mxu0 %v2214
    %6207 = vmatprep.subr.bf16.mxu0 %v2227
    %6208 = vmatpush1.bf16.msra.mxu0 %v2226
    %6209 = vmatprep.subr.bf16.mxu0 0
    %6210 = vmatpush1.bf16.msra.mxu0 0
    %6211 = vmatprep.subr.bf16.mxu0 0
    %6212 = vmatpush1.bf16.msra.mxu0 0
    %6213 = vmatprep.subr.bf16.mxu0 0
    %6214 = vmatpush1.bf16.msra.mxu0 0
    %6215 = vmatprep.subr.bf16.mxu0 0
    %6216 = vmatpush1.bf16.msra.mxu0 0
    %6217 = vmatprep.subr.bf16.mxu0 0
    %6218 = vmatpush1.bf16.msra.mxu0 0
    %6219 = vmatprep.subr.bf16.mxu0 0
    %6220 = vmatpush1.bf16.msra.mxu0 0
    %6221 = vmatprep.subr.bf16.mxu0 0
    %6222 = vmatpush1.bf16.msra.mxu0 0
    %6223 = vmatprep.subr.bf16.mxu0 0
    %6224 = vmatpush1.bf16.msra.mxu0 0
    %6225 = vmatprep.mubr.bf16.mxu0 0
    %6226 = vmatmul.mubr.bf16.gmra.mrb[0].mxu0 %v6069
    %v6227 = vpop.f32.mrb[0].mxu0
    %v6228 = vadd.f32 %v6187, %v6227
    %v6229 = vpop.f32.mrb[0].mxu0
    %v6230 = vadd.f32 %v6189, %v6229
    %v6231 = vpop.f32.mrb[0].mxu0
    %v6232 = vpop.f32.mrb[0].mxu0
    %6233 = vdwg.mxu0
    %6234 = vmatprep.subr.bf16.mxu0 %v1953
    %6235 = vmatpush1.bf16.msra.mxu0 %v1952
    %6236 = vmatprep.subr.bf16.mxu0 %v1965
    %6237 = vmatpush1.bf16.msra.mxu0 %v1964
    %6238 = vmatprep.subr.bf16.mxu0 %v1977
    %6239 = vmatpush1.bf16.msra.mxu0 %v1976
    %6240 = vmatprep.subr.bf16.mxu0 %v1989
    %6241 = vmatpush1.bf16.msra.mxu0 %v1988
    %6242 = vmatprep.subr.bf16.mxu0 %v2001
    %6243 = vmatpush1.bf16.msra.mxu0 %v2000
    %6244 = vmatprep.subr.bf16.mxu0 %v2013
    %6245 = vmatpush1.bf16.msra.mxu0 %v2012
    %6246 = vmatprep.subr.bf16.mxu0 %v2025
    %6247 = vmatpush1.bf16.msra.mxu0 %v2024
    %6248 = vmatprep.subr.bf16.mxu0 %v2037
    %6249 = vmatpush1.bf16.msra.mxu0 %v2036
    %6250 = vmatprep.subr.bf16.mxu0 %v2049
    %6251 = vmatpush1.bf16.msra.mxu0 %v2048
    %6252 = vmatprep.subr.bf16.mxu0 %v2061
    %6253 = vmatpush1.bf16.msra.mxu0 %v2060
    %6254 = vmatprep.subr.bf16.mxu0 %v2073
    %6255 = vmatpush1.bf16.msra.mxu0 %v2072
    %6256 = vmatprep.subr.bf16.mxu0 %v2085
    %6257 = vmatpush1.bf16.msra.mxu0 %v2084
    %6258 = vmatprep.subr.bf16.mxu0 %v2097
    %6259 = vmatpush1.bf16.msra.mxu0 %v2096
    %6260 = vmatprep.subr.bf16.mxu0 %v2109
    %6261 = vmatpush1.bf16.msra.mxu0 %v2108
    %6262 = vmatprep.subr.bf16.mxu0 %v2121
    %6263 = vmatpush1.bf16.msra.mxu0 %v2120
    %6264 = vmatprep.subr.bf16.mxu0 %v2133
    %6265 = vmatpush1.bf16.msra.mxu0 %v2132
    %6266 = vmatprep.mubr.bf16.mxu0 %v6068
    %6267 = vmatmul.mubr.bf16.gmra.mrb[0].mxu0 %v6067
    %v6268 = vpop.f32.mrb[0].mxu0
    %v6269 = vadd.f32 0.0, %v6268
    %v6270 = vpop.f32.mrb[0].mxu0
    %v6271 = vadd.f32 0.0, %v6270
    %v6272 = vpop.f32.mrb[0].mxu0
    %v6273 = vpop.f32.mrb[0].mxu0
    %6274 = vdwg.mxu0
    %6275 = vmatprep.subr.bf16.mxu0 %v2145
    %6276 = vmatpush1.bf16.msra.mxu0 %v2144
    %6277 = vmatprep.subr.bf16.mxu0 %v2157
    %6278 = vmatpush1.bf16.msra.mxu0 %v2156
    %6279 = vmatprep.subr.bf16.mxu0 %v2169
    %6280 = vmatpush1.bf16.msra.mxu0 %v2168
    %6281 = vmatprep.subr.bf16.mxu0 %v2181
    %6282 = vmatpush1.bf16.msra.mxu0 %v2180
    %6283 = vmatprep.subr.bf16.mxu0 %v2193
    %6284 = vmatpush1.bf16.msra.mxu0 %v2192
    %6285 = vmatprep.subr.bf16.mxu0 %v2205
    %6286 = vmatpush1.bf16.msra.mxu0 %v2204
    %6287 = vmatprep.subr.bf16.mxu0 %v2217
    %6288 = vmatpush1.bf16.msra.mxu0 %v2216
    %6289 = vmatprep.subr.bf16.mxu0 %v2229
    %6290 = vmatpush1.bf16.msra.mxu0 %v2228
    %6291 = vmatprep.subr.bf16.mxu0 0
    %6292 = vmatpush1.bf16.msra.mxu0 0
    %6293 = vmatprep.subr.bf16.mxu0 0
    %6294 = vmatpush1.bf16.msra.mxu0 0
    %6295 = vmatprep.subr.bf16.mxu0 0
    %6296 = vmatpush1.bf16.msra.mxu0 0
    %6297 = vmatprep.subr.bf16.mxu0 0
    %6298 = vmatpush1.bf16.msra.mxu0 0
    %6299 = vmatprep.subr.bf16.mxu0 0
    %6300 = vmatpush1.bf16.msra.mxu0 0
    %6301 = vmatprep.subr.bf16.mxu0 0
    %6302 = vmatpush1.bf16.msra.mxu0 0
    %6303 = vmatprep.subr.bf16.mxu0 0
    %6304 = vmatpush1.bf16.msra.mxu0 0
    %6305 = vmatprep.subr.bf16.mxu0 0
    %6306 = vmatpush1.bf16.msra.mxu0 0
    %6307 = vmatprep.mubr.bf16.mxu0 0
    %6308 = vmatmul.mubr.bf16.gmra.mrb[0].mxu0 %v6069
    %v6309 = vpop.f32.mrb[0].mxu0
    %v6310 = vadd.f32 %v6269, %v6309
    %v6311 = vpop.f32.mrb[0].mxu0
    %v6312 = vadd.f32 %v6271, %v6311
    %v6313 = vpop.f32.mrb[0].mxu0
    %v6314 = vpop.f32.mrb[0].mxu0
    %6315 = vdwg.mxu0
    %6316 = vmatprep.subr.bf16.mxu0 %v1955
    %6317 = vmatpush1.bf16.msra.mxu0 %v1954
    %6318 = vmatprep.subr.bf16.mxu0 %v1967
    %6319 = vmatpush1.bf16.msra.mxu0 %v1966
    %6320 = vmatprep.subr.bf16.mxu0 %v1979
    %6321 = vmatpush1.bf16.msra.mxu0 %v1978
    %6322 = vmatprep.subr.bf16.mxu0 %v1991
    %6323 = vmatpush1.bf16.msra.mxu0 %v1990
    %6324 = vmatprep.subr.bf16.mxu0 %v2003
    %6325 = vmatpush1.bf16.msra.mxu0 %v2002
    %6326 = vmatprep.subr.bf16.mxu0 %v2015
    %6327 = vmatpush1.bf16.msra.mxu0 %v2014
    %6328 = vmatprep.subr.bf16.mxu0 %v2027
    %6329 = vmatpush1.bf16.msra.mxu0 %v2026
    %6330 = vmatprep.subr.bf16.mxu0 %v2039
    %6331 = vmatpush1.bf16.msra.mxu0 %v2038
    %6332 = vmatprep.subr.bf16.mxu0 %v2051
    %6333 = vmatpush1.bf16.msra.mxu0 %v2050
    %6334 = vmatprep.subr.bf16.mxu0 %v2063
    %6335 = vmatpush1.bf16.msra.mxu0 %v2062
    %6336 = vmatprep.subr.bf16.mxu0 %v2075
    %6337 = vmatpush1.bf16.msra.mxu0 %v2074
    %6338 = vmatprep.subr.bf16.mxu0 %v2087
    %6339 = vmatpush1.bf16.msra.mxu0 %v2086
    %6340 = vmatprep.subr.bf16.mxu0 %v2099
    %6341 = vmatpush1.bf16.msra.mxu0 %v2098
    %6342 = vmatprep.subr.bf16.mxu0 %v2111
    %6343 = vmatpush1.bf16.msra.mxu0 %v2110
    %6344 = vmatprep.subr.bf16.mxu0 %v2123
    %6345 = vmatpush1.bf16.msra.mxu0 %v2122
    %6346 = vmatprep.subr.bf16.mxu0 %v2135
    %6347 = vmatpush1.bf16.msra.mxu0 %v2134
    %6348 = vmatprep.mubr.bf16.mxu0 %v6068
    %6349 = vmatmul.mubr.bf16.gmra.mrb[0].mxu0 %v6067
    %v6350 = vpop.f32.mrb[0].mxu0
    %v6351 = vadd.f32 0.0, %v6350
    %v6352 = vpop.f32.mrb[0].mxu0
    %v6353 = vadd.f32 0.0, %v6352
    %v6354 = vpop.f32.mrb[0].mxu0
    %v6355 = vpop.f32.mrb[0].mxu0
    %6356 = vdwg.mxu0
    %6357 = vmatprep.subr.bf16.mxu0 %v2147
    %6358 = vmatpush1.bf16.msra.mxu0 %v2146
    %6359 = vmatprep.subr.bf16.mxu0 %v2159
    %6360 = vmatpush1.bf16.msra.mxu0 %v2158
    %6361 = vmatprep.subr.bf16.mxu0 %v2171
    %6362 = vmatpush1.bf16.msra.mxu0 %v2170
    %6363 = vmatprep.subr.bf16.mxu0 %v2183
    %6364 = vmatpush1.bf16.msra.mxu0 %v2182
    %6365 = vmatprep.subr.bf16.mxu0 %v2195
    %6366 = vmatpush1.bf16.msra.mxu0 %v2194
    %6367 = vmatprep.subr.bf16.mxu0 %v2207
    %6368 = vmatpush1.bf16.msra.mxu0 %v2206
    %6369 = vmatprep.subr.bf16.mxu0 %v2219
    %6370 = vmatpush1.bf16.msra.mxu0 %v2218
    %6371 = vmatprep.subr.bf16.mxu0 %v2231
    %6372 = vmatpush1.bf16.msra.mxu0 %v2230
    %6373 = vmatprep.subr.bf16.mxu0 0
    %6374 = vmatpush1.bf16.msra.mxu0 0
    %6375 = vmatprep.subr.bf16.mxu0 0
    %6376 = vmatpush1.bf16.msra.mxu0 0
    %6377 = vmatprep.subr.bf16.mxu0 0
    %6378 = vmatpush1.bf16.msra.mxu0 0
    %6379 = vmatprep.subr.bf16.mxu0 0
    %6380 = vmatpush1.bf16.msra.mxu0 0
    %6381 = vmatprep.subr.bf16.mxu0 0
    %6382 = vmatpush1.bf16.msra.mxu0 0
    %6383 = vmatprep.subr.bf16.mxu0 0
    %6384 = vmatpush1.bf16.msra.mxu0 0
    %6385 = vmatprep.subr.bf16.mxu0 0
    %6386 = vmatpush1.bf16.msra.mxu0 0
    %6387 = vmatprep.subr.bf16.mxu0 0
    %6388 = vmatpush1.bf16.msra.mxu0 0
    %6389 = vmatprep.mubr.bf16.mxu0 0
    %6390 = vmatmul.mubr.bf16.gmra.mrb[0].mxu0 %v6069
    %v6391 = vpop.f32.mrb[0].mxu0
    %v6392 = vadd.f32 %v6351, %v6391
    %v6393 = vpop.f32.mrb[0].mxu0
    %v6394 = vadd.f32 %v6353, %v6393
    %v6395 = vpop.f32.mrb[0].mxu0
    %v6396 = vpop.f32.mrb[0].mxu0
    %6397 = vdwg.mxu0
    %6398 = vmatprep.subr.bf16.mxu0 %v1957
    %6399 = vmatpush1.bf16.msra.mxu0 %v1956
    %6400 = vmatprep.subr.bf16.mxu0 %v1969
    %6401 = vmatpush1.bf16.msra.mxu0 %v1968
    %6402 = vmatprep.subr.bf16.mxu0 %v1981
    %6403 = vmatpush1.bf16.msra.mxu0 %v1980
    %6404 = vmatprep.subr.bf16.mxu0 %v1993
    %6405 = vmatpush1.bf16.msra.mxu0 %v1992
    %6406 = vmatprep.subr.bf16.mxu0 %v2005
    %6407 = vmatpush1.bf16.msra.mxu0 %v2004
    %6408 = vmatprep.subr.bf16.mxu0 %v2017
    %6409 = vmatpush1.bf16.msra.mxu0 %v2016
    %6410 = vmatprep.subr.bf16.mxu0 %v2029
    %6411 = vmatpush1.bf16.msra.mxu0 %v2028
    %6412 = vmatprep.subr.bf16.mxu0 %v2041
    %6413 = vmatpush1.bf16.msra.mxu0 %v2040
    %6414 = vmatprep.subr.bf16.mxu0 %v2053
    %6415 = vmatpush1.bf16.msra.mxu0 %v2052
    %6416 = vmatprep.subr.bf16.mxu0 %v2065
    %6417 = vmatpush1.bf16.msra.mxu0 %v2064
    %6418 = vmatprep.subr.bf16.mxu0 %v2077
    %6419 = vmatpush1.bf16.msra.mxu0 %v2076
    %6420 = vmatprep.subr.bf16.mxu0 %v2089
    %6421 = vmatpush1.bf16.msra.mxu0 %v2088
    %6422 = vmatprep.subr.bf16.mxu0 %v2101
    %6423 = vmatpush1.bf16.msra.mxu0 %v2100
    %6424 = vmatprep.subr.bf16.mxu0 %v2113
    %6425 = vmatpush1.bf16.msra.mxu0 %v2112
    %6426 = vmatprep.subr.bf16.mxu0 %v2125
    %6427 = vmatpush1.bf16.msra.mxu0 %v2124
    %6428 = vmatprep.subr.bf16.mxu0 %v2137
    %6429 = vmatpush1.bf16.msra.mxu0 %v2136
    %6430 = vmatprep.mubr.bf16.mxu0 %v6068
    %6431 = vmatmul.mubr.bf16.gmra.mrb[0].mxu0 %v6067
    %v6432 = vpop.f32.mrb[0].mxu0
    %v6433 = vadd.f32 0.0, %v6432
    %v6434 = vpop.f32.mrb[0].mxu0
    %v6435 = vadd.f32 0.0, %v6434
    %v6436 = vpop.f32.mrb[0].mxu0
    %v6437 = vpop.f32.mrb[0].mxu0
    %6438 = vdwg.mxu0
    %6439 = vmatprep.subr.bf16.mxu0 %v2149
    %6440 = vmatpush1.bf16.msra.mxu0 %v2148
    %6441 = vmatprep.subr.bf16.mxu0 %v2161
    %6442 = vmatpush1.bf16.msra.mxu0 %v2160
    %6443 = vmatprep.subr.bf16.mxu0 %v2173
    %6444 = vmatpush1.bf16.msra.mxu0 %v2172
    %6445 = vmatprep.subr.bf16.mxu0 %v2185
    %6446 = vmatpush1.bf16.msra.mxu0 %v2184
    %6447 = vmatprep.subr.bf16.mxu0 %v2197
    %6448 = vmatpush1.bf16.msra.mxu0 %v2196
    %6449 = vmatprep.subr.bf16.mxu0 %v2209
    %6450 = vmatpush1.bf16.msra.mxu0 %v2208
    %6451 = vmatprep.subr.bf16.mxu0 %v2221
    %6452 = vmatpush1.bf16.msra.mxu0 %v2220
    %6453 = vmatprep.subr.bf16.mxu0 %v2233
    %6454 = vmatpush1.bf16.msra.mxu0 %v2232
    %6455 = vmatprep.subr.bf16.mxu0 0
    %6456 = vmatpush1.bf16.msra.mxu0 0
    %6457 = vmatprep.subr.bf16.mxu0 0
    %6458 = vmatpush1.bf16.msra.mxu0 0
    %6459 = vmatprep.subr.bf16.mxu0 0
    %6460 = vmatpush1.bf16.msra.mxu0 0
    %6461 = vmatprep.subr.bf16.mxu0 0
    %6462 = vmatpush1.bf16.msra.mxu0 0
    %6463 = vmatprep.subr.bf16.mxu0 0
    %6464 = vmatpush1.bf16.msra.mxu0 0
    %6465 = vmatprep.subr.bf16.mxu0 0
    %6466 = vmatpush1.bf16.msra.mxu0 0
    %6467 = vmatprep.subr.bf16.mxu0 0
    %6468 = vmatpush1.bf16.msra.mxu0 0
    %6469 = vmatprep.subr.bf16.mxu0 0
    %6470 = vmatpush1.bf16.msra.mxu0 0
    %6471 = vmatprep.mubr.bf16.mxu0 0
    %6472 = vmatmul.mubr.bf16.gmra.mrb[0].mxu0 %v6069
    %v6473 = vpop.f32.mrb[0].mxu0
    %v6474 = vadd.f32 %v6433, %v6473
    %v6475 = vpop.f32.mrb[0].mxu0
    %v6476 = vadd.f32 %v6435, %v6475
    %v6477 = vpop.f32.mrb[0].mxu0
    %v6478 = vpop.f32.mrb[0].mxu0
    %6479 = vdwg.mxu0
    %6480 = vmatprep.subr.bf16.mxu0 %v1959
    %6481 = vmatpush1.bf16.msra.mxu0 %v1958
    %6482 = vmatprep.subr.bf16.mxu0 %v1971
    %6483 = vmatpush1.bf16.msra.mxu0 %v1970
    %6484 = vmatprep.subr.bf16.mxu0 %v1983
    %6485 = vmatpush1.bf16.msra.mxu0 %v1982
    %6486 = vmatprep.subr.bf16.mxu0 %v1995
    %6487 = vmatpush1.bf16.msra.mxu0 %v1994
    %6488 = vmatprep.subr.bf16.mxu0 %v2007
    %6489 = vmatpush1.bf16.msra.mxu0 %v2006
    %6490 = vmatprep.subr.bf16.mxu0 %v2019
    %6491 = vmatpush1.bf16.msra.mxu0 %v2018
    %6492 = vmatprep.subr.bf16.mxu0 %v2031
    %6493 = vmatpush1.bf16.msra.mxu0 %v2030
    %6494 = vmatprep.subr.bf16.mxu0 %v2043
    %6495 = vmatpush1.bf16.msra.mxu0 %v2042
    %6496 = vmatprep.subr.bf16.mxu0 %v2055
    %6497 = vmatpush1.bf16.msra.mxu0 %v2054
    %6498 = vmatprep.subr.bf16.mxu0 %v2067
    %6499 = vmatpush1.bf16.msra.mxu0 %v2066
    %6500 = vmatprep.subr.bf16.mxu0 %v2079
    %6501 = vmatpush1.bf16.msra.mxu0 %v2078
    %6502 = vmatprep.subr.bf16.mxu0 %v2091
    %6503 = vmatpush1.bf16.msra.mxu0 %v2090
    %6504 = vmatprep.subr.bf16.mxu0 %v2103
    %6505 = vmatpush1.bf16.msra.mxu0 %v2102
    %6506 = vmatprep.subr.bf16.mxu0 %v2115
    %6507 = vmatpush1.bf16.msra.mxu0 %v2114
    %6508 = vmatprep.subr.bf16.mxu0 %v2127
    %6509 = vmatpush1.bf16.msra.mxu0 %v2126
    %6510 = vmatprep.subr.bf16.mxu0 %v2139
    %6511 = vmatpush1.bf16.msra.mxu0 %v2138
    %6512 = vmatprep.mubr.bf16.mxu0 %v6068
    %6513 = vmatmul.mubr.bf16.gmra.mrb[0].mxu0 %v6067
    %v6514 = vpop.f32.mrb[0].mxu0
    %v6515 = vadd.f32 0.0, %v6514
    %v6516 = vpop.f32.mrb[0].mxu0
    %v6517 = vadd.f32 0.0, %v6516
    %v6518 = vpop.f32.mrb[0].mxu0
    %v6519 = vpop.f32.mrb[0].mxu0
    %6520 = vdwg.mxu0
    %6521 = vmatprep.subr.bf16.mxu0 %v2151
    %6522 = vmatpush1.bf16.msra.mxu0 %v2150
    %6523 = vmatprep.subr.bf16.mxu0 %v2163
    %6524 = vmatpush1.bf16.msra.mxu0 %v2162
    %6525 = vmatprep.subr.bf16.mxu0 %v2175
    %6526 = vmatpush1.bf16.msra.mxu0 %v2174
    %6527 = vmatprep.subr.bf16.mxu0 %v2187
    %6528 = vmatpush1.bf16.msra.mxu0 %v2186
    %6529 = vmatprep.subr.bf16.mxu0 %v2199
    %6530 = vmatpush1.bf16.msra.mxu0 %v2198
    %6531 = vmatprep.subr.bf16.mxu0 %v2211
    %6532 = vmatpush1.bf16.msra.mxu0 %v2210
    %6533 = vmatprep.subr.bf16.mxu0 %v2223
    %6534 = vmatpush1.bf16.msra.mxu0 %v2222
    %6535 = vmatprep.subr.bf16.mxu0 %v2235
    %6536 = vmatpush1.bf16.msra.mxu0 %v2234
    %6537 = vmatprep.subr.bf16.mxu0 0
    %6538 = vmatpush1.bf16.msra.mxu0 0
    %6539 = vmatprep.subr.bf16.mxu0 0
    %6540 = vmatpush1.bf16.msra.mxu0 0
    %6541 = vmatprep.subr.bf16.mxu0 0
    %6542 = vmatpush1.bf16.msra.mxu0 0
    %6543 = vmatprep.subr.bf16.mxu0 0
    %6544 = vmatpush1.bf16.msra.mxu0 0
    %6545 = vmatprep.subr.bf16.mxu0 0
    %6546 = vmatpush1.bf16.msra.mxu0 0
    %6547 = vmatprep.subr.bf16.mxu0 0
    %6548 = vmatpush1.bf16.msra.mxu0 0
    %6549 = vmatprep.subr.bf16.mxu0 0
    %6550 = vmatpush1.bf16.msra.mxu0 0
    %6551 = vmatprep.subr.bf16.mxu0 0
    %6552 = vmatpush1.bf16.msra.mxu0 0
    %6553 = vmatprep.mubr.bf16.mxu0 0
    %6554 = vmatmul.mubr.bf16.gmra.mrb[0].mxu0 %v6069
    %v6555 = vpop.f32.mrb[0].mxu0
    %v6556 = vadd.f32 %v6515, %v6555
    %v6557 = vpop.f32.mrb[0].mxu0
    %v6558 = vadd.f32 %v6517, %v6557
    %v6559 = vpop.f32.mrb[0].mxu0
    %v6560 = vpop.f32.mrb[0].mxu0
    %6561 = vdwg.mxu0
    %v6562 = vadd.f32 %v6055, %v6146
    %v6563 = vadd.f32 %v6056, %v6148
    %v6564 = vadd.f32 %v6057, %v6228
    %v6565 = vadd.f32 %v6058, %v6230
    %v6566 = vadd.f32 %v6059, %v6310
    %v6567 = vadd.f32 %v6060, %v6312
    %v6568 = vadd.f32 %v6061, %v6392
    %v6569 = vadd.f32 %v6062, %v6394
    %v6570 = vadd.f32 %v6063, %v6474
    %v6571 = vadd.f32 %v6064, %v6476
    %v6572 = vadd.f32 %v6065, %v6556
    %v6573 = vadd.f32 %v6066, %v6558
    %v6574 = vxor.u32 %v6562, 2147483648
    %v6575 = vxor.u32 %v6563, 2147483648
    %v6576 = vxor.u32 %v6564, 2147483648
    %v6577 = vxor.u32 %v6565, 2147483648
    %v6578 = vxor.u32 %v6566, 2147483648
    %v6579 = vxor.u32 %v6567, 2147483648
    %v6580 = vxor.u32 %v6568, 2147483648
    %v6581 = vxor.u32 %v6569, 2147483648
    %v6582 = vxor.u32 %v6570, 2147483648
    %v6583 = vmul.f32 %v6574, 1.442695
    %v6584 = vpow.pop %v6583
    %v6585 = vmul.f32 %v6575, 1.442695
    %v6586 = vpow.pop %v6585
    %v6587 = vmul.f32 %v6576, 1.442695
    %v6588 = vpow.pop %v6587
    %v6589 = vmul.f32 %v6577, 1.442695
    %v6590 = vpow.pop %v6589
    %v6591 = vmul.f32 %v6578, 1.442695
    %v6592 = vpow.pop %v6591
    %v6593 = vmul.f32 %v6579, 1.442695
    %v6594 = vpow.pop %v6593
    %v6595 = vmul.f32 %v6580, 1.442695
    %v6596 = vpow.pop %v6595
    %v6597 = vmul.f32 %v6581, 1.442695
    %v6598 = vpow.pop %v6597
    %v6599 = vmul.f32 %v6582, 1.442695
    %v6600 = vpow.pop %v6599
    %v6601 = vadd.f32 %v6584, 1.0
    %v6602 = vadd.f32 %v6586, 1.0
    %v6603 = vadd.f32 %v6588, 1.0
    %v6604 = vadd.f32 %v6590, 1.0
    %v6605 = vadd.f32 %v6592, 1.0
    %v6606 = vadd.f32 %v6594, 1.0
    %v6607 = vadd.f32 %v6596, 1.0
    %v6608 = vadd.f32 %v6598, 1.0
    %v6609 = vadd.f32 %v6600, 1.0
    %v6610 = vrcp.pop %v6601
    %v6611 = vmul.f32 1.0, %v6610
    %v6612 = vrcp.pop %v6602
    %v6613 = vmul.f32 1.0, %v6612
    %v6614 = vrcp.pop %v6603
    %v6615 = vmul.f32 1.0, %v6614
    %v6616 = vrcp.pop %v6604
    %v6617 = vmul.f32 1.0, %v6616
    %v6618 = vrcp.pop %v6605
    %v6619 = vmul.f32 1.0, %v6618
    %v6620 = vrcp.pop %v6606
    %v6621 = vmul.f32 1.0, %v6620
    %v6622 = vrcp.pop %v6607
    %v6623 = vmul.f32 1.0, %v6622
    %v6624 = vrcp.pop %v6608
    %v6625 = vmul.f32 1.0, %v6624
    %v6626 = vrcp.pop %v6609
    %v6627 = vmul.f32 1.0, %v6626
    %v6628 = vtanh.pop %v6571
    %v6629 = vtanh.pop %v6572
    %v6630 = vtanh.pop %v6573
    %v6631 = vmul.f32 %v6617, %v6046
    %v6632 = vmul.f32 %v6619, %v6047
    %v6633 = vmul.f32 %v6621, %v6048
    %v6634 = vmul.f32 %v6611, %v6628
    %v6635 = vmul.f32 %v6613, %v6629
    %v6636 = vmul.f32 %v6615, %v6630
    %v6637 = vadd.f32 %v6631, %v6634
    %v6638 = vadd.f32 %v6632, %v6635
    %v6639 = vadd.f32 %v6633, %v6636
    %v6640 = vtanh.pop %v6637
    %v6641 = vtanh.pop %v6638
    %v6642 = vtanh.pop %v6639
    %v6643 = vmul.f32 %v6623, %v6640
    %v6644 = vmul.f32 %v6625, %v6641
    %v6645 = vmul.f32 %v6627, %v6642
    %v6646 = vld [vmem:[#allocation2 + $0x2a0] sm:$0xff]
    %v6647 = vld [vmem:[#allocation2 + $0x2a8] sm:$0xff]
    %v6648 = vld [vmem:[#allocation2 + $0x2b0] sm:$0xff]
    %v6649 = vld [vmem:[#allocation2 + $0x2b8] sm:$0xff]
    %v6650 = vld [vmem:[#allocation2 + $0x2c0] sm:$0xff]
    %v6651 = vld [vmem:[#allocation2 + $0x2c8] sm:$0xff]
    %v6652 = vld [vmem:[#allocation2 + $0x2d0] sm:$0xff]
    %v6653 = vld [vmem:[#allocation2 + $0x2d8] sm:$0xff]
    %v6654 = vld [vmem:[#allocation2 + $0x2e0] sm:$0xff]
    %v6655 = vld [vmem:[#allocation2 + $0x2e8] sm:$0xff]
    %v6656 = vld [vmem:[#allocation2 + $0x2f0] sm:$0xff]
    %v6657 = vld [vmem:[#allocation2 + $0x2f8] sm:$0xff]
    %v6658 = vpack.c.bf16 %v6643, %v6643
    %v6659 = vpack.c.bf16 %v6644, %v6644
    %v6660 = vpack.c.bf16 %v6645, %v6645
    %6661 = vmatprep.subr.bf16.mxu0 %v1949
    %6662 = vmatpush1.bf16.msra.mxu0 %v1948
    %6663 = vmatprep.subr.bf16.mxu0 %v1961
    %6664 = vmatpush1.bf16.msra.mxu0 %v1960
    %6665 = vmatprep.subr.bf16.mxu0 %v1973
    %6666 = vmatpush1.bf16.msra.mxu0 %v1972
    %6667 = vmatprep.subr.bf16.mxu0 %v1985
    %6668 = vmatpush1.bf16.msra.mxu0 %v1984
    %6669 = vmatprep.subr.bf16.mxu0 %v1997
    %6670 = vmatpush1.bf16.msra.mxu0 %v1996
    %6671 = vmatprep.subr.bf16.mxu0 %v2009
    %6672 = vmatpush1.bf16.msra.mxu0 %v2008
    %6673 = vmatprep.subr.bf16.mxu0 %v2021
    %6674 = vmatpush1.bf16.msra.mxu0 %v2020
    %6675 = vmatprep.subr.bf16.mxu0 %v2033
    %6676 = vmatpush1.bf16.msra.mxu0 %v2032
    %6677 = vmatprep.subr.bf16.mxu0 %v2045
    %6678 = vmatpush1.bf16.msra.mxu0 %v2044
    %6679 = vmatprep.subr.bf16.mxu0 %v2057
    %6680 = vmatpush1.bf16.msra.mxu0 %v2056
    %6681 = vmatprep.subr.bf16.mxu0 %v2069
    %6682 = vmatpush1.bf16.msra.mxu0 %v2068
    %6683 = vmatprep.subr.bf16.mxu0 %v2081
    %6684 = vmatpush1.bf16.msra.mxu0 %v2080
    %6685 = vmatprep.subr.bf16.mxu0 %v2093
    %6686 = vmatpush1.bf16.msra.mxu0 %v2092
    %6687 = vmatprep.subr.bf16.mxu0 %v2105
    %6688 = vmatpush1.bf16.msra.mxu0 %v2104
    %6689 = vmatprep.subr.bf16.mxu0 %v2117
    %6690 = vmatpush1.bf16.msra.mxu0 %v2116
    %6691 = vmatprep.subr.bf16.mxu0 %v2129
    %6692 = vmatpush1.bf16.msra.mxu0 %v2128
    %6693 = vmatprep.mubr.bf16.mxu0 %v6659
    %6694 = vmatmul.mubr.bf16.gmra.mrb[0].mxu0 %v6658
    %v6695 = vpop.f32.mrb[0].mxu0
    %v6696 = vadd.f32 0.0, %v6695
    %v6697 = vpop.f32.mrb[0].mxu0
    %v6698 = vadd.f32 0.0, %v6697
    %v6699 = vpop.f32.mrb[0].mxu0
    %v6700 = vpop.f32.mrb[0].mxu0
    %6701 = vdwg.mxu0
    %6702 = vmatprep.subr.bf16.mxu0 %v2141
    %6703 = vmatpush1.bf16.msra.mxu0 %v2140
    %6704 = vmatprep.subr.bf16.mxu0 %v2153
    %6705 = vmatpush1.bf16.msra.mxu0 %v2152
    %6706 = vmatprep.subr.bf16.mxu0 %v2165
    %6707 = vmatpush1.bf16.msra.mxu0 %v2164
    %6708 = vmatprep.subr.bf16.mxu0 %v2177
    %6709 = vmatpush1.bf16.msra.mxu0 %v2176
    %6710 = vmatprep.subr.bf16.mxu0 %v2189
    %6711 = vmatpush1.bf16.msra.mxu0 %v2188
    %6712 = vmatprep.subr.bf16.mxu0 %v2201
    %6713 = vmatpush1.bf16.msra.mxu0 %v2200
    %6714 = vmatprep.subr.bf16.mxu0 %v2213
    %6715 = vmatpush1.bf16.msra.mxu0 %v2212
    %6716 = vmatprep.subr.bf16.mxu0 %v2225
    %6717 = vmatpush1.bf16.msra.mxu0 %v2224
    %6718 = vmatprep.subr.bf16.mxu0 0
    %6719 = vmatpush1.bf16.msra.mxu0 0
    %6720 = vmatprep.subr.bf16.mxu0 0
    %6721 = vmatpush1.bf16.msra.mxu0 0
    %6722 = vmatprep.subr.bf16.mxu0 0
    %6723 = vmatpush1.bf16.msra.mxu0 0
    %6724 = vmatprep.subr.bf16.mxu0 0
    %6725 = vmatpush1.bf16.msra.mxu0 0
    %6726 = vmatprep.subr.bf16.mxu0 0
    %6727 = vmatpush1.bf16.msra.mxu0 0
    %6728 = vmatprep.subr.bf16.mxu0 0
    %6729 = vmatpush1.bf16.msra.mxu0 0
    %6730 = vmatprep.subr.bf16.mxu0 0
    %6731 = vmatpush1.bf16.msra.mxu0 0
    %6732 = vmatprep.subr.bf16.mxu0 0
    %6733 = vmatpush1.bf16.msra.mxu0 0
    %6734 = vmatprep.mubr.bf16.mxu0 0
    %6735 = vmatmul.mubr.bf16.gmra.mrb[0].mxu0 %v6660
    %v6736 = vpop.f32.mrb[0].mxu0
    %v6737 = vadd.f32 %v6696, %v6736
    %v6738 = vpop.f32.mrb[0].mxu0
    %v6739 = vadd.f32 %v6698, %v6738
    %v6740 = vpop.f32.mrb[0].mxu0
    %v6741 = vpop.f32.mrb[0].mxu0
    %6742 = vdwg.mxu0
    %6743 = vmatprep.subr.bf16.mxu0 %v1951
    %6744 = vmatpush1.bf16.msra.mxu0 %v1950
    %6745 = vmatprep.subr.bf16.mxu0 %v1963
    %6746 = vmatpush1.bf16.msra.mxu0 %v1962
    %6747 = vmatprep.subr.bf16.mxu0 %v1975
    %6748 = vmatpush1.bf16.msra.mxu0 %v1974
    %6749 = vmatprep.subr.bf16.mxu0 %v1987
    %6750 = vmatpush1.bf16.msra.mxu0 %v1986
    %6751 = vmatprep.subr.bf16.mxu0 %v1999
    %6752 = vmatpush1.bf16.msra.mxu0 %v1998
    %6753 = vmatprep.subr.bf16.mxu0 %v2011
    %6754 = vmatpush1.bf16.msra.mxu0 %v2010
    %6755 = vmatprep.subr.bf16.mxu0 %v2023
    %6756 = vmatpush1.bf16.msra.mxu0 %v2022
    %6757 = vmatprep.subr.bf16.mxu0 %v2035
    %6758 = vmatpush1.bf16.msra.mxu0 %v2034
    %6759 = vmatprep.subr.bf16.mxu0 %v2047
    %6760 = vmatpush1.bf16.msra.mxu0 %v2046
    %6761 = vmatprep.subr.bf16.mxu0 %v2059
    %6762 = vmatpush1.bf16.msra.mxu0 %v2058
    %6763 = vmatprep.subr.bf16.mxu0 %v2071
    %6764 = vmatpush1.bf16.msra.mxu0 %v2070
    %6765 = vmatprep.subr.bf16.mxu0 %v2083
    %6766 = vmatpush1.bf16.msra.mxu0 %v2082
    %6767 = vmatprep.subr.bf16.mxu0 %v2095
    %6768 = vmatpush1.bf16.msra.mxu0 %v2094
    %6769 = vmatprep.subr.bf16.mxu0 %v2107
    %6770 = vmatpush1.bf16.msra.mxu0 %v2106
    %6771 = vmatprep.subr.bf16.mxu0 %v2119
    %6772 = vmatpush1.bf16.msra.mxu0 %v2118
    %6773 = vmatprep.subr.bf16.mxu0 %v2131
    %6774 = vmatpush1.bf16.msra.mxu0 %v2130
    %6775 = vmatprep.mubr.bf16.mxu0 %v6659
    %6776 = vmatmul.mubr.bf16.gmra.mrb[0].mxu0 %v6658
    %v6777 = vpop.f32.mrb[0].mxu0
    %v6778 = vadd.f32 0.0, %v6777
    %v6779 = vpop.f32.mrb[0].mxu0
    %v6780 = vadd.f32 0.0, %v6779
    %v6781 = vpop.f32.mrb[0].mxu0
    %v6782 = vpop.f32.mrb[0].mxu0
    %6783 = vdwg.mxu0
    %6784 = vmatprep.subr.bf16.mxu0 %v2143
    %6785 = vmatpush1.bf16.msra.mxu0 %v2142
    %6786 = vmatprep.subr.bf16.mxu0 %v2155
    %6787 = vmatpush1.bf16.msra.mxu0 %v2154
    %6788 = vmatprep.subr.bf16.mxu0 %v2167
    %6789 = vmatpush1.bf16.msra.mxu0 %v2166
    %6790 = vmatprep.subr.bf16.mxu0 %v2179
    %6791 = vmatpush1.bf16.msra.mxu0 %v2178
    %6792 = vmatprep.subr.bf16.mxu0 %v2191
    %6793 = vmatpush1.bf16.msra.mxu0 %v2190
    %6794 = vmatprep.subr.bf16.mxu0 %v2203
    %6795 = vmatpush1.bf16.msra.mxu0 %v2202
    %6796 = vmatprep.subr.bf16.mxu0 %v2215
    %6797 = vmatpush1.bf16.msra.mxu0 %v2214
    %6798 = vmatprep.subr.bf16.mxu0 %v2227
    %6799 = vmatpush1.bf16.msra.mxu0 %v2226
    %6800 = vmatprep.subr.bf16.mxu0 0
    %6801 = vmatpush1.bf16.msra.mxu0 0
    %6802 = vmatprep.subr.bf16.mxu0 0
    %6803 = vmatpush1.bf16.msra.mxu0 0
    %6804 = vmatprep.subr.bf16.mxu0 0
    %6805 = vmatpush1.bf16.msra.mxu0 0
    %6806 = vmatprep.subr.bf16.mxu0 0
    %6807 = vmatpush1.bf16.msra.mxu0 0
    %6808 = vmatprep.subr.bf16.mxu0 0
    %6809 = vmatpush1.bf16.msra.mxu0 0
    %6810 = vmatprep.subr.bf16.mxu0 0
    %6811 = vmatpush1.bf16.msra.mxu0 0
    %6812 = vmatprep.subr.bf16.mxu0 0
    %6813 = vmatpush1.bf16.msra.mxu0 0
    %6814 = vmatprep.subr.bf16.mxu0 0
    %6815 = vmatpush1.bf16.msra.mxu0 0
    %6816 = vmatprep.mubr.bf16.mxu0 0
    %6817 = vmatmul.mubr.bf16.gmra.mrb[0].mxu0 %v6660
    %v6818 = vpop.f32.mrb[0].mxu0
    %v6819 = vadd.f32 %v6778, %v6818
    %v6820 = vpop.f32.mrb[0].mxu0
    %v6821 = vadd.f32 %v6780, %v6820
    %v6822 = vpop.f32.mrb[0].mxu0
    %v6823 = vpop.f32.mrb[0].mxu0
    %6824 = vdwg.mxu0
    %6825 = vmatprep.subr.bf16.mxu0 %v1953
    %6826 = vmatpush1.bf16.msra.mxu0 %v1952
    %6827 = vmatprep.subr.bf16.mxu0 %v1965
    %6828 = vmatpush1.bf16.msra.mxu0 %v1964
    %6829 = vmatprep.subr.bf16.mxu0 %v1977
    %6830 = vmatpush1.bf16.msra.mxu0 %v1976
    %6831 = vmatprep.subr.bf16.mxu0 %v1989
    %6832 = vmatpush1.bf16.msra.mxu0 %v1988
    %6833 = vmatprep.subr.bf16.mxu0 %v2001
    %6834 = vmatpush1.bf16.msra.mxu0 %v2000
    %6835 = vmatprep.subr.bf16.mxu0 %v2013
    %6836 = vmatpush1.bf16.msra.mxu0 %v2012
    %6837 = vmatprep.subr.bf16.mxu0 %v2025
    %6838 = vmatpush1.bf16.msra.mxu0 %v2024
    %6839 = vmatprep.subr.bf16.mxu0 %v2037
    %6840 = vmatpush1.bf16.msra.mxu0 %v2036
    %6841 = vmatprep.subr.bf16.mxu0 %v2049
    %6842 = vmatpush1.bf16.msra.mxu0 %v2048
    %6843 = vmatprep.subr.bf16.mxu0 %v2061
    %6844 = vmatpush1.bf16.msra.mxu0 %v2060
    %6845 = vmatprep.subr.bf16.mxu0 %v2073
    %6846 = vmatpush1.bf16.msra.mxu0 %v2072
    %6847 = vmatprep.subr.bf16.mxu0 %v2085
    %6848 = vmatpush1.bf16.msra.mxu0 %v2084
    %6849 = vmatprep.subr.bf16.mxu0 %v2097
    %6850 = vmatpush1.bf16.msra.mxu0 %v2096
    %6851 = vmatprep.subr.bf16.mxu0 %v2109
    %6852 = vmatpush1.bf16.msra.mxu0 %v2108
    %6853 = vmatprep.subr.bf16.mxu0 %v2121
    %6854 = vmatpush1.bf16.msra.mxu0 %v2120
    %6855 = vmatprep.subr.bf16.mxu0 %v2133
    %6856 = vmatpush1.bf16.msra.mxu0 %v2132
    %6857 = vmatprep.mubr.bf16.mxu0 %v6659
    %6858 = vmatmul.mubr.bf16.gmra.mrb[0].mxu0 %v6658
    %v6859 = vpop.f32.mrb[0].mxu0
    %v6860 = vadd.f32 0.0, %v6859
    %v6861 = vpop.f32.mrb[0].mxu0
    %v6862 = vadd.f32 0.0, %v6861
    %v6863 = vpop.f32.mrb[0].mxu0
    %v6864 = vpop.f32.mrb[0].mxu0
    %6865 = vdwg.mxu0
    %6866 = vmatprep.subr.bf16.mxu0 %v2145
    %6867 = vmatpush1.bf16.msra.mxu0 %v2144
    %6868 = vmatprep.subr.bf16.mxu0 %v2157
    %6869 = vmatpush1.bf16.msra.mxu0 %v2156
    %6870 = vmatprep.subr.bf16.mxu0 %v2169
    %6871 = vmatpush1.bf16.msra.mxu0 %v2168
    %6872 = vmatprep.subr.bf16.mxu0 %v2181
    %6873 = vmatpush1.bf16.msra.mxu0 %v2180
    %6874 = vmatprep.subr.bf16.mxu0 %v2193
    %6875 = vmatpush1.bf16.msra.mxu0 %v2192
    %6876 = vmatprep.subr.bf16.mxu0 %v2205
    %6877 = vmatpush1.bf16.msra.mxu0 %v2204
    %6878 = vmatprep.subr.bf16.mxu0 %v2217
    %6879 = vmatpush1.bf16.msra.mxu0 %v2216
    %6880 = vmatprep.subr.bf16.mxu0 %v2229
    %6881 = vmatpush1.bf16.msra.mxu0 %v2228
    %6882 = vmatprep.subr.bf16.mxu0 0
    %6883 = vmatpush1.bf16.msra.mxu0 0
    %6884 = vmatprep.subr.bf16.mxu0 0
    %6885 = vmatpush1.bf16.msra.mxu0 0
    %6886 = vmatprep.subr.bf16.mxu0 0
    %6887 = vmatpush1.bf16.msra.mxu0 0
    %6888 = vmatprep.subr.bf16.mxu0 0
    %6889 = vmatpush1.bf16.msra.mxu0 0
    %6890 = vmatprep.subr.bf16.mxu0 0
    %6891 = vmatpush1.bf16.msra.mxu0 0
    %6892 = vmatprep.subr.bf16.mxu0 0
    %6893 = vmatpush1.bf16.msra.mxu0 0
    %6894 = vmatprep.subr.bf16.mxu0 0
    %6895 = vmatpush1.bf16.msra.mxu0 0
    %6896 = vmatprep.subr.bf16.mxu0 0
    %6897 = vmatpush1.bf16.msra.mxu0 0
    %6898 = vmatprep.mubr.bf16.mxu0 0
    %6899 = vmatmul.mubr.bf16.gmra.mrb[0].mxu0 %v6660
    %v6900 = vpop.f32.mrb[0].mxu0
    %v6901 = vadd.f32 %v6860, %v6900
    %v6902 = vpop.f32.mrb[0].mxu0
    %v6903 = vadd.f32 %v6862, %v6902
    %v6904 = vpop.f32.mrb[0].mxu0
    %v6905 = vpop.f32.mrb[0].mxu0
    %6906 = vdwg.mxu0
    %6907 = vmatprep.subr.bf16.mxu0 %v1955
    %6908 = vmatpush1.bf16.msra.mxu0 %v1954
    %6909 = vmatprep.subr.bf16.mxu0 %v1967
    %6910 = vmatpush1.bf16.msra.mxu0 %v1966
    %6911 = vmatprep.subr.bf16.mxu0 %v1979
    %6912 = vmatpush1.bf16.msra.mxu0 %v1978
    %6913 = vmatprep.subr.bf16.mxu0 %v1991
    %6914 = vmatpush1.bf16.msra.mxu0 %v1990
    %6915 = vmatprep.subr.bf16.mxu0 %v2003
    %6916 = vmatpush1.bf16.msra.mxu0 %v2002
    %6917 = vmatprep.subr.bf16.mxu0 %v2015
    %6918 = vmatpush1.bf16.msra.mxu0 %v2014
    %6919 = vmatprep.subr.bf16.mxu0 %v2027
    %6920 = vmatpush1.bf16.msra.mxu0 %v2026
    %6921 = vmatprep.subr.bf16.mxu0 %v2039
    %6922 = vmatpush1.bf16.msra.mxu0 %v2038
    %6923 = vmatprep.subr.bf16.mxu0 %v2051
    %6924 = vmatpush1.bf16.msra.mxu0 %v2050
    %6925 = vmatprep.subr.bf16.mxu0 %v2063
    %6926 = vmatpush1.bf16.msra.mxu0 %v2062
    %6927 = vmatprep.subr.bf16.mxu0 %v2075
    %6928 = vmatpush1.bf16.msra.mxu0 %v2074
    %6929 = vmatprep.subr.bf16.mxu0 %v2087
    %6930 = vmatpush1.bf16.msra.mxu0 %v2086
    %6931 = vmatprep.subr.bf16.mxu0 %v2099
    %6932 = vmatpush1.bf16.msra.mxu0 %v2098
    %6933 = vmatprep.subr.bf16.mxu0 %v2111
    %6934 = vmatpush1.bf16.msra.mxu0 %v2110
    %6935 = vmatprep.subr.bf16.mxu0 %v2123
    %6936 = vmatpush1.bf16.msra.mxu0 %v2122
    %6937 = vmatprep.subr.bf16.mxu0 %v2135
    %6938 = vmatpush1.bf16.msra.mxu0 %v2134
    %6939 = vmatprep.mubr.bf16.mxu0 %v6659
    %6940 = vmatmul.mubr.bf16.gmra.mrb[0].mxu0 %v6658
    %v6941 = vpop.f32.mrb[0].mxu0
    %v6942 = vadd.f32 0.0, %v6941
    %v6943 = vpop.f32.mrb[0].mxu0
    %v6944 = vadd.f32 0.0, %v6943
    %v6945 = vpop.f32.mrb[0].mxu0
    %v6946 = vpop.f32.mrb[0].mxu0
    %6947 = vdwg.mxu0
    %6948 = vmatprep.subr.bf16.mxu0 %v2147
    %6949 = vmatpush1.bf16.msra.mxu0 %v2146
    %6950 = vmatprep.subr.bf16.mxu0 %v2159
    %6951 = vmatpush1.bf16.msra.mxu0 %v2158
    %6952 = vmatprep.subr.bf16.mxu0 %v2171
    %6953 = vmatpush1.bf16.msra.mxu0 %v2170
    %6954 = vmatprep.subr.bf16.mxu0 %v2183
    %6955 = vmatpush1.bf16.msra.mxu0 %v2182
    %6956 = vmatprep.subr.bf16.mxu0 %v2195
    %6957 = vmatpush1.bf16.msra.mxu0 %v2194
    %6958 = vmatprep.subr.bf16.mxu0 %v2207
    %6959 = vmatpush1.bf16.msra.mxu0 %v2206
    %6960 = vmatprep.subr.bf16.mxu0 %v2219
    %6961 = vmatpush1.bf16.msra.mxu0 %v2218
    %6962 = vmatprep.subr.bf16.mxu0 %v2231
    %6963 = vmatpush1.bf16.msra.mxu0 %v2230
    %6964 = vmatprep.subr.bf16.mxu0 0
    %6965 = vmatpush1.bf16.msra.mxu0 0
    %6966 = vmatprep.subr.bf16.mxu0 0
    %6967 = vmatpush1.bf16.msra.mxu0 0
    %6968 = vmatprep.subr.bf16.mxu0 0
    %6969 = vmatpush1.bf16.msra.mxu0 0
    %6970 = vmatprep.subr.bf16.mxu0 0
    %6971 = vmatpush1.bf16.msra.mxu0 0
    %6972 = vmatprep.subr.bf16.mxu0 0
    %6973 = vmatpush1.bf16.msra.mxu0 0
    %6974 = vmatprep.subr.bf16.mxu0 0
    %6975 = vmatpush1.bf16.msra.mxu0 0
    %6976 = vmatprep.subr.bf16.mxu0 0
    %6977 = vmatpush1.bf16.msra.mxu0 0
    %6978 = vmatprep.subr.bf16.mxu0 0
    %6979 = vmatpush1.bf16.msra.mxu0 0
    %6980 = vmatprep.mubr.bf16.mxu0 0
    %6981 = vmatmul.mubr.bf16.gmra.mrb[0].mxu0 %v6660
    %v6982 = vpop.f32.mrb[0].mxu0
    %v6983 = vadd.f32 %v6942, %v6982
    %v6984 = vpop.f32.mrb[0].mxu0
    %v6985 = vadd.f32 %v6944, %v6984
    %v6986 = vpop.f32.mrb[0].mxu0
    %v6987 = vpop.f32.mrb[0].mxu0
    %6988 = vdwg.mxu0
    %6989 = vmatprep.subr.bf16.mxu0 %v1957
    %6990 = vmatpush1.bf16.msra.mxu0 %v1956
    %6991 = vmatprep.subr.bf16.mxu0 %v1969
    %6992 = vmatpush1.bf16.msra.mxu0 %v1968
    %6993 = vmatprep.subr.bf16.mxu0 %v1981
    %6994 = vmatpush1.bf16.msra.mxu0 %v1980
    %6995 = vmatprep.subr.bf16.mxu0 %v1993
    %6996 = vmatpush1.bf16.msra.mxu0 %v1992
    %6997 = vmatprep.subr.bf16.mxu0 %v2005
    %6998 = vmatpush1.bf16.msra.mxu0 %v2004
    %6999 = vmatprep.subr.bf16.mxu0 %v2017
    %7000 = vmatpush1.bf16.msra.mxu0 %v2016
    %7001 = vmatprep.subr.bf16.mxu0 %v2029
    %7002 = vmatpush1.bf16.msra.mxu0 %v2028
    %7003 = vmatprep.subr.bf16.mxu0 %v2041
    %7004 = vmatpush1.bf16.msra.mxu0 %v2040
    %7005 = vmatprep.subr.bf16.mxu0 %v2053
    %7006 = vmatpush1.bf16.msra.mxu0 %v2052
    %7007 = vmatprep.subr.bf16.mxu0 %v2065
    %7008 = vmatpush1.bf16.msra.mxu0 %v2064
    %7009 = vmatprep.subr.bf16.mxu0 %v2077
    %7010 = vmatpush1.bf16.msra.mxu0 %v2076
    %7011 = vmatprep.subr.bf16.mxu0 %v2089
    %7012 = vmatpush1.bf16.msra.mxu0 %v2088
    %7013 = vmatprep.subr.bf16.mxu0 %v2101
    %7014 = vmatpush1.bf16.msra.mxu0 %v2100
    %7015 = vmatprep.subr.bf16.mxu0 %v2113
    %7016 = vmatpush1.bf16.msra.mxu0 %v2112
    %7017 = vmatprep.subr.bf16.mxu0 %v2125
    %7018 = vmatpush1.bf16.msra.mxu0 %v2124
    %7019 = vmatprep.subr.bf16.mxu0 %v2137
    %7020 = vmatpush1.bf16.msra.mxu0 %v2136
    %7021 = vmatprep.mubr.bf16.mxu0 %v6659
    %7022 = vmatmul.mubr.bf16.gmra.mrb[0].mxu0 %v6658
    %v7023 = vpop.f32.mrb[0].mxu0
    %v7024 = vadd.f32 0.0, %v7023
    %v7025 = vpop.f32.mrb[0].mxu0
    %v7026 = vadd.f32 0.0, %v7025
    %v7027 = vpop.f32.mrb[0].mxu0
    %v7028 = vpop.f32.mrb[0].mxu0
    %7029 = vdwg.mxu0
    %7030 = vmatprep.subr.bf16.mxu0 %v2149
    %7031 = vmatpush1.bf16.msra.mxu0 %v2148
    %7032 = vmatprep.subr.bf16.mxu0 %v2161
    %7033 = vmatpush1.bf16.msra.mxu0 %v2160
    %7034 = vmatprep.subr.bf16.mxu0 %v2173
    %7035 = vmatpush1.bf16.msra.mxu0 %v2172
    %7036 = vmatprep.subr.bf16.mxu0 %v2185
    %7037 = vmatpush1.bf16.msra.mxu0 %v2184
    %7038 = vmatprep.subr.bf16.mxu0 %v2197
    %7039 = vmatpush1.bf16.msra.mxu0 %v2196
    %7040 = vmatprep.subr.bf16.mxu0 %v2209
    %7041 = vmatpush1.bf16.msra.mxu0 %v2208
    %7042 = vmatprep.subr.bf16.mxu0 %v2221
    %7043 = vmatpush1.bf16.msra.mxu0 %v2220
    %7044 = vmatprep.subr.bf16.mxu0 %v2233
    %7045 = vmatpush1.bf16.msra.mxu0 %v2232
    %7046 = vmatprep.subr.bf16.mxu0 0
    %7047 = vmatpush1.bf16.msra.mxu0 0
    %7048 = vmatprep.subr.bf16.mxu0 0
    %7049 = vmatpush1.bf16.msra.mxu0 0
    %7050 = vmatprep.subr.bf16.mxu0 0
    %7051 = vmatpush1.bf16.msra.mxu0 0
    %7052 = vmatprep.subr.bf16.mxu0 0
    %7053 = vmatpush1.bf16.msra.mxu0 0
    %7054 = vmatprep.subr.bf16.mxu0 0
    %7055 = vmatpush1.bf16.msra.mxu0 0
    %7056 = vmatprep.subr.bf16.mxu0 0
    %7057 = vmatpush1.bf16.msra.mxu0 0
    %7058 = vmatprep.subr.bf16.mxu0 0
    %7059 = vmatpush1.bf16.msra.mxu0 0
    %7060 = vmatprep.subr.bf16.mxu0 0
    %7061 = vmatpush1.bf16.msra.mxu0 0
    %7062 = vmatprep.mubr.bf16.mxu0 0
    %7063 = vmatmul.mubr.bf16.gmra.mrb[0].mxu0 %v6660
    %v7064 = vpop.f32.mrb[0].mxu0
    %v7065 = vadd.f32 %v7024, %v7064
    %v7066 = vpop.f32.mrb[0].mxu0
    %v7067 = vadd.f32 %v7026, %v7066
    %v7068 = vpop.f32.mrb[0].mxu0
    %v7069 = vpop.f32.mrb[0].mxu0
    %7070 = vdwg.mxu0
    %7071 = vmatprep.subr.bf16.mxu0 %v1959
    %7072 = vmatpush1.bf16.msra.mxu0 %v1958
    %7073 = vmatprep.subr.bf16.mxu0 %v1971
    %7074 = vmatpush1.bf16.msra.mxu0 %v1970
    %7075 = vmatprep.subr.bf16.mxu0 %v1983
    %7076 = vmatpush1.bf16.msra.mxu0 %v1982
    %7077 = vmatprep.subr.bf16.mxu0 %v1995
    %7078 = vmatpush1.bf16.msra.mxu0 %v1994
    %7079 = vmatprep.subr.bf16.mxu0 %v2007
    %7080 = vmatpush1.bf16.msra.mxu0 %v2006
    %7081 = vmatprep.subr.bf16.mxu0 %v2019
    %7082 = vmatpush1.bf16.msra.mxu0 %v2018
    %7083 = vmatprep.subr.bf16.mxu0 %v2031
    %7084 = vmatpush1.bf16.msra.mxu0 %v2030
    %7085 = vmatprep.subr.bf16.mxu0 %v2043
    %7086 = vmatpush1.bf16.msra.mxu0 %v2042
    %7087 = vmatprep.subr.bf16.mxu0 %v2055
    %7088 = vmatpush1.bf16.msra.mxu0 %v2054
    %7089 = vmatprep.subr.bf16.mxu0 %v2067
    %7090 = vmatpush1.bf16.msra.mxu0 %v2066
    %7091 = vmatprep.subr.bf16.mxu0 %v2079
    %7092 = vmatpush1.bf16.msra.mxu0 %v2078
    %7093 = vmatprep.subr.bf16.mxu0 %v2091
    %7094 = vmatpush1.bf16.msra.mxu0 %v2090
    %7095 = vmatprep.subr.bf16.mxu0 %v2103
    %7096 = vmatpush1.bf16.msra.mxu0 %v2102
    %7097 = vmatprep.subr.bf16.mxu0 %v2115
    %7098 = vmatpush1.bf16.msra.mxu0 %v2114
    %7099 = vmatprep.subr.bf16.mxu0 %v2127
    %7100 = vmatpush1.bf16.msra.mxu0 %v2126
    %7101 = vmatprep.subr.bf16.mxu0 %v2139
    %7102 = vmatpush1.bf16.msra.mxu0 %v2138
    %7103 = vmatprep.mubr.bf16.mxu0 %v6659
    %7104 = vmatmul.mubr.bf16.gmra.mrb[0].mxu0 %v6658
    %v7105 = vpop.f32.mrb[0].mxu0
    %v7106 = vadd.f32 0.0, %v7105
    %v7107 = vpop.f32.mrb[0].mxu0
    %v7108 = vadd.f32 0.0, %v7107
    %v7109 = vpop.f32.mrb[0].mxu0
    %v7110 = vpop.f32.mrb[0].mxu0
    %7111 = vdwg.mxu0
    %7112 = vmatprep.subr.bf16.mxu0 %v2151
    %7113 = vmatpush1.bf16.msra.mxu0 %v2150
    %7114 = vmatprep.subr.bf16.mxu0 %v2163
    %7115 = vmatpush1.bf16.msra.mxu0 %v2162
    %7116 = vmatprep.subr.bf16.mxu0 %v2175
    %7117 = vmatpush1.bf16.msra.mxu0 %v2174
    %7118 = vmatprep.subr.bf16.mxu0 %v2187
    %7119 = vmatpush1.bf16.msra.mxu0 %v2186
    %7120 = vmatprep.subr.bf16.mxu0 %v2199
    %7121 = vmatpush1.bf16.msra.mxu0 %v2198
    %7122 = vmatprep.subr.bf16.mxu0 %v2211
    %7123 = vmatpush1.bf16.msra.mxu0 %v2210
    %7124 = vmatprep.subr.bf16.mxu0 %v2223
    %7125 = vmatpush1.bf16.msra.mxu0 %v2222
    %7126 = vmatprep.subr.bf16.mxu0 %v2235
    %7127 = vmatpush1.bf16.msra.mxu0 %v2234
    %7128 = vmatprep.subr.bf16.mxu0 0
    %7129 = vmatpush1.bf16.msra.mxu0 0
    %7130 = vmatprep.subr.bf16.mxu0 0
    %7131 = vmatpush1.bf16.msra.mxu0 0
    %7132 = vmatprep.subr.bf16.mxu0 0
    %7133 = vmatpush1.bf16.msra.mxu0 0
    %7134 = vmatprep.subr.bf16.mxu0 0
    %7135 = vmatpush1.bf16.msra.mxu0 0
    %7136 = vmatprep.subr.bf16.mxu0 0
    %7137 = vmatpush1.bf16.msra.mxu0 0
    %7138 = vmatprep.subr.bf16.mxu0 0
    %7139 = vmatpush1.bf16.msra.mxu0 0
    %7140 = vmatprep.subr.bf16.mxu0 0
    %7141 = vmatpush1.bf16.msra.mxu0 0
    %7142 = vmatprep.subr.bf16.mxu0 0
    %7143 = vmatpush1.bf16.msra.mxu0 0
    %7144 = vmatprep.mubr.bf16.mxu0 0
    %7145 = vmatmul.mubr.bf16.gmra.mrb[0].mxu0 %v6660
    %v7146 = vpop.f32.mrb[0].mxu0
    %v7147 = vadd.f32 %v7106, %v7146
    %v7148 = vpop.f32.mrb[0].mxu0
    %v7149 = vadd.f32 %v7108, %v7148
    %v7150 = vpop.f32.mrb[0].mxu0
    %v7151 = vpop.f32.mrb[0].mxu0
    %7152 = vdwg.mxu0
    %v7153 = vadd.f32 %v6646, %v6737
    %v7154 = vadd.f32 %v6647, %v6739
    %v7155 = vadd.f32 %v6648, %v6819
    %v7156 = vadd.f32 %v6649, %v6821
    %v7157 = vadd.f32 %v6650, %v6901
    %v7158 = vadd.f32 %v6651, %v6903
    %v7159 = vadd.f32 %v6652, %v6983
    %v7160 = vadd.f32 %v6653, %v6985
    %v7161 = vadd.f32 %v6654, %v7065
    %v7162 = vadd.f32 %v6655, %v7067
    %v7163 = vadd.f32 %v6656, %v7147
    %v7164 = vadd.f32 %v6657, %v7149
    %v7165 = vxor.u32 %v7153, 2147483648
    %v7166 = vxor.u32 %v7154, 2147483648
    %v7167 = vxor.u32 %v7155, 2147483648
    %v7168 = vxor.u32 %v7156, 2147483648
    %v7169 = vxor.u32 %v7157, 2147483648
    %v7170 = vxor.u32 %v7158, 2147483648
    %v7171 = vxor.u32 %v7159, 2147483648
    %v7172 = vxor.u32 %v7160, 2147483648
    %v7173 = vxor.u32 %v7161, 2147483648
    %v7174 = vmul.f32 %v7165, 1.442695
    %v7175 = vpow.pop %v7174
    %v7176 = vmul.f32 %v7166, 1.442695
    %v7177 = vpow.pop %v7176
    %v7178 = vmul.f32 %v7167, 1.442695
    %v7179 = vpow.pop %v7178
    %v7180 = vmul.f32 %v7168, 1.442695
    %v7181 = vpow.pop %v7180
    %v7182 = vmul.f32 %v7169, 1.442695
    %v7183 = vpow.pop %v7182
    %v7184 = vmul.f32 %v7170, 1.442695
    %v7185 = vpow.pop %v7184
    %v7186 = vmul.f32 %v7171, 1.442695
    %v7187 = vpow.pop %v7186
    %v7188 = vmul.f32 %v7172, 1.442695
    %v7189 = vpow.pop %v7188
    %v7190 = vmul.f32 %v7173, 1.442695
    %v7191 = vpow.pop %v7190
    %v7192 = vadd.f32 %v7175, 1.0
    %v7193 = vadd.f32 %v7177, 1.0
    %v7194 = vadd.f32 %v7179, 1.0
    %v7195 = vadd.f32 %v7181, 1.0
    %v7196 = vadd.f32 %v7183, 1.0
    %v7197 = vadd.f32 %v7185, 1.0
    %v7198 = vadd.f32 %v7187, 1.0
    %v7199 = vadd.f32 %v7189, 1.0
    %v7200 = vadd.f32 %v7191, 1.0
    %v7201 = vrcp.pop %v7192
    %v7202 = vmul.f32 1.0, %v7201
    %v7203 = vrcp.pop %v7193
    %v7204 = vmul.f32 1.0, %v7203
    %v7205 = vrcp.pop %v7194
    %v7206 = vmul.f32 1.0, %v7205
    %v7207 = vrcp.pop %v7195
    %v7208 = vmul.f32 1.0, %v7207
    %v7209 = vrcp.pop %v7196
    %v7210 = vmul.f32 1.0, %v7209
    %v7211 = vrcp.pop %v7197
    %v7212 = vmul.f32 1.0, %v7211
    %v7213 = vrcp.pop %v7198
    %v7214 = vmul.f32 1.0, %v7213
    %v7215 = vrcp.pop %v7199
    %v7216 = vmul.f32 1.0, %v7215
    %v7217 = vrcp.pop %v7200
    %v7218 = vmul.f32 1.0, %v7217
    %v7219 = vtanh.pop %v7162
    %v7220 = vtanh.pop %v7163
    %v7221 = vtanh.pop %v7164
    %v7222 = vmul.f32 %v7208, %v6637
    %v7223 = vmul.f32 %v7210, %v6638
    %v7224 = vmul.f32 %v7212, %v6639
    %v7225 = vmul.f32 %v7202, %v7219
    %v7226 = vmul.f32 %v7204, %v7220
    %v7227 = vmul.f32 %v7206, %v7221
    %v7228 = vadd.f32 %v7222, %v7225
    %v7229 = vadd.f32 %v7223, %v7226
    %v7230 = vadd.f32 %v7224, %v7227
    %v7231 = vtanh.pop %v7228
    %v7232 = vtanh.pop %v7229
    %v7233 = vtanh.pop %v7230
    %v7234 = vmul.f32 %v7214, %v7231
    %v7235 = vmul.f32 %v7216, %v7232
    %v7236 = vmul.f32 %v7218, %v7233
    %v7237 = vmax.f32 %v7234, 0.0
    %v7238 = vmax.f32 %v7235, 0.0
    %v7239 = vmax.f32 %v7236, 0.0
    %v7240 = vpack.c.bf16 %v7237, %v7237
    %v7241 = vpack.c.bf16 %v7238, %v7238
    %v7242 = vpack.c.bf16 %v7239, %v7239
    %v7243 = vld [vmem:[#allocation9] sm:$0xf]
    %v7244 = vld [vmem:[#allocation9 + $0x4] sm:$0xf]
    %v7245 = vld [vmem:[#allocation9 + $0x8] sm:$0xf]
    %v7246 = vld [vmem:[#allocation9 + $0xc] sm:$0xf]
    %v7247 = vld [vmem:[#allocation9 + $0x10] sm:$0xf]
    %v7248 = vld [vmem:[#allocation9 + $0x14] sm:$0xf]
    %v7249 = vld [vmem:[#allocation9 + $0x18] sm:$0xf]
    %v7250 = vld [vmem:[#allocation9 + $0x1c] sm:$0xf]
    %v7251 = vld [vmem:[#allocation9 + $0x20] sm:$0xf]
    %v7252 = vld [vmem:[#allocation9 + $0x24] sm:$0xf]
    %v7253 = vld [vmem:[#allocation9 + $0x28] sm:$0xf]
    %v7254 = vld [vmem:[#allocation9 + $0x2c] sm:$0xf]
    %v7255 = vld [vmem:[#allocation9 + $0x30] sm:$0xf]
    %v7256 = vld [vmem:[#allocation9 + $0x34] sm:$0xf]
    %v7257 = vld [vmem:[#allocation9 + $0x38] sm:$0xf]
    %v7258 = vld [vmem:[#allocation9 + $0x3c] sm:$0xf]
    %v7259 = vld [vmem:[#allocation9 + $0x40] sm:$0xf]
    %v7260 = vld [vmem:[#allocation9 + $0x44] sm:$0xf]
    %v7261 = vld [vmem:[#allocation9 + $0x48] sm:$0xf]
    %v7262 = vld [vmem:[#allocation9 + $0x4c] sm:$0xf]
    %v7263 = vld [vmem:[#allocation9 + $0x50] sm:$0xf]
    %v7264 = vld [vmem:[#allocation9 + $0x54] sm:$0xf]
    %v7265 = vld [vmem:[#allocation9 + $0x58] sm:$0xf]
    %v7266 = vld [vmem:[#allocation9 + $0x5c] sm:$0xf]
    %v7267 = vld [vmem:[#allocation9 + $0x60] sm:$0xf]
    %v7268 = vld [vmem:[#allocation9 + $0x64] sm:$0xf]
    %v7269 = vld [vmem:[#allocation9 + $0x68] sm:$0xf]
    %v7270 = vld [vmem:[#allocation9 + $0x6c] sm:$0xf]
    %v7271 = vld [vmem:[#allocation9 + $0x70] sm:$0xf]
    %v7272 = vld [vmem:[#allocation9 + $0x74] sm:$0xf]
    %v7273 = vld [vmem:[#allocation9 + $0x78] sm:$0xf]
    %v7274 = vld [vmem:[#allocation9 + $0x7c] sm:$0xf]
    %v7275 = vld [vmem:[#allocation9 + $0x80] sm:$0xf]
    %v7276 = vld [vmem:[#allocation9 + $0x84] sm:$0xf]
    %v7277 = vld [vmem:[#allocation9 + $0x88] sm:$0xf]
    %v7278 = vld [vmem:[#allocation9 + $0x8c] sm:$0xf]
    %v7279 = vld [vmem:[#allocation9 + $0x90] sm:$0xf]
    %v7280 = vld [vmem:[#allocation9 + $0x94] sm:$0xf]
    %v7281 = vld [vmem:[#allocation9 + $0x98] sm:$0xf]
    %v7282 = vld [vmem:[#allocation9 + $0x9c] sm:$0xf]
    %v7283 = vld [vmem:[#allocation9 + $0xa0] sm:$0xf]
    %v7284 = vld [vmem:[#allocation9 + $0xa4] sm:$0xf]
    %v7285 = vld [vmem:[#allocation9 + $0xa8] sm:$0xf]
    %v7286 = vld [vmem:[#allocation9 + $0xac] sm:$0xf]
    %v7287 = vld [vmem:[#allocation9 + $0xb0] sm:$0xf]
    %v7288 = vld [vmem:[#allocation9 + $0xb4] sm:$0xf]
    %v7289 = vld [vmem:[#allocation9 + $0xb8] sm:$0xf]
    %v7290 = vld [vmem:[#allocation9 + $0xbc] sm:$0xf]
    %v7291 = vld [vmem:[#allocation11] sm:$0x1]
    %v7293 = vlaneseq
    %v7294 = vshrl.u32 %v7293, 7
    %v7295 = vsub.s32 0, %v7294
    %v7296 = vrot.slane %v7291, %v7295
    %v7346 = vunpack.c.l.b16 %v7243
    %v7347 = vunpack.c.l.b16 %v7244
    %v7348 = vunpack.c.l.b16 %v7245
    %v7349 = vunpack.c.l.b16 %v7246
    %v7350 = vunpack.c.l.b16 %v7247
    %v7351 = vunpack.c.l.b16 %v7248
    %v7352 = vunpack.c.l.b16 %v7249
    %v7353 = vunpack.c.l.b16 %v7250
    %v7354 = vunpack.c.l.b16 %v7251
    %v7355 = vunpack.c.l.b16 %v7252
    %v7356 = vunpack.c.l.b16 %v7253
    %v7357 = vunpack.c.l.b16 %v7254
    %v7358 = vunpack.c.l.b16 %v7255
    %v7359 = vunpack.c.l.b16 %v7256
    %v7360 = vunpack.c.l.b16 %v7257
    %v7361 = vunpack.c.l.b16 %v7258
    %v7362 = vunpack.c.l.b16 %v7259
    %v7363 = vunpack.c.l.b16 %v7260
    %v7364 = vunpack.c.l.b16 %v7261
    %v7365 = vunpack.c.l.b16 %v7262
    %v7366 = vunpack.c.l.b16 %v7263
    %v7367 = vunpack.c.l.b16 %v7264
    %v7368 = vunpack.c.l.b16 %v7265
    %v7369 = vunpack.c.l.b16 %v7266
    %v7370 = vunpack.c.l.b16 %v7267
    %v7371 = vunpack.c.l.b16 %v7268
    %v7372 = vunpack.c.l.b16 %v7269
    %v7373 = vunpack.c.l.b16 %v7270
    %v7374 = vunpack.c.l.b16 %v7271
    %v7375 = vunpack.c.l.b16 %v7272
    %v7376 = vunpack.c.l.b16 %v7273
    %v7377 = vunpack.c.l.b16 %v7274
    %v7378 = vunpack.c.l.b16 %v7275
    %v7379 = vunpack.c.l.b16 %v7276
    %v7380 = vunpack.c.l.b16 %v7277
    %v7381 = vunpack.c.l.b16 %v7278
    %v7382 = vunpack.c.l.b16 %v7279
    %v7383 = vunpack.c.l.b16 %v7280
    %v7384 = vunpack.c.l.b16 %v7281
    %v7385 = vunpack.c.l.b16 %v7282
    %v7386 = vunpack.c.l.b16 %v7283
    %v7387 = vunpack.c.l.b16 %v7284
    %v7388 = vunpack.c.l.b16 %v7285
    %v7389 = vunpack.c.l.b16 %v7286
    %v7390 = vunpack.c.l.b16 %v7287
    %v7391 = vunpack.c.l.b16 %v7288
    %v7392 = vunpack.c.l.b16 %v7289
    %v7393 = vunpack.c.l.b16 %v7290
    %v7394 = vpack.c.b16 %v7347, %v7346
    %v7395 = vpack.c.b16 %v7349, %v7348
    %v7396 = vpack.c.b16 %v7351, %v7350
    %v7397 = vpack.c.b16 %v7353, %v7352
    %v7398 = vpack.c.b16 %v7355, %v7354
    %v7399 = vpack.c.b16 %v7357, %v7356
    %v7400 = vpack.c.b16 %v7359, %v7358
    %v7401 = vpack.c.b16 %v7361, %v7360
    %v7402 = vpack.c.b16 %v7363, %v7362
    %v7403 = vpack.c.b16 %v7365, %v7364
    %v7404 = vpack.c.b16 %v7367, %v7366
    %v7405 = vpack.c.b16 %v7369, %v7368
    %v7406 = vpack.c.b16 %v7371, %v7370
    %v7407 = vpack.c.b16 %v7373, %v7372
    %v7408 = vpack.c.b16 %v7375, %v7374
    %v7409 = vpack.c.b16 %v7377, %v7376
    %v7410 = vpack.c.b16 %v7379, %v7378
    %v7411 = vpack.c.b16 %v7381, %v7380
    %v7412 = vpack.c.b16 %v7383, %v7382
    %v7413 = vpack.c.b16 %v7385, %v7384
    %v7414 = vpack.c.b16 %v7387, %v7386
    %v7415 = vpack.c.b16 %v7389, %v7388
    %v7416 = vpack.c.b16 %v7391, %v7390
    %v7417 = vpack.c.b16 %v7393, %v7392
    %7442 = vmatprep.subr.bf16.mxu0 0
    %7443 = vmatpush1.bf16.msra.mxu0 %v7394
    %7444 = vmatprep.subr.bf16.mxu0 0
    %7445 = vmatpush1.bf16.msra.mxu0 %v7395
    %7446 = vmatprep.subr.bf16.mxu0 0
    %7447 = vmatpush1.bf16.msra.mxu0 %v7396
    %7448 = vmatprep.subr.bf16.mxu0 0
    %7449 = vmatpush1.bf16.msra.mxu0 %v7397
    %7450 = vmatprep.subr.bf16.mxu0 0
    %7451 = vmatpush1.bf16.msra.mxu0 %v7398
    %7452 = vmatprep.subr.bf16.mxu0 0
    %7453 = vmatpush1.bf16.msra.mxu0 %v7399
    %7454 = vmatprep.subr.bf16.mxu0 0
    %7455 = vmatpush1.bf16.msra.mxu0 %v7400
    %7456 = vmatprep.subr.bf16.mxu0 0
    %7457 = vmatpush1.bf16.msra.mxu0 %v7401
    %7458 = vmatprep.subr.bf16.mxu0 0
    %7459 = vmatpush1.bf16.msra.mxu0 %v7402
    %7460 = vmatprep.subr.bf16.mxu0 0
    %7461 = vmatpush1.bf16.msra.mxu0 %v7403
    %7462 = vmatprep.subr.bf16.mxu0 0
    %7463 = vmatpush1.bf16.msra.mxu0 %v7404
    %7464 = vmatprep.subr.bf16.mxu0 0
    %7465 = vmatpush1.bf16.msra.mxu0 %v7405
    %7466 = vmatprep.subr.bf16.mxu0 0
    %7467 = vmatpush1.bf16.msra.mxu0 %v7406
    %7468 = vmatprep.subr.bf16.mxu0 0
    %7469 = vmatpush1.bf16.msra.mxu0 %v7407
    %7470 = vmatprep.subr.bf16.mxu0 0
    %7471 = vmatpush1.bf16.msra.mxu0 %v7408
    %7472 = vmatprep.subr.bf16.mxu0 0
    %7473 = vmatpush1.bf16.msra.mxu0 %v7409
    %7474 = vmatprep.mubr.bf16.mxu0 %v7241
    %7475 = vmatmul.mubr.bf16.gmra.mrb[0].mxu0 %v7240
    %v7476 = vpop.f32.mrb[0].mxu0
    %v7477 = vadd.f32 %v7296, %v7476
    %v7478 = vpop.f32.mrb[0].mxu0
    %v7479 = vpop.f32.mrb[0].mxu0
    %v7480 = vpop.f32.mrb[0].mxu0
    %7481 = vdwg.mxu0
    %7482 = vmatprep.subr.bf16.mxu0 0
    %7483 = vmatpush1.bf16.msra.mxu0 %v7410
    %7484 = vmatprep.subr.bf16.mxu0 0
    %7485 = vmatpush1.bf16.msra.mxu0 %v7411
    %7486 = vmatprep.subr.bf16.mxu0 0
    %7487 = vmatpush1.bf16.msra.mxu0 %v7412
    %7488 = vmatprep.subr.bf16.mxu0 0
    %7489 = vmatpush1.bf16.msra.mxu0 %v7413
    %7490 = vmatprep.subr.bf16.mxu0 0
    %7491 = vmatpush1.bf16.msra.mxu0 %v7414
    %7492 = vmatprep.subr.bf16.mxu0 0
    %7493 = vmatpush1.bf16.msra.mxu0 %v7415
    %7494 = vmatprep.subr.bf16.mxu0 0
    %7495 = vmatpush1.bf16.msra.mxu0 %v7416
    %7496 = vmatprep.subr.bf16.mxu0 0
    %7497 = vmatpush1.bf16.msra.mxu0 %v7417
    %7498 = vmatprep.subr.bf16.mxu0 0
    %7499 = vmatpush1.bf16.msra.mxu0 0
    %7500 = vmatprep.subr.bf16.mxu0 0
    %7501 = vmatpush1.bf16.msra.mxu0 0
    %7502 = vmatprep.subr.bf16.mxu0 0
    %7503 = vmatpush1.bf16.msra.mxu0 0
    %7504 = vmatprep.subr.bf16.mxu0 0
    %7505 = vmatpush1.bf16.msra.mxu0 0
    %7506 = vmatprep.subr.bf16.mxu0 0
    %7507 = vmatpush1.bf16.msra.mxu0 0
    %7508 = vmatprep.subr.bf16.mxu0 0
    %7509 = vmatpush1.bf16.msra.mxu0 0
    %7510 = vmatprep.subr.bf16.mxu0 0
    %7511 = vmatpush1.bf16.msra.mxu0 0
    %7512 = vmatprep.subr.bf16.mxu0 0
    %7513 = vmatpush1.bf16.msra.mxu0 0
    %7514 = vmatprep.mubr.bf16.mxu0 0
    %7515 = vmatmul.mubr.bf16.gmra.mrb[0].mxu0 %v7242
    %v7516 = vpop.f32.mrb[0].mxu0
    %v7517 = vadd.f32 %v7477, %v7516
    %v7518 = vpop.f32.mrb[0].mxu0
    %v7519 = vpop.f32.mrb[0].mxu0
    %v7520 = vpop.f32.mrb[0].mxu0
    %7521 = vdwg.mxu0
    %v7522 = vtanh.pop %v7517
    %7523 = vst [vmem:[#allocation12] sm:$0xff] %v7522
    // Predicated region
    $region46: #{tpu_custom_call.1} parent=1 // pred_check
      _
    $region47: #{tpu_custom_call.1} parent=1 // pred_check_branch
      %7525 = sbr.rel (0) target = $region49
    $region48: #{tpu_custom_call.1} parent=1 // pred_region
      %s7527 = ssub.s32 128, 128
      %7528 = vsyncadd [#allocation5], %s7527
      %s7530 = sshll.u32 [#allocation12], 4
      %s7531 = int_to_ptr.vmem [resolvable:$true] %s7530
      %7533 = dma.vmem_to_hbm [thread:$0]  %s7531, 128, %s6, [#allocation5]
    $region49: #{tpu_custom_call.1} parent=1 // pred_fallthru
      _
    // Predicated region
    $region50: #{tpu_custom_call.1} parent=1 // pred_check
      _
    $region51: #{tpu_custom_call.1} parent=1 // pred_check_branch
      %7535 = sbr.rel (0) target = $region53
    $region52: #{tpu_custom_call.1} parent=1 // pred_region
      %7536 = dma.done [#allocation5], 128
    $region53: #{tpu_custom_call.1} parent=1 // pred_fallthru
      _
    %7537 = vsyncpa [#allocation4], 1
    %7538 = vsyncpa [#allocation7], 1
    %7539 = vsyncpa [#allocation10], 1
    %7540 = vsyncpa [#allocation5], 1

</llo_original>
